<compile_context>
chip_gen: v7x
topology: tpu7x:2x2x1
jax: 0.10.0
libtpu: 0.0.40
codegen_flags: <defaults>
</compile_context>

<pallas_src>
import functools

import numpy as np
import jax
import jax.numpy as jnp
from jax.experimental import pallas as pl
from jax.experimental.pallas import tpu as pltpu


_CPARAMS = pltpu.CompilerParams(
    dimension_semantics=("parallel",),
    vmem_limit_bytes=32 * 1024 * 1024,
)


# ----------------------------------------------------------------------------
# Small helpers
# ----------------------------------------------------------------------------

def _bspec(shape):
    """Broadcast (grid-invariant) BlockSpec: whole array every grid step."""
    nd = len(shape)
    return pl.BlockSpec(tuple(shape), lambda i, _n=nd: (0,) * _n)


def _batch_spec(shape):
    """Per-batch BlockSpec: (1, rest...) block indexed by the grid position."""
    rest = tuple(shape[1:])
    nrest = len(rest)
    return pl.BlockSpec((1,) + rest, lambda b, _n=nrest: (b,) + (0,) * _n)


def _ln(x, g, b, eps=1e-5):
    mu = jnp.mean(x, axis=-1, keepdims=True)
    xc = x - mu
    var = jnp.mean(xc * xc, axis=-1, keepdims=True)
    return xc * jax.lax.rsqrt(var + eps) * g + b


def _gelu_tanh(x):
    # TODO(synk): tanh approximation of GELU (reference nn.GELU() is exact erf).
    c = 0.7978845608028654  # sqrt(2/pi)
    return 0.5 * x * (1.0 + jnp.tanh(c * (x + 0.044715 * x * x * x)))


def _sigmoid(x):
    return 0.5 * (jnp.tanh(0.5 * x) + 1.0)


def _bf16(x):
    return x.astype(jnp.bfloat16)


def _wrap_mask(H, W):
    """wmask[:, 0] = 0 where w == W-1 (token invalid as a left-neighbour source,
    i.e. for dw = -1 taps); wmask[:, 1] = 0 where w == 0 (invalid as a
    right-neighbour source, i.e. for dw = +1 taps)."""
    N = H * W
    m = np.ones((N, 2), np.float32)
    for n in range(N):
        w = n % W
        if w == W - 1:
            m[n, 0] = 0.0
        if w == 0:
            m[n, 1] = 0.0
    return jnp.asarray(m)


# ----------------------------------------------------------------------------
# In-kernel conv helpers (all operate on zero-padded token buffers in VMEM)
# ----------------------------------------------------------------------------

def _fill_padded(act, wmask, bufs, PAD, N):
    """Write `act` [N, ch] into three zero-padded token buffers [N+2*PAD, ch]:
       bufC: unmasked (dw=0 taps); bufL: last image column zeroed (dw=-1 taps);
       bufR: first image column zeroed (dw=+1 taps).  Vertical out-of-image taps
       land in the zero pad rows; the L/R copies kill the row-wrap cases.  Pad
       rows are re-zeroed every call so there is no cross-grid-step scratch
       dependence (safe under megacore 'parallel' sharding)."""
    ch = act.shape[-1]
    zp = jnp.zeros((PAD, ch), jnp.float32)
    vals = (act, act * wmask[:, 0:1], act * wmask[:, 1:2])
    for buf, v in zip(bufs, vals):
        buf[0:PAD, :] = zp
        buf[PAD:PAD + N, :] = v
        buf[PAD + N:PAD + N + PAD, :] = zp


def _tap_slices(bufs, H, W, PAD, N):
    bufC, bufL, bufR = bufs
    taps = []
    for t in range(9):
        dh, dw = t // 3 - 1, t % 3 - 1
        s = dh * W + dw
        src = bufL if dw == -1 else (bufC if dw == 0 else bufR)
        taps.append(src[PAD + s:PAD + s + N, :])
    return taps


def _conv3x3(bufs, w9, b, H, W, PAD, N):
    """3x3 conv as ONE im2col matmul: [N, 9*Cin] x [9*Cin, Cout] (f32 acc)."""
    xcol = jnp.concatenate(_tap_slices(bufs, H, W, PAD, N), axis=-1)
    return jnp.dot(_bf16(xcol), w9, preferred_element_type=jnp.float32) + b


def _dwconv3x3(bufs, dww, dwb, H, W, PAD, N):
    """Depthwise 3x3 conv on the VPU: 9 shifted slices x per-channel weights."""
    taps = _tap_slices(bufs, H, W, PAD, N)
    acc = jnp.zeros_like(taps[0]) + dwb
    for t in range(9):
        acc = acc + taps[t] * dww[t, :]
    return acc


def _mixffn_tail(h, skip, wmask, bufs, dww, dwb, w2, b2, *, H, W, PAD, N):
    """MixFFN tail: depthwise 3x3 -> GELU -> fc2 -> + skip (all in VMEM)."""
    _fill_padded(h, wmask, bufs, PAD, N)
    g = _gelu_tanh(_dwconv3x3(bufs, dww, dwb, H, W, PAD, N))
    return skip + jnp.dot(_bf16(g), w2, preferred_element_type=jnp.float32) + b2


# ----------------------------------------------------------------------------
# Kernel A: global-semantic path + SE + LN6 + full MixFFN2 (+skip)   (grid = B)
# ----------------------------------------------------------------------------

def _gsp_mixffn2_kernel(x_ref, wmask_ref, tempc_ref,
                        wqkv_ref, wp_ref, bp_ref,
                        g5_ref, b5_ref, g4_ref, b4_ref,
                        sew1_ref, seb1_ref, sew2_ref, seb2_ref,
                        g6_ref, b6_ref,
                        w1_ref, b1_ref, dww_ref, dwb_ref, w2_ref, b2_ref,
                        mlp2_ref,
                        bufC, bufL, bufR, *, H, W, C, PAD):
    N = H * W
    x = x_ref[0]                                                # [N, C] f32
    seg = _ln(x, g5_ref[...], b5_ref[...])                      # norm5
    qkv = jnp.dot(_bf16(seg), wqkv_ref[...],
                  preferred_element_type=jnp.float32)           # fused q|k|v
    q, k, v = qkv[:, :C], qkv[:, C:2 * C], qkv[:, 2 * C:]
    # global_semantic_path in [N, C] layout (reductions over the token axis):
    # per-channel L2 normalize over tokens, *elementwise* q*k*temperature (this
    # matches the PyTorch source), softmax over tokens.  No qkv transposes.
    qn = q * jax.lax.rsqrt(jnp.maximum(jnp.sum(q * q, axis=0, keepdims=True), 1e-24))
    kn = k * jax.lax.rsqrt(jnp.maximum(jnp.sum(k * k, axis=0, keepdims=True), 1e-24))
    attn = qn * kn * tempc_ref[...]
    e = jnp.exp(attn - jnp.max(attn, axis=0, keepdims=True))
    attn = e * pl.reciprocal(jnp.sum(e, axis=0, keepdims=True), approx=True)
    ca = jnp.dot(_bf16(attn * v), wp_ref[...],
                 preferred_element_type=jnp.float32) + bp_ref[...]
    add3 = seg + ca
    n4 = _ln(add3, g4_ref[...], b4_ref[...])                    # norm4
    # SqueezeExcite on the VPU/XLU (rd ~= C/4 is far too small for the MXU).
    mu = jnp.mean(n4, axis=0, keepdims=True)                              # [1, C]
    hse = jnp.sum(mu * sew1_ref[...], axis=1, keepdims=True) + seb1_ref[...]  # [rd, 1]
    hse = _gelu_tanh(hse)
    gate = _sigmoid(jnp.sum(hse * sew2_ref[...], axis=0, keepdims=True)
                    + seb2_ref[...])                                      # [1, C]
    se = n4 * (1.0 + gate)                                      # norm4 + norm4*gate
    setok = _ln(se, g6_ref[...], b6_ref[...])                   # norm6
    h2 = jnp.dot(_bf16(setok), w1_ref[...],
                 preferred_element_type=jnp.float32) + b1_ref[...]        # mlp2.fc1
    out = _mixffn_tail(h2, setok, wmask_ref[...], (bufC, bufL, bufR),
                       dww_ref[...], dwb_ref[...], w2_ref[...], b2_ref[...],
                       H=H, W=W, PAD=PAD, N=N)
    mlp2_ref[0] = out.astype(mlp2_ref.dtype)


def gsp_mixffn2_block(x, wmask, tempc, p, H, W, PAD):
    B, N, C = x.shape
    hid = int(p["mlp2_fc1_w"].shape[1])
    Npad = N + 2 * PAD
    ins = [x, wmask, tempc,
           p["gsp_wqkv"], p["gsp_proj_w"], p["gsp_proj_b"],
           p["n5_g"], p["n5_b"], p["n4_g"], p["n4_b"],
           p["se_w1t"], p["se_b1"], p["se_w2t"], p["se_b2"],
           p["n6_g"], p["n6_b"],
           p["mlp2_fc1_w"], p["mlp2_fc1_b"], p["mlp2_dw_w"], p["mlp2_dw_b"],
           p["mlp2_fc2_w"], p["mlp2_fc2_b"]]
    in_specs = [_batch_spec(x.shape)] + [_bspec(a.shape) for a in ins[1:]]
    kern = functools.partial(_gsp_mixffn2_kernel, H=H, W=W, C=C, PAD=PAD)
    return pl.pallas_call(
        kern,
        out_shape=jax.ShapeDtypeStruct((B, N, C), jnp.bfloat16),
        grid_spec=pltpu.PrefetchScalarGridSpec(
            num_scalar_prefetch=0, grid=(B,),
            in_specs=in_specs,
            out_specs=_batch_spec((B, N, C)),
            scratch_shapes=[pltpu.VMEM((Npad, hid), jnp.float32)] * 3),
        compiler_params=_CPARAMS,
    )(*ins)


# ----------------------------------------------------------------------------
# Kernel B: LN1 + 3x3 conv + pixel-level path + LN2 + full MixFFN1   (grid = B)
# ----------------------------------------------------------------------------

def _plp_mixffn1_kernel(x_ref, wmask_ref, g1_ref, b1_ref,
                        c3w_ref, c3b_ref, kqvw_ref, kqvb_ref, temp_ref,
                        wr_ref, br_ref, g2_ref, b2_ref,
                        w1_ref, b1f_ref, dww_ref, dwb_ref, w2_ref, b2f_ref,
                        add2_ref,
                        cbufC, cbufL, cbufR, mbufC, mbufL, mbufR,
                        *, H, W, C, Ck, PAD):
    N = H * W
    x = x_ref[0]                                                # [N, C] f32
    wmask = wmask_ref[...]
    n1 = _ln(x, g1_ref[...], b1_ref[...])                       # norm1
    cbufs = (cbufC, cbufL, cbufR)
    _fill_padded(n1, wmask, cbufs, PAD, N)
    conv = jnp.maximum(
        _conv3x3(cbufs, c3w_ref[...], c3b_ref[...], H, W, PAD, N), 0.0)   # conv3+act3
    # pixel_level_path: fused k/q/v 1x1 projections + attention + reprojection.
    kqv = jnp.dot(_bf16(conv), kqvw_ref[...],
                  preferred_element_type=jnp.float32) + kqvb_ref[...]
    keys, qrys, vals = kqv[:, :Ck], kqv[:, Ck:2 * Ck], kqv[:, 2 * Ck:]
    # key: softmax over H (torch dim=2); in-VMEM reshape to [H, W, Ck].
    k3 = keys.reshape(H, W, Ck)
    ke = jnp.exp(k3 - jnp.max(k3, axis=0, keepdims=True))
    key = (ke * pl.reciprocal(jnp.sum(ke, axis=0, keepdims=True),
                              approx=True)).reshape(N, Ck)
    # query: softmax over channels (torch dim=1).
    qe = jnp.exp(qrys - jnp.max(qrys, axis=-1, keepdims=True))
    qry = qe * pl.reciprocal(jnp.sum(qe, axis=-1, keepdims=True), approx=True)
    att = key * vals * qry * temp_ref[...]
    plp = jnp.dot(_bf16(att), wr_ref[...],
                  preferred_element_type=jnp.float32) + br_ref[...]
    add1 = x + plp                                              # x + attn
    n2 = _ln(add1, g2_ref[...], b2_ref[...])                    # norm2
    h1 = jnp.dot(_bf16(n2), w1_ref[...],
                 preferred_element_type=jnp.float32) + b1f_ref[...]       # mlp1.fc1
    out = _mixffn_tail(h1, add1, wmask, (mbufC, mbufL, mbufR),
                       dww_ref[...], dwb_ref[...], w2_ref[...], b2f_ref[...],
                       H=H, W=W, PAD=PAD, N=N)
    add2_ref[0] = out.astype(add2_ref.dtype)


def plp_mixffn1_block(x, wmask, p, H, W, PAD):
    B, N, C = x.shape
    Cv = int(p["plp_r_w"].shape[0])
    Ck = (int(p["plp_kqv_w"].shape[1]) - Cv) // 2
    assert Ck == Cv, "pixel_level_path's key*value product requires key_dim == value_dim"
    hid = int(p["mlp1_fc1_w"].shape[1])
    Npad = N + 2 * PAD
    ins = [x, wmask, p["n1_g"], p["n1_b"],
           p["conv3_w"], p["conv3_b"], p["plp_kqv_w"], p["plp_kqv_b"], p["plp_temp"],
           p["plp_r_w"], p["plp_r_b"], p["n2_g"], p["n2_b"],
           p["mlp1_fc1_w"], p["mlp1_fc1_b"], p["mlp1_dw_w"], p["mlp1_dw_b"],
           p["mlp1_fc2_w"], p["mlp1_fc2_b"]]
    in_specs = [_batch_spec(x.shape)] + [_bspec(a.shape) for a in ins[1:]]
    kern = functools.partial(_plp_mixffn1_kernel, H=H, W=W, C=C, Ck=Ck, PAD=PAD)
    return pl.pallas_call(
        kern,
        out_shape=jax.ShapeDtypeStruct((B, N, C), jnp.bfloat16),
        grid_spec=pltpu.PrefetchScalarGridSpec(
            num_scalar_prefetch=0, grid=(B,),
            in_specs=in_specs,
            out_specs=_batch_spec((B, N, C)),
            scratch_shapes=[pltpu.VMEM((Npad, C), jnp.float32)] * 3
                         + [pltpu.VMEM((Npad, hid), jnp.float32)] * 3),
        compiler_params=_CPARAMS,
    )(*ins)


# ----------------------------------------------------------------------------
# Kernel C: merge (conv1+ReLU) + full residual tower + final add     (grid = B)
# ----------------------------------------------------------------------------

def _merge_res_kernel(a_ref, m_ref, wmask_ref,
                      w1a_ref, w1b_ref, cb1_ref,
                      s1_ref, t1_ref, c1w_ref, c1b_ref, s2_ref, t2_ref,
                      c3w_ref, c3b_ref, s3_ref, t3_ref, c2w_ref, c2b_ref,
                      mx_ref,
                      rbufC, rbufL, rbufR, *, H, W, PAD):
    N = H * W
    # conv1 on concat(add2, mlp2) expressed as a split-weight double matmul.
    merge = (jnp.dot(a_ref[0], w1a_ref[...], preferred_element_type=jnp.float32)
             + jnp.dot(m_ref[0], w1b_ref[...], preferred_element_type=jnp.float32)
             + cb1_ref[...])
    merge = jnp.maximum(merge, 0.0)                             # conv1 + act1
    # residual tower (BatchNorm folded to eval-mode per-channel affine).
    r = jnp.maximum(merge * s1_ref[...] + t1_ref[...], 0.0)     # BN1 + ReLU
    r = jnp.dot(_bf16(r), c1w_ref[...],
                preferred_element_type=jnp.float32) + c1b_ref[...]   # 1x1 C -> C/2
    r2 = jnp.maximum(r * s2_ref[...] + t2_ref[...], 0.0)        # BN2 + ReLU
    rbufs = (rbufC, rbufL, rbufR)
    _fill_padded(r2, wmask_ref[...], rbufs, PAD, N)
    c3 = _conv3x3(rbufs, c3w_ref[...], c3b_ref[...], H, W, PAD, N)   # 3x3 C/2 -> C/2
    r3 = jnp.maximum(c3 * s3_ref[...] + t3_ref[...], 0.0)       # BN3 + ReLU
    out = (jnp.dot(_bf16(r3), c2w_ref[...],
                   preferred_element_type=jnp.float32) + c2b_ref[...]
           + merge)                                             # 1x1 C/2 -> C + merge
    mx_ref[0] = out.astype(mx_ref.dtype)


def merge_res_block(add2, mlp2, wmask, p, H, W, PAD):
    B, N, C = add2.shape
    Ch = int(p["res_c1_w"].shape[1])
    Npad = N + 2 * PAD
    ins = [add2, mlp2, wmask,
           p["conv1_wa"], p["conv1_wb"], p["conv1_b"],
           p["rbn1_s"], p["rbn1_t"], p["res_c1_w"], p["res_c1_b"],
           p["rbn2_s"], p["rbn2_t"], p["res_c3_w"], p["res_c3_b"],
           p["rbn3_s"], p["rbn3_t"], p["res_c2_w"], p["res_c2_b"]]
    in_specs = ([_batch_spec(add2.shape), _batch_spec(mlp2.shape)]
                + [_bspec(a.shape) for a in ins[2:]])
    kern = functools.partial(_merge_res_kernel, H=H, W=W, PAD=PAD)
    return pl.pallas_call(
        kern,
        out_shape=jax.ShapeDtypeStruct((B, N, C), jnp.float32),
        grid_spec=pltpu.PrefetchScalarGridSpec(
            num_scalar_prefetch=0, grid=(B,),
            in_specs=in_specs,
            out_specs=_batch_spec((B, N, C)),
            scratch_shapes=[pltpu.VMEM((Npad, Ch), jnp.float32)] * 3),
        compiler_params=_CPARAMS,
    )(*ins)


# ----------------------------------------------------------------------------
# Forward pass (no glue copies: no jnp.pad, no reshape of activations in HBM)
# ----------------------------------------------------------------------------

def dpvt_forward(x, H, W, p):
    B, N, C = x.shape
    assert N == H * W
    PAD = ((W + 1 + 7) // 8) * 8            # >= W+1 shift range, multiple of 8
    wmask = _wrap_mask(H, W)                # static -> trace-time constant
    heads = int(p["gsp_temp"].shape[0])
    tempc = jnp.repeat(p["gsp_temp"], C // heads).reshape(1, C)   # per-channel temp

    # global-semantic branch: norm5 -> attn -> SE -> norm6 -> MixFFN2 (+skip)
    mlp2 = gsp_mixffn2_block(x, wmask, tempc, p, H, W, PAD)
    # pixel-level branch: norm1 -> conv3 -> attn -> +x -> norm2 -> MixFFN1 (+skip)
    add2 = plp_mixffn1_block(x, wmask, p, H, W, PAD)
    # merge (1x1 conv on concat) + residual tower
    return merge_res_block(add2, mlp2, wmask, p, H, W, PAD)


# ----------------------------------------------------------------------------
# Deterministic synthetic parameters (no checkpoint loading)
# ----------------------------------------------------------------------------

def init_params(key, C, key_dim, value_dim):
    heads = 8
    hid = 4 * C
    rd = int(round(C * 0.25))
    Ch = C // 2
    it = iter(jax.random.split(key, 80))
    nxt = lambda: next(it)
    Wf = lambda *s: (0.05 * jax.random.normal(nxt(), s)).astype(jnp.float32)
    Wb = lambda *s: (0.05 * jax.random.normal(nxt(), s)).astype(jnp.bfloat16)
    Bn = lambda *s: (0.02 * jax.random.normal(nxt(), s)).astype(jnp.float32)
    G = lambda n: (1.0 + 0.02 * jax.random.normal(nxt(), (1, n))).astype(jnp.float32)

    p = {}
    for nm in ("n1", "n2", "n4", "n5", "n6"):   # norm3 exists in the module but is unused
        p[f"{nm}_g"], p[f"{nm}_b"] = G(C), Bn(1, C)
    # global_semantic_path (qkv Linear fused into one [C, 3C] weight, qkv_bias=False)
    p["gsp_wqkv"] = Wb(C, 3 * C)
    p["gsp_proj_w"], p["gsp_proj_b"] = Wb(C, C), Bn(1, C)
    p["gsp_temp"] = jnp.ones((heads,), jnp.float32)
    # pixel_level_path (k/q/v 1x1 convs fused into one [C, key+key+value] weight)
    p["plp_kqv_w"] = Wb(C, 2 * key_dim + value_dim)
    p["plp_kqv_b"] = Bn(1, 2 * key_dim + value_dim)
    p["plp_temp"] = jnp.ones((1, value_dim), jnp.float32)
    p["plp_r_w"], p["plp_r_b"] = Wb(value_dim, C), Bn(1, C)
    # SqueezeExcite (weights stored transposed [rd, C] for the VPU formulation)
    p["se_w1t"], p["se_b1"] = Wf(rd, C), Bn(rd, 1)
    p["se_w2t"], p["se_b2"] = Wf(rd, C), Bn(1, C)
    # conv3 (3x3 C->C) stored as [9*C, C]; conv1 (1x1 2C->C) split into two [C, C]
    p["conv3_w"] = Wf(3, 3, C, C).reshape(9 * C, C).astype(jnp.bfloat16)
    p["conv3_b"] = Bn(1, C)
    p["conv1_wa"], p["conv1_wb"], p["conv1_b"] = Wb(C, C), Wb(C, C), Bn(1, C)
    # residual tower; BatchNorm folded to eval-mode per-channel affine
    eps = 1e-5
    for nm, ch in (("rbn1", C), ("rbn2", Ch), ("rbn3", Ch)):
        p[f"{nm}_s"] = G(ch) / jnp.sqrt(1.0 + eps)
        p[f"{nm}_t"] = Bn(1, ch)
    p["res_c1_w"], p["res_c1_b"] = Wb(C, Ch), Bn(1, Ch)
    p["res_c3_w"] = Wf(3, 3, Ch, Ch).reshape(9 * Ch, Ch).astype(jnp.bfloat16)
    p["res_c3_b"] = Bn(1, Ch)
    p["res_c2_w"], p["res_c2_b"] = Wb(Ch, C), Bn(1, C)
    # MixFFN x2 (fc1 -> depthwise 3x3 [9, hid] -> GELU -> fc2)
    for nm in ("mlp1", "mlp2"):
        p[f"{nm}_fc1_w"], p[f"{nm}_fc1_b"] = Wb(C, hid), Bn(1, hid)
        p[f"{nm}_dw_w"] = Wf(3, 3, hid).reshape(9, hid)
        p[f"{nm}_dw_b"] = Bn(1, hid)
        p[f"{nm}_fc2_w"], p[f"{nm}_fc2_b"] = Wb(hid, C), Bn(1, C)
    return p


# ----------------------------------------------------------------------------

if __name__ == "__main__":
    B, H, W, C = 2, 8, 8, 32            # in_dim=32 (divisible by 8 heads), N = H*W = 64
    key_dim = value_dim = C
    N = H * W

    root = jax.random.PRNGKey(0)
    kx, kp = jax.random.split(root)
    x = jax.random.normal(kx, (B, N, C), jnp.float32)
    params = init_params(kp, C, key_dim, value_dim)

    fwd = jax.jit(dpvt_forward, static_argnums=(1, 2))
    out = fwd(x, H, W, params)
    jax.block_until_ready(out)

    assert out.shape == (B, N, C), out.shape
    assert bool(jnp.all(jnp.isfinite(out)))
    print("KERNEL_OK")
</pallas_src>

<mosaic_0001>
module attributes {stable_mosaic.version = 11 : i64} {
  func.func @_plp_mixffn1_kernel(%arg0: i32, %arg1: memref<1x64x32xf32, #tpu.memory_space<vmem>>, %arg2: memref<64x2xf32, #tpu.memory_space<vmem>>, %arg3: memref<1x32xf32, #tpu.memory_space<vmem>>, %arg4: memref<1x32xf32, #tpu.memory_space<vmem>>, %arg5: memref<288x32xbf16, #tpu.memory_space<vmem>>, %arg6: memref<1x32xf32, #tpu.memory_space<vmem>>, %arg7: memref<32x96xbf16, #tpu.memory_space<vmem>>, %arg8: memref<1x96xf32, #tpu.memory_space<vmem>>, %arg9: memref<1x32xf32, #tpu.memory_space<vmem>>, %arg10: memref<32x32xbf16, #tpu.memory_space<vmem>>, %arg11: memref<1x32xf32, #tpu.memory_space<vmem>>, %arg12: memref<1x32xf32, #tpu.memory_space<vmem>>, %arg13: memref<1x32xf32, #tpu.memory_space<vmem>>, %arg14: memref<32x128xbf16, #tpu.memory_space<vmem>>, %arg15: memref<1x128xf32, #tpu.memory_space<vmem>>, %arg16: memref<9x128xf32, #tpu.memory_space<vmem>>, %arg17: memref<1x128xf32, #tpu.memory_space<vmem>>, %arg18: memref<128x32xbf16, #tpu.memory_space<vmem>>, %arg19: memref<1x32xf32, #tpu.memory_space<vmem>>, %arg20: memref<1x64x32xbf16, #tpu.memory_space<vmem>>, %arg21: memref<96x32xf32, #tpu.memory_space<vmem>>, %arg22: memref<96x32xf32, #tpu.memory_space<vmem>>, %arg23: memref<96x32xf32, #tpu.memory_space<vmem>>, %arg24: memref<96x128xf32, #tpu.memory_space<vmem>>, %arg25: memref<96x128xf32, #tpu.memory_space<vmem>>, %arg26: memref<96x128xf32, #tpu.memory_space<vmem>>) attributes {dimension_semantics = [#tpu.dimension_semantics<parallel>], iteration_bounds = array<i64: 2>, scalar_prefetch = 0 : i64, scratch_operands = 6 : i64, tpu.core_type = #tpu.core_type<tc>, window_params = [{transform_indices = @transform_0, window_bounds = array<i64: 1, 64, 32>}, {pipeline_mode = #tpu.pipeline_mode<synchronous>, transform_indices = @transform_1, window_bounds = array<i64: 64, 2>}, {pipeline_mode = #tpu.pipeline_mode<synchronous>, transform_indices = @transform_2, window_bounds = array<i64: 1, 32>}, {pipeline_mode = #tpu.pipeline_mode<synchronous>, transform_indices = @transform_3, window_bounds = array<i64: 1, 32>}, {pipeline_mode = #tpu.pipeline_mode<synchronous>, transform_indices = @transform_4, window_bounds = array<i64: 288, 32>}, {pipeline_mode = #tpu.pipeline_mode<synchronous>, transform_indices = @transform_5, window_bounds = array<i64: 1, 32>}, {pipeline_mode = #tpu.pipeline_mode<synchronous>, transform_indices = @transform_6, window_bounds = array<i64: 32, 96>}, {pipeline_mode = #tpu.pipeline_mode<synchronous>, transform_indices = @transform_7, window_bounds = array<i64: 1, 96>}, {pipeline_mode = #tpu.pipeline_mode<synchronous>, transform_indices = @transform_8, window_bounds = array<i64: 1, 32>}, {pipeline_mode = #tpu.pipeline_mode<synchronous>, transform_indices = @transform_9, window_bounds = array<i64: 32, 32>}, {pipeline_mode = #tpu.pipeline_mode<synchronous>, transform_indices = @transform_10, window_bounds = array<i64: 1, 32>}, {pipeline_mode = #tpu.pipeline_mode<synchronous>, transform_indices = @transform_11, window_bounds = array<i64: 1, 32>}, {pipeline_mode = #tpu.pipeline_mode<synchronous>, transform_indices = @transform_12, window_bounds = array<i64: 1, 32>}, {pipeline_mode = #tpu.pipeline_mode<synchronous>, transform_indices = @transform_13, window_bounds = array<i64: 32, 128>}, {pipeline_mode = #tpu.pipeline_mode<synchronous>, transform_indices = @transform_14, window_bounds = array<i64: 1, 128>}, {pipeline_mode = #tpu.pipeline_mode<synchronous>, transform_indices = @transform_15, window_bounds = array<i64: 9, 128>}, {pipeline_mode = #tpu.pipeline_mode<synchronous>, transform_indices = @transform_16, window_bounds = array<i64: 1, 128>}, {pipeline_mode = #tpu.pipeline_mode<synchronous>, transform_indices = @transform_17, window_bounds = array<i64: 128, 32>}, {pipeline_mode = #tpu.pipeline_mode<synchronous>, transform_indices = @transform_18, window_bounds = array<i64: 1, 32>}, {transform_indices = @transform_19, window_bounds = array<i64: 1, 64, 32>}]} {
    %c0 = arith.constant 0 : index
    %c0_0 = arith.constant 0 : index
    %c0_1 = arith.constant 0 : index
    %0 = vector.load %arg1[%c0, %c0_0, %c0_1] : memref<1x64x32xf32, #tpu.memory_space<vmem>>, vector<1x64x32xf32>
    %1 = vector.shape_cast %0 : vector<1x64x32xf32> to vector<64x32xf32>
    %c0_2 = arith.constant 0 : index
    %c0_3 = arith.constant 0 : index
    %2 = vector.load %arg2[%c0_2, %c0_3] : memref<64x2xf32, #tpu.memory_space<vmem>>, vector<64x2xf32>
    %c0_4 = arith.constant 0 : index
    %c0_5 = arith.constant 0 : index
    %3 = vector.load %arg3[%c0_4, %c0_5] : memref<1x32xf32, #tpu.memory_space<vmem>>, vector<1x32xf32>
    %c0_6 = arith.constant 0 : index
    %c0_7 = arith.constant 0 : index
    %4 = vector.load %arg4[%c0_6, %c0_7] : memref<1x32xf32, #tpu.memory_space<vmem>>, vector<1x32xf32>
    %cst = arith.constant dense<0.000000e+00> : vector<64xf32>
    %5 = vector.multi_reduction <add>, %1, %cst [1] : vector<64x32xf32> to vector<64xf32>
    %6 = vector.shape_cast %5 : vector<64xf32> to vector<64x1xf32>
    %cst_8 = arith.constant 3.200000e+01 : f32
    %7 = vector.broadcast %cst_8 : f32 to vector<64x1xf32>
    %8 = arith.divf %6, %7 : vector<64x1xf32>
    %9 = vector.broadcast %8 : vector<64x1xf32> to vector<64x32xf32>
    %10 = arith.subf %1, %9 : vector<64x32xf32>
    %11 = arith.mulf %10, %10 : vector<64x32xf32>
    %cst_9 = arith.constant dense<0.000000e+00> : vector<64xf32>
    %12 = vector.multi_reduction <add>, %11, %cst_9 [1] : vector<64x32xf32> to vector<64xf32>
    %13 = vector.shape_cast %12 : vector<64xf32> to vector<64x1xf32>
    %cst_10 = arith.constant 3.200000e+01 : f32
    %14 = vector.broadcast %cst_10 : f32 to vector<64x1xf32>
    %15 = arith.divf %13, %14 : vector<64x1xf32>
    %cst_11 = arith.constant 9.99999974E-6 : f32
    %16 = vector.broadcast %cst_11 : f32 to vector<64x1xf32>
    %17 = arith.addf %15, %16 : vector<64x1xf32>
    %18 = math.rsqrt %17 : vector<64x1xf32>
    %19 = vector.broadcast %18 : vector<64x1xf32> to vector<64x32xf32>
    %20 = arith.mulf %10, %19 : vector<64x32xf32>
    %21 = vector.broadcast %3 : vector<1x32xf32> to vector<64x32xf32>
    %22 = arith.mulf %20, %21 : vector<64x32xf32>
    %23 = vector.broadcast %4 : vector<1x32xf32> to vector<64x32xf32>
    %24 = arith.addf %22, %23 : vector<64x32xf32>
    %cst_12 = arith.constant 0.000000e+00 : f32
    %25 = vector.broadcast %cst_12 : f32 to vector<16x32xf32>
    %26 = vector.extract_strided_slice %2 {offsets = [0, 0], sizes = [64, 1], strides = [1, 1]} : vector<64x2xf32> to vector<64x1xf32>
    %27 = vector.broadcast %26 : vector<64x1xf32> to vector<64x32xf32>
    %28 = arith.mulf %24, %27 : vector<64x32xf32>
    %29 = vector.extract_strided_slice %2 {offsets = [0, 1], sizes = [64, 1], strides = [1, 1]} : vector<64x2xf32> to vector<64x1xf32>
    %30 = vector.broadcast %29 : vector<64x1xf32> to vector<64x32xf32>
    %31 = arith.mulf %24, %30 : vector<64x32xf32>
    %c0_13 = arith.constant 0 : index
    %c0_14 = arith.constant 0 : index
    %32 = vector.load %arg21[%c0_13, %c0_14] : memref<96x32xf32, #tpu.memory_space<vmem>>, vector<16x32xf32>
    tpu.vector_store %arg21[%c0_13, %c0_14], %25 {strides = array<i32>} : memref<96x32xf32, #tpu.memory_space<vmem>>, vector<16x32xf32>,
    %c16 = arith.constant 16 : index
    %c0_15 = arith.constant 0 : index
    %33 = vector.load %arg21[%c16, %c0_15] : memref<96x32xf32, #tpu.memory_space<vmem>>, vector<64x32xf32>
    tpu.vector_store %arg21[%c16, %c0_15], %24 {strides = array<i32>} : memref<96x32xf32, #tpu.memory_space<vmem>>, vector<64x32xf32>,
    %c80 = arith.constant 80 : index
    %c0_16 = arith.constant 0 : index
    %34 = vector.load %arg21[%c80, %c0_16] : memref<96x32xf32, #tpu.memory_space<vmem>>, vector<16x32xf32>
    tpu.vector_store %arg21[%c80, %c0_16], %25 {strides = array<i32>} : memref<96x32xf32, #tpu.memory_space<vmem>>, vector<16x32xf32>,
    %c0_17 = arith.constant 0 : index
    %c0_18 = arith.constant 0 : index
    %35 = vector.load %arg22[%c0_17, %c0_18] : memref<96x32xf32, #tpu.memory_space<vmem>>, vector<16x32xf32>
    tpu.vector_store %arg22[%c0_17, %c0_18], %25 {strides = array<i32>} : memref<96x32xf32, #tpu.memory_space<vmem>>, vector<16x32xf32>,
    %c16_19 = arith.constant 16 : index
    %c0_20 = arith.constant 0 : index
    %36 = vector.load %arg22[%c16_19, %c0_20] : memref<96x32xf32, #tpu.memory_space<vmem>>, vector<64x32xf32>
    tpu.vector_store %arg22[%c16_19, %c0_20], %28 {strides = array<i32>} : memref<96x32xf32, #tpu.memory_space<vmem>>, vector<64x32xf32>,
    %c80_21 = arith.constant 80 : index
    %c0_22 = arith.constant 0 : index
    %37 = vector.load %arg22[%c80_21, %c0_22] : memref<96x32xf32, #tpu.memory_space<vmem>>, vector<16x32xf32>
    tpu.vector_store %arg22[%c80_21, %c0_22], %25 {strides = array<i32>} : memref<96x32xf32, #tpu.memory_space<vmem>>, vector<16x32xf32>,
    %c0_23 = arith.constant 0 : index
    %c0_24 = arith.constant 0 : index
    %38 = vector.load %arg23[%c0_23, %c0_24] : memref<96x32xf32, #tpu.memory_space<vmem>>, vector<16x32xf32>
    tpu.vector_store %arg23[%c0_23, %c0_24], %25 {strides = array<i32>} : memref<96x32xf32, #tpu.memory_space<vmem>>, vector<16x32xf32>,
    %c16_25 = arith.constant 16 : index
    %c0_26 = arith.constant 0 : index
    %39 = vector.load %arg23[%c16_25, %c0_26] : memref<96x32xf32, #tpu.memory_space<vmem>>, vector<64x32xf32>
    tpu.vector_store %arg23[%c16_25, %c0_26], %31 {strides = array<i32>} : memref<96x32xf32, #tpu.memory_space<vmem>>, vector<64x32xf32>,
    %c80_27 = arith.constant 80 : index
    %c0_28 = arith.constant 0 : index
    %40 = vector.load %arg23[%c80_27, %c0_28] : memref<96x32xf32, #tpu.memory_space<vmem>>, vector<16x32xf32>
    tpu.vector_store %arg23[%c80_27, %c0_28], %25 {strides = array<i32>} : memref<96x32xf32, #tpu.memory_space<vmem>>, vector<16x32xf32>,
    %c0_29 = arith.constant 0 : index
    %c0_30 = arith.constant 0 : index
    %41 = vector.load %arg5[%c0_29, %c0_30] : memref<288x32xbf16, #tpu.memory_space<vmem>>, vector<288x32xbf16>
    %c0_31 = arith.constant 0 : index
    %c0_32 = arith.constant 0 : index
    %42 = vector.load %arg6[%c0_31, %c0_32] : memref<1x32xf32, #tpu.memory_space<vmem>>, vector<1x32xf32>
    %c7 = arith.constant 7 : index
    %c0_33 = arith.constant 0 : index
    %43 = vector.load %arg22[%c7, %c0_33] : memref<96x32xf32, #tpu.memory_space<vmem>>, vector<64x32xf32>
    %c8 = arith.constant 8 : index
    %c0_34 = arith.constant 0 : index
    %44 = vector.load %arg21[%c8, %c0_34] : memref<96x32xf32, #tpu.memory_space<vmem>>, vector<64x32xf32>
    %c9 = arith.constant 9 : index
    %c0_35 = arith.constant 0 : index
    %45 = vector.load %arg23[%c9, %c0_35] : memref<96x32xf32, #tpu.memory_space<vmem>>, vector<64x32xf32>
    %c15 = arith.constant 15 : index
    %c0_36 = arith.constant 0 : index
    %46 = vector.load %arg22[%c15, %c0_36] : memref<96x32xf32, #tpu.memory_space<vmem>>, vector<64x32xf32>
    %c16_37 = arith.constant 16 : index
    %c0_38 = arith.constant 0 : index
    %47 = vector.load %arg21[%c16_37, %c0_38] : memref<96x32xf32, #tpu.memory_space<vmem>>, vector<64x32xf32>
    %c17 = arith.constant 17 : index
    %c0_39 = arith.constant 0 : index
    %48 = vector.load %arg23[%c17, %c0_39] : memref<96x32xf32, #tpu.memory_space<vmem>>, vector<64x32xf32>
    %c23 = arith.constant 23 : index
    %c0_40 = arith.constant 0 : index
    %49 = vector.load %arg22[%c23, %c0_40] : memref<96x32xf32, #tpu.memory_space<vmem>>, vector<64x32xf32>
    %c24 = arith.constant 24 : index
    %c0_41 = arith.constant 0 : index
    %50 = vector.load %arg21[%c24, %c0_41] : memref<96x32xf32, #tpu.memory_space<vmem>>, vector<64x32xf32>
    %c25 = arith.constant 25 : index
    %c0_42 = arith.constant 0 : index
    %51 = vector.load %arg23[%c25, %c0_42] : memref<96x32xf32, #tpu.memory_space<vmem>>, vector<64x32xf32>
    %52 = tpu.concatenate %43, %44, %45, %46, %47, %48, %49, %50, %51 in 1 : vector<64x32xf32>, vector<64x32xf32>, vector<64x32xf32>, vector<64x32xf32>, vector<64x32xf32>, vector<64x32xf32>, vector<64x32xf32>, vector<64x32xf32>, vector<64x32xf32> -> vector<64x288xf32>
    %53 = arith.truncf %52 : vector<64x288xf32> to vector<64x288xbf16>
    %cst_43 = arith.constant dense<0.000000e+00> : vector<64x32xf32>
    %54 = tpu.matmul %53, %41, %cst_43 {dimension_numbers = #tpu.dot_dimension_numbers<[1], [0], [0], [1], [0, 0, 1, 1], [], []>} : vector<64x288xbf16>, vector<288x32xbf16>, vector<64x32xf32> -> vector<64x32xf32>
    %55 = vector.broadcast %42 : vector<1x32xf32> to vector<64x32xf32>
    %56 = arith.addf %54, %55 : vector<64x32xf32>
    %cst_44 = arith.constant 0.000000e+00 : f32
    %57 = vector.broadcast %cst_44 : f32 to vector<64x32xf32>
    %58 = arith.maximumf %56, %57 : vector<64x32xf32>
    %59 = arith.truncf %58 : vector<64x32xf32> to vector<64x32xbf16>
    %c0_45 = arith.constant 0 : index
    %c0_46 = arith.constant 0 : index
    %60 = vector.load %arg7[%c0_45, %c0_46] : memref<32x96xbf16, #tpu.memory_space<vmem>>, vector<32x96xbf16>
    %cst_47 = arith.constant dense<0.000000e+00> : vector<64x96xf32>
    %61 = tpu.matmul %59, %60, %cst_47 {dimension_numbers = #tpu.dot_dimension_numbers<[1], [0], [0], [1], [0, 0, 1, 1], [], []>} : vector<64x32xbf16>, vector<32x96xbf16>, vector<64x96xf32> -> vector<64x96xf32>
    %c0_48 = arith.constant 0 : index
    %c0_49 = arith.constant 0 : index
    %62 = vector.load %arg8[%c0_48, %c0_49] : memref<1x96xf32, #tpu.memory_space<vmem>>, vector<1x96xf32>
    %63 = vector.broadcast %62 : vector<1x96xf32> to vector<64x96xf32>
    %64 = arith.addf %61, %63 : vector<64x96xf32>
    %65 = vector.extract_strided_slice %64 {offsets = [0, 0], sizes = [64, 32], strides = [1, 1]} : vector<64x96xf32> to vector<64x32xf32>
    %66 = vector.extract_strided_slice %64 {offsets = [0, 32], sizes = [64, 32], strides = [1, 1]} : vector<64x96xf32> to vector<64x32xf32>
    %67 = vector.extract_strided_slice %64 {offsets = [0, 64], sizes = [64, 32], strides = [1, 1]} : vector<64x96xf32> to vector<64x32xf32>
    %68 = vector.shape_cast %65 : vector<64x32xf32> to vector<8x8x32xf32>
    %cst_50 = arith.constant dense<0xFF800000> : vector<8x32xf32>
    %69 = vector.multi_reduction <maximumf>, %68, %cst_50 [0] : vector<8x8x32xf32> to vector<8x32xf32>
    %70 = vector.shape_cast %69 : vector<8x32xf32> to vector<1x8x32xf32>
    %71 = vector.broadcast %70 : vector<1x8x32xf32> to vector<8x8x32xf32>
    %72 = arith.subf %68, %71 : vector<8x8x32xf32>
    %73 = math.exp %72 : vector<8x8x32xf32>
    %cst_51 = arith.constant dense<0.000000e+00> : vector<8x32xf32>
    %74 = vector.multi_reduction <add>, %73, %cst_51 [0] : vector<8x8x32xf32> to vector<8x32xf32>
    %75 = vector.shape_cast %74 : vector<8x32xf32> to vector<1x8x32xf32>
    %76 = tpu.reciprocal %75 {approx = true} : vector<1x8x32xf32> -> vector<1x8x32xf32>
    %77 = vector.broadcast %76 : vector<1x8x32xf32> to vector<8x8x32xf32>
    %78 = arith.mulf %73, %77 : vector<8x8x32xf32>
    %79 = vector.shape_cast %78 : vector<8x8x32xf32> to vector<64x32xf32>
    %cst_52 = arith.constant dense<0xFF800000> : vector<64xf32>
    %80 = vector.multi_reduction <maximumf>, %66, %cst_52 [1] : vector<64x32xf32> to vector<64xf32>
    %81 = vector.shape_cast %80 : vector<64xf32> to vector<64x1xf32>
    %82 = vector.broadcast %81 : vector<64x1xf32> to vector<64x32xf32>
    %83 = arith.subf %66, %82 : vector<64x32xf32>
    %84 = math.exp %83 : vector<64x32xf32>
    %cst_53 = arith.constant dense<0.000000e+00> : vector<64xf32>
    %85 = vector.multi_reduction <add>, %84, %cst_53 [1] : vector<64x32xf32> to vector<64xf32>
    %86 = vector.shape_cast %85 : vector<64xf32> to vector<64x1xf32>
    %87 = tpu.reciprocal %86 {approx = true} : vector<64x1xf32> -> vector<64x1xf32>
    %88 = vector.broadcast %87 : vector<64x1xf32> to vector<64x32xf32>
    %89 = arith.mulf %84, %88 : vector<64x32xf32>
    %90 = arith.mulf %79, %67 : vector<64x32xf32>
    %91 = arith.mulf %90, %89 : vector<64x32xf32>
    %c0_54 = arith.constant 0 : index
    %c0_55 = arith.constant 0 : index
    %92 = vector.load %arg9[%c0_54, %c0_55] : memref<1x32xf32, #tpu.memory_space<vmem>>, vector<1x32xf32>
    %93 = vector.broadcast %92 : vector<1x32xf32> to vector<64x32xf32>
    %94 = arith.mulf %91, %93 : vector<64x32xf32>
    %95 = arith.truncf %94 : vector<64x32xf32> to vector<64x32xbf16>
    %c0_56 = arith.constant 0 : index
    %c0_57 = arith.constant 0 : index
    %96 = vector.load %arg10[%c0_56, %c0_57] : memref<32x32xbf16, #tpu.memory_space<vmem>>, vector<32x32xbf16>
    %cst_58 = arith.constant dense<0.000000e+00> : vector<64x32xf32>
    %97 = tpu.matmul %95, %96, %cst_58 {dimension_numbers = #tpu.dot_dimension_numbers<[1], [0], [0], [1], [0, 0, 1, 1], [], []>} : vector<64x32xbf16>, vector<32x32xbf16>, vector<64x32xf32> -> vector<64x32xf32>
    %c0_59 = arith.constant 0 : index
    %c0_60 = arith.constant 0 : index
    %98 = vector.load %arg11[%c0_59, %c0_60] : memref<1x32xf32, #tpu.memory_space<vmem>>, vector<1x32xf32>
    %99 = vector.broadcast %98 : vector<1x32xf32> to vector<64x32xf32>
    %100 = arith.addf %97, %99 : vector<64x32xf32>
    %101 = arith.addf %1, %100 : vector<64x32xf32>
    %c0_61 = arith.constant 0 : index
    %c0_62 = arith.constant 0 : index
    %102 = vector.load %arg12[%c0_61, %c0_62] : memref<1x32xf32, #tpu.memory_space<vmem>>, vector<1x32xf32>
    %c0_63 = arith.constant 0 : index
    %c0_64 = arith.constant 0 : index
    %103 = vector.load %arg13[%c0_63, %c0_64] : memref<1x32xf32, #tpu.memory_space<vmem>>, vector<1x32xf32>
    %cst_65 = arith.constant dense<0.000000e+00> : vector<64xf32>
    %104 = vector.multi_reduction <add>, %101, %cst_65 [1] : vector<64x32xf32> to vector<64xf32>
    %105 = vector.shape_cast %104 : vector<64xf32> to vector<64x1xf32>
    %cst_66 = arith.constant 3.200000e+01 : f32
    %106 = vector.broadcast %cst_66 : f32 to vector<64x1xf32>
    %107 = arith.divf %105, %106 : vector<64x1xf32>
    %108 = vector.broadcast %107 : vector<64x1xf32> to vector<64x32xf32>
    %109 = arith.subf %101, %108 : vector<64x32xf32>
    %110 = arith.mulf %109, %109 : vector<64x32xf32>
    %cst_67 = arith.constant dense<0.000000e+00> : vector<64xf32>
    %111 = vector.multi_reduction <add>, %110, %cst_67 [1] : vector<64x32xf32> to vector<64xf32>
    %112 = vector.shape_cast %111 : vector<64xf32> to vector<64x1xf32>
    %cst_68 = arith.constant 3.200000e+01 : f32
    %113 = vector.broadcast %cst_68 : f32 to vector<64x1xf32>
    %114 = arith.divf %112, %113 : vector<64x1xf32>
    %cst_69 = arith.constant 9.99999974E-6 : f32
    %115 = vector.broadcast %cst_69 : f32 to vector<64x1xf32>
    %116 = arith.addf %114, %115 : vector<64x1xf32>
    %117 = math.rsqrt %116 : vector<64x1xf32>
    %118 = vector.broadcast %117 : vector<64x1xf32> to vector<64x32xf32>
    %119 = arith.mulf %109, %118 : vector<64x32xf32>
    %120 = vector.broadcast %102 : vector<1x32xf32> to vector<64x32xf32>
    %121 = arith.mulf %119, %120 : vector<64x32xf32>
    %122 = vector.broadcast %103 : vector<1x32xf32> to vector<64x32xf32>
    %123 = arith.addf %121, %122 : vector<64x32xf32>
    %124 = arith.truncf %123 : vector<64x32xf32> to vector<64x32xbf16>
    %c0_70 = arith.constant 0 : index
    %c0_71 = arith.constant 0 : index
    %125 = vector.load %arg14[%c0_70, %c0_71] : memref<32x128xbf16, #tpu.memory_space<vmem>>, vector<32x128xbf16>
    %cst_72 = arith.constant dense<0.000000e+00> : vector<64x128xf32>
    %126 = tpu.matmul %124, %125, %cst_72 {dimension_numbers = #tpu.dot_dimension_numbers<[1], [0], [0], [1], [0, 0, 1, 1], [], []>} : vector<64x32xbf16>, vector<32x128xbf16>, vector<64x128xf32> -> vector<64x128xf32>
    %c0_73 = arith.constant 0 : index
    %c0_74 = arith.constant 0 : index
    %127 = vector.load %arg15[%c0_73, %c0_74] : memref<1x128xf32, #tpu.memory_space<vmem>>, vector<1x128xf32>
    %128 = vector.broadcast %127 : vector<1x128xf32> to vector<64x128xf32>
    %129 = arith.addf %126, %128 : vector<64x128xf32>
    %c0_75 = arith.constant 0 : index
    %c0_76 = arith.constant 0 : index
    %130 = vector.load %arg16[%c0_75, %c0_76] : memref<9x128xf32, #tpu.memory_space<vmem>>, vector<9x128xf32>
    %c0_77 = arith.constant 0 : index
    %c0_78 = arith.constant 0 : index
    %131 = vector.load %arg17[%c0_77, %c0_78] : memref<1x128xf32, #tpu.memory_space<vmem>>, vector<1x128xf32>
    %c0_79 = arith.constant 0 : index
    %c0_80 = arith.constant 0 : index
    %132 = vector.load %arg18[%c0_79, %c0_80] : memref<128x32xbf16, #tpu.memory_space<vmem>>, vector<128x32xbf16>
    %c0_81 = arith.constant 0 : index
    %c0_82 = arith.constant 0 : index
    %133 = vector.load %arg19[%c0_81, %c0_82] : memref<1x32xf32, #tpu.memory_space<vmem>>, vector<1x32xf32>
    %cst_83 = arith.constant 0.000000e+00 : f32
    %134 = vector.broadcast %cst_83 : f32 to vector<16x128xf32>
    %135 = vector.extract_strided_slice %2 {offsets = [0, 0], sizes = [64, 1], strides = [1, 1]} : vector<64x2xf32> to vector<64x1xf32>
    %136 = vector.broadcast %135 : vector<64x1xf32> to vector<64x128xf32>
    %137 = arith.mulf %129, %136 : vector<64x128xf32>
    %138 = vector.extract_strided_slice %2 {offsets = [0, 1], sizes = [64, 1], strides = [1, 1]} : vector<64x2xf32> to vector<64x1xf32>
    %139 = vector.broadcast %138 : vector<64x1xf32> to vector<64x128xf32>
    %140 = arith.mulf %129, %139 : vector<64x128xf32>
    %c0_84 = arith.constant 0 : index
    %c0_85 = arith.constant 0 : index
    %141 = vector.load %arg24[%c0_84, %c0_85] : memref<96x128xf32, #tpu.memory_space<vmem>>, vector<16x128xf32>
    tpu.vector_store %arg24[%c0_84, %c0_85], %134 {strides = array<i32>} : memref<96x128xf32, #tpu.memory_space<vmem>>, vector<16x128xf32>,
    %c16_86 = arith.constant 16 : index
    %c0_87 = arith.constant 0 : index
    %142 = vector.load %arg24[%c16_86, %c0_87] : memref<96x128xf32, #tpu.memory_space<vmem>>, vector<64x128xf32>
    tpu.vector_store %arg24[%c16_86, %c0_87], %129 {strides = array<i32>} : memref<96x128xf32, #tpu.memory_space<vmem>>, vector<64x128xf32>,
    %c80_88 = arith.constant 80 : index
    %c0_89 = arith.constant 0 : index
    %143 = vector.load %arg24[%c80_88, %c0_89] : memref<96x128xf32, #tpu.memory_space<vmem>>, vector<16x128xf32>
    tpu.vector_store %arg24[%c80_88, %c0_89], %134 {strides = array<i32>} : memref<96x128xf32, #tpu.memory_space<vmem>>, vector<16x128xf32>,
    %c0_90 = arith.constant 0 : index
    %c0_91 = arith.constant 0 : index
    %144 = vector.load %arg25[%c0_90, %c0_91] : memref<96x128xf32, #tpu.memory_space<vmem>>, vector<16x128xf32>
    tpu.vector_store %arg25[%c0_90, %c0_91], %134 {strides = array<i32>} : memref<96x128xf32, #tpu.memory_space<vmem>>, vector<16x128xf32>,
    %c16_92 = arith.constant 16 : index
    %c0_93 = arith.constant 0 : index
    %145 = vector.load %arg25[%c16_92, %c0_93] : memref<96x128xf32, #tpu.memory_space<vmem>>, vector<64x128xf32>
    tpu.vector_store %arg25[%c16_92, %c0_93], %137 {strides = array<i32>} : memref<96x128xf32, #tpu.memory_space<vmem>>, vector<64x128xf32>,
    %c80_94 = arith.constant 80 : index
    %c0_95 = arith.constant 0 : index
    %146 = vector.load %arg25[%c80_94, %c0_95] : memref<96x128xf32, #tpu.memory_space<vmem>>, vector<16x128xf32>
    tpu.vector_store %arg25[%c80_94, %c0_95], %134 {strides = array<i32>} : memref<96x128xf32, #tpu.memory_space<vmem>>, vector<16x128xf32>,
    %c0_96 = arith.constant 0 : index
    %c0_97 = arith.constant 0 : index
    %147 = vector.load %arg26[%c0_96, %c0_97] : memref<96x128xf32, #tpu.memory_space<vmem>>, vector<16x128xf32>
    tpu.vector_store %arg26[%c0_96, %c0_97], %134 {strides = array<i32>} : memref<96x128xf32, #tpu.memory_space<vmem>>, vector<16x128xf32>,
    %c16_98 = arith.constant 16 : index
    %c0_99 = arith.constant 0 : index
    %148 = vector.load %arg26[%c16_98, %c0_99] : memref<96x128xf32, #tpu.memory_space<vmem>>, vector<64x128xf32>
    tpu.vector_store %arg26[%c16_98, %c0_99], %140 {strides = array<i32>} : memref<96x128xf32, #tpu.memory_space<vmem>>, vector<64x128xf32>,
    %c80_100 = arith.constant 80 : index
    %c0_101 = arith.constant 0 : index
    %149 = vector.load %arg26[%c80_100, %c0_101] : memref<96x128xf32, #tpu.memory_space<vmem>>, vector<16x128xf32>
    tpu.vector_store %arg26[%c80_100, %c0_101], %134 {strides = array<i32>} : memref<96x128xf32, #tpu.memory_space<vmem>>, vector<16x128xf32>,
    %c7_102 = arith.constant 7 : index
    %c0_103 = arith.constant 0 : index
    %150 = vector.load %arg25[%c7_102, %c0_103] : memref<96x128xf32, #tpu.memory_space<vmem>>, vector<64x128xf32>
    %c8_104 = arith.constant 8 : index
    %c0_105 = arith.constant 0 : index
    %151 = vector.load %arg24[%c8_104, %c0_105] : memref<96x128xf32, #tpu.memory_space<vmem>>, vector<64x128xf32>
    %c9_106 = arith.constant 9 : index
    %c0_107 = arith.constant 0 : index
    %152 = vector.load %arg26[%c9_106, %c0_107] : memref<96x128xf32, #tpu.memory_space<vmem>>, vector<64x128xf32>
    %c15_108 = arith.constant 15 : index
    %c0_109 = arith.constant 0 : index
    %153 = vector.load %arg25[%c15_108, %c0_109] : memref<96x128xf32, #tpu.memory_space<vmem>>, vector<64x128xf32>
    %c16_110 = arith.constant 16 : index
    %c0_111 = arith.constant 0 : index
    %154 = vector.load %arg24[%c16_110, %c0_111] : memref<96x128xf32, #tpu.memory_space<vmem>>, vector<64x128xf32>
    %c17_112 = arith.constant 17 : index
    %c0_113 = arith.constant 0 : index
    %155 = vector.load %arg26[%c17_112, %c0_113] : memref<96x128xf32, #tpu.memory_space<vmem>>, vector<64x128xf32>
    %c23_114 = arith.constant 23 : index
    %c0_115 = arith.constant 0 : index
    %156 = vector.load %arg25[%c23_114, %c0_115] : memref<96x128xf32, #tpu.memory_space<vmem>>, vector<64x128xf32>
    %c24_116 = arith.constant 24 : index
    %c0_117 = arith.constant 0 : index
    %157 = vector.load %arg24[%c24_116, %c0_117] : memref<96x128xf32, #tpu.memory_space<vmem>>, vector<64x128xf32>
    %c25_118 = arith.constant 25 : index
    %c0_119 = arith.constant 0 : index
    %158 = vector.load %arg26[%c25_118, %c0_119] : memref<96x128xf32, #tpu.memory_space<vmem>>, vector<64x128xf32>
    %cst_120 = arith.constant 0.000000e+00 : f32
    %159 = vector.broadcast %cst_120 : f32 to vector<64x128xf32>
    %160 = vector.broadcast %131 : vector<1x128xf32> to vector<64x128xf32>
    %161 = arith.addf %159, %160 : vector<64x128xf32>
    %162 = vector.extract_strided_slice %130 {offsets = [0, 0], sizes = [1, 128], strides = [1, 1]} : vector<9x128xf32> to vector<1x128xf32>
    %163 = vector.shape_cast %162 : vector<1x128xf32> to vector<128xf32>
    %164 = vector.shape_cast %163 : vector<128xf32> to vector<1x128xf32>
    %165 = vector.broadcast %164 : vector<1x128xf32> to vector<64x128xf32>
    %166 = arith.mulf %150, %165 : vector<64x128xf32>
    %167 = arith.addf %161, %166 : vector<64x128xf32>
    %168 = vector.extract_strided_slice %130 {offsets = [1, 0], sizes = [1, 128], strides = [1, 1]} : vector<9x128xf32> to vector<1x128xf32>
    %169 = vector.shape_cast %168 : vector<1x128xf32> to vector<128xf32>
    %170 = vector.shape_cast %169 : vector<128xf32> to vector<1x128xf32>
    %171 = vector.broadcast %170 : vector<1x128xf32> to vector<64x128xf32>
    %172 = arith.mulf %151, %171 : vector<64x128xf32>
    %173 = arith.addf %167, %172 : vector<64x128xf32>
    %174 = vector.extract_strided_slice %130 {offsets = [2, 0], sizes = [1, 128], strides = [1, 1]} : vector<9x128xf32> to vector<1x128xf32>
    %175 = vector.shape_cast %174 : vector<1x128xf32> to vector<128xf32>
    %176 = vector.shape_cast %175 : vector<128xf32> to vector<1x128xf32>
    %177 = vector.broadcast %176 : vector<1x128xf32> to vector<64x128xf32>
    %178 = arith.mulf %152, %177 : vector<64x128xf32>
    %179 = arith.addf %173, %178 : vector<64x128xf32>
    %180 = vector.extract_strided_slice %130 {offsets = [3, 0], sizes = [1, 128], strides = [1, 1]} : vector<9x128xf32> to vector<1x128xf32>
    %181 = vector.shape_cast %180 : vector<1x128xf32> to vector<128xf32>
    %182 = vector.shape_cast %181 : vector<128xf32> to vector<1x128xf32>
    %183 = vector.broadcast %182 : vector<1x128xf32> to vector<64x128xf32>
    %184 = arith.mulf %153, %183 : vector<64x128xf32>
    %185 = arith.addf %179, %184 : vector<64x128xf32>
    %186 = vector.extract_strided_slice %130 {offsets = [4, 0], sizes = [1, 128], strides = [1, 1]} : vector<9x128xf32> to vector<1x128xf32>
    %187 = vector.shape_cast %186 : vector<1x128xf32> to vector<128xf32>
    %188 = vector.shape_cast %187 : vector<128xf32> to vector<1x128xf32>
    %189 = vector.broadcast %188 : vector<1x128xf32> to vector<64x128xf32>
    %190 = arith.mulf %154, %189 : vector<64x128xf32>
    %191 = arith.addf %185, %190 : vector<64x128xf32>
    %192 = vector.extract_strided_slice %130 {offsets = [5, 0], sizes = [1, 128], strides = [1, 1]} : vector<9x128xf32> to vector<1x128xf32>
    %193 = vector.shape_cast %192 : vector<1x128xf32> to vector<128xf32>
    %194 = vector.shape_cast %193 : vector<128xf32> to vector<1x128xf32>
    %195 = vector.broadcast %194 : vector<1x128xf32> to vector<64x128xf32>
    %196 = arith.mulf %155, %195 : vector<64x128xf32>
    %197 = arith.addf %191, %196 : vector<64x128xf32>
    %198 = vector.extract_strided_slice %130 {offsets = [6, 0], sizes = [1, 128], strides = [1, 1]} : vector<9x128xf32> to vector<1x128xf32>
    %199 = vector.shape_cast %198 : vector<1x128xf32> to vector<128xf32>
    %200 = vector.shape_cast %199 : vector<128xf32> to vector<1x128xf32>
    %201 = vector.broadcast %200 : vector<1x128xf32> to vector<64x128xf32>
    %202 = arith.mulf %156, %201 : vector<64x128xf32>
    %203 = arith.addf %197, %202 : vector<64x128xf32>
    %204 = vector.extract_strided_slice %130 {offsets = [7, 0], sizes = [1, 128], strides = [1, 1]} : vector<9x128xf32> to vector<1x128xf32>
    %205 = vector.shape_cast %204 : vector<1x128xf32> to vector<128xf32>
    %206 = vector.shape_cast %205 : vector<128xf32> to vector<1x128xf32>
    %207 = vector.broadcast %206 : vector<1x128xf32> to vector<64x128xf32>
    %208 = arith.mulf %157, %207 : vector<64x128xf32>
    %209 = arith.addf %203, %208 : vector<64x128xf32>
    %210 = vector.extract_strided_slice %130 {offsets = [8, 0], sizes = [1, 128], strides = [1, 1]} : vector<9x128xf32> to vector<1x128xf32>
    %211 = vector.shape_cast %210 : vector<1x128xf32> to vector<128xf32>
    %212 = vector.shape_cast %211 : vector<128xf32> to vector<1x128xf32>
    %213 = vector.broadcast %212 : vector<1x128xf32> to vector<64x128xf32>
    %214 = arith.mulf %158, %213 : vector<64x128xf32>
    %215 = arith.addf %209, %214 : vector<64x128xf32>
    %cst_121 = arith.constant 5.000000e-01 : f32
    %216 = vector.broadcast %cst_121 : f32 to vector<64x128xf32>
    %217 = arith.mulf %216, %215 : vector<64x128xf32>
    %cst_122 = arith.constant 4.471500e-02 : f32
    %218 = vector.broadcast %cst_122 : f32 to vector<64x128xf32>
    %219 = arith.mulf %218, %215 : vector<64x128xf32>
    %220 = arith.mulf %219, %215 : vector<64x128xf32>
    %221 = arith.mulf %220, %215 : vector<64x128xf32>
    %222 = arith.addf %215, %221 : vector<64x128xf32>
    %cst_123 = arith.constant 0.797884583 : f32
    %223 = vector.broadcast %cst_123 : f32 to vector<64x128xf32>
    %224 = arith.mulf %223, %222 : vector<64x128xf32>
    %225 = math.tanh %224 : vector<64x128xf32>
    %cst_124 = arith.constant 1.000000e+00 : f32
    %226 = vector.broadcast %cst_124 : f32 to vector<64x128xf32>
    %227 = arith.addf %226, %225 : vector<64x128xf32>
    %228 = arith.mulf %217, %227 : vector<64x128xf32>
    %229 = arith.truncf %228 : vector<64x128xf32> to vector<64x128xbf16>
    %cst_125 = arith.constant dense<0.000000e+00> : vector<64x32xf32>
    %230 = tpu.matmul %229, %132, %cst_125 {dimension_numbers = #tpu.dot_dimension_numbers<[1], [0], [0], [1], [0, 0, 1, 1], [], []>} : vector<64x128xbf16>, vector<128x32xbf16>, vector<64x32xf32> -> vector<64x32xf32>
    %231 = arith.addf %101, %230 : vector<64x32xf32>
    %232 = vector.broadcast %133 : vector<1x32xf32> to vector<64x32xf32>
    %233 = arith.addf %231, %232 : vector<64x32xf32>
    %234 = arith.truncf %233 : vector<64x32xf32> to vector<64x32xbf16>
    %c0_126 = arith.constant 0 : index
    %c0_127 = arith.constant 0 : index
    %c0_128 = arith.constant 0 : index
    %235 = vector.load %arg20[%c0_126, %c0_127, %c0_128] : memref<1x64x32xbf16, #tpu.memory_space<vmem>>, vector<1x64x32xbf16>
    %236 = vector.shape_cast %235 : vector<1x64x32xbf16> to vector<64x32xbf16>
    %237 = vector.shape_cast %234 : vector<64x32xbf16> to vector<1x64x32xbf16>
    tpu.vector_store %arg20[%c0_126, %c0_127, %c0_128], %237 {strides = array<i32>} : memref<1x64x32xbf16, #tpu.memory_space<vmem>>, vector<1x64x32xbf16>,
    return
  }
  func.func @transform_0(%arg0: i32) -> (i32, i32, i32) {
    %c0_i32 = arith.constant 0 : i32
    %c0_i32_0 = arith.constant 0 : i32
    %c0_i32_1 = arith.constant 0 : i32
    return %arg0, %c0_i32, %c0_i32_0 : i32, i32, i32
  }
  func.func @transform_1(%arg0: i32) -> (i32, i32) {
    %c0_i32 = arith.constant 0 : i32
    %c0_i32_0 = arith.constant 0 : i32
    %c0_i32_1 = arith.constant 0 : i32
    return %c0_i32, %c0_i32_0 : i32, i32
  }
  func.func @transform_2(%arg0: i32) -> (i32, i32) {
    %c0_i32 = arith.constant 0 : i32
    %c0_i32_0 = arith.constant 0 : i32
    %c0_i32_1 = arith.constant 0 : i32
    return %c0_i32, %c0_i32_0 : i32, i32
  }
  func.func @transform_3(%arg0: i32) -> (i32, i32) {
    %c0_i32 = arith.constant 0 : i32
    %c0_i32_0 = arith.constant 0 : i32
    %c0_i32_1 = arith.constant 0 : i32
    return %c0_i32, %c0_i32_0 : i32, i32
  }
  func.func @transform_4(%arg0: i32) -> (i32, i32) {
    %c0_i32 = arith.constant 0 : i32
    %c0_i32_0 = arith.constant 0 : i32
    %c0_i32_1 = arith.constant 0 : i32
    return %c0_i32, %c0_i32_0 : i32, i32
  }
  func.func @transform_5(%arg0: i32) -> (i32, i32) {
    %c0_i32 = arith.constant 0 : i32
    %c0_i32_0 = arith.constant 0 : i32
    %c0_i32_1 = arith.constant 0 : i32
    return %c0_i32, %c0_i32_0 : i32, i32
  }
  func.func @transform_6(%arg0: i32) -> (i32, i32) {
    %c0_i32 = arith.constant 0 : i32
    %c0_i32_0 = arith.constant 0 : i32
    %c0_i32_1 = arith.constant 0 : i32
    return %c0_i32, %c0_i32_0 : i32, i32
  }
  func.func @transform_7(%arg0: i32) -> (i32, i32) {
    %c0_i32 = arith.constant 0 : i32
    %c0_i32_0 = arith.constant 0 : i32
    %c0_i32_1 = arith.constant 0 : i32
    return %c0_i32, %c0_i32_0 : i32, i32
  }
  func.func @transform_8(%arg0: i32) -> (i32, i32) {
    %c0_i32 = arith.constant 0 : i32
    %c0_i32_0 = arith.constant 0 : i32
    %c0_i32_1 = arith.constant 0 : i32
    return %c0_i32, %c0_i32_0 : i32, i32
  }
  func.func @transform_9(%arg0: i32) -> (i32, i32) {
    %c0_i32 = arith.constant 0 : i32
    %c0_i32_0 = arith.constant 0 : i32
    %c0_i32_1 = arith.constant 0 : i32
    return %c0_i32, %c0_i32_0 : i32, i32
  }
  func.func @transform_10(%arg0: i32) -> (i32, i32) {
    %c0_i32 = arith.constant 0 : i32
    %c0_i32_0 = arith.constant 0 : i32
    %c0_i32_1 = arith.constant 0 : i32
    return %c0_i32, %c0_i32_0 : i32, i32
  }
  func.func @transform_11(%arg0: i32) -> (i32, i32) {
    %c0_i32 = arith.constant 0 : i32
    %c0_i32_0 = arith.constant 0 : i32
    %c0_i32_1 = arith.constant 0 : i32
    return %c0_i32, %c0_i32_0 : i32, i32
  }
  func.func @transform_12(%arg0: i32) -> (i32, i32) {
    %c0_i32 = arith.constant 0 : i32
    %c0_i32_0 = arith.constant 0 : i32
    %c0_i32_1 = arith.constant 0 : i32
    return %c0_i32, %c0_i32_0 : i32, i32
  }
  func.func @transform_13(%arg0: i32) -> (i32, i32) {
    %c0_i32 = arith.constant 0 : i32
    %c0_i32_0 = arith.constant 0 : i32
    %c0_i32_1 = arith.constant 0 : i32
    return %c0_i32, %c0_i32_0 : i32, i32
  }
  func.func @transform_14(%arg0: i32) -> (i32, i32) {
    %c0_i32 = arith.constant 0 : i32
    %c0_i32_0 = arith.constant 0 : i32
    %c0_i32_1 = arith.constant 0 : i32
    return %c0_i32, %c0_i32_0 : i32, i32
  }
  func.func @transform_15(%arg0: i32) -> (i32, i32) {
    %c0_i32 = arith.constant 0 : i32
    %c0_i32_0 = arith.constant 0 : i32
    %c0_i32_1 = arith.constant 0 : i32
    return %c0_i32, %c0_i32_0 : i32, i32
  }
  func.func @transform_16(%arg0: i32) -> (i32, i32) {
    %c0_i32 = arith.constant 0 : i32
    %c0_i32_0 = arith.constant 0 : i32
    %c0_i32_1 = arith.constant 0 : i32
    return %c0_i32, %c0_i32_0 : i32, i32
  }
  func.func @transform_17(%arg0: i32) -> (i32, i32) {
    %c0_i32 = arith.constant 0 : i32
    %c0_i32_0 = arith.constant 0 : i32
    %c0_i32_1 = arith.constant 0 : i32
    return %c0_i32, %c0_i32_0 : i32, i32
  }
  func.func @transform_18(%arg0: i32) -> (i32, i32) {
    %c0_i32 = arith.constant 0 : i32
    %c0_i32_0 = arith.constant 0 : i32
    %c0_i32_1 = arith.constant 0 : i32
    return %c0_i32, %c0_i32_0 : i32, i32
  }
  func.func @transform_19(%arg0: i32) -> (i32, i32, i32) {
    %c0_i32 = arith.constant 0 : i32
    %c0_i32_0 = arith.constant 0 : i32
    %c0_i32_1 = arith.constant 0 : i32
    return %arg0, %c0_i32, %c0_i32_0 : i32, i32, i32
  }
}

module attributes {stable_mosaic.version = 11 : i64} {
  func.func @_gsp_mixffn2_kernel(%arg0: i32, %arg1: memref<1x64x32xf32, #tpu.memory_space<vmem>>, %arg2: memref<64x2xf32, #tpu.memory_space<vmem>>, %arg3: memref<1x32xf32, #tpu.memory_space<vmem>>, %arg4: memref<32x96xbf16, #tpu.memory_space<vmem>>, %arg5: memref<32x32xbf16, #tpu.memory_space<vmem>>, %arg6: memref<1x32xf32, #tpu.memory_space<vmem>>, %arg7: memref<1x32xf32, #tpu.memory_space<vmem>>, %arg8: memref<1x32xf32, #tpu.memory_space<vmem>>, %arg9: memref<1x32xf32, #tpu.memory_space<vmem>>, %arg10: memref<1x32xf32, #tpu.memory_space<vmem>>, %arg11: memref<8x32xf32, #tpu.memory_space<vmem>>, %arg12: memref<8x1xf32, #tpu.memory_space<vmem>>, %arg13: memref<8x32xf32, #tpu.memory_space<vmem>>, %arg14: memref<1x32xf32, #tpu.memory_space<vmem>>, %arg15: memref<1x32xf32, #tpu.memory_space<vmem>>, %arg16: memref<1x32xf32, #tpu.memory_space<vmem>>, %arg17: memref<32x128xbf16, #tpu.memory_space<vmem>>, %arg18: memref<1x128xf32, #tpu.memory_space<vmem>>, %arg19: memref<9x128xf32, #tpu.memory_space<vmem>>, %arg20: memref<1x128xf32, #tpu.memory_space<vmem>>, %arg21: memref<128x32xbf16, #tpu.memory_space<vmem>>, %arg22: memref<1x32xf32, #tpu.memory_space<vmem>>, %arg23: memref<1x64x32xbf16, #tpu.memory_space<vmem>>, %arg24: memref<96x128xf32, #tpu.memory_space<vmem>>, %arg25: memref<96x128xf32, #tpu.memory_space<vmem>>, %arg26: memref<96x128xf32, #tpu.memory_space<vmem>>) attributes {dimension_semantics = [#tpu.dimension_semantics<parallel>], iteration_bounds = array<i64: 2>, scalar_prefetch = 0 : i64, scratch_operands = 3 : i64, tpu.core_type = #tpu.core_type<tc>, window_params = [{transform_indices = @transform_0, window_bounds = array<i64: 1, 64, 32>}, {pipeline_mode = #tpu.pipeline_mode<synchronous>, transform_indices = @transform_1, window_bounds = array<i64: 64, 2>}, {pipeline_mode = #tpu.pipeline_mode<synchronous>, transform_indices = @transform_2, window_bounds = array<i64: 1, 32>}, {pipeline_mode = #tpu.pipeline_mode<synchronous>, transform_indices = @transform_3, window_bounds = array<i64: 32, 96>}, {pipeline_mode = #tpu.pipeline_mode<synchronous>, transform_indices = @transform_4, window_bounds = array<i64: 32, 32>}, {pipeline_mode = #tpu.pipeline_mode<synchronous>, transform_indices = @transform_5, window_bounds = array<i64: 1, 32>}, {pipeline_mode = #tpu.pipeline_mode<synchronous>, transform_indices = @transform_6, window_bounds = array<i64: 1, 32>}, {pipeline_mode = #tpu.pipeline_mode<synchronous>, transform_indices = @transform_7, window_bounds = array<i64: 1, 32>}, {pipeline_mode = #tpu.pipeline_mode<synchronous>, transform_indices = @transform_8, window_bounds = array<i64: 1, 32>}, {pipeline_mode = #tpu.pipeline_mode<synchronous>, transform_indices = @transform_9, window_bounds = array<i64: 1, 32>}, {pipeline_mode = #tpu.pipeline_mode<synchronous>, transform_indices = @transform_10, window_bounds = array<i64: 8, 32>}, {pipeline_mode = #tpu.pipeline_mode<synchronous>, transform_indices = @transform_11, window_bounds = array<i64: 8, 1>}, {pipeline_mode = #tpu.pipeline_mode<synchronous>, transform_indices = @transform_12, window_bounds = array<i64: 8, 32>}, {pipeline_mode = #tpu.pipeline_mode<synchronous>, transform_indices = @transform_13, window_bounds = array<i64: 1, 32>}, {pipeline_mode = #tpu.pipeline_mode<synchronous>, transform_indices = @transform_14, window_bounds = array<i64: 1, 32>}, {pipeline_mode = #tpu.pipeline_mode<synchronous>, transform_indices = @transform_15, window_bounds = array<i64: 1, 32>}, {pipeline_mode = #tpu.pipeline_mode<synchronous>, transform_indices = @transform_16, window_bounds = array<i64: 32, 128>}, {pipeline_mode = #tpu.pipeline_mode<synchronous>, transform_indices = @transform_17, window_bounds = array<i64: 1, 128>}, {pipeline_mode = #tpu.pipeline_mode<synchronous>, transform_indices = @transform_18, window_bounds = array<i64: 9, 128>}, {pipeline_mode = #tpu.pipeline_mode<synchronous>, transform_indices = @transform_19, window_bounds = array<i64: 1, 128>}, {pipeline_mode = #tpu.pipeline_mode<synchronous>, transform_indices = @transform_20, window_bounds = array<i64: 128, 32>}, {pipeline_mode = #tpu.pipeline_mode<synchronous>, transform_indices = @transform_21, window_bounds = array<i64: 1, 32>}, {transform_indices = @transform_22, window_bounds = array<i64: 1, 64, 32>}]} {
    %c0 = arith.constant 0 : index
    %c0_0 = arith.constant 0 : index
    %c0_1 = arith.constant 0 : index
    %0 = vector.load %arg1[%c0, %c0_0, %c0_1] : memref<1x64x32xf32, #tpu.memory_space<vmem>>, vector<1x64x32xf32>
    %1 = vector.shape_cast %0 : vector<1x64x32xf32> to vector<64x32xf32>
    %c0_2 = arith.constant 0 : index
    %c0_3 = arith.constant 0 : index
    %2 = vector.load %arg7[%c0_2, %c0_3] : memref<1x32xf32, #tpu.memory_space<vmem>>, vector<1x32xf32>
    %c0_4 = arith.constant 0 : index
    %c0_5 = arith.constant 0 : index
    %3 = vector.load %arg8[%c0_4, %c0_5] : memref<1x32xf32, #tpu.memory_space<vmem>>, vector<1x32xf32>
    %cst = arith.constant dense<0.000000e+00> : vector<64xf32>
    %4 = vector.multi_reduction <add>, %1, %cst [1] : vector<64x32xf32> to vector<64xf32>
    %5 = vector.shape_cast %4 : vector<64xf32> to vector<64x1xf32>
    %cst_6 = arith.constant 3.200000e+01 : f32
    %6 = vector.broadcast %cst_6 : f32 to vector<64x1xf32>
    %7 = arith.divf %5, %6 : vector<64x1xf32>
    %8 = vector.broadcast %7 : vector<64x1xf32> to vector<64x32xf32>
    %9 = arith.subf %1, %8 : vector<64x32xf32>
    %10 = arith.mulf %9, %9 : vector<64x32xf32>
    %cst_7 = arith.constant dense<0.000000e+00> : vector<64xf32>
    %11 = vector.multi_reduction <add>, %10, %cst_7 [1] : vector<64x32xf32> to vector<64xf32>
    %12 = vector.shape_cast %11 : vector<64xf32> to vector<64x1xf32>
    %cst_8 = arith.constant 3.200000e+01 : f32
    %13 = vector.broadcast %cst_8 : f32 to vector<64x1xf32>
    %14 = arith.divf %12, %13 : vector<64x1xf32>
    %cst_9 = arith.constant 9.99999974E-6 : f32
    %15 = vector.broadcast %cst_9 : f32 to vector<64x1xf32>
    %16 = arith.addf %14, %15 : vector<64x1xf32>
    %17 = math.rsqrt %16 : vector<64x1xf32>
    %18 = vector.broadcast %17 : vector<64x1xf32> to vector<64x32xf32>
    %19 = arith.mulf %9, %18 : vector<64x32xf32>
    %20 = vector.broadcast %2 : vector<1x32xf32> to vector<64x32xf32>
    %21 = arith.mulf %19, %20 : vector<64x32xf32>
    %22 = vector.broadcast %3 : vector<1x32xf32> to vector<64x32xf32>
    %23 = arith.addf %21, %22 : vector<64x32xf32>
    %24 = arith.truncf %23 : vector<64x32xf32> to vector<64x32xbf16>
    %c0_10 = arith.constant 0 : index
    %c0_11 = arith.constant 0 : index
    %25 = vector.load %arg4[%c0_10, %c0_11] : memref<32x96xbf16, #tpu.memory_space<vmem>>, vector<32x96xbf16>
    %cst_12 = arith.constant dense<0.000000e+00> : vector<64x96xf32>
    %26 = tpu.matmul %24, %25, %cst_12 {dimension_numbers = #tpu.dot_dimension_numbers<[1], [0], [0], [1], [0, 0, 1, 1], [], []>} : vector<64x32xbf16>, vector<32x96xbf16>, vector<64x96xf32> -> vector<64x96xf32>
    %27 = vector.extract_strided_slice %26 {offsets = [0, 0], sizes = [64, 32], strides = [1, 1]} : vector<64x96xf32> to vector<64x32xf32>
    %28 = vector.extract_strided_slice %26 {offsets = [0, 32], sizes = [64, 32], strides = [1, 1]} : vector<64x96xf32> to vector<64x32xf32>
    %29 = vector.extract_strided_slice %26 {offsets = [0, 64], sizes = [64, 32], strides = [1, 1]} : vector<64x96xf32> to vector<64x32xf32>
    %30 = arith.mulf %27, %27 : vector<64x32xf32>
    %cst_13 = arith.constant dense<0.000000e+00> : vector<32xf32>
    %31 = vector.multi_reduction <add>, %30, %cst_13 [0] : vector<64x32xf32> to vector<32xf32>
    %32 = vector.shape_cast %31 : vector<32xf32> to vector<1x32xf32>
    %cst_14 = arith.constant 1.000000e-24 : f32
    %33 = vector.broadcast %cst_14 : f32 to vector<1x32xf32>
    %34 = arith.maximumf %32, %33 : vector<1x32xf32>
    %35 = math.rsqrt %34 : vector<1x32xf32>
    %36 = vector.broadcast %35 : vector<1x32xf32> to vector<64x32xf32>
    %37 = arith.mulf %27, %36 : vector<64x32xf32>
    %38 = arith.mulf %28, %28 : vector<64x32xf32>
    %cst_15 = arith.constant dense<0.000000e+00> : vector<32xf32>
    %39 = vector.multi_reduction <add>, %38, %cst_15 [0] : vector<64x32xf32> to vector<32xf32>
    %40 = vector.shape_cast %39 : vector<32xf32> to vector<1x32xf32>
    %cst_16 = arith.constant 1.000000e-24 : f32
    %41 = vector.broadcast %cst_16 : f32 to vector<1x32xf32>
    %42 = arith.maximumf %40, %41 : vector<1x32xf32>
    %43 = math.rsqrt %42 : vector<1x32xf32>
    %44 = vector.broadcast %43 : vector<1x32xf32> to vector<64x32xf32>
    %45 = arith.mulf %28, %44 : vector<64x32xf32>
    %46 = arith.mulf %37, %45 : vector<64x32xf32>
    %c0_17 = arith.constant 0 : index
    %c0_18 = arith.constant 0 : index
    %47 = vector.load %arg3[%c0_17, %c0_18] : memref<1x32xf32, #tpu.memory_space<vmem>>, vector<1x32xf32>
    %48 = vector.broadcast %47 : vector<1x32xf32> to vector<64x32xf32>
    %49 = arith.mulf %46, %48 : vector<64x32xf32>
    %cst_19 = arith.constant dense<0xFF800000> : vector<32xf32>
    %50 = vector.multi_reduction <maximumf>, %49, %cst_19 [0] : vector<64x32xf32> to vector<32xf32>
    %51 = vector.shape_cast %50 : vector<32xf32> to vector<1x32xf32>
    %52 = vector.broadcast %51 : vector<1x32xf32> to vector<64x32xf32>
    %53 = arith.subf %49, %52 : vector<64x32xf32>
    %54 = math.exp %53 : vector<64x32xf32>
    %cst_20 = arith.constant dense<0.000000e+00> : vector<32xf32>
    %55 = vector.multi_reduction <add>, %54, %cst_20 [0] : vector<64x32xf32> to vector<32xf32>
    %56 = vector.shape_cast %55 : vector<32xf32> to vector<1x32xf32>
    %57 = tpu.reciprocal %56 {approx = true} : vector<1x32xf32> -> vector<1x32xf32>
    %58 = vector.broadcast %57 : vector<1x32xf32> to vector<64x32xf32>
    %59 = arith.mulf %54, %58 : vector<64x32xf32>
    %60 = arith.mulf %59, %29 : vector<64x32xf32>
    %61 = arith.truncf %60 : vector<64x32xf32> to vector<64x32xbf16>
    %c0_21 = arith.constant 0 : index
    %c0_22 = arith.constant 0 : index
    %62 = vector.load %arg5[%c0_21, %c0_22] : memref<32x32xbf16, #tpu.memory_space<vmem>>, vector<32x32xbf16>
    %cst_23 = arith.constant dense<0.000000e+00> : vector<64x32xf32>
    %63 = tpu.matmul %61, %62, %cst_23 {dimension_numbers = #tpu.dot_dimension_numbers<[1], [0], [0], [1], [0, 0, 1, 1], [], []>} : vector<64x32xbf16>, vector<32x32xbf16>, vector<64x32xf32> -> vector<64x32xf32>
    %c0_24 = arith.constant 0 : index
    %c0_25 = arith.constant 0 : index
    %64 = vector.load %arg6[%c0_24, %c0_25] : memref<1x32xf32, #tpu.memory_space<vmem>>, vector<1x32xf32>
    %65 = vector.broadcast %64 : vector<1x32xf32> to vector<64x32xf32>
    %66 = arith.addf %63, %65 : vector<64x32xf32>
    %67 = arith.addf %23, %66 : vector<64x32xf32>
    %c0_26 = arith.constant 0 : index
    %c0_27 = arith.constant 0 : index
    %68 = vector.load %arg9[%c0_26, %c0_27] : memref<1x32xf32, #tpu.memory_space<vmem>>, vector<1x32xf32>
    %c0_28 = arith.constant 0 : index
    %c0_29 = arith.constant 0 : index
    %69 = vector.load %arg10[%c0_28, %c0_29] : memref<1x32xf32, #tpu.memory_space<vmem>>, vector<1x32xf32>
    %cst_30 = arith.constant dense<0.000000e+00> : vector<64xf32>
    %70 = vector.multi_reduction <add>, %67, %cst_30 [1] : vector<64x32xf32> to vector<64xf32>
    %71 = vector.shape_cast %70 : vector<64xf32> to vector<64x1xf32>
    %cst_31 = arith.constant 3.200000e+01 : f32
    %72 = vector.broadcast %cst_31 : f32 to vector<64x1xf32>
    %73 = arith.divf %71, %72 : vector<64x1xf32>
    %74 = vector.broadcast %73 : vector<64x1xf32> to vector<64x32xf32>
    %75 = arith.subf %67, %74 : vector<64x32xf32>
    %76 = arith.mulf %75, %75 : vector<64x32xf32>
    %cst_32 = arith.constant dense<0.000000e+00> : vector<64xf32>
    %77 = vector.multi_reduction <add>, %76, %cst_32 [1] : vector<64x32xf32> to vector<64xf32>
    %78 = vector.shape_cast %77 : vector<64xf32> to vector<64x1xf32>
    %cst_33 = arith.constant 3.200000e+01 : f32
    %79 = vector.broadcast %cst_33 : f32 to vector<64x1xf32>
    %80 = arith.divf %78, %79 : vector<64x1xf32>
    %cst_34 = arith.constant 9.99999974E-6 : f32
    %81 = vector.broadcast %cst_34 : f32 to vector<64x1xf32>
    %82 = arith.addf %80, %81 : vector<64x1xf32>
    %83 = math.rsqrt %82 : vector<64x1xf32>
    %84 = vector.broadcast %83 : vector<64x1xf32> to vector<64x32xf32>
    %85 = arith.mulf %75, %84 : vector<64x32xf32>
    %86 = vector.broadcast %68 : vector<1x32xf32> to vector<64x32xf32>
    %87 = arith.mulf %85, %86 : vector<64x32xf32>
    %88 = vector.broadcast %69 : vector<1x32xf32> to vector<64x32xf32>
    %89 = arith.addf %87, %88 : vector<64x32xf32>
    %cst_35 = arith.constant dense<0.000000e+00> : vector<32xf32>
    %90 = vector.multi_reduction <add>, %89, %cst_35 [0] : vector<64x32xf32> to vector<32xf32>
    %91 = vector.shape_cast %90 : vector<32xf32> to vector<1x32xf32>
    %cst_36 = arith.constant 6.400000e+01 : f32
    %92 = vector.broadcast %cst_36 : f32 to vector<1x32xf32>
    %93 = arith.divf %91, %92 : vector<1x32xf32>
    %c0_37 = arith.constant 0 : index
    %c0_38 = arith.constant 0 : index
    %94 = vector.load %arg11[%c0_37, %c0_38] : memref<8x32xf32, #tpu.memory_space<vmem>>, vector<8x32xf32>
    %95 = vector.broadcast %93 : vector<1x32xf32> to vector<8x32xf32>
    %96 = arith.mulf %95, %94 : vector<8x32xf32>
    %cst_39 = arith.constant dense<0.000000e+00> : vector<8xf32>
    %97 = vector.multi_reduction <add>, %96, %cst_39 [1] : vector<8x32xf32> to vector<8xf32>
    %98 = vector.shape_cast %97 : vector<8xf32> to vector<8x1xf32>
    %c0_40 = arith.constant 0 : index
    %c0_41 = arith.constant 0 : index
    %99 = vector.load %arg12[%c0_40, %c0_41] : memref<8x1xf32, #tpu.memory_space<vmem>>, vector<8x1xf32>
    %100 = arith.addf %98, %99 : vector<8x1xf32>
    %cst_42 = arith.constant 5.000000e-01 : f32
    %101 = vector.broadcast %cst_42 : f32 to vector<8x1xf32>
    %102 = arith.mulf %101, %100 : vector<8x1xf32>
    %cst_43 = arith.constant 4.471500e-02 : f32
    %103 = vector.broadcast %cst_43 : f32 to vector<8x1xf32>
    %104 = arith.mulf %103, %100 : vector<8x1xf32>
    %105 = arith.mulf %104, %100 : vector<8x1xf32>
    %106 = arith.mulf %105, %100 : vector<8x1xf32>
    %107 = arith.addf %100, %106 : vector<8x1xf32>
    %cst_44 = arith.constant 0.797884583 : f32
    %108 = vector.broadcast %cst_44 : f32 to vector<8x1xf32>
    %109 = arith.mulf %108, %107 : vector<8x1xf32>
    %110 = math.tanh %109 : vector<8x1xf32>
    %cst_45 = arith.constant 1.000000e+00 : f32
    %111 = vector.broadcast %cst_45 : f32 to vector<8x1xf32>
    %112 = arith.addf %111, %110 : vector<8x1xf32>
    %113 = arith.mulf %102, %112 : vector<8x1xf32>
    %c0_46 = arith.constant 0 : index
    %c0_47 = arith.constant 0 : index
    %114 = vector.load %arg13[%c0_46, %c0_47] : memref<8x32xf32, #tpu.memory_space<vmem>>, vector<8x32xf32>
    %115 = vector.broadcast %113 : vector<8x1xf32> to vector<8x32xf32>
    %116 = arith.mulf %115, %114 : vector<8x32xf32>
    %cst_48 = arith.constant dense<0.000000e+00> : vector<32xf32>
    %117 = vector.multi_reduction <add>, %116, %cst_48 [0] : vector<8x32xf32> to vector<32xf32>
    %118 = vector.shape_cast %117 : vector<32xf32> to vector<1x32xf32>
    %c0_49 = arith.constant 0 : index
    %c0_50 = arith.constant 0 : index
    %119 = vector.load %arg14[%c0_49, %c0_50] : memref<1x32xf32, #tpu.memory_space<vmem>>, vector<1x32xf32>
    %120 = arith.addf %118, %119 : vector<1x32xf32>
    %cst_51 = arith.constant 5.000000e-01 : f32
    %121 = vector.broadcast %cst_51 : f32 to vector<1x32xf32>
    %122 = arith.mulf %121, %120 : vector<1x32xf32>
    %123 = math.tanh %122 : vector<1x32xf32>
    %cst_52 = arith.constant 1.000000e+00 : f32
    %124 = vector.broadcast %cst_52 : f32 to vector<1x32xf32>
    %125 = arith.addf %123, %124 : vector<1x32xf32>
    %cst_53 = arith.constant 5.000000e-01 : f32
    %126 = vector.broadcast %cst_53 : f32 to vector<1x32xf32>
    %127 = arith.mulf %126, %125 : vector<1x32xf32>
    %cst_54 = arith.constant 1.000000e+00 : f32
    %128 = vector.broadcast %cst_54 : f32 to vector<1x32xf32>
    %129 = arith.addf %128, %127 : vector<1x32xf32>
    %130 = vector.broadcast %129 : vector<1x32xf32> to vector<64x32xf32>
    %131 = arith.mulf %89, %130 : vector<64x32xf32>
    %c0_55 = arith.constant 0 : index
    %c0_56 = arith.constant 0 : index
    %132 = vector.load %arg15[%c0_55, %c0_56] : memref<1x32xf32, #tpu.memory_space<vmem>>, vector<1x32xf32>
    %c0_57 = arith.constant 0 : index
    %c0_58 = arith.constant 0 : index
    %133 = vector.load %arg16[%c0_57, %c0_58] : memref<1x32xf32, #tpu.memory_space<vmem>>, vector<1x32xf32>
    %cst_59 = arith.constant dense<0.000000e+00> : vector<64xf32>
    %134 = vector.multi_reduction <add>, %131, %cst_59 [1] : vector<64x32xf32> to vector<64xf32>
    %135 = vector.shape_cast %134 : vector<64xf32> to vector<64x1xf32>
    %cst_60 = arith.constant 3.200000e+01 : f32
    %136 = vector.broadcast %cst_60 : f32 to vector<64x1xf32>
    %137 = arith.divf %135, %136 : vector<64x1xf32>
    %138 = vector.broadcast %137 : vector<64x1xf32> to vector<64x32xf32>
    %139 = arith.subf %131, %138 : vector<64x32xf32>
    %140 = arith.mulf %139, %139 : vector<64x32xf32>
    %cst_61 = arith.constant dense<0.000000e+00> : vector<64xf32>
    %141 = vector.multi_reduction <add>, %140, %cst_61 [1] : vector<64x32xf32> to vector<64xf32>
    %142 = vector.shape_cast %141 : vector<64xf32> to vector<64x1xf32>
    %cst_62 = arith.constant 3.200000e+01 : f32
    %143 = vector.broadcast %cst_62 : f32 to vector<64x1xf32>
    %144 = arith.divf %142, %143 : vector<64x1xf32>
    %cst_63 = arith.constant 9.99999974E-6 : f32
    %145 = vector.broadcast %cst_63 : f32 to vector<64x1xf32>
    %146 = arith.addf %144, %145 : vector<64x1xf32>
    %147 = math.rsqrt %146 : vector<64x1xf32>
    %148 = vector.broadcast %147 : vector<64x1xf32> to vector<64x32xf32>
    %149 = arith.mulf %139, %148 : vector<64x32xf32>
    %150 = vector.broadcast %132 : vector<1x32xf32> to vector<64x32xf32>
    %151 = arith.mulf %149, %150 : vector<64x32xf32>
    %152 = vector.broadcast %133 : vector<1x32xf32> to vector<64x32xf32>
    %153 = arith.addf %151, %152 : vector<64x32xf32>
    %154 = arith.truncf %153 : vector<64x32xf32> to vector<64x32xbf16>
    %c0_64 = arith.constant 0 : index
    %c0_65 = arith.constant 0 : index
    %155 = vector.load %arg17[%c0_64, %c0_65] : memref<32x128xbf16, #tpu.memory_space<vmem>>, vector<32x128xbf16>
    %cst_66 = arith.constant dense<0.000000e+00> : vector<64x128xf32>
    %156 = tpu.matmul %154, %155, %cst_66 {dimension_numbers = #tpu.dot_dimension_numbers<[1], [0], [0], [1], [0, 0, 1, 1], [], []>} : vector<64x32xbf16>, vector<32x128xbf16>, vector<64x128xf32> -> vector<64x128xf32>
    %c0_67 = arith.constant 0 : index
    %c0_68 = arith.constant 0 : index
    %157 = vector.load %arg18[%c0_67, %c0_68] : memref<1x128xf32, #tpu.memory_space<vmem>>, vector<1x128xf32>
    %158 = vector.broadcast %157 : vector<1x128xf32> to vector<64x128xf32>
    %159 = arith.addf %156, %158 : vector<64x128xf32>
    %c0_69 = arith.constant 0 : index
    %c0_70 = arith.constant 0 : index
    %160 = vector.load %arg2[%c0_69, %c0_70] : memref<64x2xf32, #tpu.memory_space<vmem>>, vector<64x2xf32>
    %c0_71 = arith.constant 0 : index
    %c0_72 = arith.constant 0 : index
    %161 = vector.load %arg19[%c0_71, %c0_72] : memref<9x128xf32, #tpu.memory_space<vmem>>, vector<9x128xf32>
    %c0_73 = arith.constant 0 : index
    %c0_74 = arith.constant 0 : index
    %162 = vector.load %arg20[%c0_73, %c0_74] : memref<1x128xf32, #tpu.memory_space<vmem>>, vector<1x128xf32>
    %c0_75 = arith.constant 0 : index
    %c0_76 = arith.constant 0 : index
    %163 = vector.load %arg21[%c0_75, %c0_76] : memref<128x32xbf16, #tpu.memory_space<vmem>>, vector<128x32xbf16>
    %c0_77 = arith.constant 0 : index
    %c0_78 = arith.constant 0 : index
    %164 = vector.load %arg22[%c0_77, %c0_78] : memref<1x32xf32, #tpu.memory_space<vmem>>, vector<1x32xf32>
    %cst_79 = arith.constant 0.000000e+00 : f32
    %165 = vector.broadcast %cst_79 : f32 to vector<16x128xf32>
    %166 = vector.extract_strided_slice %160 {offsets = [0, 0], sizes = [64, 1], strides = [1, 1]} : vector<64x2xf32> to vector<64x1xf32>
    %167 = vector.broadcast %166 : vector<64x1xf32> to vector<64x128xf32>
    %168 = arith.mulf %159, %167 : vector<64x128xf32>
    %169 = vector.extract_strided_slice %160 {offsets = [0, 1], sizes = [64, 1], strides = [1, 1]} : vector<64x2xf32> to vector<64x1xf32>
    %170 = vector.broadcast %169 : vector<64x1xf32> to vector<64x128xf32>
    %171 = arith.mulf %159, %170 : vector<64x128xf32>
    %c0_80 = arith.constant 0 : index
    %c0_81 = arith.constant 0 : index
    %172 = vector.load %arg24[%c0_80, %c0_81] : memref<96x128xf32, #tpu.memory_space<vmem>>, vector<16x128xf32>
    tpu.vector_store %arg24[%c0_80, %c0_81], %165 {strides = array<i32>} : memref<96x128xf32, #tpu.memory_space<vmem>>, vector<16x128xf32>,
    %c16 = arith.constant 16 : index
    %c0_82 = arith.constant 0 : index
    %173 = vector.load %arg24[%c16, %c0_82] : memref<96x128xf32, #tpu.memory_space<vmem>>, vector<64x128xf32>
    tpu.vector_store %arg24[%c16, %c0_82], %159 {strides = array<i32>} : memref<96x128xf32, #tpu.memory_space<vmem>>, vector<64x128xf32>,
    %c80 = arith.constant 80 : index
    %c0_83 = arith.constant 0 : index
    %174 = vector.load %arg24[%c80, %c0_83] : memref<96x128xf32, #tpu.memory_space<vmem>>, vector<16x128xf32>
    tpu.vector_store %arg24[%c80, %c0_83], %165 {strides = array<i32>} : memref<96x128xf32, #tpu.memory_space<vmem>>, vector<16x128xf32>,
    %c0_84 = arith.constant 0 : index
    %c0_85 = arith.constant 0 : index
    %175 = vector.load %arg25[%c0_84, %c0_85] : memref<96x128xf32, #tpu.memory_space<vmem>>, vector<16x128xf32>
    tpu.vector_store %arg25[%c0_84, %c0_85], %165 {strides = array<i32>} : memref<96x128xf32, #tpu.memory_space<vmem>>, vector<16x128xf32>,
    %c16_86 = arith.constant 16 : index
    %c0_87 = arith.constant 0 : index
    %176 = vector.load %arg25[%c16_86, %c0_87] : memref<96x128xf32, #tpu.memory_space<vmem>>, vector<64x128xf32>
    tpu.vector_store %arg25[%c16_86, %c0_87], %168 {strides = array<i32>} : memref<96x128xf32, #tpu.memory_space<vmem>>, vector<64x128xf32>,
    %c80_88 = arith.constant 80 : index
    %c0_89 = arith.constant 0 : index
    %177 = vector.load %arg25[%c80_88, %c0_89] : memref<96x128xf32, #tpu.memory_space<vmem>>, vector<16x128xf32>
    tpu.vector_store %arg25[%c80_88, %c0_89], %165 {strides = array<i32>} : memref<96x128xf32, #tpu.memory_space<vmem>>, vector<16x128xf32>,
    %c0_90 = arith.constant 0 : index
    %c0_91 = arith.constant 0 : index
    %178 = vector.load %arg26[%c0_90, %c0_91] : memref<96x128xf32, #tpu.memory_space<vmem>>, vector<16x128xf32>
    tpu.vector_store %arg26[%c0_90, %c0_91], %165 {strides = array<i32>} : memref<96x128xf32, #tpu.memory_space<vmem>>, vector<16x128xf32>,
    %c16_92 = arith.constant 16 : index
    %c0_93 = arith.constant 0 : index
    %179 = vector.load %arg26[%c16_92, %c0_93] : memref<96x128xf32, #tpu.memory_space<vmem>>, vector<64x128xf32>
    tpu.vector_store %arg26[%c16_92, %c0_93], %171 {strides = array<i32>} : memref<96x128xf32, #tpu.memory_space<vmem>>, vector<64x128xf32>,
    %c80_94 = arith.constant 80 : index
    %c0_95 = arith.constant 0 : index
    %180 = vector.load %arg26[%c80_94, %c0_95] : memref<96x128xf32, #tpu.memory_space<vmem>>, vector<16x128xf32>
    tpu.vector_store %arg26[%c80_94, %c0_95], %165 {strides = array<i32>} : memref<96x128xf32, #tpu.memory_space<vmem>>, vector<16x128xf32>,
    %c7 = arith.constant 7 : index
    %c0_96 = arith.constant 0 : index
    %181 = vector.load %arg25[%c7, %c0_96] : memref<96x128xf32, #tpu.memory_space<vmem>>, vector<64x128xf32>
    %c8 = arith.constant 8 : index
    %c0_97 = arith.constant 0 : index
    %182 = vector.load %arg24[%c8, %c0_97] : memref<96x128xf32, #tpu.memory_space<vmem>>, vector<64x128xf32>
    %c9 = arith.constant 9 : index
    %c0_98 = arith.constant 0 : index
    %183 = vector.load %arg26[%c9, %c0_98] : memref<96x128xf32, #tpu.memory_space<vmem>>, vector<64x128xf32>
    %c15 = arith.constant 15 : index
    %c0_99 = arith.constant 0 : index
    %184 = vector.load %arg25[%c15, %c0_99] : memref<96x128xf32, #tpu.memory_space<vmem>>, vector<64x128xf32>
    %c16_100 = arith.constant 16 : index
    %c0_101 = arith.constant 0 : index
    %185 = vector.load %arg24[%c16_100, %c0_101] : memref<96x128xf32, #tpu.memory_space<vmem>>, vector<64x128xf32>
    %c17 = arith.constant 17 : index
    %c0_102 = arith.constant 0 : index
    %186 = vector.load %arg26[%c17, %c0_102] : memref<96x128xf32, #tpu.memory_space<vmem>>, vector<64x128xf32>
    %c23 = arith.constant 23 : index
    %c0_103 = arith.constant 0 : index
    %187 = vector.load %arg25[%c23, %c0_103] : memref<96x128xf32, #tpu.memory_space<vmem>>, vector<64x128xf32>
    %c24 = arith.constant 24 : index
    %c0_104 = arith.constant 0 : index
    %188 = vector.load %arg24[%c24, %c0_104] : memref<96x128xf32, #tpu.memory_space<vmem>>, vector<64x128xf32>
    %c25 = arith.constant 25 : index
    %c0_105 = arith.constant 0 : index
    %189 = vector.load %arg26[%c25, %c0_105] : memref<96x128xf32, #tpu.memory_space<vmem>>, vector<64x128xf32>
    %cst_106 = arith.constant 0.000000e+00 : f32
    %190 = vector.broadcast %cst_106 : f32 to vector<64x128xf32>
    %191 = vector.broadcast %162 : vector<1x128xf32> to vector<64x128xf32>
    %192 = arith.addf %190, %191 : vector<64x128xf32>
    %193 = vector.extract_strided_slice %161 {offsets = [0, 0], sizes = [1, 128], strides = [1, 1]} : vector<9x128xf32> to vector<1x128xf32>
    %194 = vector.shape_cast %193 : vector<1x128xf32> to vector<128xf32>
    %195 = vector.shape_cast %194 : vector<128xf32> to vector<1x128xf32>
    %196 = vector.broadcast %195 : vector<1x128xf32> to vector<64x128xf32>
    %197 = arith.mulf %181, %196 : vector<64x128xf32>
    %198 = arith.addf %192, %197 : vector<64x128xf32>
    %199 = vector.extract_strided_slice %161 {offsets = [1, 0], sizes = [1, 128], strides = [1, 1]} : vector<9x128xf32> to vector<1x128xf32>
    %200 = vector.shape_cast %199 : vector<1x128xf32> to vector<128xf32>
    %201 = vector.shape_cast %200 : vector<128xf32> to vector<1x128xf32>
    %202 = vector.broadcast %201 : vector<1x128xf32> to vector<64x128xf32>
    %203 = arith.mulf %182, %202 : vector<64x128xf32>
    %204 = arith.addf %198, %203 : vector<64x128xf32>
    %205 = vector.extract_strided_slice %161 {offsets = [2, 0], sizes = [1, 128], strides = [1, 1]} : vector<9x128xf32> to vector<1x128xf32>
    %206 = vector.shape_cast %205 : vector<1x128xf32> to vector<128xf32>
    %207 = vector.shape_cast %206 : vector<128xf32> to vector<1x128xf32>
    %208 = vector.broadcast %207 : vector<1x128xf32> to vector<64x128xf32>
    %209 = arith.mulf %183, %208 : vector<64x128xf32>
    %210 = arith.addf %204, %209 : vector<64x128xf32>
    %211 = vector.extract_strided_slice %161 {offsets = [3, 0], sizes = [1, 128], strides = [1, 1]} : vector<9x128xf32> to vector<1x128xf32>
    %212 = vector.shape_cast %211 : vector<1x128xf32> to vector<128xf32>
    %213 = vector.shape_cast %212 : vector<128xf32> to vector<1x128xf32>
    %214 = vector.broadcast %213 : vector<1x128xf32> to vector<64x128xf32>
    %215 = arith.mulf %184, %214 : vector<64x128xf32>
    %216 = arith.addf %210, %215 : vector<64x128xf32>
    %217 = vector.extract_strided_slice %161 {offsets = [4, 0], sizes = [1, 128], strides = [1, 1]} : vector<9x128xf32> to vector<1x128xf32>
    %218 = vector.shape_cast %217 : vector<1x128xf32> to vector<128xf32>
    %219 = vector.shape_cast %218 : vector<128xf32> to vector<1x128xf32>
    %220 = vector.broadcast %219 : vector<1x128xf32> to vector<64x128xf32>
    %221 = arith.mulf %185, %220 : vector<64x128xf32>
    %222 = arith.addf %216, %221 : vector<64x128xf32>
    %223 = vector.extract_strided_slice %161 {offsets = [5, 0], sizes = [1, 128], strides = [1, 1]} : vector<9x128xf32> to vector<1x128xf32>
    %224 = vector.shape_cast %223 : vector<1x128xf32> to vector<128xf32>
    %225 = vector.shape_cast %224 : vector<128xf32> to vector<1x128xf32>
    %226 = vector.broadcast %225 : vector<1x128xf32> to vector<64x128xf32>
    %227 = arith.mulf %186, %226 : vector<64x128xf32>
    %228 = arith.addf %222, %227 : vector<64x128xf32>
    %229 = vector.extract_strided_slice %161 {offsets = [6, 0], sizes = [1, 128], strides = [1, 1]} : vector<9x128xf32> to vector<1x128xf32>
    %230 = vector.shape_cast %229 : vector<1x128xf32> to vector<128xf32>
    %231 = vector.shape_cast %230 : vector<128xf32> to vector<1x128xf32>
    %232 = vector.broadcast %231 : vector<1x128xf32> to vector<64x128xf32>
    %233 = arith.mulf %187, %232 : vector<64x128xf32>
    %234 = arith.addf %228, %233 : vector<64x128xf32>
    %235 = vector.extract_strided_slice %161 {offsets = [7, 0], sizes = [1, 128], strides = [1, 1]} : vector<9x128xf32> to vector<1x128xf32>
    %236 = vector.shape_cast %235 : vector<1x128xf32> to vector<128xf32>
    %237 = vector.shape_cast %236 : vector<128xf32> to vector<1x128xf32>
    %238 = vector.broadcast %237 : vector<1x128xf32> to vector<64x128xf32>
    %239 = arith.mulf %188, %238 : vector<64x128xf32>
    %240 = arith.addf %234, %239 : vector<64x128xf32>
    %241 = vector.extract_strided_slice %161 {offsets = [8, 0], sizes = [1, 128], strides = [1, 1]} : vector<9x128xf32> to vector<1x128xf32>
    %242 = vector.shape_cast %241 : vector<1x128xf32> to vector<128xf32>
    %243 = vector.shape_cast %242 : vector<128xf32> to vector<1x128xf32>
    %244 = vector.broadcast %243 : vector<1x128xf32> to vector<64x128xf32>
    %245 = arith.mulf %189, %244 : vector<64x128xf32>
    %246 = arith.addf %240, %245 : vector<64x128xf32>
    %cst_107 = arith.constant 5.000000e-01 : f32
    %247 = vector.broadcast %cst_107 : f32 to vector<64x128xf32>
    %248 = arith.mulf %247, %246 : vector<64x128xf32>
    %cst_108 = arith.constant 4.471500e-02 : f32
    %249 = vector.broadcast %cst_108 : f32 to vector<64x128xf32>
    %250 = arith.mulf %249, %246 : vector<64x128xf32>
    %251 = arith.mulf %250, %246 : vector<64x128xf32>
    %252 = arith.mulf %251, %246 : vector<64x128xf32>
    %253 = arith.addf %246, %252 : vector<64x128xf32>
    %cst_109 = arith.constant 0.797884583 : f32
    %254 = vector.broadcast %cst_109 : f32 to vector<64x128xf32>
    %255 = arith.mulf %254, %253 : vector<64x128xf32>
    %256 = math.tanh %255 : vector<64x128xf32>
    %cst_110 = arith.constant 1.000000e+00 : f32
    %257 = vector.broadcast %cst_110 : f32 to vector<64x128xf32>
    %258 = arith.addf %257, %256 : vector<64x128xf32>
    %259 = arith.mulf %248, %258 : vector<64x128xf32>
    %260 = arith.truncf %259 : vector<64x128xf32> to vector<64x128xbf16>
    %cst_111 = arith.constant dense<0.000000e+00> : vector<64x32xf32>
    %261 = tpu.matmul %260, %163, %cst_111 {dimension_numbers = #tpu.dot_dimension_numbers<[1], [0], [0], [1], [0, 0, 1, 1], [], []>} : vector<64x128xbf16>, vector<128x32xbf16>, vector<64x32xf32> -> vector<64x32xf32>
    %262 = arith.addf %153, %261 : vector<64x32xf32>
    %263 = vector.broadcast %164 : vector<1x32xf32> to vector<64x32xf32>
    %264 = arith.addf %262, %263 : vector<64x32xf32>
    %265 = arith.truncf %264 : vector<64x32xf32> to vector<64x32xbf16>
    %c0_112 = arith.constant 0 : index
    %c0_113 = arith.constant 0 : index
    %c0_114 = arith.constant 0 : index
    %266 = vector.load %arg23[%c0_112, %c0_113, %c0_114] : memref<1x64x32xbf16, #tpu.memory_space<vmem>>, vector<1x64x32xbf16>
    %267 = vector.shape_cast %266 : vector<1x64x32xbf16> to vector<64x32xbf16>
    %268 = vector.shape_cast %265 : vector<64x32xbf16> to vector<1x64x32xbf16>
    tpu.vector_store %arg23[%c0_112, %c0_113, %c0_114], %268 {strides = array<i32>} : memref<1x64x32xbf16, #tpu.memory_space<vmem>>, vector<1x64x32xbf16>,
    return
  }
  func.func @transform_0(%arg0: i32) -> (i32, i32, i32) {
    %c0_i32 = arith.constant 0 : i32
    %c0_i32_0 = arith.constant 0 : i32
    %c0_i32_1 = arith.constant 0 : i32
    return %arg0, %c0_i32, %c0_i32_0 : i32, i32, i32
  }
  func.func @transform_1(%arg0: i32) -> (i32, i32) {
    %c0_i32 = arith.constant 0 : i32
    %c0_i32_0 = arith.constant 0 : i32
    %c0_i32_1 = arith.constant 0 : i32
    return %c0_i32, %c0_i32_0 : i32, i32
  }
  func.func @transform_2(%arg0: i32) -> (i32, i32) {
    %c0_i32 = arith.constant 0 : i32
    %c0_i32_0 = arith.constant 0 : i32
    %c0_i32_1 = arith.constant 0 : i32
    return %c0_i32, %c0_i32_0 : i32, i32
  }
  func.func @transform_3(%arg0: i32) -> (i32, i32) {
    %c0_i32 = arith.constant 0 : i32
    %c0_i32_0 = arith.constant 0 : i32
    %c0_i32_1 = arith.constant 0 : i32
    return %c0_i32, %c0_i32_0 : i32, i32
  }
  func.func @transform_4(%arg0: i32) -> (i32, i32) {
    %c0_i32 = arith.constant 0 : i32
    %c0_i32_0 = arith.constant 0 : i32
    %c0_i32_1 = arith.constant 0 : i32
    return %c0_i32, %c0_i32_0 : i32, i32
  }
  func.func @transform_5(%arg0: i32) -> (i32, i32) {
    %c0_i32 = arith.constant 0 : i32
    %c0_i32_0 = arith.constant 0 : i32
    %c0_i32_1 = arith.constant 0 : i32
    return %c0_i32, %c0_i32_0 : i32, i32
  }
  func.func @transform_6(%arg0: i32) -> (i32, i32) {
    %c0_i32 = arith.constant 0 : i32
    %c0_i32_0 = arith.constant 0 : i32
    %c0_i32_1 = arith.constant 0 : i32
    return %c0_i32, %c0_i32_0 : i32, i32
  }
  func.func @transform_7(%arg0: i32) -> (i32, i32) {
    %c0_i32 = arith.constant 0 : i32
    %c0_i32_0 = arith.constant 0 : i32
    %c0_i32_1 = arith.constant 0 : i32
    return %c0_i32, %c0_i32_0 : i32, i32
  }
  func.func @transform_8(%arg0: i32) -> (i32, i32) {
    %c0_i32 = arith.constant 0 : i32
    %c0_i32_0 = arith.constant 0 : i32
    %c0_i32_1 = arith.constant 0 : i32
    return %c0_i32, %c0_i32_0 : i32, i32
  }
  func.func @transform_9(%arg0: i32) -> (i32, i32) {
    %c0_i32 = arith.constant 0 : i32
    %c0_i32_0 = arith.constant 0 : i32
    %c0_i32_1 = arith.constant 0 : i32
    return %c0_i32, %c0_i32_0 : i32, i32
  }
  func.func @transform_10(%arg0: i32) -> (i32, i32) {
    %c0_i32 = arith.constant 0 : i32
    %c0_i32_0 = arith.constant 0 : i32
    %c0_i32_1 = arith.constant 0 : i32
    return %c0_i32, %c0_i32_0 : i32, i32
  }
  func.func @transform_11(%arg0: i32) -> (i32, i32) {
    %c0_i32 = arith.constant 0 : i32
    %c0_i32_0 = arith.constant 0 : i32
    %c0_i32_1 = arith.constant 0 : i32
    return %c0_i32, %c0_i32_0 : i32, i32
  }
  func.func @transform_12(%arg0: i32) -> (i32, i32) {
    %c0_i32 = arith.constant 0 : i32
    %c0_i32_0 = arith.constant 0 : i32
    %c0_i32_1 = arith.constant 0 : i32
    return %c0_i32, %c0_i32_0 : i32, i32
  }
  func.func @transform_13(%arg0: i32) -> (i32, i32) {
    %c0_i32 = arith.constant 0 : i32
    %c0_i32_0 = arith.constant 0 : i32
    %c0_i32_1 = arith.constant 0 : i32
    return %c0_i32, %c0_i32_0 : i32, i32
  }
  func.func @transform_14(%arg0: i32) -> (i32, i32) {
    %c0_i32 = arith.constant 0 : i32
    %c0_i32_0 = arith.constant 0 : i32
    %c0_i32_1 = arith.constant 0 : i32
    return %c0_i32, %c0_i32_0 : i32, i32
  }
  func.func @transform_15(%arg0: i32) -> (i32, i32) {
    %c0_i32 = arith.constant 0 : i32
    %c0_i32_0 = arith.constant 0 : i32
    %c0_i32_1 = arith.constant 0 : i32
    return %c0_i32, %c0_i32_0 : i32, i32
  }
  func.func @transform_16(%arg0: i32) -> (i32, i32) {
    %c0_i32 = arith.constant 0 : i32
    %c0_i32_0 = arith.constant 0 : i32
    %c0_i32_1 = arith.constant 0 : i32
    return %c0_i32, %c0_i32_0 : i32, i32
  }
  func.func @transform_17(%arg0: i32) -> (i32, i32) {
    %c0_i32 = arith.constant 0 : i32
    %c0_i32_0 = arith.constant 0 : i32
    %c0_i32_1 = arith.constant 0 : i32
    return %c0_i32, %c0_i32_0 : i32, i32
  }
  func.func @transform_18(%arg0: i32) -> (i32, i32) {
    %c0_i32 = arith.constant 0 : i32
    %c0_i32_0 = arith.constant 0 : i32
    %c0_i32_1 = arith.constant 0 : i32
    return %c0_i32, %c0_i32_0 : i32, i32
  }
  func.func @transform_19(%arg0: i32) -> (i32, i32) {
    %c0_i32 = arith.constant 0 : i32
    %c0_i32_0 = arith.constant 0 : i32
    %c0_i32_1 = arith.constant 0 : i32
    return %c0_i32, %c0_i32_0 : i32, i32
  }
  func.func @transform_20(%arg0: i32) -> (i32, i32) {
    %c0_i32 = arith.constant 0 : i32
    %c0_i32_0 = arith.constant 0 : i32
    %c0_i32_1 = arith.constant 0 : i32
    return %c0_i32, %c0_i32_0 : i32, i32
  }
  func.func @transform_21(%arg0: i32) -> (i32, i32) {
    %c0_i32 = arith.constant 0 : i32
    %c0_i32_0 = arith.constant 0 : i32
    %c0_i32_1 = arith.constant 0 : i32
    return %c0_i32, %c0_i32_0 : i32, i32
  }
  func.func @transform_22(%arg0: i32) -> (i32, i32, i32) {
    %c0_i32 = arith.constant 0 : i32
    %c0_i32_0 = arith.constant 0 : i32
    %c0_i32_1 = arith.constant 0 : i32
    return %arg0, %c0_i32, %c0_i32_0 : i32, i32, i32
  }
}

module attributes {stable_mosaic.version = 11 : i64} {
  func.func @_merge_res_kernel(%arg0: i32, %arg1: memref<1x64x32xbf16, #tpu.memory_space<vmem>>, %arg2: memref<1x64x32xbf16, #tpu.memory_space<vmem>>, %arg3: memref<64x2xf32, #tpu.memory_space<vmem>>, %arg4: memref<32x32xbf16, #tpu.memory_space<vmem>>, %arg5: memref<32x32xbf16, #tpu.memory_space<vmem>>, %arg6: memref<1x32xf32, #tpu.memory_space<vmem>>, %arg7: memref<1x32xf32, #tpu.memory_space<vmem>>, %arg8: memref<1x32xf32, #tpu.memory_space<vmem>>, %arg9: memref<32x16xbf16, #tpu.memory_space<vmem>>, %arg10: memref<1x16xf32, #tpu.memory_space<vmem>>, %arg11: memref<1x16xf32, #tpu.memory_space<vmem>>, %arg12: memref<1x16xf32, #tpu.memory_space<vmem>>, %arg13: memref<144x16xbf16, #tpu.memory_space<vmem>>, %arg14: memref<1x16xf32, #tpu.memory_space<vmem>>, %arg15: memref<1x16xf32, #tpu.memory_space<vmem>>, %arg16: memref<1x16xf32, #tpu.memory_space<vmem>>, %arg17: memref<16x32xbf16, #tpu.memory_space<vmem>>, %arg18: memref<1x32xf32, #tpu.memory_space<vmem>>, %arg19: memref<1x64x32xf32, #tpu.memory_space<vmem>>, %arg20: memref<96x16xf32, #tpu.memory_space<vmem>>, %arg21: memref<96x16xf32, #tpu.memory_space<vmem>>, %arg22: memref<96x16xf32, #tpu.memory_space<vmem>>) attributes {dimension_semantics = [#tpu.dimension_semantics<parallel>], iteration_bounds = array<i64: 2>, scalar_prefetch = 0 : i64, scratch_operands = 3 : i64, tpu.core_type = #tpu.core_type<tc>, window_params = [{transform_indices = @transform_0, window_bounds = array<i64: 1, 64, 32>}, {transform_indices = @transform_1, window_bounds = array<i64: 1, 64, 32>}, {pipeline_mode = #tpu.pipeline_mode<synchronous>, transform_indices = @transform_2, window_bounds = array<i64: 64, 2>}, {pipeline_mode = #tpu.pipeline_mode<synchronous>, transform_indices = @transform_3, window_bounds = array<i64: 32, 32>}, {pipeline_mode = #tpu.pipeline_mode<synchronous>, transform_indices = @transform_4, window_bounds = array<i64: 32, 32>}, {pipeline_mode = #tpu.pipeline_mode<synchronous>, transform_indices = @transform_5, window_bounds = array<i64: 1, 32>}, {pipeline_mode = #tpu.pipeline_mode<synchronous>, transform_indices = @transform_6, window_bounds = array<i64: 1, 32>}, {pipeline_mode = #tpu.pipeline_mode<synchronous>, transform_indices = @transform_7, window_bounds = array<i64: 1, 32>}, {pipeline_mode = #tpu.pipeline_mode<synchronous>, transform_indices = @transform_8, window_bounds = array<i64: 32, 16>}, {pipeline_mode = #tpu.pipeline_mode<synchronous>, transform_indices = @transform_9, window_bounds = array<i64: 1, 16>}, {pipeline_mode = #tpu.pipeline_mode<synchronous>, transform_indices = @transform_10, window_bounds = array<i64: 1, 16>}, {pipeline_mode = #tpu.pipeline_mode<synchronous>, transform_indices = @transform_11, window_bounds = array<i64: 1, 16>}, {pipeline_mode = #tpu.pipeline_mode<synchronous>, transform_indices = @transform_12, window_bounds = array<i64: 144, 16>}, {pipeline_mode = #tpu.pipeline_mode<synchronous>, transform_indices = @transform_13, window_bounds = array<i64: 1, 16>}, {pipeline_mode = #tpu.pipeline_mode<synchronous>, transform_indices = @transform_14, window_bounds = array<i64: 1, 16>}, {pipeline_mode = #tpu.pipeline_mode<synchronous>, transform_indices = @transform_15, window_bounds = array<i64: 1, 16>}, {pipeline_mode = #tpu.pipeline_mode<synchronous>, transform_indices = @transform_16, window_bounds = array<i64: 16, 32>}, {pipeline_mode = #tpu.pipeline_mode<synchronous>, transform_indices = @transform_17, window_bounds = array<i64: 1, 32>}, {transform_indices = @transform_18, window_bounds = array<i64: 1, 64, 32>}]} {
    %c0 = arith.constant 0 : index
    %c0_0 = arith.constant 0 : index
    %c0_1 = arith.constant 0 : index
    %0 = vector.load %arg1[%c0, %c0_0, %c0_1] : memref<1x64x32xbf16, #tpu.memory_space<vmem>>, vector<1x64x32xbf16>
    %1 = vector.shape_cast %0 : vector<1x64x32xbf16> to vector<64x32xbf16>
    %c0_2 = arith.constant 0 : index
    %c0_3 = arith.constant 0 : index
    %2 = vector.load %arg4[%c0_2, %c0_3] : memref<32x32xbf16, #tpu.memory_space<vmem>>, vector<32x32xbf16>
    %cst = arith.constant dense<0.000000e+00> : vector<64x32xf32>
    %3 = tpu.matmul %1, %2, %cst {dimension_numbers = #tpu.dot_dimension_numbers<[1], [0], [0], [1], [0, 0, 1, 1], [], []>} : vector<64x32xbf16>, vector<32x32xbf16>, vector<64x32xf32> -> vector<64x32xf32>
    %c0_4 = arith.constant 0 : index
    %c0_5 = arith.constant 0 : index
    %c0_6 = arith.constant 0 : index
    %4 = vector.load %arg2[%c0_4, %c0_5, %c0_6] : memref<1x64x32xbf16, #tpu.memory_space<vmem>>, vector<1x64x32xbf16>
    %5 = vector.shape_cast %4 : vector<1x64x32xbf16> to vector<64x32xbf16>
    %c0_7 = arith.constant 0 : index
    %c0_8 = arith.constant 0 : index
    %6 = vector.load %arg5[%c0_7, %c0_8] : memref<32x32xbf16, #tpu.memory_space<vmem>>, vector<32x32xbf16>
    %cst_9 = arith.constant dense<0.000000e+00> : vector<64x32xf32>
    %7 = tpu.matmul %5, %6, %cst_9 {dimension_numbers = #tpu.dot_dimension_numbers<[1], [0], [0], [1], [0, 0, 1, 1], [], []>} : vector<64x32xbf16>, vector<32x32xbf16>, vector<64x32xf32> -> vector<64x32xf32>
    %8 = arith.addf %3, %7 : vector<64x32xf32>
    %c0_10 = arith.constant 0 : index
    %c0_11 = arith.constant 0 : index
    %9 = vector.load %arg6[%c0_10, %c0_11] : memref<1x32xf32, #tpu.memory_space<vmem>>, vector<1x32xf32>
    %10 = vector.broadcast %9 : vector<1x32xf32> to vector<64x32xf32>
    %11 = arith.addf %8, %10 : vector<64x32xf32>
    %cst_12 = arith.constant 0.000000e+00 : f32
    %12 = vector.broadcast %cst_12 : f32 to vector<64x32xf32>
    %13 = arith.maximumf %11, %12 : vector<64x32xf32>
    %c0_13 = arith.constant 0 : index
    %c0_14 = arith.constant 0 : index
    %14 = vector.load %arg7[%c0_13, %c0_14] : memref<1x32xf32, #tpu.memory_space<vmem>>, vector<1x32xf32>
    %15 = vector.broadcast %14 : vector<1x32xf32> to vector<64x32xf32>
    %16 = arith.mulf %13, %15 : vector<64x32xf32>
    %c0_15 = arith.constant 0 : index
    %c0_16 = arith.constant 0 : index
    %17 = vector.load %arg8[%c0_15, %c0_16] : memref<1x32xf32, #tpu.memory_space<vmem>>, vector<1x32xf32>
    %18 = vector.broadcast %17 : vector<1x32xf32> to vector<64x32xf32>
    %19 = arith.addf %16, %18 : vector<64x32xf32>
    %cst_17 = arith.constant 0.000000e+00 : f32
    %20 = vector.broadcast %cst_17 : f32 to vector<64x32xf32>
    %21 = arith.maximumf %19, %20 : vector<64x32xf32>
    %22 = arith.truncf %21 : vector<64x32xf32> to vector<64x32xbf16>
    %c0_18 = arith.constant 0 : index
    %c0_19 = arith.constant 0 : index
    %23 = vector.load %arg9[%c0_18, %c0_19] : memref<32x16xbf16, #tpu.memory_space<vmem>>, vector<32x16xbf16>
    %cst_20 = arith.constant dense<0.000000e+00> : vector<64x16xf32>
    %24 = tpu.matmul %22, %23, %cst_20 {dimension_numbers = #tpu.dot_dimension_numbers<[1], [0], [0], [1], [0, 0, 1, 1], [], []>} : vector<64x32xbf16>, vector<32x16xbf16>, vector<64x16xf32> -> vector<64x16xf32>
    %c0_21 = arith.constant 0 : index
    %c0_22 = arith.constant 0 : index
    %25 = vector.load %arg10[%c0_21, %c0_22] : memref<1x16xf32, #tpu.memory_space<vmem>>, vector<1x16xf32>
    %26 = vector.broadcast %25 : vector<1x16xf32> to vector<64x16xf32>
    %27 = arith.addf %24, %26 : vector<64x16xf32>
    %c0_23 = arith.constant 0 : index
    %c0_24 = arith.constant 0 : index
    %28 = vector.load %arg11[%c0_23, %c0_24] : memref<1x16xf32, #tpu.memory_space<vmem>>, vector<1x16xf32>
    %29 = vector.broadcast %28 : vector<1x16xf32> to vector<64x16xf32>
    %30 = arith.mulf %27, %29 : vector<64x16xf32>
    %c0_25 = arith.constant 0 : index
    %c0_26 = arith.constant 0 : index
    %31 = vector.load %arg12[%c0_25, %c0_26] : memref<1x16xf32, #tpu.memory_space<vmem>>, vector<1x16xf32>
    %32 = vector.broadcast %31 : vector<1x16xf32> to vector<64x16xf32>
    %33 = arith.addf %30, %32 : vector<64x16xf32>
    %cst_27 = arith.constant 0.000000e+00 : f32
    %34 = vector.broadcast %cst_27 : f32 to vector<64x16xf32>
    %35 = arith.maximumf %33, %34 : vector<64x16xf32>
    %c0_28 = arith.constant 0 : index
    %c0_29 = arith.constant 0 : index
    %36 = vector.load %arg3[%c0_28, %c0_29] : memref<64x2xf32, #tpu.memory_space<vmem>>, vector<64x2xf32>
    %cst_30 = arith.constant 0.000000e+00 : f32
    %37 = vector.broadcast %cst_30 : f32 to vector<16x16xf32>
    %38 = vector.extract_strided_slice %36 {offsets = [0, 0], sizes = [64, 1], strides = [1, 1]} : vector<64x2xf32> to vector<64x1xf32>
    %39 = vector.broadcast %38 : vector<64x1xf32> to vector<64x16xf32>
    %40 = arith.mulf %35, %39 : vector<64x16xf32>
    %41 = vector.extract_strided_slice %36 {offsets = [0, 1], sizes = [64, 1], strides = [1, 1]} : vector<64x2xf32> to vector<64x1xf32>
    %42 = vector.broadcast %41 : vector<64x1xf32> to vector<64x16xf32>
    %43 = arith.mulf %35, %42 : vector<64x16xf32>
    %c0_31 = arith.constant 0 : index
    %c0_32 = arith.constant 0 : index
    %44 = vector.load %arg20[%c0_31, %c0_32] : memref<96x16xf32, #tpu.memory_space<vmem>>, vector<16x16xf32>
    tpu.vector_store %arg20[%c0_31, %c0_32], %37 {strides = array<i32>} : memref<96x16xf32, #tpu.memory_space<vmem>>, vector<16x16xf32>,
    %c16 = arith.constant 16 : index
    %c0_33 = arith.constant 0 : index
    %45 = vector.load %arg20[%c16, %c0_33] : memref<96x16xf32, #tpu.memory_space<vmem>>, vector<64x16xf32>
    tpu.vector_store %arg20[%c16, %c0_33], %35 {strides = array<i32>} : memref<96x16xf32, #tpu.memory_space<vmem>>, vector<64x16xf32>,
    %c80 = arith.constant 80 : index
    %c0_34 = arith.constant 0 : index
    %46 = vector.load %arg20[%c80, %c0_34] : memref<96x16xf32, #tpu.memory_space<vmem>>, vector<16x16xf32>
    tpu.vector_store %arg20[%c80, %c0_34], %37 {strides = array<i32>} : memref<96x16xf32, #tpu.memory_space<vmem>>, vector<16x16xf32>,
    %c0_35 = arith.constant 0 : index
    %c0_36 = arith.constant 0 : index
    %47 = vector.load %arg21[%c0_35, %c0_36] : memref<96x16xf32, #tpu.memory_space<vmem>>, vector<16x16xf32>
    tpu.vector_store %arg21[%c0_35, %c0_36], %37 {strides = array<i32>} : memref<96x16xf32, #tpu.memory_space<vmem>>, vector<16x16xf32>,
    %c16_37 = arith.constant 16 : index
    %c0_38 = arith.constant 0 : index
    %48 = vector.load %arg21[%c16_37, %c0_38] : memref<96x16xf32, #tpu.memory_space<vmem>>, vector<64x16xf32>
    tpu.vector_store %arg21[%c16_37, %c0_38], %40 {strides = array<i32>} : memref<96x16xf32, #tpu.memory_space<vmem>>, vector<64x16xf32>,
    %c80_39 = arith.constant 80 : index
    %c0_40 = arith.constant 0 : index
    %49 = vector.load %arg21[%c80_39, %c0_40] : memref<96x16xf32, #tpu.memory_space<vmem>>, vector<16x16xf32>
    tpu.vector_store %arg21[%c80_39, %c0_40], %37 {strides = array<i32>} : memref<96x16xf32, #tpu.memory_space<vmem>>, vector<16x16xf32>,
    %c0_41 = arith.constant 0 : index
    %c0_42 = arith.constant 0 : index
    %50 = vector.load %arg22[%c0_41, %c0_42] : memref<96x16xf32, #tpu.memory_space<vmem>>, vector<16x16xf32>
    tpu.vector_store %arg22[%c0_41, %c0_42], %37 {strides = array<i32>} : memref<96x16xf32, #tpu.memory_space<vmem>>, vector<16x16xf32>,
    %c16_43 = arith.constant 16 : index
    %c0_44 = arith.constant 0 : index
    %51 = vector.load %arg22[%c16_43, %c0_44] : memref<96x16xf32, #tpu.memory_space<vmem>>, vector<64x16xf32>
    tpu.vector_store %arg22[%c16_43, %c0_44], %43 {strides = array<i32>} : memref<96x16xf32, #tpu.memory_space<vmem>>, vector<64x16xf32>,
    %c80_45 = arith.constant 80 : index
    %c0_46 = arith.constant 0 : index
    %52 = vector.load %arg22[%c80_45, %c0_46] : memref<96x16xf32, #tpu.memory_space<vmem>>, vector<16x16xf32>
    tpu.vector_store %arg22[%c80_45, %c0_46], %37 {strides = array<i32>} : memref<96x16xf32, #tpu.memory_space<vmem>>, vector<16x16xf32>,
    %c0_47 = arith.constant 0 : index
    %c0_48 = arith.constant 0 : index
    %53 = vector.load %arg13[%c0_47, %c0_48] : memref<144x16xbf16, #tpu.memory_space<vmem>>, vector<144x16xbf16>
    %c0_49 = arith.constant 0 : index
    %c0_50 = arith.constant 0 : index
    %54 = vector.load %arg14[%c0_49, %c0_50] : memref<1x16xf32, #tpu.memory_space<vmem>>, vector<1x16xf32>
    %c7 = arith.constant 7 : index
    %c0_51 = arith.constant 0 : index
    %55 = vector.load %arg21[%c7, %c0_51] : memref<96x16xf32, #tpu.memory_space<vmem>>, vector<64x16xf32>
    %c8 = arith.constant 8 : index
    %c0_52 = arith.constant 0 : index
    %56 = vector.load %arg20[%c8, %c0_52] : memref<96x16xf32, #tpu.memory_space<vmem>>, vector<64x16xf32>
    %c9 = arith.constant 9 : index
    %c0_53 = arith.constant 0 : index
    %57 = vector.load %arg22[%c9, %c0_53] : memref<96x16xf32, #tpu.memory_space<vmem>>, vector<64x16xf32>
    %c15 = arith.constant 15 : index
    %c0_54 = arith.constant 0 : index
    %58 = vector.load %arg21[%c15, %c0_54] : memref<96x16xf32, #tpu.memory_space<vmem>>, vector<64x16xf32>
    %c16_55 = arith.constant 16 : index
    %c0_56 = arith.constant 0 : index
    %59 = vector.load %arg20[%c16_55, %c0_56] : memref<96x16xf32, #tpu.memory_space<vmem>>, vector<64x16xf32>
    %c17 = arith.constant 17 : index
    %c0_57 = arith.constant 0 : index
    %60 = vector.load %arg22[%c17, %c0_57] : memref<96x16xf32, #tpu.memory_space<vmem>>, vector<64x16xf32>
    %c23 = arith.constant 23 : index
    %c0_58 = arith.constant 0 : index
    %61 = vector.load %arg21[%c23, %c0_58] : memref<96x16xf32, #tpu.memory_space<vmem>>, vector<64x16xf32>
    %c24 = arith.constant 24 : index
    %c0_59 = arith.constant 0 : index
    %62 = vector.load %arg20[%c24, %c0_59] : memref<96x16xf32, #tpu.memory_space<vmem>>, vector<64x16xf32>
    %c25 = arith.constant 25 : index
    %c0_60 = arith.constant 0 : index
    %63 = vector.load %arg22[%c25, %c0_60] : memref<96x16xf32, #tpu.memory_space<vmem>>, vector<64x16xf32>
    %64 = tpu.concatenate %55, %56, %57, %58, %59, %60, %61, %62, %63 in 1 : vector<64x16xf32>, vector<64x16xf32>, vector<64x16xf32>, vector<64x16xf32>, vector<64x16xf32>, vector<64x16xf32>, vector<64x16xf32>, vector<64x16xf32>, vector<64x16xf32> -> vector<64x144xf32>
    %65 = arith.truncf %64 : vector<64x144xf32> to vector<64x144xbf16>
    %cst_61 = arith.constant dense<0.000000e+00> : vector<64x16xf32>
    %66 = tpu.matmul %65, %53, %cst_61 {dimension_numbers = #tpu.dot_dimension_numbers<[1], [0], [0], [1], [0, 0, 1, 1], [], []>} : vector<64x144xbf16>, vector<144x16xbf16>, vector<64x16xf32> -> vector<64x16xf32>
    %67 = vector.broadcast %54 : vector<1x16xf32> to vector<64x16xf32>
    %68 = arith.addf %66, %67 : vector<64x16xf32>
    %c0_62 = arith.constant 0 : index
    %c0_63 = arith.constant 0 : index
    %69 = vector.load %arg15[%c0_62, %c0_63] : memref<1x16xf32, #tpu.memory_space<vmem>>, vector<1x16xf32>
    %70 = vector.broadcast %69 : vector<1x16xf32> to vector<64x16xf32>
    %71 = arith.mulf %68, %70 : vector<64x16xf32>
    %c0_64 = arith.constant 0 : index
    %c0_65 = arith.constant 0 : index
    %72 = vector.load %arg16[%c0_64, %c0_65] : memref<1x16xf32, #tpu.memory_space<vmem>>, vector<1x16xf32>
    %73 = vector.broadcast %72 : vector<1x16xf32> to vector<64x16xf32>
    %74 = arith.addf %71, %73 : vector<64x16xf32>
    %cst_66 = arith.constant 0.000000e+00 : f32
    %75 = vector.broadcast %cst_66 : f32 to vector<64x16xf32>
    %76 = arith.maximumf %74, %75 : vector<64x16xf32>
    %77 = arith.truncf %76 : vector<64x16xf32> to vector<64x16xbf16>
    %c0_67 = arith.constant 0 : index
    %c0_68 = arith.constant 0 : index
    %78 = vector.load %arg17[%c0_67, %c0_68] : memref<16x32xbf16, #tpu.memory_space<vmem>>, vector<16x32xbf16>
    %cst_69 = arith.constant dense<0.000000e+00> : vector<64x32xf32>
    %79 = tpu.matmul %77, %78, %cst_69 {dimension_numbers = #tpu.dot_dimension_numbers<[1], [0], [0], [1], [0, 0, 1, 1], [], []>} : vector<64x16xbf16>, vector<16x32xbf16>, vector<64x32xf32> -> vector<64x32xf32>
    %c0_70 = arith.constant 0 : index
    %c0_71 = arith.constant 0 : index
    %80 = vector.load %arg18[%c0_70, %c0_71] : memref<1x32xf32, #tpu.memory_space<vmem>>, vector<1x32xf32>
    %81 = vector.broadcast %80 : vector<1x32xf32> to vector<64x32xf32>
    %82 = arith.addf %79, %81 : vector<64x32xf32>
    %83 = arith.addf %82, %13 : vector<64x32xf32>
    %c0_72 = arith.constant 0 : index
    %c0_73 = arith.constant 0 : index
    %c0_74 = arith.constant 0 : index
    %84 = vector.load %arg19[%c0_72, %c0_73, %c0_74] : memref<1x64x32xf32, #tpu.memory_space<vmem>>, vector<1x64x32xf32>
    %85 = vector.shape_cast %84 : vector<1x64x32xf32> to vector<64x32xf32>
    %86 = vector.shape_cast %83 : vector<64x32xf32> to vector<1x64x32xf32>
    tpu.vector_store %arg19[%c0_72, %c0_73, %c0_74], %86 {strides = array<i32>} : memref<1x64x32xf32, #tpu.memory_space<vmem>>, vector<1x64x32xf32>,
    return
  }
  func.func @transform_0(%arg0: i32) -> (i32, i32, i32) {
    %c0_i32 = arith.constant 0 : i32
    %c0_i32_0 = arith.constant 0 : i32
    %c0_i32_1 = arith.constant 0 : i32
    return %arg0, %c0_i32, %c0_i32_0 : i32, i32, i32
  }
  func.func @transform_1(%arg0: i32) -> (i32, i32, i32) {
    %c0_i32 = arith.constant 0 : i32
    %c0_i32_0 = arith.constant 0 : i32
    %c0_i32_1 = arith.constant 0 : i32
    return %arg0, %c0_i32, %c0_i32_0 : i32, i32, i32
  }
  func.func @transform_2(%arg0: i32) -> (i32, i32) {
    %c0_i32 = arith.constant 0 : i32
    %c0_i32_0 = arith.constant 0 : i32
    %c0_i32_1 = arith.constant 0 : i32
    return %c0_i32, %c0_i32_0 : i32, i32
  }
  func.func @transform_3(%arg0: i32) -> (i32, i32) {
    %c0_i32 = arith.constant 0 : i32
    %c0_i32_0 = arith.constant 0 : i32
    %c0_i32_1 = arith.constant 0 : i32
    return %c0_i32, %c0_i32_0 : i32, i32
  }
  func.func @transform_4(%arg0: i32) -> (i32, i32) {
    %c0_i32 = arith.constant 0 : i32
    %c0_i32_0 = arith.constant 0 : i32
    %c0_i32_1 = arith.constant 0 : i32
    return %c0_i32, %c0_i32_0 : i32, i32
  }
  func.func @transform_5(%arg0: i32) -> (i32, i32) {
    %c0_i32 = arith.constant 0 : i32
    %c0_i32_0 = arith.constant 0 : i32
    %c0_i32_1 = arith.constant 0 : i32
    return %c0_i32, %c0_i32_0 : i32, i32
  }
  func.func @transform_6(%arg0: i32) -> (i32, i32) {
    %c0_i32 = arith.constant 0 : i32
    %c0_i32_0 = arith.constant 0 : i32
    %c0_i32_1 = arith.constant 0 : i32
    return %c0_i32, %c0_i32_0 : i32, i32
  }
  func.func @transform_7(%arg0: i32) -> (i32, i32) {
    %c0_i32 = arith.constant 0 : i32
    %c0_i32_0 = arith.constant 0 : i32
    %c0_i32_1 = arith.constant 0 : i32
    return %c0_i32, %c0_i32_0 : i32, i32
  }
  func.func @transform_8(%arg0: i32) -> (i32, i32) {
    %c0_i32 = arith.constant 0 : i32
    %c0_i32_0 = arith.constant 0 : i32
    %c0_i32_1 = arith.constant 0 : i32
    return %c0_i32, %c0_i32_0 : i32, i32
  }
  func.func @transform_9(%arg0: i32) -> (i32, i32) {
    %c0_i32 = arith.constant 0 : i32
    %c0_i32_0 = arith.constant 0 : i32
    %c0_i32_1 = arith.constant 0 : i32
    return %c0_i32, %c0_i32_0 : i32, i32
  }
  func.func @transform_10(%arg0: i32) -> (i32, i32) {
    %c0_i32 = arith.constant 0 : i32
    %c0_i32_0 = arith.constant 0 : i32
    %c0_i32_1 = arith.constant 0 : i32
    return %c0_i32, %c0_i32_0 : i32, i32
  }
  func.func @transform_11(%arg0: i32) -> (i32, i32) {
    %c0_i32 = arith.constant 0 : i32
    %c0_i32_0 = arith.constant 0 : i32
    %c0_i32_1 = arith.constant 0 : i32
    return %c0_i32, %c0_i32_0 : i32, i32
  }
  func.func @transform_12(%arg0: i32) -> (i32, i32) {
    %c0_i32 = arith.constant 0 : i32
    %c0_i32_0 = arith.constant 0 : i32
    %c0_i32_1 = arith.constant 0 : i32
    return %c0_i32, %c0_i32_0 : i32, i32
  }
  func.func @transform_13(%arg0: i32) -> (i32, i32) {
    %c0_i32 = arith.constant 0 : i32
    %c0_i32_0 = arith.constant 0 : i32
    %c0_i32_1 = arith.constant 0 : i32
    return %c0_i32, %c0_i32_0 : i32, i32
  }
  func.func @transform_14(%arg0: i32) -> (i32, i32) {
    %c0_i32 = arith.constant 0 : i32
    %c0_i32_0 = arith.constant 0 : i32
    %c0_i32_1 = arith.constant 0 : i32
    return %c0_i32, %c0_i32_0 : i32, i32
  }
  func.func @transform_15(%arg0: i32) -> (i32, i32) {
    %c0_i32 = arith.constant 0 : i32
    %c0_i32_0 = arith.constant 0 : i32
    %c0_i32_1 = arith.constant 0 : i32
    return %c0_i32, %c0_i32_0 : i32, i32
  }
  func.func @transform_16(%arg0: i32) -> (i32, i32) {
    %c0_i32 = arith.constant 0 : i32
    %c0_i32_0 = arith.constant 0 : i32
    %c0_i32_1 = arith.constant 0 : i32
    return %c0_i32, %c0_i32_0 : i32, i32
  }
  func.func @transform_17(%arg0: i32) -> (i32, i32) {
    %c0_i32 = arith.constant 0 : i32
    %c0_i32_0 = arith.constant 0 : i32
    %c0_i32_1 = arith.constant 0 : i32
    return %c0_i32, %c0_i32_0 : i32, i32
  }
  func.func @transform_18(%arg0: i32) -> (i32, i32, i32) {
    %c0_i32 = arith.constant 0 : i32
    %c0_i32_0 = arith.constant 0 : i32
    %c0_i32_1 = arith.constant 0 : i32
    return %arg0, %c0_i32, %c0_i32_0 : i32, i32, i32
  }
}

</mosaic_0001>

<llo_original>
// kernel: dpvt_forward.5
$region0: #{dpvt_forward.5}
  #allocation0 [shape = 'u32[]', space=smem, size = 0x4, offset = 0x4, fixed_abs, tag = 'smem constant byte address 0x4 - core index']
  #allocation1 [shape = 'u32[144,128]{1,0:T(1,128)}', space=vmem, size = 0x12000, scoped, tag = 'internal scratch']
  #allocation2 [shape = 'f32[96,16]{1,0:T(8,128)}', space=vmem, size = 0xc000, scoped, tag = 'scratch operand']
  #allocation3 [shape = 'f32[96,16]{1,0:T(8,128)}', space=vmem, size = 0xc000, scoped, tag = 'scratch operand']
  #allocation4 [shape = 'f32[96,16]{1,0:T(8,128)}', space=vmem, size = 0xc000, scoped, tag = 'scratch operand']
  %s0 = inlined_call_operand.vmem [shape: bf16[2,64,32], index: 0, kind: input, shape index: {}]
  %s1 = inlined_call_operand.vmem [shape: bf16[2,64,32], index: 1, kind: input, shape index: {}]
  %s2 = inlined_call_operand.vmem [shape: f32[64,2], index: 2, kind: input, shape index: {}]
  %s3 = inlined_call_operand.vmem [shape: bf16[32,32], index: 3, kind: input, shape index: {}]
  %s4 = inlined_call_operand.vmem [shape: bf16[32,32], index: 4, kind: input, shape index: {}]
  %s5 = inlined_call_operand.vmem [shape: f32[1,32], index: 5, kind: input, shape index: {}]
  %s6 = inlined_call_operand.vmem [shape: f32[1,32], index: 6, kind: input, shape index: {}]
  %s7 = inlined_call_operand.vmem [shape: f32[1,32], index: 7, kind: input, shape index: {}]
  %s8 = inlined_call_operand.vmem [shape: bf16[32,16], index: 8, kind: input, shape index: {}]
  %s9 = inlined_call_operand.vmem [shape: f32[1,16], index: 9, kind: input, shape index: {}]
  %s10 = inlined_call_operand.vmem [shape: f32[1,16], index: 10, kind: input, shape index: {}]
  %s11 = inlined_call_operand.vmem [shape: f32[1,16], index: 11, kind: input, shape index: {}]
  %s12 = inlined_call_operand.vmem [shape: bf16[144,16], index: 12, kind: input, shape index: {}]
  %s13 = inlined_call_operand.vmem [shape: f32[1,16], index: 13, kind: input, shape index: {}]
  %s14 = inlined_call_operand.vmem [shape: f32[1,16], index: 14, kind: input, shape index: {}]
  %s15 = inlined_call_operand.vmem [shape: f32[1,16], index: 15, kind: input, shape index: {}]
  %s16 = inlined_call_operand.vmem [shape: bf16[16,32], index: 16, kind: input, shape index: {}]
  %s17 = inlined_call_operand.vmem [shape: f32[1,32], index: 17, kind: input, shape index: {}]
  %s18 = inlined_call_operand.vmem [shape: f32[2,64,32], index: 18, kind: output, shape index: {}]
  %s19 = sld [smem:[#allocation0]]
  $region105: #{dpvt_forward.5} parent=0
    _
  %s21 = ssub.s32 1, %s19
  %s22 = scalar_select 0, %s21, %s19
  loop: start=0, step=1, limit=4
  $region2: #{dpvt_forward.5} parent=0 // loop_pre_header
    _
  $region3: #{dpvt_forward.5} parent=0 // loop_header
    %s24 = sphi 0, %s28
    %p25 = scmp.ge.s32.totalorder %s24, 4
    %s34 = sphi 0, %s36
    %s37 = sphi 0, %s34
    %s38 = sphi 0, %s37
    %s54 = sphi 0, %s38
    %s60 = sphi 0, %s62
    %s63 = sphi 0, %s60
    %s64 = sphi 0, %s63
    %s80 = sphi 0, %s64
    %s84 = sphi 0, %s84
    %s86 = sphi 0, %s84
    %s87 = sphi 0, %s86
    %s101 = sphi 0, %s87
    %s105 = sphi 0, %s105
    %s107 = sphi 0, %s105
    %s108 = sphi 0, %s107
    %s122 = sphi 0, %s108
    %s126 = sphi 0, %s126
    %s128 = sphi 0, %s126
    %s129 = sphi 0, %s128
    %s143 = sphi 0, %s129
    %s147 = sphi 0, %s147
    %s149 = sphi 0, %s147
    %s150 = sphi 0, %s149
    %s164 = sphi 0, %s150
    %s168 = sphi 0, %s168
    %s170 = sphi 0, %s168
    %s171 = sphi 0, %s170
    %s185 = sphi 0, %s171
    %s189 = sphi 0, %s189
    %s191 = sphi 0, %s189
    %s192 = sphi 0, %s191
    %s206 = sphi 0, %s192
    %s210 = sphi 0, %s210
    %s212 = sphi 0, %s210
    %s213 = sphi 0, %s212
    %s227 = sphi 0, %s213
    %s231 = sphi 0, %s231
    %s233 = sphi 0, %s231
    %s234 = sphi 0, %s233
    %s248 = sphi 0, %s234
    %s252 = sphi 0, %s252
    %s254 = sphi 0, %s252
    %s255 = sphi 0, %s254
    %s269 = sphi 0, %s255
    %s273 = sphi 0, %s273
    %s275 = sphi 0, %s273
    %s276 = sphi 0, %s275
    %s290 = sphi 0, %s276
    %s294 = sphi 0, %s294
    %s296 = sphi 0, %s294
    %s297 = sphi 0, %s296
    %s311 = sphi 0, %s297
    %s315 = sphi 0, %s315
    %s317 = sphi 0, %s315
    %s318 = sphi 0, %s317
    %s332 = sphi 0, %s318
    %s336 = sphi 0, %s336
    %s338 = sphi 0, %s336
    %s339 = sphi 0, %s338
    %s353 = sphi 0, %s339
    %s357 = sphi 0, %s357
    %s359 = sphi 0, %s357
    %s360 = sphi 0, %s359
    %s374 = sphi 0, %s360
    %s378 = sphi 0, %s378
    %s380 = sphi 0, %s378
    %s381 = sphi 0, %s380
    %s395 = sphi 0, %s381
    %s399 = sphi 0, %s399
    %s401 = sphi 0, %s399
    %s402 = sphi 0, %s401
    %s416 = sphi 0, %s402
    %s422 = sphi 0, %s424
    %s425 = sphi 0, %s422
    %s426 = sphi 0, %s425
    %s442 = sphi 0, %s426
  $region4: #{dpvt_forward.5} parent=0 // loop_header_branch
    %27 = sbr.rel (%p25) target = $region8
  $region5: #{dpvt_forward.5} parent=0 // loop_body
    %s29 = ssub.s32 %s24, 1
    %s30 = ssub.s32 %s24, 2
    %s31 = sadd.s32 %s24, 1
    %s32 = ssub.s32 %s24, %s31
    %p33 = scmp.eq.s32.totalorder %s32, 0
    %s35 = sadd.s32 %s34, 1
    %s36 = scalar_select %p33, %s34, %s35
    %p39 = pneg %p33
    %p40 = scmp.eq.s32.totalorder %s24, 1
    %p41 = por %p39, %p40
    %p42 = scmp.ne.s32.totalorder %s34, %s37
    %p43 = scmp.eq.s32.totalorder %s24, 0
    %p44 = por %p42, %p43
    %p45 = scmp.ne.s32.totalorder %s34, %s37
    %p46 = scmp.eq.s32.totalorder %s29, 1
    %p47 = por %p45, %p46
    %p48 = scmp.ne.s32.totalorder %s37, %s38
    %p49 = scmp.eq.s32.totalorder %s29, 0
    %p50 = por %p48, %p49
    %p51 = scmp.ne.s32.totalorder %s37, %s38
    %p52 = scmp.eq.s32.totalorder %s30, 1
    %p53 = por %p51, %p52
    %p55 = scmp.ne.s32.totalorder %s38, %s54
    %p56 = scmp.eq.s32.totalorder %s30, 0
    %p57 = por %p55, %p56
    %s58 = ssub.s32 %s24, %s31
    %p59 = scmp.eq.s32.totalorder %s58, 0
    %s61 = sadd.s32 %s60, 1
    %s62 = scalar_select %p59, %s60, %s61
    %p65 = pneg %p59
    %p66 = scmp.eq.s32.totalorder %s24, 1
    %p67 = por %p65, %p66
    %p68 = scmp.ne.s32.totalorder %s60, %s63
    %p69 = scmp.eq.s32.totalorder %s24, 0
    %p70 = por %p68, %p69
    %p71 = scmp.ne.s32.totalorder %s60, %s63
    %p72 = scmp.eq.s32.totalorder %s29, 1
    %p73 = por %p71, %p72
    %p74 = scmp.ne.s32.totalorder %s63, %s64
    %p75 = scmp.eq.s32.totalorder %s29, 0
    %p76 = por %p74, %p75
    %p77 = scmp.ne.s32.totalorder %s63, %s64
    %p78 = scmp.eq.s32.totalorder %s30, 1
    %p79 = por %p77, %p78
    %p81 = scmp.ne.s32.totalorder %s64, %s80
    %p82 = scmp.eq.s32.totalorder %s30, 0
    %p83 = por %p81, %p82
    %s85 = sadd.s32 %s84, 1
    %p88 = scmp.eq.s32.totalorder %s24, 1
    %p89 = scmp.ne.s32.totalorder %s84, %s86
    %p90 = scmp.eq.s32.totalorder %s24, 0
    %p91 = por %p89, %p90
    %p92 = scmp.ne.s32.totalorder %s84, %s86
    %p93 = scmp.eq.s32.totalorder %s29, 1
    %p94 = por %p92, %p93
    %p95 = scmp.ne.s32.totalorder %s86, %s87
    %p96 = scmp.eq.s32.totalorder %s29, 0
    %p97 = por %p95, %p96
    %p98 = scmp.ne.s32.totalorder %s86, %s87
    %p99 = scmp.eq.s32.totalorder %s30, 1
    %p100 = por %p98, %p99
    %p102 = scmp.ne.s32.totalorder %s87, %s101
    %p103 = scmp.eq.s32.totalorder %s30, 0
    %p104 = por %p102, %p103
    %s106 = sadd.s32 %s105, 1
    %p109 = scmp.eq.s32.totalorder %s24, 1
    %p110 = scmp.ne.s32.totalorder %s105, %s107
    %p111 = scmp.eq.s32.totalorder %s24, 0
    %p112 = por %p110, %p111
    %p113 = scmp.ne.s32.totalorder %s105, %s107
    %p114 = scmp.eq.s32.totalorder %s29, 1
    %p115 = por %p113, %p114
    %p116 = scmp.ne.s32.totalorder %s107, %s108
    %p117 = scmp.eq.s32.totalorder %s29, 0
    %p118 = por %p116, %p117
    %p119 = scmp.ne.s32.totalorder %s107, %s108
    %p120 = scmp.eq.s32.totalorder %s30, 1
    %p121 = por %p119, %p120
    %p123 = scmp.ne.s32.totalorder %s108, %s122
    %p124 = scmp.eq.s32.totalorder %s30, 0
    %p125 = por %p123, %p124
    %s127 = sadd.s32 %s126, 1
    %p130 = scmp.eq.s32.totalorder %s24, 1
    %p131 = scmp.ne.s32.totalorder %s126, %s128
    %p132 = scmp.eq.s32.totalorder %s24, 0
    %p133 = por %p131, %p132
    %p134 = scmp.ne.s32.totalorder %s126, %s128
    %p135 = scmp.eq.s32.totalorder %s29, 1
    %p136 = por %p134, %p135
    %p137 = scmp.ne.s32.totalorder %s128, %s129
    %p138 = scmp.eq.s32.totalorder %s29, 0
    %p139 = por %p137, %p138
    %p140 = scmp.ne.s32.totalorder %s128, %s129
    %p141 = scmp.eq.s32.totalorder %s30, 1
    %p142 = por %p140, %p141
    %p144 = scmp.ne.s32.totalorder %s129, %s143
    %p145 = scmp.eq.s32.totalorder %s30, 0
    %p146 = por %p144, %p145
    %s148 = sadd.s32 %s147, 1
    %p151 = scmp.eq.s32.totalorder %s24, 1
    %p152 = scmp.ne.s32.totalorder %s147, %s149
    %p153 = scmp.eq.s32.totalorder %s24, 0
    %p154 = por %p152, %p153
    %p155 = scmp.ne.s32.totalorder %s147, %s149
    %p156 = scmp.eq.s32.totalorder %s29, 1
    %p157 = por %p155, %p156
    %p158 = scmp.ne.s32.totalorder %s149, %s150
    %p159 = scmp.eq.s32.totalorder %s29, 0
    %p160 = por %p158, %p159
    %p161 = scmp.ne.s32.totalorder %s149, %s150
    %p162 = scmp.eq.s32.totalorder %s30, 1
    %p163 = por %p161, %p162
    %p165 = scmp.ne.s32.totalorder %s150, %s164
    %p166 = scmp.eq.s32.totalorder %s30, 0
    %p167 = por %p165, %p166
    %s169 = sadd.s32 %s168, 1
    %p172 = scmp.eq.s32.totalorder %s24, 1
    %p173 = scmp.ne.s32.totalorder %s168, %s170
    %p174 = scmp.eq.s32.totalorder %s24, 0
    %p175 = por %p173, %p174
    %p176 = scmp.ne.s32.totalorder %s168, %s170
    %p177 = scmp.eq.s32.totalorder %s29, 1
    %p178 = por %p176, %p177
    %p179 = scmp.ne.s32.totalorder %s170, %s171
    %p180 = scmp.eq.s32.totalorder %s29, 0
    %p181 = por %p179, %p180
    %p182 = scmp.ne.s32.totalorder %s170, %s171
    %p183 = scmp.eq.s32.totalorder %s30, 1
    %p184 = por %p182, %p183
    %p186 = scmp.ne.s32.totalorder %s171, %s185
    %p187 = scmp.eq.s32.totalorder %s30, 0
    %p188 = por %p186, %p187
    %s190 = sadd.s32 %s189, 1
    %p193 = scmp.eq.s32.totalorder %s24, 1
    %p194 = scmp.ne.s32.totalorder %s189, %s191
    %p195 = scmp.eq.s32.totalorder %s24, 0
    %p196 = por %p194, %p195
    %p197 = scmp.ne.s32.totalorder %s189, %s191
    %p198 = scmp.eq.s32.totalorder %s29, 1
    %p199 = por %p197, %p198
    %p200 = scmp.ne.s32.totalorder %s191, %s192
    %p201 = scmp.eq.s32.totalorder %s29, 0
    %p202 = por %p200, %p201
    %p203 = scmp.ne.s32.totalorder %s191, %s192
    %p204 = scmp.eq.s32.totalorder %s30, 1
    %p205 = por %p203, %p204
    %p207 = scmp.ne.s32.totalorder %s192, %s206
    %p208 = scmp.eq.s32.totalorder %s30, 0
    %p209 = por %p207, %p208
    %s211 = sadd.s32 %s210, 1
    %p214 = scmp.eq.s32.totalorder %s24, 1
    %p215 = scmp.ne.s32.totalorder %s210, %s212
    %p216 = scmp.eq.s32.totalorder %s24, 0
    %p217 = por %p215, %p216
    %p218 = scmp.ne.s32.totalorder %s210, %s212
    %p219 = scmp.eq.s32.totalorder %s29, 1
    %p220 = por %p218, %p219
    %p221 = scmp.ne.s32.totalorder %s212, %s213
    %p222 = scmp.eq.s32.totalorder %s29, 0
    %p223 = por %p221, %p222
    %p224 = scmp.ne.s32.totalorder %s212, %s213
    %p225 = scmp.eq.s32.totalorder %s30, 1
    %p226 = por %p224, %p225
    %p228 = scmp.ne.s32.totalorder %s213, %s227
    %p229 = scmp.eq.s32.totalorder %s30, 0
    %p230 = por %p228, %p229
    %s232 = sadd.s32 %s231, 1
    %p235 = scmp.eq.s32.totalorder %s24, 1
    %p236 = scmp.ne.s32.totalorder %s231, %s233
    %p237 = scmp.eq.s32.totalorder %s24, 0
    %p238 = por %p236, %p237
    %p239 = scmp.ne.s32.totalorder %s231, %s233
    %p240 = scmp.eq.s32.totalorder %s29, 1
    %p241 = por %p239, %p240
    %p242 = scmp.ne.s32.totalorder %s233, %s234
    %p243 = scmp.eq.s32.totalorder %s29, 0
    %p244 = por %p242, %p243
    %p245 = scmp.ne.s32.totalorder %s233, %s234
    %p246 = scmp.eq.s32.totalorder %s30, 1
    %p247 = por %p245, %p246
    %p249 = scmp.ne.s32.totalorder %s234, %s248
    %p250 = scmp.eq.s32.totalorder %s30, 0
    %p251 = por %p249, %p250
    %s253 = sadd.s32 %s252, 1
    %p256 = scmp.eq.s32.totalorder %s24, 1
    %p257 = scmp.ne.s32.totalorder %s252, %s254
    %p258 = scmp.eq.s32.totalorder %s24, 0
    %p259 = por %p257, %p258
    %p260 = scmp.ne.s32.totalorder %s252, %s254
    %p261 = scmp.eq.s32.totalorder %s29, 1
    %p262 = por %p260, %p261
    %p263 = scmp.ne.s32.totalorder %s254, %s255
    %p264 = scmp.eq.s32.totalorder %s29, 0
    %p265 = por %p263, %p264
    %p266 = scmp.ne.s32.totalorder %s254, %s255
    %p267 = scmp.eq.s32.totalorder %s30, 1
    %p268 = por %p266, %p267
    %p270 = scmp.ne.s32.totalorder %s255, %s269
    %p271 = scmp.eq.s32.totalorder %s30, 0
    %p272 = por %p270, %p271
    %s274 = sadd.s32 %s273, 1
    %p277 = scmp.eq.s32.totalorder %s24, 1
    %p278 = scmp.ne.s32.totalorder %s273, %s275
    %p279 = scmp.eq.s32.totalorder %s24, 0
    %p280 = por %p278, %p279
    %p281 = scmp.ne.s32.totalorder %s273, %s275
    %p282 = scmp.eq.s32.totalorder %s29, 1
    %p283 = por %p281, %p282
    %p284 = scmp.ne.s32.totalorder %s275, %s276
    %p285 = scmp.eq.s32.totalorder %s29, 0
    %p286 = por %p284, %p285
    %p287 = scmp.ne.s32.totalorder %s275, %s276
    %p288 = scmp.eq.s32.totalorder %s30, 1
    %p289 = por %p287, %p288
    %p291 = scmp.ne.s32.totalorder %s276, %s290
    %p292 = scmp.eq.s32.totalorder %s30, 0
    %p293 = por %p291, %p292
    %s295 = sadd.s32 %s294, 1
    %p298 = scmp.eq.s32.totalorder %s24, 1
    %p299 = scmp.ne.s32.totalorder %s294, %s296
    %p300 = scmp.eq.s32.totalorder %s24, 0
    %p301 = por %p299, %p300
    %p302 = scmp.ne.s32.totalorder %s294, %s296
    %p303 = scmp.eq.s32.totalorder %s29, 1
    %p304 = por %p302, %p303
    %p305 = scmp.ne.s32.totalorder %s296, %s297
    %p306 = scmp.eq.s32.totalorder %s29, 0
    %p307 = por %p305, %p306
    %p308 = scmp.ne.s32.totalorder %s296, %s297
    %p309 = scmp.eq.s32.totalorder %s30, 1
    %p310 = por %p308, %p309
    %p312 = scmp.ne.s32.totalorder %s297, %s311
    %p313 = scmp.eq.s32.totalorder %s30, 0
    %p314 = por %p312, %p313
    %s316 = sadd.s32 %s315, 1
    %p319 = scmp.eq.s32.totalorder %s24, 1
    %p320 = scmp.ne.s32.totalorder %s315, %s317
    %p321 = scmp.eq.s32.totalorder %s24, 0
    %p322 = por %p320, %p321
    %p323 = scmp.ne.s32.totalorder %s315, %s317
    %p324 = scmp.eq.s32.totalorder %s29, 1
    %p325 = por %p323, %p324
    %p326 = scmp.ne.s32.totalorder %s317, %s318
    %p327 = scmp.eq.s32.totalorder %s29, 0
    %p328 = por %p326, %p327
    %p329 = scmp.ne.s32.totalorder %s317, %s318
    %p330 = scmp.eq.s32.totalorder %s30, 1
    %p331 = por %p329, %p330
    %p333 = scmp.ne.s32.totalorder %s318, %s332
    %p334 = scmp.eq.s32.totalorder %s30, 0
    %p335 = por %p333, %p334
    %s337 = sadd.s32 %s336, 1
    %p340 = scmp.eq.s32.totalorder %s24, 1
    %p341 = scmp.ne.s32.totalorder %s336, %s338
    %p342 = scmp.eq.s32.totalorder %s24, 0
    %p343 = por %p341, %p342
    %p344 = scmp.ne.s32.totalorder %s336, %s338
    %p345 = scmp.eq.s32.totalorder %s29, 1
    %p346 = por %p344, %p345
    %p347 = scmp.ne.s32.totalorder %s338, %s339
    %p348 = scmp.eq.s32.totalorder %s29, 0
    %p349 = por %p347, %p348
    %p350 = scmp.ne.s32.totalorder %s338, %s339
    %p351 = scmp.eq.s32.totalorder %s30, 1
    %p352 = por %p350, %p351
    %p354 = scmp.ne.s32.totalorder %s339, %s353
    %p355 = scmp.eq.s32.totalorder %s30, 0
    %p356 = por %p354, %p355
    %s358 = sadd.s32 %s357, 1
    %p361 = scmp.eq.s32.totalorder %s24, 1
    %p362 = scmp.ne.s32.totalorder %s357, %s359
    %p363 = scmp.eq.s32.totalorder %s24, 0
    %p364 = por %p362, %p363
    %p365 = scmp.ne.s32.totalorder %s357, %s359
    %p366 = scmp.eq.s32.totalorder %s29, 1
    %p367 = por %p365, %p366
    %p368 = scmp.ne.s32.totalorder %s359, %s360
    %p369 = scmp.eq.s32.totalorder %s29, 0
    %p370 = por %p368, %p369
    %p371 = scmp.ne.s32.totalorder %s359, %s360
    %p372 = scmp.eq.s32.totalorder %s30, 1
    %p373 = por %p371, %p372
    %p375 = scmp.ne.s32.totalorder %s360, %s374
    %p376 = scmp.eq.s32.totalorder %s30, 0
    %p377 = por %p375, %p376
    %s379 = sadd.s32 %s378, 1
    %p382 = scmp.eq.s32.totalorder %s24, 1
    %p383 = scmp.ne.s32.totalorder %s378, %s380
    %p384 = scmp.eq.s32.totalorder %s24, 0
    %p385 = por %p383, %p384
    %p386 = scmp.ne.s32.totalorder %s378, %s380
    %p387 = scmp.eq.s32.totalorder %s29, 1
    %p388 = por %p386, %p387
    %p389 = scmp.ne.s32.totalorder %s380, %s381
    %p390 = scmp.eq.s32.totalorder %s29, 0
    %p391 = por %p389, %p390
    %p392 = scmp.ne.s32.totalorder %s380, %s381
    %p393 = scmp.eq.s32.totalorder %s30, 1
    %p394 = por %p392, %p393
    %p396 = scmp.ne.s32.totalorder %s381, %s395
    %p397 = scmp.eq.s32.totalorder %s30, 0
    %p398 = por %p396, %p397
    %s400 = sadd.s32 %s399, 1
    %p403 = scmp.eq.s32.totalorder %s24, 1
    %p404 = scmp.ne.s32.totalorder %s399, %s401
    %p405 = scmp.eq.s32.totalorder %s24, 0
    %p406 = por %p404, %p405
    %p407 = scmp.ne.s32.totalorder %s399, %s401
    %p408 = scmp.eq.s32.totalorder %s29, 1
    %p409 = por %p407, %p408
    %p410 = scmp.ne.s32.totalorder %s401, %s402
    %p411 = scmp.eq.s32.totalorder %s29, 0
    %p412 = por %p410, %p411
    %p413 = scmp.ne.s32.totalorder %s401, %s402
    %p414 = scmp.eq.s32.totalorder %s30, 1
    %p415 = por %p413, %p414
    %p417 = scmp.ne.s32.totalorder %s402, %s416
    %p418 = scmp.eq.s32.totalorder %s30, 0
    %p419 = por %p417, %p418
    %s420 = ssub.s32 %s24, %s31
    %p421 = scmp.eq.s32.totalorder %s420, 0
    %s423 = sadd.s32 %s422, 1
    %s424 = scalar_select %p421, %s422, %s423
    %p427 = pneg %p421
    %p428 = scmp.eq.s32.totalorder %s24, 1
    %p429 = por %p427, %p428
    %p430 = scmp.ne.s32.totalorder %s422, %s425
    %p431 = scmp.eq.s32.totalorder %s24, 0
    %p432 = por %p430, %p431
    %p433 = scmp.ne.s32.totalorder %s422, %s425
    %p434 = scmp.eq.s32.totalorder %s29, 1
    %p435 = por %p433, %p434
    %p436 = scmp.ne.s32.totalorder %s425, %s426
    %p437 = scmp.eq.s32.totalorder %s29, 0
    %p438 = por %p436, %p437
    %p439 = scmp.ne.s32.totalorder %s425, %s426
    %p440 = scmp.eq.s32.totalorder %s30, 1
    %p441 = por %p439, %p440
    %p443 = scmp.ne.s32.totalorder %s426, %s442
    %p444 = scmp.eq.s32.totalorder %s30, 0
    %p445 = por %p443, %p444
    %p446 = scmp.le.s32.totalorder 1, %s24
    %p447 = scmp.lt.s32.totalorder %s24, 3
    %p448 = pnand %p446, %p447
    %p449 = pneg %p448
    // Predicated region
    $region9: #{dpvt_forward.5} parent=5 // pred_check
      _
    $region10: #{dpvt_forward.5} parent=5 // pred_check_branch
      %451 = sbr.rel (%p448) target = $region12
    $region11: #{dpvt_forward.5} parent=5 // pred_region
      %s452 = ssub.s32 %s24, 1
      // Predicated region
      $region13: #{dpvt_forward.5} parent=11 // pred_check
        %p453 = pneg %p97
      $region14: #{dpvt_forward.5} parent=11 // pred_check_branch
        %455 = sbr.rel (%p453) target = $region16
      $region15: #{dpvt_forward.5} parent=11 // pred_region
        _
      $region16: #{dpvt_forward.5} parent=11 // pred_fallthru
        _
      // Predicated region
      $region17: #{dpvt_forward.5} parent=11 // pred_check
        %p456 = pneg %p118
      $region18: #{dpvt_forward.5} parent=11 // pred_check_branch
        %458 = sbr.rel (%p456) target = $region20
      $region19: #{dpvt_forward.5} parent=11 // pred_region
        _
      $region20: #{dpvt_forward.5} parent=11 // pred_fallthru
        _
      // Predicated region
      $region21: #{dpvt_forward.5} parent=11 // pred_check
        %p459 = pneg %p139
      $region22: #{dpvt_forward.5} parent=11 // pred_check_branch
        %461 = sbr.rel (%p459) target = $region24
      $region23: #{dpvt_forward.5} parent=11 // pred_region
        _
      $region24: #{dpvt_forward.5} parent=11 // pred_fallthru
        _
      // Predicated region
      $region25: #{dpvt_forward.5} parent=11 // pred_check
        %p462 = pneg %p160
      $region26: #{dpvt_forward.5} parent=11 // pred_check_branch
        %464 = sbr.rel (%p462) target = $region28
      $region27: #{dpvt_forward.5} parent=11 // pred_region
        _
      $region28: #{dpvt_forward.5} parent=11 // pred_fallthru
        _
      // Predicated region
      $region29: #{dpvt_forward.5} parent=11 // pred_check
        %p465 = pneg %p181
      $region30: #{dpvt_forward.5} parent=11 // pred_check_branch
        %467 = sbr.rel (%p465) target = $region32
      $region31: #{dpvt_forward.5} parent=11 // pred_region
        _
      $region32: #{dpvt_forward.5} parent=11 // pred_fallthru
        _
      // Predicated region
      $region33: #{dpvt_forward.5} parent=11 // pred_check
        %p468 = pneg %p202
      $region34: #{dpvt_forward.5} parent=11 // pred_check_branch
        %470 = sbr.rel (%p468) target = $region36
      $region35: #{dpvt_forward.5} parent=11 // pred_region
        _
      $region36: #{dpvt_forward.5} parent=11 // pred_fallthru
        _
      // Predicated region
      $region37: #{dpvt_forward.5} parent=11 // pred_check
        %p471 = pneg %p223
      $region38: #{dpvt_forward.5} parent=11 // pred_check_branch
        %473 = sbr.rel (%p471) target = $region40
      $region39: #{dpvt_forward.5} parent=11 // pred_region
        _
      $region40: #{dpvt_forward.5} parent=11 // pred_fallthru
        _
      // Predicated region
      $region41: #{dpvt_forward.5} parent=11 // pred_check
        %p474 = pneg %p244
      $region42: #{dpvt_forward.5} parent=11 // pred_check_branch
        %476 = sbr.rel (%p474) target = $region44
      $region43: #{dpvt_forward.5} parent=11 // pred_region
        _
      $region44: #{dpvt_forward.5} parent=11 // pred_fallthru
        _
      // Predicated region
      $region45: #{dpvt_forward.5} parent=11 // pred_check
        %p477 = pneg %p265
      $region46: #{dpvt_forward.5} parent=11 // pred_check_branch
        %479 = sbr.rel (%p477) target = $region48
      $region47: #{dpvt_forward.5} parent=11 // pred_region
        _
      $region48: #{dpvt_forward.5} parent=11 // pred_fallthru
        _
      // Predicated region
      $region49: #{dpvt_forward.5} parent=11 // pred_check
        %p480 = pneg %p286
      $region50: #{dpvt_forward.5} parent=11 // pred_check_branch
        %482 = sbr.rel (%p480) target = $region52
      $region51: #{dpvt_forward.5} parent=11 // pred_region
        _
      $region52: #{dpvt_forward.5} parent=11 // pred_fallthru
        _
      // Predicated region
      $region53: #{dpvt_forward.5} parent=11 // pred_check
        %p483 = pneg %p307
      $region54: #{dpvt_forward.5} parent=11 // pred_check_branch
        %485 = sbr.rel (%p483) target = $region56
      $region55: #{dpvt_forward.5} parent=11 // pred_region
        _
      $region56: #{dpvt_forward.5} parent=11 // pred_fallthru
        _
      // Predicated region
      $region57: #{dpvt_forward.5} parent=11 // pred_check
        %p486 = pneg %p328
      $region58: #{dpvt_forward.5} parent=11 // pred_check_branch
        %488 = sbr.rel (%p486) target = $region60
      $region59: #{dpvt_forward.5} parent=11 // pred_region
        _
      $region60: #{dpvt_forward.5} parent=11 // pred_fallthru
        _
      // Predicated region
      $region61: #{dpvt_forward.5} parent=11 // pred_check
        %p489 = pneg %p349
      $region62: #{dpvt_forward.5} parent=11 // pred_check_branch
        %491 = sbr.rel (%p489) target = $region64
      $region63: #{dpvt_forward.5} parent=11 // pred_region
        _
      $region64: #{dpvt_forward.5} parent=11 // pred_fallthru
        _
      // Predicated region
      $region65: #{dpvt_forward.5} parent=11 // pred_check
        %p492 = pneg %p370
      $region66: #{dpvt_forward.5} parent=11 // pred_check_branch
        %494 = sbr.rel (%p492) target = $region68
      $region67: #{dpvt_forward.5} parent=11 // pred_region
        _
      $region68: #{dpvt_forward.5} parent=11 // pred_fallthru
        _
      // Predicated region
      $region69: #{dpvt_forward.5} parent=11 // pred_check
        %p495 = pneg %p391
      $region70: #{dpvt_forward.5} parent=11 // pred_check_branch
        %497 = sbr.rel (%p495) target = $region72
      $region71: #{dpvt_forward.5} parent=11 // pred_region
        _
      $region72: #{dpvt_forward.5} parent=11 // pred_fallthru
        _
      // Predicated region
      $region73: #{dpvt_forward.5} parent=11 // pred_check
        %p498 = pneg %p412
      $region74: #{dpvt_forward.5} parent=11 // pred_check_branch
        %500 = sbr.rel (%p498) target = $region76
      $region75: #{dpvt_forward.5} parent=11 // pred_region
        _
      $region76: #{dpvt_forward.5} parent=11 // pred_fallthru
        _
    $region12: #{dpvt_forward.5} parent=5 // pred_fallthru
      _
    %p501 = scmp.lt.s32.totalorder %s24, 2
    // Predicated region
    $region77: #{dpvt_forward.5} parent=5 // pred_check
      %p502 = pneg %p501
    $region78: #{dpvt_forward.5} parent=5 // pred_check_branch
      %504 = sbr.rel (%p502) target = $region80
    $region79: #{dpvt_forward.5} parent=5 // pred_region
      // Predicated region
      $region81: #{dpvt_forward.5} parent=79 // pred_check
        %p505 = pneg %p44
      $region82: #{dpvt_forward.5} parent=79 // pred_check_branch
        %507 = sbr.rel (%p505) target = $region84
      $region83: #{dpvt_forward.5} parent=79 // pred_region
        %p508 = scmp.lt.s32.totalorder %s24, 1
        %s509 = scalar_select %p508, %s24, 1
        %s510 = smul.addr %s509, 8
        %s511 = smul.addr %s510, 4
        %s512 = scalar_lea.vmem %s0, %s511
      $region84: #{dpvt_forward.5} parent=79 // pred_fallthru
        _
      // Predicated region
      $region85: #{dpvt_forward.5} parent=79 // pred_check
        %p513 = pneg %p70
      $region86: #{dpvt_forward.5} parent=79 // pred_check_branch
        %515 = sbr.rel (%p513) target = $region88
      $region87: #{dpvt_forward.5} parent=79 // pred_region
        %p516 = scmp.lt.s32.totalorder %s24, 1
        %s517 = scalar_select %p516, %s24, 1
        %s518 = smul.addr %s517, 8
        %s519 = smul.addr %s518, 4
        %s520 = scalar_lea.vmem %s1, %s519
      $region88: #{dpvt_forward.5} parent=79 // pred_fallthru
        _
    $region80: #{dpvt_forward.5} parent=5 // pred_fallthru
      _
    %p521 = scmp.le.s32.totalorder 1, %s24
    %p522 = scmp.lt.s32.totalorder %s24, 3
    %p523 = pnand %p521, %p522
    %p524 = pneg %p523
    // Predicated region
    $region89: #{dpvt_forward.5} parent=5 // pred_check
      _
    $region90: #{dpvt_forward.5} parent=5 // pred_check_branch
      %526 = sbr.rel (%p523) target = $region92
    $region91: #{dpvt_forward.5} parent=5 // pred_region
      %s527 = ssub.s32 %s24, 1
      %p528 = scmp.lt.s32.totalorder %s29, 1
      %s529 = scalar_select %p528, %s29, 1
      %s530 = smul.addr %s529, 8
      %s531 = smul.addr %s530, 4
      %s532 = scalar_lea.vmem %s0, %s531
      %p533 = pneg %p50
      %p534 = pneg %p47
      %p535 = scmp.lt.s32.totalorder %s29, 1
      %s536 = scalar_select %p535, %s29, 1
      %s537 = smul.addr %s536, 8
      %s538 = smul.addr %s537, 4
      %s539 = scalar_lea.vmem %s1, %s538
      %p540 = pneg %p76
      %p541 = pneg %p73
      %p542 = pneg %p97
      %p543 = pneg %p94
      %p544 = pneg %p118
      %p545 = pneg %p115
      %p546 = pneg %p139
      %p547 = pneg %p136
      %p548 = pneg %p160
      %p549 = pneg %p157
      %p550 = pneg %p181
      %p551 = pneg %p178
      %p552 = pneg %p202
      %p553 = pneg %p199
      %p554 = pneg %p223
      %p555 = pneg %p220
      %p556 = pneg %p244
      %p557 = pneg %p241
      %p558 = pneg %p265
      %p559 = pneg %p262
      %p560 = pneg %p286
      %p561 = pneg %p283
      %p562 = pneg %p307
      %p563 = pneg %p304
      %p564 = pneg %p328
      %p565 = pneg %p325
      %p566 = pneg %p349
      %p567 = pneg %p346
      %p568 = pneg %p370
      %p569 = pneg %p367
      %p570 = pneg %p391
      %p571 = pneg %p388
      %p572 = pneg %p412
      %p573 = pneg %p409
      %p574 = pneg %p438
      %p575 = pneg %p435
      %p576 = scmp.lt.s32.totalorder %s29, 1
      %s577 = scalar_select %p576, %s29, 1
      %s578 = smul.addr %s577, 8
      %s579 = smul.addr %s578, 8
      %s580 = scalar_lea.vmem %s18, %s579
      %p581 = scmp.lt.s32.totalorder %s29, 1
      %s582 = scalar_select %p581, %s29, 1
      %s583 = smul.addr %s582, 8
      %s584 = smul.addr %s583, 4
      %s585 = scalar_lea.vmem %s0, %s584
      %p586 = scmp.lt.s32.totalorder %s29, 1
      %s587 = scalar_select %p586, %s29, 1
      %s588 = smul.addr %s587, 8
      %s589 = smul.addr %s588, 4
      %s590 = scalar_lea.vmem %s1, %s589
      %p591 = scmp.lt.s32.totalorder %s29, 1
      %s592 = scalar_select %p591, %s29, 1
      %s593 = smul.addr %s592, 8
      %s594 = smul.addr %s593, 8
      %s595 = scalar_lea.vmem %s18, %s594
      %v597 = vld [vmem:[%s585] sm:$0xf]
      %v598 = vld [vmem:[%s585 + $0x4] sm:$0xf]
      %v599 = vld [vmem:[%s585 + $0x8] sm:$0xf]
      %v600 = vld [vmem:[%s585 + $0xc] sm:$0xf]
      %v601 = vld [vmem:[%s585 + $0x10] sm:$0xf]
      %v602 = vld [vmem:[%s585 + $0x14] sm:$0xf]
      %v603 = vld [vmem:[%s585 + $0x18] sm:$0xf]
      %v604 = vld [vmem:[%s585 + $0x1c] sm:$0xf]
      %v605 = vld [vmem:[%s3] sm:$0xf]
      %v606 = vld [vmem:[%s3 + $0x4] sm:$0xf]
      %v607 = vld [vmem:[%s3 + $0x8] sm:$0xf]
      %v608 = vld [vmem:[%s3 + $0xc] sm:$0xf]
      %v609 = vld [vmem:[%s590] sm:$0xf]
      %v610 = vld [vmem:[%s590 + $0x4] sm:$0xf]
      %v611 = vld [vmem:[%s590 + $0x8] sm:$0xf]
      %v612 = vld [vmem:[%s590 + $0xc] sm:$0xf]
      %v613 = vld [vmem:[%s590 + $0x10] sm:$0xf]
      %v614 = vld [vmem:[%s590 + $0x14] sm:$0xf]
      %v615 = vld [vmem:[%s590 + $0x18] sm:$0xf]
      %v616 = vld [vmem:[%s590 + $0x1c] sm:$0xf]
      %v617 = vld [vmem:[%s4] sm:$0xf]
      %v618 = vld [vmem:[%s4 + $0x4] sm:$0xf]
      %v619 = vld [vmem:[%s4 + $0x8] sm:$0xf]
      %v620 = vld [vmem:[%s4 + $0xc] sm:$0xf]
      %v629 = vunpack.c.l.b16 %v609
      %v630 = vunpack.c.l.b16 %v610
      %v631 = vunpack.c.l.b16 %v611
      %v632 = vunpack.c.l.b16 %v612
      %v633 = vunpack.c.l.b16 %v613
      %v634 = vunpack.c.l.b16 %v614
      %v635 = vunpack.c.l.b16 %v615
      %v636 = vunpack.c.l.b16 %v616
      %v637 = vpack.c.b16 %v630, %v629
      %v638 = vpack.c.b16 %v632, %v631
      %v639 = vpack.c.b16 %v634, %v633
      %v640 = vpack.c.b16 %v636, %v635
      %v645 = vunpack.c.l.b16 %v617
      %v646 = vunpack.c.l.b16 %v618
      %v647 = vunpack.c.l.b16 %v619
      %v648 = vunpack.c.l.b16 %v620
      %v649 = vpack.c.b16 %v646, %v645
      %v650 = vpack.c.b16 %v648, %v647
      %vm653 = vcmask 261120
      %v655 = vsel %vm653, %v637, 0
      %v658 = vsel %vm653, %v638, 0
      %v661 = vsel %vm653, %v639, 0
      %v664 = vsel %vm653, %v640, 0
      %666 = vmatprep.subr.bf16.mxu0 0
      %667 = vmatpush1.bf16.msra.mxu0 %v649
      %668 = vmatprep.subr.bf16.mxu0 0
      %669 = vmatpush1.bf16.msra.mxu0 %v650
      %670 = vmatprep.subr.bf16.mxu0 0
      %671 = vmatpush1.bf16.msra.mxu0 0
      %672 = vmatprep.subr.bf16.mxu0 0
      %673 = vmatpush1.bf16.msra.mxu0 0
      %674 = vmatprep.subr.bf16.mxu0 0
      %675 = vmatpush1.bf16.msra.mxu0 0
      %676 = vmatprep.subr.bf16.mxu0 0
      %677 = vmatpush1.bf16.msra.mxu0 0
      %678 = vmatprep.subr.bf16.mxu0 0
      %679 = vmatpush1.bf16.msra.mxu0 0
      %680 = vmatprep.subr.bf16.mxu0 0
      %681 = vmatpush1.bf16.msra.mxu0 0
      %682 = vmatprep.subr.bf16.mxu0 0
      %683 = vmatpush1.bf16.msra.mxu0 0
      %684 = vmatprep.subr.bf16.mxu0 0
      %685 = vmatpush1.bf16.msra.mxu0 0
      %686 = vmatprep.subr.bf16.mxu0 0
      %687 = vmatpush1.bf16.msra.mxu0 0
      %688 = vmatprep.subr.bf16.mxu0 0
      %689 = vmatpush1.bf16.msra.mxu0 0
      %690 = vmatprep.subr.bf16.mxu0 0
      %691 = vmatpush1.bf16.msra.mxu0 0
      %692 = vmatprep.subr.bf16.mxu0 0
      %693 = vmatpush1.bf16.msra.mxu0 0
      %694 = vmatprep.subr.bf16.mxu0 0
      %695 = vmatpush1.bf16.msra.mxu0 0
      %696 = vmatprep.subr.bf16.mxu0 0
      %697 = vmatpush1.bf16.msra.mxu0 0
      %698 = vmatprep.mubr.bf16.mxu0 0
      %699 = vmatmul.mubr.bf16.gmra.mrb[0].mxu0 %v655
      %v700 = vpop.f32.mrb[0].mxu0
      %v701 = vadd.f32 0.0, %v700
      %v702 = vpop.f32.mrb[0].mxu0
      %v703 = vpop.f32.mrb[0].mxu0
      %v704 = vadd.f32 0.0, %v703
      %v705 = vpop.f32.mrb[0].mxu0
      %706 = vmatprep.mubr.bf16.mxu0 0
      %707 = vmatmul.mubr.bf16.gmra.mrb[0].mxu0 %v658
      %v708 = vpop.f32.mrb[0].mxu0
      %v709 = vadd.f32 0.0, %v708
      %v710 = vpop.f32.mrb[0].mxu0
      %v711 = vpop.f32.mrb[0].mxu0
      %v712 = vadd.f32 0.0, %v711
      %v713 = vpop.f32.mrb[0].mxu0
      %714 = vmatprep.mubr.bf16.mxu0 0
      %715 = vmatmul.mubr.bf16.gmra.mrb[0].mxu0 %v661
      %v716 = vpop.f32.mrb[0].mxu0
      %v717 = vadd.f32 0.0, %v716
      %v718 = vpop.f32.mrb[0].mxu0
      %v719 = vpop.f32.mrb[0].mxu0
      %v720 = vadd.f32 0.0, %v719
      %v721 = vpop.f32.mrb[0].mxu0
      %722 = vmatprep.mubr.bf16.mxu0 0
      %723 = vmatmul.mubr.bf16.gmra.mrb[0].mxu0 %v664
      %v724 = vpop.f32.mrb[0].mxu0
      %v725 = vadd.f32 0.0, %v724
      %v726 = vpop.f32.mrb[0].mxu0
      %v727 = vpop.f32.mrb[0].mxu0
      %v728 = vadd.f32 0.0, %v727
      %v729 = vpop.f32.mrb[0].mxu0
      %730 = vdwg.mxu0
      %v739 = vunpack.c.l.b16 %v597
      %v740 = vunpack.c.l.b16 %v598
      %v741 = vunpack.c.l.b16 %v599
      %v742 = vunpack.c.l.b16 %v600
      %v743 = vunpack.c.l.b16 %v601
      %v744 = vunpack.c.l.b16 %v602
      %v745 = vunpack.c.l.b16 %v603
      %v746 = vunpack.c.l.b16 %v604
      %v747 = vpack.c.b16 %v740, %v739
      %v748 = vpack.c.b16 %v742, %v741
      %v749 = vpack.c.b16 %v744, %v743
      %v750 = vpack.c.b16 %v746, %v745
      %v755 = vunpack.c.l.b16 %v605
      %v756 = vunpack.c.l.b16 %v606
      %v757 = vunpack.c.l.b16 %v607
      %v758 = vunpack.c.l.b16 %v608
      %v759 = vpack.c.b16 %v756, %v755
      %v760 = vpack.c.b16 %v758, %v757
      %v764 = vsel %vm653, %v747, 0
      %v767 = vsel %vm653, %v748, 0
      %v770 = vsel %vm653, %v749, 0
      %v773 = vsel %vm653, %v750, 0
      %775 = vmatprep.subr.bf16.mxu0 0
      %776 = vmatpush1.bf16.msra.mxu0 %v759
      %777 = vmatprep.subr.bf16.mxu0 0
      %778 = vmatpush1.bf16.msra.mxu0 %v760
      %779 = vmatprep.subr.bf16.mxu0 0
      %780 = vmatpush1.bf16.msra.mxu0 0
      %781 = vmatprep.subr.bf16.mxu0 0
      %782 = vmatpush1.bf16.msra.mxu0 0
      %783 = vmatprep.subr.bf16.mxu0 0
      %784 = vmatpush1.bf16.msra.mxu0 0
      %785 = vmatprep.subr.bf16.mxu0 0
      %786 = vmatpush1.bf16.msra.mxu0 0
      %787 = vmatprep.subr.bf16.mxu0 0
      %788 = vmatpush1.bf16.msra.mxu0 0
      %789 = vmatprep.subr.bf16.mxu0 0
      %790 = vmatpush1.bf16.msra.mxu0 0
      %791 = vmatprep.subr.bf16.mxu0 0
      %792 = vmatpush1.bf16.msra.mxu0 0
      %793 = vmatprep.subr.bf16.mxu0 0
      %794 = vmatpush1.bf16.msra.mxu0 0
      %795 = vmatprep.subr.bf16.mxu0 0
      %796 = vmatpush1.bf16.msra.mxu0 0
      %797 = vmatprep.subr.bf16.mxu0 0
      %798 = vmatpush1.bf16.msra.mxu0 0
      %799 = vmatprep.subr.bf16.mxu0 0
      %800 = vmatpush1.bf16.msra.mxu0 0
      %801 = vmatprep.subr.bf16.mxu0 0
      %802 = vmatpush1.bf16.msra.mxu0 0
      %803 = vmatprep.subr.bf16.mxu0 0
      %804 = vmatpush1.bf16.msra.mxu0 0
      %805 = vmatprep.subr.bf16.mxu0 0
      %806 = vmatpush1.bf16.msra.mxu0 0
      %807 = vmatprep.mubr.bf16.mxu0 0
      %808 = vmatmul.mubr.bf16.gmra.mrb[0].mxu0 %v764
      %v809 = vpop.f32.mrb[0].mxu0
      %v810 = vadd.f32 %v701, %v809
      %v811 = vpop.f32.mrb[0].mxu0
      %v812 = vpop.f32.mrb[0].mxu0
      %v813 = vadd.f32 %v704, %v812
      %v814 = vpop.f32.mrb[0].mxu0
      %815 = vmatprep.mubr.bf16.mxu0 0
      %816 = vmatmul.mubr.bf16.gmra.mrb[0].mxu0 %v767
      %v817 = vpop.f32.mrb[0].mxu0
      %v818 = vadd.f32 %v709, %v817
      %v819 = vpop.f32.mrb[0].mxu0
      %v820 = vpop.f32.mrb[0].mxu0
      %v821 = vadd.f32 %v712, %v820
      %v822 = vpop.f32.mrb[0].mxu0
      %823 = vmatprep.mubr.bf16.mxu0 0
      %824 = vmatmul.mubr.bf16.gmra.mrb[0].mxu0 %v770
      %v825 = vpop.f32.mrb[0].mxu0
      %v826 = vadd.f32 %v717, %v825
      %v827 = vpop.f32.mrb[0].mxu0
      %v828 = vpop.f32.mrb[0].mxu0
      %v829 = vadd.f32 %v720, %v828
      %v830 = vpop.f32.mrb[0].mxu0
      %831 = vmatprep.mubr.bf16.mxu0 0
      %832 = vmatmul.mubr.bf16.gmra.mrb[0].mxu0 %v773
      %v833 = vpop.f32.mrb[0].mxu0
      %v834 = vadd.f32 %v725, %v833
      %v835 = vpop.f32.mrb[0].mxu0
      %v836 = vpop.f32.mrb[0].mxu0
      %v837 = vadd.f32 %v728, %v836
      %v838 = vpop.f32.mrb[0].mxu0
      %839 = vdwg.mxu0
      %v840 = vld [vmem:[%s5] sm:$0x1]
      %v842 = vlaneseq
      %v843 = vshrl.u32 %v842, 7
      %v844 = vsub.s32 0, %v843
      %v845 = vrot.slane %v840, %v844
      %v847 = vadd.f32 %v810, %v845
      %v848 = vadd.f32 %v813, %v845
      %v849 = vadd.f32 %v818, %v845
      %v850 = vadd.f32 %v821, %v845
      %v851 = vadd.f32 %v826, %v845
      %v852 = vadd.f32 %v829, %v845
      %v853 = vadd.f32 %v834, %v845
      %v854 = vadd.f32 %v837, %v845
      %v855 = vmax.f32 %v847, 0.0
      %v856 = vmax.f32 %v848, 0.0
      %v857 = vmax.f32 %v849, 0.0
      %v858 = vmax.f32 %v850, 0.0
      %v859 = vmax.f32 %v851, 0.0
      %v860 = vmax.f32 %v852, 0.0
      %v861 = vmax.f32 %v853, 0.0
      %v862 = vmax.f32 %v854, 0.0
      %v863 = vld [vmem:[%s6] sm:$0x1]
      %v865 = vlaneseq
      %v866 = vshrl.u32 %v865, 7
      %v867 = vsub.s32 0, %v866
      %v868 = vrot.slane %v863, %v867
      %v870 = vmul.f32 %v855, %v868
      %v871 = vmul.f32 %v856, %v868
      %v872 = vmul.f32 %v857, %v868
      %v873 = vmul.f32 %v858, %v868
      %v874 = vmul.f32 %v859, %v868
      %v875 = vmul.f32 %v860, %v868
      %v876 = vmul.f32 %v861, %v868
      %v877 = vmul.f32 %v862, %v868
      %v878 = vld [vmem:[%s7] sm:$0x1]
      %v880 = vlaneseq
      %v881 = vshrl.u32 %v880, 7
      %v882 = vsub.s32 0, %v881
      %v883 = vrot.slane %v878, %v882
      %v885 = vadd.f32 %v870, %v883
      %v886 = vadd.f32 %v871, %v883
      %v887 = vadd.f32 %v872, %v883
      %v888 = vadd.f32 %v873, %v883
      %v889 = vadd.f32 %v874, %v883
      %v890 = vadd.f32 %v875, %v883
      %v891 = vadd.f32 %v876, %v883
      %v892 = vadd.f32 %v877, %v883
      %v893 = vmax.f32 %v885, 0.0
      %v894 = vmax.f32 %v886, 0.0
      %v895 = vmax.f32 %v887, 0.0
      %v896 = vmax.f32 %v888, 0.0
      %v897 = vmax.f32 %v889, 0.0
      %v898 = vmax.f32 %v890, 0.0
      %v899 = vmax.f32 %v891, 0.0
      %v900 = vmax.f32 %v892, 0.0
      %v901 = vpack.c.bf16 %v894, %v893
      %v902 = vpack.c.bf16 %v896, %v895
      %v903 = vpack.c.bf16 %v898, %v897
      %v904 = vpack.c.bf16 %v900, %v899
      %v905 = vld [vmem:[%s8] sm:$0xf]
      %v906 = vld [vmem:[%s8 + $0x4] sm:$0xf]
      %v907 = vld [vmem:[%s8 + $0x8] sm:$0xf]
      %v908 = vld [vmem:[%s8 + $0xc] sm:$0xf]
      %v909 = vld [vmem:[%s9] sm:$0x1]
      %v911 = vlaneseq
      %v912 = vshrl.u32 %v911, 7
      %v913 = vsub.s32 0, %v912
      %v914 = vrot.slane %v909, %v913
      %v920 = vunpack.c.l.b16 %v905
      %v921 = vunpack.c.l.b16 %v906
      %v922 = vunpack.c.l.b16 %v907
      %v923 = vunpack.c.l.b16 %v908
      %v924 = vpack.c.b16 %v921, %v920
      %v925 = vpack.c.b16 %v923, %v922
      %v929 = vsel %vm653, %v901, 0
      %v932 = vsel %vm653, %v902, 0
      %v935 = vsel %vm653, %v903, 0
      %v938 = vsel %vm653, %v904, 0
      %940 = vmatprep.subr.bf16.mxu0 0
      %941 = vmatpush1.bf16.msra.mxu0 %v924
      %942 = vmatprep.subr.bf16.mxu0 0
      %943 = vmatpush1.bf16.msra.mxu0 %v925
      %944 = vmatprep.subr.bf16.mxu0 0
      %945 = vmatpush1.bf16.msra.mxu0 0
      %946 = vmatprep.subr.bf16.mxu0 0
      %947 = vmatpush1.bf16.msra.mxu0 0
      %948 = vmatprep.subr.bf16.mxu0 0
      %949 = vmatpush1.bf16.msra.mxu0 0
      %950 = vmatprep.subr.bf16.mxu0 0
      %951 = vmatpush1.bf16.msra.mxu0 0
      %952 = vmatprep.subr.bf16.mxu0 0
      %953 = vmatpush1.bf16.msra.mxu0 0
      %954 = vmatprep.subr.bf16.mxu0 0
      %955 = vmatpush1.bf16.msra.mxu0 0
      %956 = vmatprep.subr.bf16.mxu0 0
      %957 = vmatpush1.bf16.msra.mxu0 0
      %958 = vmatprep.subr.bf16.mxu0 0
      %959 = vmatpush1.bf16.msra.mxu0 0
      %960 = vmatprep.subr.bf16.mxu0 0
      %961 = vmatpush1.bf16.msra.mxu0 0
      %962 = vmatprep.subr.bf16.mxu0 0
      %963 = vmatpush1.bf16.msra.mxu0 0
      %964 = vmatprep.subr.bf16.mxu0 0
      %965 = vmatpush1.bf16.msra.mxu0 0
      %966 = vmatprep.subr.bf16.mxu0 0
      %967 = vmatpush1.bf16.msra.mxu0 0
      %968 = vmatprep.subr.bf16.mxu0 0
      %969 = vmatpush1.bf16.msra.mxu0 0
      %970 = vmatprep.subr.bf16.mxu0 0
      %971 = vmatpush1.bf16.msra.mxu0 0
      %972 = vmatprep.mubr.bf16.mxu0 0
      %973 = vmatmul.mubr.bf16.gmra.mrb[0].mxu0 %v929
      %v974 = vpop.f32.mrb[0].mxu0
      %v975 = vadd.f32 %v914, %v974
      %v976 = vpop.f32.mrb[0].mxu0
      %v977 = vpop.f32.mrb[0].mxu0
      %v978 = vadd.f32 %v914, %v977
      %v979 = vpop.f32.mrb[0].mxu0
      %980 = vmatprep.mubr.bf16.mxu0 0
      %981 = vmatmul.mubr.bf16.gmra.mrb[0].mxu0 %v932
      %v982 = vpop.f32.mrb[0].mxu0
      %v983 = vadd.f32 %v914, %v982
      %v984 = vpop.f32.mrb[0].mxu0
      %v985 = vpop.f32.mrb[0].mxu0
      %v986 = vadd.f32 %v914, %v985
      %v987 = vpop.f32.mrb[0].mxu0
      %988 = vmatprep.mubr.bf16.mxu0 0
      %989 = vmatmul.mubr.bf16.gmra.mrb[0].mxu0 %v935
      %v990 = vpop.f32.mrb[0].mxu0
      %v991 = vadd.f32 %v914, %v990
      %v992 = vpop.f32.mrb[0].mxu0
      %v993 = vpop.f32.mrb[0].mxu0
      %v994 = vadd.f32 %v914, %v993
      %v995 = vpop.f32.mrb[0].mxu0
      %996 = vmatprep.mubr.bf16.mxu0 0
      %997 = vmatmul.mubr.bf16.gmra.mrb[0].mxu0 %v938
      %v998 = vpop.f32.mrb[0].mxu0
      %v999 = vadd.f32 %v914, %v998
      %v1000 = vpop.f32.mrb[0].mxu0
      %v1001 = vpop.f32.mrb[0].mxu0
      %v1002 = vadd.f32 %v914, %v1001
      %v1003 = vpop.f32.mrb[0].mxu0
      %1004 = vdwg.mxu0
      %v1005 = vld [vmem:[%s10] sm:$0x1]
      %v1007 = vlaneseq
      %v1008 = vshrl.u32 %v1007, 7
      %v1009 = vsub.s32 0, %v1008
      %v1010 = vrot.slane %v1005, %v1009
      %v1012 = vmul.f32 %v975, %v1010
      %v1013 = vmul.f32 %v978, %v1010
      %v1014 = vmul.f32 %v983, %v1010
      %v1015 = vmul.f32 %v986, %v1010
      %v1016 = vmul.f32 %v991, %v1010
      %v1017 = vmul.f32 %v994, %v1010
      %v1018 = vmul.f32 %v999, %v1010
      %v1019 = vmul.f32 %v1002, %v1010
      %v1020 = vld [vmem:[%s11] sm:$0x1]
      %v1022 = vlaneseq
      %v1023 = vshrl.u32 %v1022, 7
      %v1024 = vsub.s32 0, %v1023
      %v1025 = vrot.slane %v1020, %v1024
      %v1027 = vadd.f32 %v1012, %v1025
      %v1028 = vadd.f32 %v1013, %v1025
      %v1029 = vadd.f32 %v1014, %v1025
      %v1030 = vadd.f32 %v1015, %v1025
      %v1031 = vadd.f32 %v1016, %v1025
      %v1032 = vadd.f32 %v1017, %v1025
      %v1033 = vadd.f32 %v1018, %v1025
      %v1034 = vadd.f32 %v1019, %v1025
      %v1035 = vmax.f32 %v1027, 0.0
      %v1036 = vmax.f32 %v1028, 0.0
      %v1037 = vmax.f32 %v1029, 0.0
      %v1038 = vmax.f32 %v1030, 0.0
      %v1039 = vmax.f32 %v1031, 0.0
      %v1040 = vmax.f32 %v1032, 0.0
      %v1041 = vmax.f32 %v1033, 0.0
      %v1042 = vmax.f32 %v1034, 0.0
      %v1043 = vld [vmem:[%s2] sm:$0xff]
      %v1044 = vld [vmem:[%s2 + $0x8] sm:$0xff]
      %v1045 = vld [vmem:[%s2 + $0x10] sm:$0xff]
      %v1046 = vld [vmem:[%s2 + $0x18] sm:$0xff]
      %v1047 = vld [vmem:[%s2 + $0x20] sm:$0xff]
      %v1048 = vld [vmem:[%s2 + $0x28] sm:$0xff]
      %v1049 = vld [vmem:[%s2 + $0x30] sm:$0xff]
      %v1050 = vld [vmem:[%s2 + $0x38] sm:$0xff]
      %1052 = vset.pattern.permute.xlu0 0
      %1053 = vperm.xlu0 %1052, %v1043
      %v1054 = vpop.permute.xlu0 %1053
      %1057 = vset.pattern.permute.xlu0 0
      %1058 = vperm.xlu0 %1057, %v1044
      %v1059 = vpop.permute.xlu0 %1058
      %1062 = vset.pattern.permute.xlu0 0
      %1063 = vperm.xlu0 %1062, %v1045
      %v1064 = vpop.permute.xlu0 %1063
      %1067 = vset.pattern.permute.xlu0 0
      %1068 = vperm.xlu0 %1067, %v1046
      %v1069 = vpop.permute.xlu0 %1068
      %1072 = vset.pattern.permute.xlu0 0
      %1073 = vperm.xlu0 %1072, %v1047
      %v1074 = vpop.permute.xlu0 %1073
      %1077 = vset.pattern.permute.xlu0 0
      %1078 = vperm.xlu0 %1077, %v1048
      %v1079 = vpop.permute.xlu0 %1078
      %1082 = vset.pattern.permute.xlu0 0
      %1083 = vperm.xlu0 %1082, %v1049
      %v1084 = vpop.permute.xlu0 %1083
      %1087 = vset.pattern.permute.xlu0 0
      %1088 = vperm.xlu0 %1087, %v1050
      %v1089 = vpop.permute.xlu0 %1088
      %v1091 = vmul.f32 %v1035, %v1054
      %v1092 = vmul.f32 %v1036, %v1059
      %v1093 = vmul.f32 %v1037, %v1064
      %v1094 = vmul.f32 %v1038, %v1069
      %v1095 = vmul.f32 %v1039, %v1074
      %v1096 = vmul.f32 %v1040, %v1079
      %v1097 = vmul.f32 %v1041, %v1084
      %v1098 = vmul.f32 %v1042, %v1089
      %1099 = vset.pattern.permute.xlu0 1
      %1100 = vperm.xlu0 %1099, %v1043
      %v1101 = vpop.permute.xlu0 %1100
      %1103 = vset.pattern.permute.xlu0 1
      %1104 = vperm.xlu0 %1103, %v1044
      %v1105 = vpop.permute.xlu0 %1104
      %1107 = vset.pattern.permute.xlu0 1
      %1108 = vperm.xlu0 %1107, %v1045
      %v1109 = vpop.permute.xlu0 %1108
      %1111 = vset.pattern.permute.xlu0 1
      %1112 = vperm.xlu0 %1111, %v1046
      %v1113 = vpop.permute.xlu0 %1112
      %1115 = vset.pattern.permute.xlu0 1
      %1116 = vperm.xlu0 %1115, %v1047
      %v1117 = vpop.permute.xlu0 %1116
      %1119 = vset.pattern.permute.xlu0 1
      %1120 = vperm.xlu0 %1119, %v1048
      %v1121 = vpop.permute.xlu0 %1120
      %1123 = vset.pattern.permute.xlu0 1
      %1124 = vperm.xlu0 %1123, %v1049
      %v1125 = vpop.permute.xlu0 %1124
      %1127 = vset.pattern.permute.xlu0 1
      %1128 = vperm.xlu0 %1127, %v1050
      %v1129 = vpop.permute.xlu0 %1128
      %v1131 = vmul.f32 %v1035, %v1101
      %v1132 = vmul.f32 %v1036, %v1105
      %v1133 = vmul.f32 %v1037, %v1109
      %v1134 = vmul.f32 %v1038, %v1113
      %v1135 = vmul.f32 %v1039, %v1117
      %v1136 = vmul.f32 %v1040, %v1121
      %v1137 = vmul.f32 %v1041, %v1125
      %v1138 = vmul.f32 %v1042, %v1129
      %vm1139 = vcmask 130048
      %1140 = vst.msk [vmem:[#allocation2] sm:$0xff] %vm1139, 0.0
      %1141 = vst.msk [vmem:[#allocation2 + $0x8] sm:$0xff] %vm1139, 0.0
      %1142 = vst.msk [vmem:[#allocation2 + $0x10] sm:$0xff] %vm1139, %v1035
      %1143 = vst.msk [vmem:[#allocation2 + $0x18] sm:$0xff] %vm1139, %v1036
      %1144 = vst.msk [vmem:[#allocation2 + $0x20] sm:$0xff] %vm1139, %v1037
      %1145 = vst.msk [vmem:[#allocation2 + $0x28] sm:$0xff] %vm1139, %v1038
      %1146 = vst.msk [vmem:[#allocation2 + $0x30] sm:$0xff] %vm1139, %v1039
      %1147 = vst.msk [vmem:[#allocation2 + $0x38] sm:$0xff] %vm1139, %v1040
      %1148 = vst.msk [vmem:[#allocation2 + $0x40] sm:$0xff] %vm1139, %v1041
      %1149 = vst.msk [vmem:[#allocation2 + $0x48] sm:$0xff] %vm1139, %v1042
      %1150 = vst.msk [vmem:[#allocation2 + $0x50] sm:$0xff] %vm1139, 0.0
      %1151 = vst.msk [vmem:[#allocation2 + $0x58] sm:$0xff] %vm1139, 0.0
      %1152 = vst.msk [vmem:[#allocation3] sm:$0xff] %vm1139, 0.0
      %1153 = vst.msk [vmem:[#allocation3 + $0x8] sm:$0xff] %vm1139, 0.0
      %1154 = vst.msk [vmem:[#allocation3 + $0x10] sm:$0xff] %vm1139, %v1091
      %1155 = vst.msk [vmem:[#allocation3 + $0x18] sm:$0xff] %vm1139, %v1092
      %1156 = vst.msk [vmem:[#allocation3 + $0x20] sm:$0xff] %vm1139, %v1093
      %1157 = vst.msk [vmem:[#allocation3 + $0x28] sm:$0xff] %vm1139, %v1094
      %1158 = vst.msk [vmem:[#allocation3 + $0x30] sm:$0xff] %vm1139, %v1095
      %1159 = vst.msk [vmem:[#allocation3 + $0x38] sm:$0xff] %vm1139, %v1096
      %1160 = vst.msk [vmem:[#allocation3 + $0x40] sm:$0xff] %vm1139, %v1097
      %1161 = vst.msk [vmem:[#allocation3 + $0x48] sm:$0xff] %vm1139, %v1098
      %1162 = vst.msk [vmem:[#allocation3 + $0x50] sm:$0xff] %vm1139, 0.0
      %1163 = vst.msk [vmem:[#allocation3 + $0x58] sm:$0xff] %vm1139, 0.0
      %1164 = vst.msk [vmem:[#allocation4] sm:$0xff] %vm1139, 0.0
      %1165 = vst.msk [vmem:[#allocation4 + $0x8] sm:$0xff] %vm1139, 0.0
      %1166 = vst.msk [vmem:[#allocation4 + $0x10] sm:$0xff] %vm1139, %v1131
      %1167 = vst.msk [vmem:[#allocation4 + $0x18] sm:$0xff] %vm1139, %v1132
      %1168 = vst.msk [vmem:[#allocation4 + $0x20] sm:$0xff] %vm1139, %v1133
      %1169 = vst.msk [vmem:[#allocation4 + $0x28] sm:$0xff] %vm1139, %v1134
      %1170 = vst.msk [vmem:[#allocation4 + $0x30] sm:$0xff] %vm1139, %v1135
      %1171 = vst.msk [vmem:[#allocation4 + $0x38] sm:$0xff] %vm1139, %v1136
      %1172 = vst.msk [vmem:[#allocation4 + $0x40] sm:$0xff] %vm1139, %v1137
      %1173 = vst.msk [vmem:[#allocation4 + $0x48] sm:$0xff] %vm1139, %v1138
      %1174 = vst.msk [vmem:[#allocation4 + $0x50] sm:$0xff] %vm1139, 0.0
      %1175 = vst.msk [vmem:[#allocation4 + $0x58] sm:$0xff] %vm1139, 0.0
      %v1176 = vld [vmem:[%s12] sm:$0xf]
      %v1177 = vld [vmem:[%s12 + $0x4] sm:$0xf]
      %v1178 = vld [vmem:[%s12 + $0x8] sm:$0xf]
      %v1179 = vld [vmem:[%s12 + $0xc] sm:$0xf]
      %v1180 = vld [vmem:[%s12 + $0x10] sm:$0xf]
      %v1181 = vld [vmem:[%s12 + $0x14] sm:$0xf]
      %v1182 = vld [vmem:[%s12 + $0x18] sm:$0xf]
      %v1183 = vld [vmem:[%s12 + $0x1c] sm:$0xf]
      %v1184 = vld [vmem:[%s12 + $0x20] sm:$0xf]
      %v1185 = vld [vmem:[%s12 + $0x24] sm:$0xf]
      %v1186 = vld [vmem:[%s12 + $0x28] sm:$0xf]
      %v1187 = vld [vmem:[%s12 + $0x2c] sm:$0xf]
      %v1188 = vld [vmem:[%s12 + $0x30] sm:$0xf]
      %v1189 = vld [vmem:[%s12 + $0x34] sm:$0xf]
      %v1190 = vld [vmem:[%s12 + $0x38] sm:$0xf]
      %v1191 = vld [vmem:[%s12 + $0x3c] sm:$0xf]
      %v1192 = vld [vmem:[%s12 + $0x40] sm:$0xf]
      %v1193 = vld [vmem:[%s12 + $0x44] sm:$0xf]
      %v1194 = vld [vmem:[%s13] sm:$0x1]
      %v1195 = vld [vmem:[#allocation3 + $0x7] sm:$0xff]
      %v1196 = vld [vmem:[#allocation3 + $0xf] sm:$0xff]
      %v1197 = vld [vmem:[#allocation3 + $0x17] sm:$0xff]
      %v1198 = vld [vmem:[#allocation3 + $0x1f] sm:$0xff]
      %v1199 = vld [vmem:[#allocation3 + $0x27] sm:$0xff]
      %v1200 = vld [vmem:[#allocation3 + $0x2f] sm:$0xff]
      %v1201 = vld [vmem:[#allocation3 + $0x37] sm:$0xff]
      %v1202 = vld [vmem:[#allocation3 + $0x3f] sm:$0xff]
      %v1203 = vld [vmem:[#allocation2 + $0x8] sm:$0xff]
      %v1204 = vld [vmem:[#allocation2 + $0x10] sm:$0xff]
      %v1205 = vld [vmem:[#allocation2 + $0x18] sm:$0xff]
      %v1206 = vld [vmem:[#allocation2 + $0x20] sm:$0xff]
      %v1207 = vld [vmem:[#allocation2 + $0x28] sm:$0xff]
      %v1208 = vld [vmem:[#allocation2 + $0x30] sm:$0xff]
      %v1209 = vld [vmem:[#allocation2 + $0x38] sm:$0xff]
      %v1210 = vld [vmem:[#allocation2 + $0x40] sm:$0xff]
      %v1211 = vld [vmem:[#allocation4 + $0x9] sm:$0xff]
      %v1212 = vld [vmem:[#allocation4 + $0x11] sm:$0xff]
      %v1213 = vld [vmem:[#allocation4 + $0x19] sm:$0xff]
      %v1214 = vld [vmem:[#allocation4 + $0x21] sm:$0xff]
      %v1215 = vld [vmem:[#allocation4 + $0x29] sm:$0xff]
      %v1216 = vld [vmem:[#allocation4 + $0x31] sm:$0xff]
      %v1217 = vld [vmem:[#allocation4 + $0x39] sm:$0xff]
      %v1218 = vld [vmem:[#allocation4 + $0x41] sm:$0xff]
      %v1219 = vld [vmem:[#allocation3 + $0x47] sm:$0xff]
      %v1220 = vld [vmem:[#allocation2 + $0x48] sm:$0xff]
      %v1221 = vld [vmem:[#allocation4 + $0x49] sm:$0xff]
      %v1222 = vld [vmem:[#allocation3 + $0x4f] sm:$0xff]
      %v1223 = vld [vmem:[#allocation2 + $0x50] sm:$0xff]
      %v1224 = vld [vmem:[#allocation4 + $0x51] sm:$0xff]
      %1233 = vrot.lane.b32.xlu0 %v1203, 16
      %v1234 = vpop.permute.xlu0 %1233
      %1235 = vrot.lane.b32.xlu0 %v1204, 16
      %v1236 = vpop.permute.xlu0 %1235
      %1237 = vrot.lane.b32.xlu0 %v1205, 16
      %v1238 = vpop.permute.xlu0 %1237
      %1239 = vrot.lane.b32.xlu0 %v1206, 16
      %v1240 = vpop.permute.xlu0 %1239
      %1241 = vrot.lane.b32.xlu0 %v1207, 16
      %v1242 = vpop.permute.xlu0 %1241
      %1243 = vrot.lane.b32.xlu0 %v1208, 16
      %v1244 = vpop.permute.xlu0 %1243
      %1245 = vrot.lane.b32.xlu0 %v1209, 16
      %v1246 = vpop.permute.xlu0 %1245
      %1247 = vrot.lane.b32.xlu0 %v1210, 16
      %v1248 = vpop.permute.xlu0 %1247
      %1265 = vrot.lane.b32.xlu0 %v1211, 32
      %v1266 = vpop.permute.xlu0 %1265
      %1267 = vrot.lane.b32.xlu0 %v1212, 32
      %v1268 = vpop.permute.xlu0 %1267
      %1269 = vrot.lane.b32.xlu0 %v1213, 32
      %v1270 = vpop.permute.xlu0 %1269
      %1271 = vrot.lane.b32.xlu0 %v1214, 32
      %v1272 = vpop.permute.xlu0 %1271
      %1273 = vrot.lane.b32.xlu0 %v1215, 32
      %v1274 = vpop.permute.xlu0 %1273
      %1275 = vrot.lane.b32.xlu0 %v1216, 32
      %v1276 = vpop.permute.xlu0 %1275
      %1277 = vrot.lane.b32.xlu0 %v1217, 32
      %v1278 = vpop.permute.xlu0 %1277
      %1279 = vrot.lane.b32.xlu0 %v1218, 32
      %v1280 = vpop.permute.xlu0 %1279
      %1297 = vrot.lane.b32.xlu0 %v1196, 48
      %v1298 = vpop.permute.xlu0 %1297
      %1299 = vrot.lane.b32.xlu0 %v1197, 48
      %v1300 = vpop.permute.xlu0 %1299
      %1301 = vrot.lane.b32.xlu0 %v1198, 48
      %v1302 = vpop.permute.xlu0 %1301
      %1303 = vrot.lane.b32.xlu0 %v1199, 48
      %v1304 = vpop.permute.xlu0 %1303
      %1305 = vrot.lane.b32.xlu0 %v1200, 48
      %v1306 = vpop.permute.xlu0 %1305
      %1307 = vrot.lane.b32.xlu0 %v1201, 48
      %v1308 = vpop.permute.xlu0 %1307
      %1309 = vrot.lane.b32.xlu0 %v1202, 48
      %v1310 = vpop.permute.xlu0 %1309
      %1311 = vrot.lane.b32.xlu0 %v1219, 48
      %v1312 = vpop.permute.xlu0 %1311
      %1322 = vrot.lane.b32.xlu0 %v1204, 64
      %v1323 = vpop.permute.xlu0 %1322
      %1324 = vrot.lane.b32.xlu0 %v1205, 64
      %v1325 = vpop.permute.xlu0 %1324
      %1326 = vrot.lane.b32.xlu0 %v1206, 64
      %v1327 = vpop.permute.xlu0 %1326
      %1328 = vrot.lane.b32.xlu0 %v1207, 64
      %v1329 = vpop.permute.xlu0 %1328
      %1330 = vrot.lane.b32.xlu0 %v1208, 64
      %v1331 = vpop.permute.xlu0 %1330
      %1332 = vrot.lane.b32.xlu0 %v1209, 64
      %v1333 = vpop.permute.xlu0 %1332
      %1334 = vrot.lane.b32.xlu0 %v1210, 64
      %v1335 = vpop.permute.xlu0 %1334
      %1336 = vrot.lane.b32.xlu0 %v1220, 64
      %v1337 = vpop.permute.xlu0 %1336
      %1347 = vrot.lane.b32.xlu0 %v1212, 80
      %v1348 = vpop.permute.xlu0 %1347
      %1349 = vrot.lane.b32.xlu0 %v1213, 80
      %v1350 = vpop.permute.xlu0 %1349
      %1351 = vrot.lane.b32.xlu0 %v1214, 80
      %v1352 = vpop.permute.xlu0 %1351
      %1353 = vrot.lane.b32.xlu0 %v1215, 80
      %v1354 = vpop.permute.xlu0 %1353
      %1355 = vrot.lane.b32.xlu0 %v1216, 80
      %v1356 = vpop.permute.xlu0 %1355
      %1357 = vrot.lane.b32.xlu0 %v1217, 80
      %v1358 = vpop.permute.xlu0 %1357
      %1359 = vrot.lane.b32.xlu0 %v1218, 80
      %v1360 = vpop.permute.xlu0 %1359
      %1361 = vrot.lane.b32.xlu0 %v1221, 80
      %v1362 = vpop.permute.xlu0 %1361
      %1372 = vrot.lane.b32.xlu0 %v1197, 96
      %v1373 = vpop.permute.xlu0 %1372
      %1374 = vrot.lane.b32.xlu0 %v1198, 96
      %v1375 = vpop.permute.xlu0 %1374
      %1376 = vrot.lane.b32.xlu0 %v1199, 96
      %v1377 = vpop.permute.xlu0 %1376
      %1378 = vrot.lane.b32.xlu0 %v1200, 96
      %v1379 = vpop.permute.xlu0 %1378
      %1380 = vrot.lane.b32.xlu0 %v1201, 96
      %v1381 = vpop.permute.xlu0 %1380
      %1382 = vrot.lane.b32.xlu0 %v1202, 96
      %v1383 = vpop.permute.xlu0 %1382
      %1384 = vrot.lane.b32.xlu0 %v1219, 96
      %v1385 = vpop.permute.xlu0 %1384
      %1386 = vrot.lane.b32.xlu0 %v1222, 96
      %v1387 = vpop.permute.xlu0 %1386
      %1397 = vrot.lane.b32.xlu0 %v1205, 112
      %v1398 = vpop.permute.xlu0 %1397
      %1399 = vrot.lane.b32.xlu0 %v1206, 112
      %v1400 = vpop.permute.xlu0 %1399
      %1401 = vrot.lane.b32.xlu0 %v1207, 112
      %v1402 = vpop.permute.xlu0 %1401
      %1403 = vrot.lane.b32.xlu0 %v1208, 112
      %v1404 = vpop.permute.xlu0 %1403
      %1405 = vrot.lane.b32.xlu0 %v1209, 112
      %v1406 = vpop.permute.xlu0 %1405
      %1407 = vrot.lane.b32.xlu0 %v1210, 112
      %v1408 = vpop.permute.xlu0 %1407
      %1409 = vrot.lane.b32.xlu0 %v1220, 112
      %v1410 = vpop.permute.xlu0 %1409
      %1411 = vrot.lane.b32.xlu0 %v1223, 112
      %v1412 = vpop.permute.xlu0 %1411
      %v1421 = vsel %vm1139, %v1195, %v1234
      %v1422 = vsel %vm1139, %v1196, %v1236
      %v1423 = vsel %vm1139, %v1197, %v1238
      %v1424 = vsel %vm1139, %v1198, %v1240
      %v1425 = vsel %vm1139, %v1199, %v1242
      %v1426 = vsel %vm1139, %v1200, %v1244
      %v1427 = vsel %vm1139, %v1201, %v1246
      %v1428 = vsel %vm1139, %v1202, %v1248
      %v1429 = vsel %vm653, %v1421, %v1266
      %v1430 = vsel %vm653, %v1422, %v1268
      %v1431 = vsel %vm653, %v1423, %v1270
      %v1432 = vsel %vm653, %v1424, %v1272
      %v1433 = vsel %vm653, %v1425, %v1274
      %v1434 = vsel %vm653, %v1426, %v1276
      %v1435 = vsel %vm653, %v1427, %v1278
      %v1436 = vsel %vm653, %v1428, %v1280
      %vm1437 = vcmask 392192
      %v1438 = vsel %vm1437, %v1429, %v1298
      %v1439 = vsel %vm1437, %v1430, %v1300
      %v1440 = vsel %vm1437, %v1431, %v1302
      %v1441 = vsel %vm1437, %v1432, %v1304
      %v1442 = vsel %vm1437, %v1433, %v1306
      %v1443 = vsel %vm1437, %v1434, %v1308
      %v1444 = vsel %vm1437, %v1435, %v1310
      %v1445 = vsel %vm1437, %v1436, %v1312
      %vm1446 = vcmask 523264
      %v1447 = vsel %vm1446, %v1438, %v1323
      %v1448 = vsel %vm1446, %v1439, %v1325
      %v1449 = vsel %vm1446, %v1440, %v1327
      %v1450 = vsel %vm1446, %v1441, %v1329
      %v1451 = vsel %vm1446, %v1442, %v1331
      %v1452 = vsel %vm1446, %v1443, %v1333
      %v1453 = vsel %vm1446, %v1444, %v1335
      %v1454 = vsel %vm1446, %v1445, %v1337
      %vm1455 = vcmask 654336
      %v1456 = vsel %vm1455, %v1447, %v1348
      %v1457 = vsel %vm1455, %v1448, %v1350
      %v1458 = vsel %vm1455, %v1449, %v1352
      %v1459 = vsel %vm1455, %v1450, %v1354
      %v1460 = vsel %vm1455, %v1451, %v1356
      %v1461 = vsel %vm1455, %v1452, %v1358
      %v1462 = vsel %vm1455, %v1453, %v1360
      %v1463 = vsel %vm1455, %v1454, %v1362
      %vm1464 = vcmask 785408
      %v1465 = vsel %vm1464, %v1456, %v1373
      %v1466 = vsel %vm1464, %v1457, %v1375
      %v1467 = vsel %vm1464, %v1458, %v1377
      %v1468 = vsel %vm1464, %v1459, %v1379
      %v1469 = vsel %vm1464, %v1460, %v1381
      %v1470 = vsel %vm1464, %v1461, %v1383
      %v1471 = vsel %vm1464, %v1462, %v1385
      %v1472 = vsel %vm1464, %v1463, %v1387
      %vm1473 = vcmask 916480
      %v1474 = vsel %vm1473, %v1465, %v1398
      %v1475 = vsel %vm1473, %v1466, %v1400
      %v1476 = vsel %vm1473, %v1467, %v1402
      %v1477 = vsel %vm1473, %v1468, %v1404
      %v1478 = vsel %vm1473, %v1469, %v1406
      %v1479 = vsel %vm1473, %v1470, %v1408
      %v1480 = vsel %vm1473, %v1471, %v1410
      %v1481 = vsel %vm1473, %v1472, %v1412
      %v1482 = vpack.c.bf16 %v1475, %v1474
      %v1483 = vpack.c.bf16 %v1214, %v1213
      %v1484 = vpack.c.bf16 %v1477, %v1476
      %v1485 = vpack.c.bf16 %v1216, %v1215
      %v1486 = vpack.c.bf16 %v1479, %v1478
      %v1487 = vpack.c.bf16 %v1218, %v1217
      %v1488 = vpack.c.bf16 %v1481, %v1480
      %v1489 = vpack.c.bf16 %v1224, %v1221
      %v1491 = vlaneseq
      %v1492 = vshrl.u32 %v1491, 7
      %v1493 = vsub.s32 0, %v1492
      %v1494 = vrot.slane %v1194, %v1493
      %v1514 = vunpack.c.l.b16 %v1176
      %v1515 = vunpack.c.l.b16 %v1177
      %v1516 = vunpack.c.l.b16 %v1178
      %v1517 = vunpack.c.l.b16 %v1179
      %v1518 = vunpack.c.l.b16 %v1180
      %v1519 = vunpack.c.l.b16 %v1181
      %v1520 = vunpack.c.l.b16 %v1182
      %v1521 = vunpack.c.l.b16 %v1183
      %v1522 = vunpack.c.l.b16 %v1184
      %v1523 = vunpack.c.l.b16 %v1185
      %v1524 = vunpack.c.l.b16 %v1186
      %v1525 = vunpack.c.l.b16 %v1187
      %v1526 = vunpack.c.l.b16 %v1188
      %v1527 = vunpack.c.l.b16 %v1189
      %v1528 = vunpack.c.l.b16 %v1190
      %v1529 = vunpack.c.l.b16 %v1191
      %v1530 = vunpack.c.l.b16 %v1192
      %v1531 = vunpack.c.l.b16 %v1193
      %v1532 = vpack.c.b16 %v1515, %v1514
      %v1533 = vpack.c.b16 %v1517, %v1516
      %v1534 = vpack.c.b16 %v1519, %v1518
      %v1535 = vpack.c.b16 %v1521, %v1520
      %v1536 = vpack.c.b16 %v1523, %v1522
      %v1537 = vpack.c.b16 %v1525, %v1524
      %v1538 = vpack.c.b16 %v1527, %v1526
      %v1539 = vpack.c.b16 %v1529, %v1528
      %v1540 = vpack.c.b16 %v1531, %v1530
      %v1551 = vsel %vm1139, %v1483, 0
      %v1554 = vsel %vm1139, %v1485, 0
      %v1557 = vsel %vm1139, %v1487, 0
      %v1560 = vsel %vm1139, %v1489, 0
      %1562 = vmatprep.subr.bf16.mxu0 0
      %1563 = vmatpush1.bf16.msra.mxu0 %v1532
      %1564 = vmatprep.subr.bf16.mxu0 0
      %1565 = vmatpush1.bf16.msra.mxu0 %v1533
      %1566 = vmatprep.subr.bf16.mxu0 0
      %1567 = vmatpush1.bf16.msra.mxu0 %v1534
      %1568 = vmatprep.subr.bf16.mxu0 0
      %1569 = vmatpush1.bf16.msra.mxu0 %v1535
      %1570 = vmatprep.subr.bf16.mxu0 0
      %1571 = vmatpush1.bf16.msra.mxu0 %v1536
      %1572 = vmatprep.subr.bf16.mxu0 0
      %1573 = vmatpush1.bf16.msra.mxu0 %v1537
      %1574 = vmatprep.subr.bf16.mxu0 0
      %1575 = vmatpush1.bf16.msra.mxu0 %v1538
      %1576 = vmatprep.subr.bf16.mxu0 0
      %1577 = vmatpush1.bf16.msra.mxu0 %v1539
      %1578 = vmatprep.subr.bf16.mxu0 0
      %1579 = vmatpush1.bf16.msra.mxu0 %v1540
      %1580 = vmatprep.subr.bf16.mxu0 0
      %1581 = vmatpush1.bf16.msra.mxu0 0
      %1582 = vmatprep.subr.bf16.mxu0 0
      %1583 = vmatpush1.bf16.msra.mxu0 0
      %1584 = vmatprep.subr.bf16.mxu0 0
      %1585 = vmatpush1.bf16.msra.mxu0 0
      %1586 = vmatprep.subr.bf16.mxu0 0
      %1587 = vmatpush1.bf16.msra.mxu0 0
      %1588 = vmatprep.subr.bf16.mxu0 0
      %1589 = vmatpush1.bf16.msra.mxu0 0
      %1590 = vmatprep.subr.bf16.mxu0 0
      %1591 = vmatpush1.bf16.msra.mxu0 0
      %1592 = vmatprep.subr.bf16.mxu0 0
      %1593 = vmatpush1.bf16.msra.mxu0 0
      %1594 = vmatprep.mubr.bf16.mxu0 %v1551
      %1595 = vmatmul.mubr.bf16.gmra.mrb[0].mxu0 %v1482
      %v1596 = vpop.f32.mrb[0].mxu0
      %v1597 = vadd.f32 %v1494, %v1596
      %v1598 = vpop.f32.mrb[0].mxu0
      %v1599 = vpop.f32.mrb[0].mxu0
      %v1600 = vadd.f32 %v1494, %v1599
      %v1601 = vpop.f32.mrb[0].mxu0
      %1602 = vmatprep.mubr.bf16.mxu0 %v1554
      %1603 = vmatmul.mubr.bf16.gmra.mrb[0].mxu0 %v1484
      %v1604 = vpop.f32.mrb[0].mxu0
      %v1605 = vadd.f32 %v1494, %v1604
      %v1606 = vpop.f32.mrb[0].mxu0
      %v1607 = vpop.f32.mrb[0].mxu0
      %v1608 = vadd.f32 %v1494, %v1607
      %v1609 = vpop.f32.mrb[0].mxu0
      %1610 = vmatprep.mubr.bf16.mxu0 %v1557
      %1611 = vmatmul.mubr.bf16.gmra.mrb[0].mxu0 %v1486
      %v1612 = vpop.f32.mrb[0].mxu0
      %v1613 = vadd.f32 %v1494, %v1612
      %v1614 = vpop.f32.mrb[0].mxu0
      %v1615 = vpop.f32.mrb[0].mxu0
      %v1616 = vadd.f32 %v1494, %v1615
      %v1617 = vpop.f32.mrb[0].mxu0
      %1618 = vmatprep.mubr.bf16.mxu0 %v1560
      %1619 = vmatmul.mubr.bf16.gmra.mrb[0].mxu0 %v1488
      %v1620 = vpop.f32.mrb[0].mxu0
      %v1621 = vadd.f32 %v1494, %v1620
      %v1622 = vpop.f32.mrb[0].mxu0
      %v1623 = vpop.f32.mrb[0].mxu0
      %v1624 = vadd.f32 %v1494, %v1623
      %v1625 = vpop.f32.mrb[0].mxu0
      %1626 = vdwg.mxu0
      %v1627 = vld [vmem:[%s14] sm:$0x1]
      %v1629 = vlaneseq
      %v1630 = vshrl.u32 %v1629, 7
      %v1631 = vsub.s32 0, %v1630
      %v1632 = vrot.slane %v1627, %v1631
      %v1634 = vmul.f32 %v1597, %v1632
      %v1635 = vmul.f32 %v1600, %v1632
      %v1636 = vmul.f32 %v1605, %v1632
      %v1637 = vmul.f32 %v1608, %v1632
      %v1638 = vmul.f32 %v1613, %v1632
      %v1639 = vmul.f32 %v1616, %v1632
      %v1640 = vmul.f32 %v1621, %v1632
      %v1641 = vmul.f32 %v1624, %v1632
      %v1642 = vld [vmem:[%s15] sm:$0x1]
      %v1644 = vlaneseq
      %v1645 = vshrl.u32 %v1644, 7
      %v1646 = vsub.s32 0, %v1645
      %v1647 = vrot.slane %v1642, %v1646
      %v1649 = vadd.f32 %v1634, %v1647
      %v1650 = vadd.f32 %v1635, %v1647
      %v1651 = vadd.f32 %v1636, %v1647
      %v1652 = vadd.f32 %v1637, %v1647
      %v1653 = vadd.f32 %v1638, %v1647
      %v1654 = vadd.f32 %v1639, %v1647
      %v1655 = vadd.f32 %v1640, %v1647
      %v1656 = vadd.f32 %v1641, %v1647
      %v1657 = vmax.f32 %v1649, 0.0
      %v1658 = vmax.f32 %v1650, 0.0
      %v1659 = vmax.f32 %v1651, 0.0
      %v1660 = vmax.f32 %v1652, 0.0
      %v1661 = vmax.f32 %v1653, 0.0
      %v1662 = vmax.f32 %v1654, 0.0
      %v1663 = vmax.f32 %v1655, 0.0
      %v1664 = vmax.f32 %v1656, 0.0
      %v1665 = vpack.c.bf16 %v1658, %v1657
      %v1666 = vpack.c.bf16 %v1660, %v1659
      %v1667 = vpack.c.bf16 %v1662, %v1661
      %v1668 = vpack.c.bf16 %v1664, %v1663
      %v1669 = vld [vmem:[%s16] sm:$0xf]
      %v1670 = vld [vmem:[%s16 + $0x4] sm:$0xf]
      %v1671 = vld [vmem:[%s17] sm:$0x1]
      %v1673 = vlaneseq
      %v1674 = vshrl.u32 %v1673, 7
      %v1675 = vsub.s32 0, %v1674
      %v1676 = vrot.slane %v1671, %v1675
      %v1680 = vunpack.c.l.b16 %v1669
      %v1681 = vunpack.c.l.b16 %v1670
      %v1682 = vpack.c.b16 %v1681, %v1680
      %v1685 = vsel %vm1139, %v1665, 0
      %v1688 = vsel %vm1139, %v1666, 0
      %v1691 = vsel %vm1139, %v1667, 0
      %v1694 = vsel %vm1139, %v1668, 0
      %1696 = vmatprep.subr.bf16.mxu0 0
      %1697 = vmatpush1.bf16.msra.mxu0 %v1682
      %1698 = vmatprep.subr.bf16.mxu0 0
      %1699 = vmatpush1.bf16.msra.mxu0 0
      %1700 = vmatprep.subr.bf16.mxu0 0
      %1701 = vmatpush1.bf16.msra.mxu0 0
      %1702 = vmatprep.subr.bf16.mxu0 0
      %1703 = vmatpush1.bf16.msra.mxu0 0
      %1704 = vmatprep.subr.bf16.mxu0 0
      %1705 = vmatpush1.bf16.msra.mxu0 0
      %1706 = vmatprep.subr.bf16.mxu0 0
      %1707 = vmatpush1.bf16.msra.mxu0 0
      %1708 = vmatprep.subr.bf16.mxu0 0
      %1709 = vmatpush1.bf16.msra.mxu0 0
      %1710 = vmatprep.subr.bf16.mxu0 0
      %1711 = vmatpush1.bf16.msra.mxu0 0
      %1712 = vmatprep.subr.bf16.mxu0 0
      %1713 = vmatpush1.bf16.msra.mxu0 0
      %1714 = vmatprep.subr.bf16.mxu0 0
      %1715 = vmatpush1.bf16.msra.mxu0 0
      %1716 = vmatprep.subr.bf16.mxu0 0
      %1717 = vmatpush1.bf16.msra.mxu0 0
      %1718 = vmatprep.subr.bf16.mxu0 0
      %1719 = vmatpush1.bf16.msra.mxu0 0
      %1720 = vmatprep.subr.bf16.mxu0 0
      %1721 = vmatpush1.bf16.msra.mxu0 0
      %1722 = vmatprep.subr.bf16.mxu0 0
      %1723 = vmatpush1.bf16.msra.mxu0 0
      %1724 = vmatprep.subr.bf16.mxu0 0
      %1725 = vmatpush1.bf16.msra.mxu0 0
      %1726 = vmatprep.subr.bf16.mxu0 0
      %1727 = vmatpush1.bf16.msra.mxu0 0
      %1728 = vmatprep.mubr.bf16.mxu0 0
      %1729 = vmatmul.mubr.bf16.gmra.mrb[0].mxu0 %v1685
      %v1730 = vpop.f32.mrb[0].mxu0
      %v1731 = vadd.f32 %v1676, %v1730
      %v1732 = vpop.f32.mrb[0].mxu0
      %v1733 = vpop.f32.mrb[0].mxu0
      %v1734 = vadd.f32 %v1676, %v1733
      %v1735 = vpop.f32.mrb[0].mxu0
      %1736 = vmatprep.mubr.bf16.mxu0 0
      %1737 = vmatmul.mubr.bf16.gmra.mrb[0].mxu0 %v1688
      %v1738 = vpop.f32.mrb[0].mxu0
      %v1739 = vadd.f32 %v1676, %v1738
      %v1740 = vpop.f32.mrb[0].mxu0
      %v1741 = vpop.f32.mrb[0].mxu0
      %v1742 = vadd.f32 %v1676, %v1741
      %v1743 = vpop.f32.mrb[0].mxu0
      %1744 = vmatprep.mubr.bf16.mxu0 0
      %1745 = vmatmul.mubr.bf16.gmra.mrb[0].mxu0 %v1691
      %v1746 = vpop.f32.mrb[0].mxu0
      %v1747 = vadd.f32 %v1676, %v1746
      %v1748 = vpop.f32.mrb[0].mxu0
      %v1749 = vpop.f32.mrb[0].mxu0
      %v1750 = vadd.f32 %v1676, %v1749
      %v1751 = vpop.f32.mrb[0].mxu0
      %1752 = vmatprep.mubr.bf16.mxu0 0
      %1753 = vmatmul.mubr.bf16.gmra.mrb[0].mxu0 %v1694
      %v1754 = vpop.f32.mrb[0].mxu0
      %v1755 = vadd.f32 %v1676, %v1754
      %v1756 = vpop.f32.mrb[0].mxu0
      %v1757 = vpop.f32.mrb[0].mxu0
      %v1758 = vadd.f32 %v1676, %v1757
      %v1759 = vpop.f32.mrb[0].mxu0
      %1760 = vdwg.mxu0
      %v1761 = vadd.f32 %v1731, %v855
      %v1762 = vadd.f32 %v1734, %v856
      %v1763 = vadd.f32 %v1739, %v857
      %v1764 = vadd.f32 %v1742, %v858
      %v1765 = vadd.f32 %v1747, %v859
      %v1766 = vadd.f32 %v1750, %v860
      %v1767 = vadd.f32 %v1755, %v861
      %v1768 = vadd.f32 %v1758, %v862
      %1769 = vst.msk [vmem:[%s595] sm:$0xff] %vm653, %v1761
      %1770 = vst.msk [vmem:[%s595 + $0x8] sm:$0xff] %vm653, %v1762
      %1771 = vst.msk [vmem:[%s595 + $0x10] sm:$0xff] %vm653, %v1763
      %1772 = vst.msk [vmem:[%s595 + $0x18] sm:$0xff] %vm653, %v1764
      %1773 = vst.msk [vmem:[%s595 + $0x20] sm:$0xff] %vm653, %v1765
      %1774 = vst.msk [vmem:[%s595 + $0x28] sm:$0xff] %vm653, %v1766
      %1775 = vst.msk [vmem:[%s595 + $0x30] sm:$0xff] %vm653, %v1767
      %1776 = vst.msk [vmem:[%s595 + $0x38] sm:$0xff] %vm653, %v1768
      %p1777 = scmp.lt.s32.totalorder %s29, 1
      %s1778 = scalar_select %p1777, %s29, 1
      %s1779 = smul.addr %s1778, 8
      %s1780 = smul.addr %s1779, 8
      %s1781 = scalar_lea.vmem %s18, %s1780
      // Predicated region
      $region93: #{dpvt_forward.5} parent=91 // pred_check
        %p1782 = pneg %p435
      $region94: #{dpvt_forward.5} parent=91 // pred_check_branch
        %1784 = sbr.rel (%p1782) target = $region96
      $region95: #{dpvt_forward.5} parent=91 // pred_region
        _
      $region96: #{dpvt_forward.5} parent=91 // pred_fallthru
        _
    $region92: #{dpvt_forward.5} parent=5 // pred_fallthru
      _
    %p1785 = scmp.le.s32.totalorder 2, %s24
    // Predicated region
    $region97: #{dpvt_forward.5} parent=5 // pred_check
      %p1786 = pneg %p1785
    $region98: #{dpvt_forward.5} parent=5 // pred_check_branch
      %1788 = sbr.rel (%p1786) target = $region100
    $region99: #{dpvt_forward.5} parent=5 // pred_region
      %s1789 = ssub.s32 %s24, 2
      // Predicated region
      $region101: #{dpvt_forward.5} parent=99 // pred_check
        %p1790 = pneg %p441
      $region102: #{dpvt_forward.5} parent=99 // pred_check_branch
        %1792 = sbr.rel (%p1790) target = $region104
      $region103: #{dpvt_forward.5} parent=99 // pred_region
        %p1793 = scmp.lt.s32.totalorder %s30, 1
        %s1794 = scalar_select %p1793, %s30, 1
        %s1795 = smul.addr %s1794, 8
        %s1796 = smul.addr %s1795, 8
        %s1797 = scalar_lea.vmem %s18, %s1796
      $region104: #{dpvt_forward.5} parent=99 // pred_fallthru
        _
    $region100: #{dpvt_forward.5} parent=5 // pred_fallthru
      _
  $region6: #{dpvt_forward.5} parent=0 // loop_footer
    %s28 = sadd.s32 1, %s24
  $region7: #{dpvt_forward.5} parent=0 // loop_footer_branch
    %23 = sbr.rel target = $region3
  $region8: #{dpvt_forward.5} parent=0 // loop_exit
    _

// kernel: dpvt_forward.3
$region0: #{dpvt_forward.3}
  #allocation0 [shape = 'u32[]', space=smem, size = 0x4, offset = 0x4, fixed_abs, tag = 'smem constant byte address 0x4 - core index']
  #allocation1 [shape = 'u32[144,128]{1,0:T(1,128)}', space=vmem, size = 0x12000, scoped, tag = 'internal scratch']
  #allocation2 [shape = 'f32[96,128]{1,0:T(8,128)}', space=vmem, size = 0xc000, scoped, tag = 'scratch operand']
  #allocation3 [shape = 'f32[96,128]{1,0:T(8,128)}', space=vmem, size = 0xc000, scoped, tag = 'scratch operand']
  #allocation4 [shape = 'f32[96,128]{1,0:T(8,128)}', space=vmem, size = 0xc000, scoped, tag = 'scratch operand']
  %s0 = inlined_call_operand.vmem [shape: f32[2,64,32], index: 0, kind: input, shape index: {}]
  %s1 = inlined_call_operand.vmem [shape: f32[64,2], index: 1, kind: input, shape index: {}]
  %s2 = inlined_call_operand.vmem [shape: f32[1,32], index: 2, kind: input, shape index: {}]
  %s3 = inlined_call_operand.vmem [shape: bf16[32,96], index: 3, kind: input, shape index: {}]
  %s4 = inlined_call_operand.vmem [shape: bf16[32,32], index: 4, kind: input, shape index: {}]
  %s5 = inlined_call_operand.vmem [shape: f32[1,32], index: 5, kind: input, shape index: {}]
  %s6 = inlined_call_operand.vmem [shape: f32[1,32], index: 6, kind: input, shape index: {}]
  %s7 = inlined_call_operand.vmem [shape: f32[1,32], index: 7, kind: input, shape index: {}]
  %s8 = inlined_call_operand.vmem [shape: f32[1,32], index: 8, kind: input, shape index: {}]
  %s9 = inlined_call_operand.vmem [shape: f32[1,32], index: 9, kind: input, shape index: {}]
  %s10 = inlined_call_operand.vmem [shape: f32[8,32], index: 10, kind: input, shape index: {}]
  %s11 = inlined_call_operand.vmem [shape: f32[8,1], index: 11, kind: input, shape index: {}]
  %s12 = inlined_call_operand.vmem [shape: f32[8,32], index: 12, kind: input, shape index: {}]
  %s13 = inlined_call_operand.vmem [shape: f32[1,32], index: 13, kind: input, shape index: {}]
  %s14 = inlined_call_operand.vmem [shape: f32[1,32], index: 14, kind: input, shape index: {}]
  %s15 = inlined_call_operand.vmem [shape: f32[1,32], index: 15, kind: input, shape index: {}]
  %s16 = inlined_call_operand.vmem [shape: bf16[32,128], index: 16, kind: input, shape index: {}]
  %s17 = inlined_call_operand.vmem [shape: f32[1,128], index: 17, kind: input, shape index: {}]
  %s18 = inlined_call_operand.vmem [shape: f32[9,128], index: 18, kind: input, shape index: {}]
  %s19 = inlined_call_operand.vmem [shape: f32[1,128], index: 19, kind: input, shape index: {}]
  %s20 = inlined_call_operand.vmem [shape: bf16[128,32], index: 20, kind: input, shape index: {}]
  %s21 = inlined_call_operand.vmem [shape: f32[1,32], index: 21, kind: input, shape index: {}]
  %s22 = inlined_call_operand.vmem [shape: bf16[2,64,32], index: 22, kind: output, shape index: {}]
  %s23 = sld [smem:[#allocation0]]
  $region121: #{dpvt_forward.3} parent=0
    _
  %s25 = ssub.s32 1, %s23
  %s26 = scalar_select 0, %s25, %s23
  loop: start=0, step=1, limit=4
  $region2: #{dpvt_forward.3} parent=0 // loop_pre_header
    _
  $region3: #{dpvt_forward.3} parent=0 // loop_header
    %s28 = sphi 0, %s32
    %p29 = scmp.ge.s32.totalorder %s28, 4
    %s38 = sphi 0, %s40
    %s41 = sphi 0, %s38
    %s42 = sphi 0, %s41
    %s58 = sphi 0, %s42
    %s62 = sphi 0, %s62
    %s64 = sphi 0, %s62
    %s65 = sphi 0, %s64
    %s79 = sphi 0, %s65
    %s83 = sphi 0, %s83
    %s85 = sphi 0, %s83
    %s86 = sphi 0, %s85
    %s100 = sphi 0, %s86
    %s104 = sphi 0, %s104
    %s106 = sphi 0, %s104
    %s107 = sphi 0, %s106
    %s121 = sphi 0, %s107
    %s125 = sphi 0, %s125
    %s127 = sphi 0, %s125
    %s128 = sphi 0, %s127
    %s142 = sphi 0, %s128
    %s146 = sphi 0, %s146
    %s148 = sphi 0, %s146
    %s149 = sphi 0, %s148
    %s163 = sphi 0, %s149
    %s167 = sphi 0, %s167
    %s169 = sphi 0, %s167
    %s170 = sphi 0, %s169
    %s184 = sphi 0, %s170
    %s188 = sphi 0, %s188
    %s190 = sphi 0, %s188
    %s191 = sphi 0, %s190
    %s205 = sphi 0, %s191
    %s209 = sphi 0, %s209
    %s211 = sphi 0, %s209
    %s212 = sphi 0, %s211
    %s226 = sphi 0, %s212
    %s230 = sphi 0, %s230
    %s232 = sphi 0, %s230
    %s233 = sphi 0, %s232
    %s247 = sphi 0, %s233
    %s251 = sphi 0, %s251
    %s253 = sphi 0, %s251
    %s254 = sphi 0, %s253
    %s268 = sphi 0, %s254
    %s272 = sphi 0, %s272
    %s274 = sphi 0, %s272
    %s275 = sphi 0, %s274
    %s289 = sphi 0, %s275
    %s293 = sphi 0, %s293
    %s295 = sphi 0, %s293
    %s296 = sphi 0, %s295
    %s310 = sphi 0, %s296
    %s314 = sphi 0, %s314
    %s316 = sphi 0, %s314
    %s317 = sphi 0, %s316
    %s331 = sphi 0, %s317
    %s335 = sphi 0, %s335
    %s337 = sphi 0, %s335
    %s338 = sphi 0, %s337
    %s352 = sphi 0, %s338
    %s356 = sphi 0, %s356
    %s358 = sphi 0, %s356
    %s359 = sphi 0, %s358
    %s373 = sphi 0, %s359
    %s377 = sphi 0, %s377
    %s379 = sphi 0, %s377
    %s380 = sphi 0, %s379
    %s394 = sphi 0, %s380
    %s398 = sphi 0, %s398
    %s400 = sphi 0, %s398
    %s401 = sphi 0, %s400
    %s415 = sphi 0, %s401
    %s419 = sphi 0, %s419
    %s421 = sphi 0, %s419
    %s422 = sphi 0, %s421
    %s436 = sphi 0, %s422
    %s440 = sphi 0, %s440
    %s442 = sphi 0, %s440
    %s443 = sphi 0, %s442
    %s457 = sphi 0, %s443
    %s461 = sphi 0, %s461
    %s463 = sphi 0, %s461
    %s464 = sphi 0, %s463
    %s478 = sphi 0, %s464
    %s482 = sphi 0, %s482
    %s484 = sphi 0, %s482
    %s485 = sphi 0, %s484
    %s499 = sphi 0, %s485
    %s505 = sphi 0, %s507
    %s508 = sphi 0, %s505
    %s509 = sphi 0, %s508
    %s525 = sphi 0, %s509
  $region4: #{dpvt_forward.3} parent=0 // loop_header_branch
    %31 = sbr.rel (%p29) target = $region8
  $region5: #{dpvt_forward.3} parent=0 // loop_body
    %s33 = ssub.s32 %s28, 1
    %s34 = ssub.s32 %s28, 2
    %s35 = sadd.s32 %s28, 1
    %s36 = ssub.s32 %s28, %s35
    %p37 = scmp.eq.s32.totalorder %s36, 0
    %s39 = sadd.s32 %s38, 1
    %s40 = scalar_select %p37, %s38, %s39
    %p43 = pneg %p37
    %p44 = scmp.eq.s32.totalorder %s28, 1
    %p45 = por %p43, %p44
    %p46 = scmp.ne.s32.totalorder %s38, %s41
    %p47 = scmp.eq.s32.totalorder %s28, 0
    %p48 = por %p46, %p47
    %p49 = scmp.ne.s32.totalorder %s38, %s41
    %p50 = scmp.eq.s32.totalorder %s33, 1
    %p51 = por %p49, %p50
    %p52 = scmp.ne.s32.totalorder %s41, %s42
    %p53 = scmp.eq.s32.totalorder %s33, 0
    %p54 = por %p52, %p53
    %p55 = scmp.ne.s32.totalorder %s41, %s42
    %p56 = scmp.eq.s32.totalorder %s34, 1
    %p57 = por %p55, %p56
    %p59 = scmp.ne.s32.totalorder %s42, %s58
    %p60 = scmp.eq.s32.totalorder %s34, 0
    %p61 = por %p59, %p60
    %s63 = sadd.s32 %s62, 1
    %p66 = scmp.eq.s32.totalorder %s28, 1
    %p67 = scmp.ne.s32.totalorder %s62, %s64
    %p68 = scmp.eq.s32.totalorder %s28, 0
    %p69 = por %p67, %p68
    %p70 = scmp.ne.s32.totalorder %s62, %s64
    %p71 = scmp.eq.s32.totalorder %s33, 1
    %p72 = por %p70, %p71
    %p73 = scmp.ne.s32.totalorder %s64, %s65
    %p74 = scmp.eq.s32.totalorder %s33, 0
    %p75 = por %p73, %p74
    %p76 = scmp.ne.s32.totalorder %s64, %s65
    %p77 = scmp.eq.s32.totalorder %s34, 1
    %p78 = por %p76, %p77
    %p80 = scmp.ne.s32.totalorder %s65, %s79
    %p81 = scmp.eq.s32.totalorder %s34, 0
    %p82 = por %p80, %p81
    %s84 = sadd.s32 %s83, 1
    %p87 = scmp.eq.s32.totalorder %s28, 1
    %p88 = scmp.ne.s32.totalorder %s83, %s85
    %p89 = scmp.eq.s32.totalorder %s28, 0
    %p90 = por %p88, %p89
    %p91 = scmp.ne.s32.totalorder %s83, %s85
    %p92 = scmp.eq.s32.totalorder %s33, 1
    %p93 = por %p91, %p92
    %p94 = scmp.ne.s32.totalorder %s85, %s86
    %p95 = scmp.eq.s32.totalorder %s33, 0
    %p96 = por %p94, %p95
    %p97 = scmp.ne.s32.totalorder %s85, %s86
    %p98 = scmp.eq.s32.totalorder %s34, 1
    %p99 = por %p97, %p98
    %p101 = scmp.ne.s32.totalorder %s86, %s100
    %p102 = scmp.eq.s32.totalorder %s34, 0
    %p103 = por %p101, %p102
    %s105 = sadd.s32 %s104, 1
    %p108 = scmp.eq.s32.totalorder %s28, 1
    %p109 = scmp.ne.s32.totalorder %s104, %s106
    %p110 = scmp.eq.s32.totalorder %s28, 0
    %p111 = por %p109, %p110
    %p112 = scmp.ne.s32.totalorder %s104, %s106
    %p113 = scmp.eq.s32.totalorder %s33, 1
    %p114 = por %p112, %p113
    %p115 = scmp.ne.s32.totalorder %s106, %s107
    %p116 = scmp.eq.s32.totalorder %s33, 0
    %p117 = por %p115, %p116
    %p118 = scmp.ne.s32.totalorder %s106, %s107
    %p119 = scmp.eq.s32.totalorder %s34, 1
    %p120 = por %p118, %p119
    %p122 = scmp.ne.s32.totalorder %s107, %s121
    %p123 = scmp.eq.s32.totalorder %s34, 0
    %p124 = por %p122, %p123
    %s126 = sadd.s32 %s125, 1
    %p129 = scmp.eq.s32.totalorder %s28, 1
    %p130 = scmp.ne.s32.totalorder %s125, %s127
    %p131 = scmp.eq.s32.totalorder %s28, 0
    %p132 = por %p130, %p131
    %p133 = scmp.ne.s32.totalorder %s125, %s127
    %p134 = scmp.eq.s32.totalorder %s33, 1
    %p135 = por %p133, %p134
    %p136 = scmp.ne.s32.totalorder %s127, %s128
    %p137 = scmp.eq.s32.totalorder %s33, 0
    %p138 = por %p136, %p137
    %p139 = scmp.ne.s32.totalorder %s127, %s128
    %p140 = scmp.eq.s32.totalorder %s34, 1
    %p141 = por %p139, %p140
    %p143 = scmp.ne.s32.totalorder %s128, %s142
    %p144 = scmp.eq.s32.totalorder %s34, 0
    %p145 = por %p143, %p144
    %s147 = sadd.s32 %s146, 1
    %p150 = scmp.eq.s32.totalorder %s28, 1
    %p151 = scmp.ne.s32.totalorder %s146, %s148
    %p152 = scmp.eq.s32.totalorder %s28, 0
    %p153 = por %p151, %p152
    %p154 = scmp.ne.s32.totalorder %s146, %s148
    %p155 = scmp.eq.s32.totalorder %s33, 1
    %p156 = por %p154, %p155
    %p157 = scmp.ne.s32.totalorder %s148, %s149
    %p158 = scmp.eq.s32.totalorder %s33, 0
    %p159 = por %p157, %p158
    %p160 = scmp.ne.s32.totalorder %s148, %s149
    %p161 = scmp.eq.s32.totalorder %s34, 1
    %p162 = por %p160, %p161
    %p164 = scmp.ne.s32.totalorder %s149, %s163
    %p165 = scmp.eq.s32.totalorder %s34, 0
    %p166 = por %p164, %p165
    %s168 = sadd.s32 %s167, 1
    %p171 = scmp.eq.s32.totalorder %s28, 1
    %p172 = scmp.ne.s32.totalorder %s167, %s169
    %p173 = scmp.eq.s32.totalorder %s28, 0
    %p174 = por %p172, %p173
    %p175 = scmp.ne.s32.totalorder %s167, %s169
    %p176 = scmp.eq.s32.totalorder %s33, 1
    %p177 = por %p175, %p176
    %p178 = scmp.ne.s32.totalorder %s169, %s170
    %p179 = scmp.eq.s32.totalorder %s33, 0
    %p180 = por %p178, %p179
    %p181 = scmp.ne.s32.totalorder %s169, %s170
    %p182 = scmp.eq.s32.totalorder %s34, 1
    %p183 = por %p181, %p182
    %p185 = scmp.ne.s32.totalorder %s170, %s184
    %p186 = scmp.eq.s32.totalorder %s34, 0
    %p187 = por %p185, %p186
    %s189 = sadd.s32 %s188, 1
    %p192 = scmp.eq.s32.totalorder %s28, 1
    %p193 = scmp.ne.s32.totalorder %s188, %s190
    %p194 = scmp.eq.s32.totalorder %s28, 0
    %p195 = por %p193, %p194
    %p196 = scmp.ne.s32.totalorder %s188, %s190
    %p197 = scmp.eq.s32.totalorder %s33, 1
    %p198 = por %p196, %p197
    %p199 = scmp.ne.s32.totalorder %s190, %s191
    %p200 = scmp.eq.s32.totalorder %s33, 0
    %p201 = por %p199, %p200
    %p202 = scmp.ne.s32.totalorder %s190, %s191
    %p203 = scmp.eq.s32.totalorder %s34, 1
    %p204 = por %p202, %p203
    %p206 = scmp.ne.s32.totalorder %s191, %s205
    %p207 = scmp.eq.s32.totalorder %s34, 0
    %p208 = por %p206, %p207
    %s210 = sadd.s32 %s209, 1
    %p213 = scmp.eq.s32.totalorder %s28, 1
    %p214 = scmp.ne.s32.totalorder %s209, %s211
    %p215 = scmp.eq.s32.totalorder %s28, 0
    %p216 = por %p214, %p215
    %p217 = scmp.ne.s32.totalorder %s209, %s211
    %p218 = scmp.eq.s32.totalorder %s33, 1
    %p219 = por %p217, %p218
    %p220 = scmp.ne.s32.totalorder %s211, %s212
    %p221 = scmp.eq.s32.totalorder %s33, 0
    %p222 = por %p220, %p221
    %p223 = scmp.ne.s32.totalorder %s211, %s212
    %p224 = scmp.eq.s32.totalorder %s34, 1
    %p225 = por %p223, %p224
    %p227 = scmp.ne.s32.totalorder %s212, %s226
    %p228 = scmp.eq.s32.totalorder %s34, 0
    %p229 = por %p227, %p228
    %s231 = sadd.s32 %s230, 1
    %p234 = scmp.eq.s32.totalorder %s28, 1
    %p235 = scmp.ne.s32.totalorder %s230, %s232
    %p236 = scmp.eq.s32.totalorder %s28, 0
    %p237 = por %p235, %p236
    %p238 = scmp.ne.s32.totalorder %s230, %s232
    %p239 = scmp.eq.s32.totalorder %s33, 1
    %p240 = por %p238, %p239
    %p241 = scmp.ne.s32.totalorder %s232, %s233
    %p242 = scmp.eq.s32.totalorder %s33, 0
    %p243 = por %p241, %p242
    %p244 = scmp.ne.s32.totalorder %s232, %s233
    %p245 = scmp.eq.s32.totalorder %s34, 1
    %p246 = por %p244, %p245
    %p248 = scmp.ne.s32.totalorder %s233, %s247
    %p249 = scmp.eq.s32.totalorder %s34, 0
    %p250 = por %p248, %p249
    %s252 = sadd.s32 %s251, 1
    %p255 = scmp.eq.s32.totalorder %s28, 1
    %p256 = scmp.ne.s32.totalorder %s251, %s253
    %p257 = scmp.eq.s32.totalorder %s28, 0
    %p258 = por %p256, %p257
    %p259 = scmp.ne.s32.totalorder %s251, %s253
    %p260 = scmp.eq.s32.totalorder %s33, 1
    %p261 = por %p259, %p260
    %p262 = scmp.ne.s32.totalorder %s253, %s254
    %p263 = scmp.eq.s32.totalorder %s33, 0
    %p264 = por %p262, %p263
    %p265 = scmp.ne.s32.totalorder %s253, %s254
    %p266 = scmp.eq.s32.totalorder %s34, 1
    %p267 = por %p265, %p266
    %p269 = scmp.ne.s32.totalorder %s254, %s268
    %p270 = scmp.eq.s32.totalorder %s34, 0
    %p271 = por %p269, %p270
    %s273 = sadd.s32 %s272, 1
    %p276 = scmp.eq.s32.totalorder %s28, 1
    %p277 = scmp.ne.s32.totalorder %s272, %s274
    %p278 = scmp.eq.s32.totalorder %s28, 0
    %p279 = por %p277, %p278
    %p280 = scmp.ne.s32.totalorder %s272, %s274
    %p281 = scmp.eq.s32.totalorder %s33, 1
    %p282 = por %p280, %p281
    %p283 = scmp.ne.s32.totalorder %s274, %s275
    %p284 = scmp.eq.s32.totalorder %s33, 0
    %p285 = por %p283, %p284
    %p286 = scmp.ne.s32.totalorder %s274, %s275
    %p287 = scmp.eq.s32.totalorder %s34, 1
    %p288 = por %p286, %p287
    %p290 = scmp.ne.s32.totalorder %s275, %s289
    %p291 = scmp.eq.s32.totalorder %s34, 0
    %p292 = por %p290, %p291
    %s294 = sadd.s32 %s293, 1
    %p297 = scmp.eq.s32.totalorder %s28, 1
    %p298 = scmp.ne.s32.totalorder %s293, %s295
    %p299 = scmp.eq.s32.totalorder %s28, 0
    %p300 = por %p298, %p299
    %p301 = scmp.ne.s32.totalorder %s293, %s295
    %p302 = scmp.eq.s32.totalorder %s33, 1
    %p303 = por %p301, %p302
    %p304 = scmp.ne.s32.totalorder %s295, %s296
    %p305 = scmp.eq.s32.totalorder %s33, 0
    %p306 = por %p304, %p305
    %p307 = scmp.ne.s32.totalorder %s295, %s296
    %p308 = scmp.eq.s32.totalorder %s34, 1
    %p309 = por %p307, %p308
    %p311 = scmp.ne.s32.totalorder %s296, %s310
    %p312 = scmp.eq.s32.totalorder %s34, 0
    %p313 = por %p311, %p312
    %s315 = sadd.s32 %s314, 1
    %p318 = scmp.eq.s32.totalorder %s28, 1
    %p319 = scmp.ne.s32.totalorder %s314, %s316
    %p320 = scmp.eq.s32.totalorder %s28, 0
    %p321 = por %p319, %p320
    %p322 = scmp.ne.s32.totalorder %s314, %s316
    %p323 = scmp.eq.s32.totalorder %s33, 1
    %p324 = por %p322, %p323
    %p325 = scmp.ne.s32.totalorder %s316, %s317
    %p326 = scmp.eq.s32.totalorder %s33, 0
    %p327 = por %p325, %p326
    %p328 = scmp.ne.s32.totalorder %s316, %s317
    %p329 = scmp.eq.s32.totalorder %s34, 1
    %p330 = por %p328, %p329
    %p332 = scmp.ne.s32.totalorder %s317, %s331
    %p333 = scmp.eq.s32.totalorder %s34, 0
    %p334 = por %p332, %p333
    %s336 = sadd.s32 %s335, 1
    %p339 = scmp.eq.s32.totalorder %s28, 1
    %p340 = scmp.ne.s32.totalorder %s335, %s337
    %p341 = scmp.eq.s32.totalorder %s28, 0
    %p342 = por %p340, %p341
    %p343 = scmp.ne.s32.totalorder %s335, %s337
    %p344 = scmp.eq.s32.totalorder %s33, 1
    %p345 = por %p343, %p344
    %p346 = scmp.ne.s32.totalorder %s337, %s338
    %p347 = scmp.eq.s32.totalorder %s33, 0
    %p348 = por %p346, %p347
    %p349 = scmp.ne.s32.totalorder %s337, %s338
    %p350 = scmp.eq.s32.totalorder %s34, 1
    %p351 = por %p349, %p350
    %p353 = scmp.ne.s32.totalorder %s338, %s352
    %p354 = scmp.eq.s32.totalorder %s34, 0
    %p355 = por %p353, %p354
    %s357 = sadd.s32 %s356, 1
    %p360 = scmp.eq.s32.totalorder %s28, 1
    %p361 = scmp.ne.s32.totalorder %s356, %s358
    %p362 = scmp.eq.s32.totalorder %s28, 0
    %p363 = por %p361, %p362
    %p364 = scmp.ne.s32.totalorder %s356, %s358
    %p365 = scmp.eq.s32.totalorder %s33, 1
    %p366 = por %p364, %p365
    %p367 = scmp.ne.s32.totalorder %s358, %s359
    %p368 = scmp.eq.s32.totalorder %s33, 0
    %p369 = por %p367, %p368
    %p370 = scmp.ne.s32.totalorder %s358, %s359
    %p371 = scmp.eq.s32.totalorder %s34, 1
    %p372 = por %p370, %p371
    %p374 = scmp.ne.s32.totalorder %s359, %s373
    %p375 = scmp.eq.s32.totalorder %s34, 0
    %p376 = por %p374, %p375
    %s378 = sadd.s32 %s377, 1
    %p381 = scmp.eq.s32.totalorder %s28, 1
    %p382 = scmp.ne.s32.totalorder %s377, %s379
    %p383 = scmp.eq.s32.totalorder %s28, 0
    %p384 = por %p382, %p383
    %p385 = scmp.ne.s32.totalorder %s377, %s379
    %p386 = scmp.eq.s32.totalorder %s33, 1
    %p387 = por %p385, %p386
    %p388 = scmp.ne.s32.totalorder %s379, %s380
    %p389 = scmp.eq.s32.totalorder %s33, 0
    %p390 = por %p388, %p389
    %p391 = scmp.ne.s32.totalorder %s379, %s380
    %p392 = scmp.eq.s32.totalorder %s34, 1
    %p393 = por %p391, %p392
    %p395 = scmp.ne.s32.totalorder %s380, %s394
    %p396 = scmp.eq.s32.totalorder %s34, 0
    %p397 = por %p395, %p396
    %s399 = sadd.s32 %s398, 1
    %p402 = scmp.eq.s32.totalorder %s28, 1
    %p403 = scmp.ne.s32.totalorder %s398, %s400
    %p404 = scmp.eq.s32.totalorder %s28, 0
    %p405 = por %p403, %p404
    %p406 = scmp.ne.s32.totalorder %s398, %s400
    %p407 = scmp.eq.s32.totalorder %s33, 1
    %p408 = por %p406, %p407
    %p409 = scmp.ne.s32.totalorder %s400, %s401
    %p410 = scmp.eq.s32.totalorder %s33, 0
    %p411 = por %p409, %p410
    %p412 = scmp.ne.s32.totalorder %s400, %s401
    %p413 = scmp.eq.s32.totalorder %s34, 1
    %p414 = por %p412, %p413
    %p416 = scmp.ne.s32.totalorder %s401, %s415
    %p417 = scmp.eq.s32.totalorder %s34, 0
    %p418 = por %p416, %p417
    %s420 = sadd.s32 %s419, 1
    %p423 = scmp.eq.s32.totalorder %s28, 1
    %p424 = scmp.ne.s32.totalorder %s419, %s421
    %p425 = scmp.eq.s32.totalorder %s28, 0
    %p426 = por %p424, %p425
    %p427 = scmp.ne.s32.totalorder %s419, %s421
    %p428 = scmp.eq.s32.totalorder %s33, 1
    %p429 = por %p427, %p428
    %p430 = scmp.ne.s32.totalorder %s421, %s422
    %p431 = scmp.eq.s32.totalorder %s33, 0
    %p432 = por %p430, %p431
    %p433 = scmp.ne.s32.totalorder %s421, %s422
    %p434 = scmp.eq.s32.totalorder %s34, 1
    %p435 = por %p433, %p434
    %p437 = scmp.ne.s32.totalorder %s422, %s436
    %p438 = scmp.eq.s32.totalorder %s34, 0
    %p439 = por %p437, %p438
    %s441 = sadd.s32 %s440, 1
    %p444 = scmp.eq.s32.totalorder %s28, 1
    %p445 = scmp.ne.s32.totalorder %s440, %s442
    %p446 = scmp.eq.s32.totalorder %s28, 0
    %p447 = por %p445, %p446
    %p448 = scmp.ne.s32.totalorder %s440, %s442
    %p449 = scmp.eq.s32.totalorder %s33, 1
    %p450 = por %p448, %p449
    %p451 = scmp.ne.s32.totalorder %s442, %s443
    %p452 = scmp.eq.s32.totalorder %s33, 0
    %p453 = por %p451, %p452
    %p454 = scmp.ne.s32.totalorder %s442, %s443
    %p455 = scmp.eq.s32.totalorder %s34, 1
    %p456 = por %p454, %p455
    %p458 = scmp.ne.s32.totalorder %s443, %s457
    %p459 = scmp.eq.s32.totalorder %s34, 0
    %p460 = por %p458, %p459
    %s462 = sadd.s32 %s461, 1
    %p465 = scmp.eq.s32.totalorder %s28, 1
    %p466 = scmp.ne.s32.totalorder %s461, %s463
    %p467 = scmp.eq.s32.totalorder %s28, 0
    %p468 = por %p466, %p467
    %p469 = scmp.ne.s32.totalorder %s461, %s463
    %p470 = scmp.eq.s32.totalorder %s33, 1
    %p471 = por %p469, %p470
    %p472 = scmp.ne.s32.totalorder %s463, %s464
    %p473 = scmp.eq.s32.totalorder %s33, 0
    %p474 = por %p472, %p473
    %p475 = scmp.ne.s32.totalorder %s463, %s464
    %p476 = scmp.eq.s32.totalorder %s34, 1
    %p477 = por %p475, %p476
    %p479 = scmp.ne.s32.totalorder %s464, %s478
    %p480 = scmp.eq.s32.totalorder %s34, 0
    %p481 = por %p479, %p480
    %s483 = sadd.s32 %s482, 1
    %p486 = scmp.eq.s32.totalorder %s28, 1
    %p487 = scmp.ne.s32.totalorder %s482, %s484
    %p488 = scmp.eq.s32.totalorder %s28, 0
    %p489 = por %p487, %p488
    %p490 = scmp.ne.s32.totalorder %s482, %s484
    %p491 = scmp.eq.s32.totalorder %s33, 1
    %p492 = por %p490, %p491
    %p493 = scmp.ne.s32.totalorder %s484, %s485
    %p494 = scmp.eq.s32.totalorder %s33, 0
    %p495 = por %p493, %p494
    %p496 = scmp.ne.s32.totalorder %s484, %s485
    %p497 = scmp.eq.s32.totalorder %s34, 1
    %p498 = por %p496, %p497
    %p500 = scmp.ne.s32.totalorder %s485, %s499
    %p501 = scmp.eq.s32.totalorder %s34, 0
    %p502 = por %p500, %p501
    %s503 = ssub.s32 %s28, %s35
    %p504 = scmp.eq.s32.totalorder %s503, 0
    %s506 = sadd.s32 %s505, 1
    %s507 = scalar_select %p504, %s505, %s506
    %p510 = pneg %p504
    %p511 = scmp.eq.s32.totalorder %s28, 1
    %p512 = por %p510, %p511
    %p513 = scmp.ne.s32.totalorder %s505, %s508
    %p514 = scmp.eq.s32.totalorder %s28, 0
    %p515 = por %p513, %p514
    %p516 = scmp.ne.s32.totalorder %s505, %s508
    %p517 = scmp.eq.s32.totalorder %s33, 1
    %p518 = por %p516, %p517
    %p519 = scmp.ne.s32.totalorder %s508, %s509
    %p520 = scmp.eq.s32.totalorder %s33, 0
    %p521 = por %p519, %p520
    %p522 = scmp.ne.s32.totalorder %s508, %s509
    %p523 = scmp.eq.s32.totalorder %s34, 1
    %p524 = por %p522, %p523
    %p526 = scmp.ne.s32.totalorder %s509, %s525
    %p527 = scmp.eq.s32.totalorder %s34, 0
    %p528 = por %p526, %p527
    %p529 = scmp.le.s32.totalorder 1, %s28
    %p530 = scmp.lt.s32.totalorder %s28, 3
    %p531 = pnand %p529, %p530
    %p532 = pneg %p531
    // Predicated region
    $region9: #{dpvt_forward.3} parent=5 // pred_check
      _
    $region10: #{dpvt_forward.3} parent=5 // pred_check_branch
      %534 = sbr.rel (%p531) target = $region12
    $region11: #{dpvt_forward.3} parent=5 // pred_region
      %s535 = ssub.s32 %s28, 1
      // Predicated region
      $region13: #{dpvt_forward.3} parent=11 // pred_check
        %p536 = pneg %p75
      $region14: #{dpvt_forward.3} parent=11 // pred_check_branch
        %538 = sbr.rel (%p536) target = $region16
      $region15: #{dpvt_forward.3} parent=11 // pred_region
        _
      $region16: #{dpvt_forward.3} parent=11 // pred_fallthru
        _
      // Predicated region
      $region17: #{dpvt_forward.3} parent=11 // pred_check
        %p539 = pneg %p96
      $region18: #{dpvt_forward.3} parent=11 // pred_check_branch
        %541 = sbr.rel (%p539) target = $region20
      $region19: #{dpvt_forward.3} parent=11 // pred_region
        _
      $region20: #{dpvt_forward.3} parent=11 // pred_fallthru
        _
      // Predicated region
      $region21: #{dpvt_forward.3} parent=11 // pred_check
        %p542 = pneg %p117
      $region22: #{dpvt_forward.3} parent=11 // pred_check_branch
        %544 = sbr.rel (%p542) target = $region24
      $region23: #{dpvt_forward.3} parent=11 // pred_region
        _
      $region24: #{dpvt_forward.3} parent=11 // pred_fallthru
        _
      // Predicated region
      $region25: #{dpvt_forward.3} parent=11 // pred_check
        %p545 = pneg %p138
      $region26: #{dpvt_forward.3} parent=11 // pred_check_branch
        %547 = sbr.rel (%p545) target = $region28
      $region27: #{dpvt_forward.3} parent=11 // pred_region
        _
      $region28: #{dpvt_forward.3} parent=11 // pred_fallthru
        _
      // Predicated region
      $region29: #{dpvt_forward.3} parent=11 // pred_check
        %p548 = pneg %p159
      $region30: #{dpvt_forward.3} parent=11 // pred_check_branch
        %550 = sbr.rel (%p548) target = $region32
      $region31: #{dpvt_forward.3} parent=11 // pred_region
        _
      $region32: #{dpvt_forward.3} parent=11 // pred_fallthru
        _
      // Predicated region
      $region33: #{dpvt_forward.3} parent=11 // pred_check
        %p551 = pneg %p180
      $region34: #{dpvt_forward.3} parent=11 // pred_check_branch
        %553 = sbr.rel (%p551) target = $region36
      $region35: #{dpvt_forward.3} parent=11 // pred_region
        _
      $region36: #{dpvt_forward.3} parent=11 // pred_fallthru
        _
      // Predicated region
      $region37: #{dpvt_forward.3} parent=11 // pred_check
        %p554 = pneg %p201
      $region38: #{dpvt_forward.3} parent=11 // pred_check_branch
        %556 = sbr.rel (%p554) target = $region40
      $region39: #{dpvt_forward.3} parent=11 // pred_region
        _
      $region40: #{dpvt_forward.3} parent=11 // pred_fallthru
        _
      // Predicated region
      $region41: #{dpvt_forward.3} parent=11 // pred_check
        %p557 = pneg %p222
      $region42: #{dpvt_forward.3} parent=11 // pred_check_branch
        %559 = sbr.rel (%p557) target = $region44
      $region43: #{dpvt_forward.3} parent=11 // pred_region
        _
      $region44: #{dpvt_forward.3} parent=11 // pred_fallthru
        _
      // Predicated region
      $region45: #{dpvt_forward.3} parent=11 // pred_check
        %p560 = pneg %p243
      $region46: #{dpvt_forward.3} parent=11 // pred_check_branch
        %562 = sbr.rel (%p560) target = $region48
      $region47: #{dpvt_forward.3} parent=11 // pred_region
        _
      $region48: #{dpvt_forward.3} parent=11 // pred_fallthru
        _
      // Predicated region
      $region49: #{dpvt_forward.3} parent=11 // pred_check
        %p563 = pneg %p264
      $region50: #{dpvt_forward.3} parent=11 // pred_check_branch
        %565 = sbr.rel (%p563) target = $region52
      $region51: #{dpvt_forward.3} parent=11 // pred_region
        _
      $region52: #{dpvt_forward.3} parent=11 // pred_fallthru
        _
      // Predicated region
      $region53: #{dpvt_forward.3} parent=11 // pred_check
        %p566 = pneg %p285
      $region54: #{dpvt_forward.3} parent=11 // pred_check_branch
        %568 = sbr.rel (%p566) target = $region56
      $region55: #{dpvt_forward.3} parent=11 // pred_region
        _
      $region56: #{dpvt_forward.3} parent=11 // pred_fallthru
        _
      // Predicated region
      $region57: #{dpvt_forward.3} parent=11 // pred_check
        %p569 = pneg %p306
      $region58: #{dpvt_forward.3} parent=11 // pred_check_branch
        %571 = sbr.rel (%p569) target = $region60
      $region59: #{dpvt_forward.3} parent=11 // pred_region
        _
      $region60: #{dpvt_forward.3} parent=11 // pred_fallthru
        _
      // Predicated region
      $region61: #{dpvt_forward.3} parent=11 // pred_check
        %p572 = pneg %p327
      $region62: #{dpvt_forward.3} parent=11 // pred_check_branch
        %574 = sbr.rel (%p572) target = $region64
      $region63: #{dpvt_forward.3} parent=11 // pred_region
        _
      $region64: #{dpvt_forward.3} parent=11 // pred_fallthru
        _
      // Predicated region
      $region65: #{dpvt_forward.3} parent=11 // pred_check
        %p575 = pneg %p348
      $region66: #{dpvt_forward.3} parent=11 // pred_check_branch
        %577 = sbr.rel (%p575) target = $region68
      $region67: #{dpvt_forward.3} parent=11 // pred_region
        _
      $region68: #{dpvt_forward.3} parent=11 // pred_fallthru
        _
      // Predicated region
      $region69: #{dpvt_forward.3} parent=11 // pred_check
        %p578 = pneg %p369
      $region70: #{dpvt_forward.3} parent=11 // pred_check_branch
        %580 = sbr.rel (%p578) target = $region72
      $region71: #{dpvt_forward.3} parent=11 // pred_region
        _
      $region72: #{dpvt_forward.3} parent=11 // pred_fallthru
        _
      // Predicated region
      $region73: #{dpvt_forward.3} parent=11 // pred_check
        %p581 = pneg %p390
      $region74: #{dpvt_forward.3} parent=11 // pred_check_branch
        %583 = sbr.rel (%p581) target = $region76
      $region75: #{dpvt_forward.3} parent=11 // pred_region
        _
      $region76: #{dpvt_forward.3} parent=11 // pred_fallthru
        _
      // Predicated region
      $region77: #{dpvt_forward.3} parent=11 // pred_check
        %p584 = pneg %p411
      $region78: #{dpvt_forward.3} parent=11 // pred_check_branch
        %586 = sbr.rel (%p584) target = $region80
      $region79: #{dpvt_forward.3} parent=11 // pred_region
        _
      $region80: #{dpvt_forward.3} parent=11 // pred_fallthru
        _
      // Predicated region
      $region81: #{dpvt_forward.3} parent=11 // pred_check
        %p587 = pneg %p432
      $region82: #{dpvt_forward.3} parent=11 // pred_check_branch
        %589 = sbr.rel (%p587) target = $region84
      $region83: #{dpvt_forward.3} parent=11 // pred_region
        _
      $region84: #{dpvt_forward.3} parent=11 // pred_fallthru
        _
      // Predicated region
      $region85: #{dpvt_forward.3} parent=11 // pred_check
        %p590 = pneg %p453
      $region86: #{dpvt_forward.3} parent=11 // pred_check_branch
        %592 = sbr.rel (%p590) target = $region88
      $region87: #{dpvt_forward.3} parent=11 // pred_region
        _
      $region88: #{dpvt_forward.3} parent=11 // pred_fallthru
        _
      // Predicated region
      $region89: #{dpvt_forward.3} parent=11 // pred_check
        %p593 = pneg %p474
      $region90: #{dpvt_forward.3} parent=11 // pred_check_branch
        %595 = sbr.rel (%p593) target = $region92
      $region91: #{dpvt_forward.3} parent=11 // pred_region
        _
      $region92: #{dpvt_forward.3} parent=11 // pred_fallthru
        _
      // Predicated region
      $region93: #{dpvt_forward.3} parent=11 // pred_check
        %p596 = pneg %p495
      $region94: #{dpvt_forward.3} parent=11 // pred_check_branch
        %598 = sbr.rel (%p596) target = $region96
      $region95: #{dpvt_forward.3} parent=11 // pred_region
        _
      $region96: #{dpvt_forward.3} parent=11 // pred_fallthru
        _
    $region12: #{dpvt_forward.3} parent=5 // pred_fallthru
      _
    %p599 = scmp.lt.s32.totalorder %s28, 2
    // Predicated region
    $region97: #{dpvt_forward.3} parent=5 // pred_check
      %p600 = pneg %p599
    $region98: #{dpvt_forward.3} parent=5 // pred_check_branch
      %602 = sbr.rel (%p600) target = $region100
    $region99: #{dpvt_forward.3} parent=5 // pred_region
      // Predicated region
      $region101: #{dpvt_forward.3} parent=99 // pred_check
        %p603 = pneg %p48
      $region102: #{dpvt_forward.3} parent=99 // pred_check_branch
        %605 = sbr.rel (%p603) target = $region104
      $region103: #{dpvt_forward.3} parent=99 // pred_region
        %p606 = scmp.lt.s32.totalorder %s28, 1
        %s607 = scalar_select %p606, %s28, 1
        %s608 = smul.addr %s607, 8
        %s609 = smul.addr %s608, 8
        %s610 = scalar_lea.vmem %s0, %s609
      $region104: #{dpvt_forward.3} parent=99 // pred_fallthru
        _
    $region100: #{dpvt_forward.3} parent=5 // pred_fallthru
      _
    %p611 = scmp.le.s32.totalorder 1, %s28
    %p612 = scmp.lt.s32.totalorder %s28, 3
    %p613 = pnand %p611, %p612
    %p614 = pneg %p613
    // Predicated region
    $region105: #{dpvt_forward.3} parent=5 // pred_check
      _
    $region106: #{dpvt_forward.3} parent=5 // pred_check_branch
      %616 = sbr.rel (%p613) target = $region108
    $region107: #{dpvt_forward.3} parent=5 // pred_region
      %s617 = ssub.s32 %s28, 1
      %p618 = scmp.lt.s32.totalorder %s33, 1
      %s619 = scalar_select %p618, %s33, 1
      %s620 = smul.addr %s619, 8
      %s621 = smul.addr %s620, 8
      %s622 = scalar_lea.vmem %s0, %s621
      %p623 = pneg %p54
      %p624 = pneg %p51
      %p625 = pneg %p75
      %p626 = pneg %p72
      %p627 = pneg %p96
      %p628 = pneg %p93
      %p629 = pneg %p117
      %p630 = pneg %p114
      %p631 = pneg %p138
      %p632 = pneg %p135
      %p633 = pneg %p159
      %p634 = pneg %p156
      %p635 = pneg %p180
      %p636 = pneg %p177
      %p637 = pneg %p201
      %p638 = pneg %p198
      %p639 = pneg %p222
      %p640 = pneg %p219
      %p641 = pneg %p243
      %p642 = pneg %p240
      %p643 = pneg %p264
      %p644 = pneg %p261
      %p645 = pneg %p285
      %p646 = pneg %p282
      %p647 = pneg %p306
      %p648 = pneg %p303
      %p649 = pneg %p327
      %p650 = pneg %p324
      %p651 = pneg %p348
      %p652 = pneg %p345
      %p653 = pneg %p369
      %p654 = pneg %p366
      %p655 = pneg %p390
      %p656 = pneg %p387
      %p657 = pneg %p411
      %p658 = pneg %p408
      %p659 = pneg %p432
      %p660 = pneg %p429
      %p661 = pneg %p453
      %p662 = pneg %p450
      %p663 = pneg %p474
      %p664 = pneg %p471
      %p665 = pneg %p495
      %p666 = pneg %p492
      %p667 = pneg %p521
      %p668 = pneg %p518
      %p669 = scmp.lt.s32.totalorder %s33, 1
      %s670 = scalar_select %p669, %s33, 1
      %s671 = smul.addr %s670, 8
      %s672 = smul.addr %s671, 4
      %s673 = scalar_lea.vmem %s22, %s672
      %p674 = scmp.lt.s32.totalorder %s33, 1
      %s675 = scalar_select %p674, %s33, 1
      %s676 = smul.addr %s675, 8
      %s677 = smul.addr %s676, 8
      %s678 = scalar_lea.vmem %s0, %s677
      %p679 = scmp.lt.s32.totalorder %s33, 1
      %s680 = scalar_select %p679, %s33, 1
      %s681 = smul.addr %s680, 8
      %s682 = smul.addr %s681, 4
      %s683 = scalar_lea.vmem %s22, %s682
      %v685 = vld [vmem:[%s678] sm:$0xff]
      %v686 = vld [vmem:[%s678 + $0x8] sm:$0xff]
      %v687 = vld [vmem:[%s678 + $0x10] sm:$0xff]
      %v688 = vld [vmem:[%s678 + $0x18] sm:$0xff]
      %v689 = vld [vmem:[%s678 + $0x20] sm:$0xff]
      %v690 = vld [vmem:[%s678 + $0x28] sm:$0xff]
      %v691 = vld [vmem:[%s678 + $0x30] sm:$0xff]
      %v692 = vld [vmem:[%s678 + $0x38] sm:$0xff]
      %v693 = vld [vmem:[%s6] sm:$0x1]
      %v694 = vld [vmem:[%s7] sm:$0x1]
      %vm695 = vcmask 261120
      %v696 = vsel %vm695, %v685, 0.0
      %697 = vadd.xlane.f32.xlu0 %v696
      %v698 = vpop.xlane.xlu0 %697
      %v699 = vsel %vm695, %v686, 0.0
      %700 = vadd.xlane.f32.xlu0 %v699
      %v701 = vpop.xlane.xlu0 %700
      %v702 = vsel %vm695, %v687, 0.0
      %703 = vadd.xlane.f32.xlu0 %v702
      %v704 = vpop.xlane.xlu0 %703
      %v705 = vsel %vm695, %v688, 0.0
      %706 = vadd.xlane.f32.xlu0 %v705
      %v707 = vpop.xlane.xlu0 %706
      %v708 = vsel %vm695, %v689, 0.0
      %709 = vadd.xlane.f32.xlu0 %v708
      %v710 = vpop.xlane.xlu0 %709
      %v711 = vsel %vm695, %v690, 0.0
      %712 = vadd.xlane.f32.xlu0 %v711
      %v713 = vpop.xlane.xlu0 %712
      %v714 = vsel %vm695, %v691, 0.0
      %715 = vadd.xlane.f32.xlu0 %v714
      %v716 = vpop.xlane.xlu0 %715
      %v717 = vsel %vm695, %v692, 0.0
      %718 = vadd.xlane.f32.xlu0 %v717
      %v719 = vpop.xlane.xlu0 %718
      %v720 = vrcp.pop 32.0
      %v721 = vmul.f32 %v698, %v720
      %v722 = vmul.f32 %v701, %v720
      %v723 = vmul.f32 %v704, %v720
      %v724 = vmul.f32 %v707, %v720
      %v725 = vmul.f32 %v710, %v720
      %v726 = vmul.f32 %v713, %v720
      %v727 = vmul.f32 %v716, %v720
      %v728 = vmul.f32 %v719, %v720
      %v729 = vsub.f32 %v685, %v721
      %v730 = vsub.f32 %v686, %v722
      %v731 = vsub.f32 %v687, %v723
      %v732 = vsub.f32 %v688, %v724
      %v733 = vsub.f32 %v689, %v725
      %v734 = vsub.f32 %v690, %v726
      %v735 = vsub.f32 %v691, %v727
      %v736 = vsub.f32 %v692, %v728
      %v737 = vmul.f32 %v729, %v729
      %v738 = vmul.f32 %v730, %v730
      %v739 = vmul.f32 %v731, %v731
      %v740 = vmul.f32 %v732, %v732
      %v741 = vmul.f32 %v733, %v733
      %v742 = vmul.f32 %v734, %v734
      %v743 = vmul.f32 %v735, %v735
      %v744 = vmul.f32 %v736, %v736
      %v745 = vsel %vm695, %v737, 0.0
      %746 = vadd.xlane.f32.xlu0 %v745
      %v747 = vpop.xlane.xlu0 %746
      %v748 = vsel %vm695, %v738, 0.0
      %749 = vadd.xlane.f32.xlu0 %v748
      %v750 = vpop.xlane.xlu0 %749
      %v751 = vsel %vm695, %v739, 0.0
      %752 = vadd.xlane.f32.xlu0 %v751
      %v753 = vpop.xlane.xlu0 %752
      %v754 = vsel %vm695, %v740, 0.0
      %755 = vadd.xlane.f32.xlu0 %v754
      %v756 = vpop.xlane.xlu0 %755
      %v757 = vsel %vm695, %v741, 0.0
      %758 = vadd.xlane.f32.xlu0 %v757
      %v759 = vpop.xlane.xlu0 %758
      %v760 = vsel %vm695, %v742, 0.0
      %761 = vadd.xlane.f32.xlu0 %v760
      %v762 = vpop.xlane.xlu0 %761
      %v763 = vsel %vm695, %v743, 0.0
      %764 = vadd.xlane.f32.xlu0 %v763
      %v765 = vpop.xlane.xlu0 %764
      %v766 = vsel %vm695, %v744, 0.0
      %767 = vadd.xlane.f32.xlu0 %v766
      %v768 = vpop.xlane.xlu0 %767
      %v769 = vmul.f32 %v747, %v720
      %v770 = vmul.f32 %v750, %v720
      %v771 = vmul.f32 %v753, %v720
      %v772 = vmul.f32 %v756, %v720
      %v773 = vmul.f32 %v759, %v720
      %v774 = vmul.f32 %v762, %v720
      %v775 = vmul.f32 %v765, %v720
      %v776 = vmul.f32 %v768, %v720
      %v777 = vadd.f32 %v769, 1e-05
      %v778 = vadd.f32 %v770, 1e-05
      %v779 = vadd.f32 %v771, 1e-05
      %v780 = vadd.f32 %v772, 1e-05
      %v781 = vadd.f32 %v773, 1e-05
      %v782 = vadd.f32 %v774, 1e-05
      %v783 = vadd.f32 %v775, 1e-05
      %v784 = vadd.f32 %v776, 1e-05
      %v785 = vrsqrt.pop %v777
      %v786 = vrsqrt.pop %v778
      %v787 = vrsqrt.pop %v779
      %v788 = vrsqrt.pop %v780
      %v789 = vrsqrt.pop %v781
      %v790 = vrsqrt.pop %v782
      %v791 = vrsqrt.pop %v783
      %v792 = vrsqrt.pop %v784
      %v793 = vmul.f32 %v729, %v785
      %v794 = vmul.f32 %v730, %v786
      %v795 = vmul.f32 %v731, %v787
      %v796 = vmul.f32 %v732, %v788
      %v797 = vmul.f32 %v733, %v789
      %v798 = vmul.f32 %v734, %v790
      %v799 = vmul.f32 %v735, %v791
      %v800 = vmul.f32 %v736, %v792
      %v802 = vlaneseq
      %v803 = vshrl.u32 %v802, 7
      %v804 = vsub.s32 0, %v803
      %v805 = vrot.slane %v693, %v804
      %v807 = vmul.f32 %v793, %v805
      %v808 = vmul.f32 %v794, %v805
      %v809 = vmul.f32 %v795, %v805
      %v810 = vmul.f32 %v796, %v805
      %v811 = vmul.f32 %v797, %v805
      %v812 = vmul.f32 %v798, %v805
      %v813 = vmul.f32 %v799, %v805
      %v814 = vmul.f32 %v800, %v805
      %v816 = vlaneseq
      %v817 = vshrl.u32 %v816, 7
      %v818 = vsub.s32 0, %v817
      %v819 = vrot.slane %v694, %v818
      %v821 = vadd.f32 %v807, %v819
      %v822 = vadd.f32 %v808, %v819
      %v823 = vadd.f32 %v809, %v819
      %v824 = vadd.f32 %v810, %v819
      %v825 = vadd.f32 %v811, %v819
      %v826 = vadd.f32 %v812, %v819
      %v827 = vadd.f32 %v813, %v819
      %v828 = vadd.f32 %v814, %v819
      %v829 = vpack.c.bf16 %v822, %v821
      %v830 = vpack.c.bf16 %v824, %v823
      %v831 = vpack.c.bf16 %v826, %v825
      %v832 = vpack.c.bf16 %v828, %v827
      %v833 = vld [vmem:[%s3] sm:$0xf]
      %v834 = vld [vmem:[%s3 + $0x4] sm:$0xf]
      %v835 = vld [vmem:[%s3 + $0x8] sm:$0xf]
      %v836 = vld [vmem:[%s3 + $0xc] sm:$0xf]
      %v841 = vunpack.c.l.b16 %v833
      %v842 = vunpack.c.l.b16 %v834
      %v843 = vunpack.c.l.b16 %v835
      %v844 = vunpack.c.l.b16 %v836
      %v845 = vpack.c.b16 %v842, %v841
      %v846 = vpack.c.b16 %v844, %v843
      %v850 = vsel %vm695, %v829, 0
      %v853 = vsel %vm695, %v830, 0
      %v856 = vsel %vm695, %v831, 0
      %v859 = vsel %vm695, %v832, 0
      %861 = vmatprep.subr.bf16.mxu0 0
      %862 = vmatpush1.bf16.msra.mxu0 %v845
      %863 = vmatprep.subr.bf16.mxu0 0
      %864 = vmatpush1.bf16.msra.mxu0 %v846
      %865 = vmatprep.subr.bf16.mxu0 0
      %866 = vmatpush1.bf16.msra.mxu0 0
      %867 = vmatprep.subr.bf16.mxu0 0
      %868 = vmatpush1.bf16.msra.mxu0 0
      %869 = vmatprep.subr.bf16.mxu0 0
      %870 = vmatpush1.bf16.msra.mxu0 0
      %871 = vmatprep.subr.bf16.mxu0 0
      %872 = vmatpush1.bf16.msra.mxu0 0
      %873 = vmatprep.subr.bf16.mxu0 0
      %874 = vmatpush1.bf16.msra.mxu0 0
      %875 = vmatprep.subr.bf16.mxu0 0
      %876 = vmatpush1.bf16.msra.mxu0 0
      %877 = vmatprep.subr.bf16.mxu0 0
      %878 = vmatpush1.bf16.msra.mxu0 0
      %879 = vmatprep.subr.bf16.mxu0 0
      %880 = vmatpush1.bf16.msra.mxu0 0
      %881 = vmatprep.subr.bf16.mxu0 0
      %882 = vmatpush1.bf16.msra.mxu0 0
      %883 = vmatprep.subr.bf16.mxu0 0
      %884 = vmatpush1.bf16.msra.mxu0 0
      %885 = vmatprep.subr.bf16.mxu0 0
      %886 = vmatpush1.bf16.msra.mxu0 0
      %887 = vmatprep.subr.bf16.mxu0 0
      %888 = vmatpush1.bf16.msra.mxu0 0
      %889 = vmatprep.subr.bf16.mxu0 0
      %890 = vmatpush1.bf16.msra.mxu0 0
      %891 = vmatprep.subr.bf16.mxu0 0
      %892 = vmatpush1.bf16.msra.mxu0 0
      %893 = vmatprep.mubr.bf16.mxu0 0
      %894 = vmatmul.mubr.bf16.gmra.mrb[0].mxu0 %v850
      %v895 = vpop.f32.mrb[0].mxu0
      %v896 = vadd.f32 0.0, %v895
      %v897 = vpop.f32.mrb[0].mxu0
      %v898 = vpop.f32.mrb[0].mxu0
      %v899 = vadd.f32 0.0, %v898
      %v900 = vpop.f32.mrb[0].mxu0
      %901 = vmatprep.mubr.bf16.mxu0 0
      %902 = vmatmul.mubr.bf16.gmra.mrb[0].mxu0 %v853
      %v903 = vpop.f32.mrb[0].mxu0
      %v904 = vadd.f32 0.0, %v903
      %v905 = vpop.f32.mrb[0].mxu0
      %v906 = vpop.f32.mrb[0].mxu0
      %v907 = vadd.f32 0.0, %v906
      %v908 = vpop.f32.mrb[0].mxu0
      %909 = vmatprep.mubr.bf16.mxu0 0
      %910 = vmatmul.mubr.bf16.gmra.mrb[0].mxu0 %v856
      %v911 = vpop.f32.mrb[0].mxu0
      %v912 = vadd.f32 0.0, %v911
      %v913 = vpop.f32.mrb[0].mxu0
      %v914 = vpop.f32.mrb[0].mxu0
      %v915 = vadd.f32 0.0, %v914
      %v916 = vpop.f32.mrb[0].mxu0
      %917 = vmatprep.mubr.bf16.mxu0 0
      %918 = vmatmul.mubr.bf16.gmra.mrb[0].mxu0 %v859
      %v919 = vpop.f32.mrb[0].mxu0
      %v920 = vadd.f32 0.0, %v919
      %v921 = vpop.f32.mrb[0].mxu0
      %v922 = vpop.f32.mrb[0].mxu0
      %v923 = vadd.f32 0.0, %v922
      %v924 = vpop.f32.mrb[0].mxu0
      %925 = vdwg.mxu0
      %v926 = vmul.f32 %v896, %v896
      %v927 = vmul.f32 %v899, %v899
      %v928 = vmul.f32 %v904, %v904
      %v929 = vmul.f32 %v907, %v907
      %v930 = vmul.f32 %v912, %v912
      %v931 = vmul.f32 %v915, %v915
      %v932 = vmul.f32 %v920, %v920
      %v933 = vmul.f32 %v923, %v923
      %v934 = vsel %vm695, %v926, 0.0
      %v935 = vsel %vm695, %v927, 0.0
      %v936 = vadd.f32 %v934, %v935
      %v937 = vsel %vm695, %v928, 0.0
      %v938 = vadd.f32 %v936, %v937
      %v939 = vsel %vm695, %v929, 0.0
      %v940 = vadd.f32 %v938, %v939
      %v941 = vsel %vm695, %v930, 0.0
      %v942 = vadd.f32 %v940, %v941
      %v943 = vsel %vm695, %v931, 0.0
      %v944 = vadd.f32 %v942, %v943
      %v945 = vsel %vm695, %v932, 0.0
      %v946 = vadd.f32 %v944, %v945
      %v947 = vsel %vm695, %v933, 0.0
      %v948 = vadd.f32 %v946, %v947
      %v949 = vrot.slane %v948, 4
      %v950 = vadd.f32 %v948, %v949
      %v951 = vrot.slane %v950, 2
      %v952 = vadd.f32 %v950, %v951
      %v953 = vrot.slane %v952, 1
      %v954 = vadd.f32 %v952, %v953
      %v955 = vmax.f32 %v954, 1e-24
      %v956 = vrsqrt.pop %v955
      %v957 = vmul.f32 %v896, %v956
      %v958 = vmul.f32 %v899, %v956
      %v959 = vmul.f32 %v904, %v956
      %v960 = vmul.f32 %v907, %v956
      %v961 = vmul.f32 %v912, %v956
      %v962 = vmul.f32 %v915, %v956
      %v963 = vmul.f32 %v920, %v956
      %v964 = vmul.f32 %v923, %v956
      %vm965 = vcmask 523520
      %v966 = vsel %vm965, %v926, 0.0
      %v967 = vsel %vm965, %v927, 0.0
      %v968 = vadd.f32 %v966, %v967
      %v969 = vsel %vm965, %v928, 0.0
      %v970 = vadd.f32 %v968, %v969
      %v971 = vsel %vm965, %v929, 0.0
      %v972 = vadd.f32 %v970, %v971
      %v973 = vsel %vm965, %v930, 0.0
      %v974 = vadd.f32 %v972, %v973
      %v975 = vsel %vm965, %v931, 0.0
      %v976 = vadd.f32 %v974, %v975
      %v977 = vsel %vm965, %v932, 0.0
      %v978 = vadd.f32 %v976, %v977
      %v979 = vsel %vm965, %v933, 0.0
      %v980 = vadd.f32 %v978, %v979
      %v981 = vrot.slane %v980, 4
      %v982 = vadd.f32 %v980, %v981
      %v983 = vrot.slane %v982, 2
      %v984 = vadd.f32 %v982, %v983
      %v985 = vrot.slane %v984, 1
      %v986 = vadd.f32 %v984, %v985
      %v987 = vmax.f32 %v986, 1e-24
      %v988 = vrsqrt.pop %v987
      %v989 = vmul.f32 %v896, %v988
      %v990 = vmul.f32 %v899, %v988
      %v991 = vmul.f32 %v904, %v988
      %v992 = vmul.f32 %v907, %v988
      %v993 = vmul.f32 %v912, %v988
      %v994 = vmul.f32 %v915, %v988
      %v995 = vmul.f32 %v920, %v988
      %v996 = vmul.f32 %v923, %v988
      %1005 = vrot.lane.b32.xlu0 %v989, 96
      %v1006 = vpop.permute.xlu0 %1005
      %1007 = vrot.lane.b32.xlu0 %v990, 96
      %v1008 = vpop.permute.xlu0 %1007
      %1009 = vrot.lane.b32.xlu0 %v991, 96
      %v1010 = vpop.permute.xlu0 %1009
      %1011 = vrot.lane.b32.xlu0 %v992, 96
      %v1012 = vpop.permute.xlu0 %1011
      %1013 = vrot.lane.b32.xlu0 %v993, 96
      %v1014 = vpop.permute.xlu0 %1013
      %1015 = vrot.lane.b32.xlu0 %v994, 96
      %v1016 = vpop.permute.xlu0 %1015
      %1017 = vrot.lane.b32.xlu0 %v995, 96
      %v1018 = vpop.permute.xlu0 %1017
      %1019 = vrot.lane.b32.xlu0 %v996, 96
      %v1020 = vpop.permute.xlu0 %1019
      %v1029 = vmul.f32 %v957, %v1006
      %v1030 = vmul.f32 %v958, %v1008
      %v1031 = vmul.f32 %v959, %v1010
      %v1032 = vmul.f32 %v960, %v1012
      %v1033 = vmul.f32 %v961, %v1014
      %v1034 = vmul.f32 %v962, %v1016
      %v1035 = vmul.f32 %v963, %v1018
      %v1036 = vmul.f32 %v964, %v1020
      %v1037 = vld [vmem:[%s2] sm:$0x1]
      %v1039 = vlaneseq
      %v1040 = vshrl.u32 %v1039, 7
      %v1041 = vsub.s32 0, %v1040
      %v1042 = vrot.slane %v1037, %v1041
      %v1044 = vmul.f32 %v1029, %v1042
      %v1045 = vmul.f32 %v1030, %v1042
      %v1046 = vmul.f32 %v1031, %v1042
      %v1047 = vmul.f32 %v1032, %v1042
      %v1048 = vmul.f32 %v1033, %v1042
      %v1049 = vmul.f32 %v1034, %v1042
      %v1050 = vmul.f32 %v1035, %v1042
      %v1051 = vmul.f32 %v1036, %v1042
      %v1052 = vsel %vm695, %v1044, -inf
      %v1053 = vsel %vm695, %v1045, -inf
      %v1054 = vsel %vm695, %v1046, -inf
      %v1055 = vsel %vm695, %v1047, -inf
      %v1056 = vsel %vm695, %v1048, -inf
      %v1057 = vmax.f32 %v1052, %v1056
      %v1058 = vsel %vm695, %v1049, -inf
      %v1059 = vmax.f32 %v1053, %v1058
      %v1060 = vsel %vm695, %v1050, -inf
      %v1061 = vmax.f32 %v1054, %v1060
      %v1062 = vsel %vm695, %v1051, -inf
      %v1063 = vmax.f32 %v1055, %v1062
      %v1064 = vmax.f32 %v1057, %v1059
      %v1065 = vmax.f32 %v1061, %v1063
      %v1066 = vmax.f32 %v1064, %v1065
      %v1067 = vrot.slane %v1066, 4
      %v1068 = vmax.f32 %v1066, %v1067
      %v1069 = vrot.slane %v1068, 2
      %v1070 = vmax.f32 %v1068, %v1069
      %v1071 = vrot.slane %v1070, 1
      %v1072 = vmax.f32 %v1070, %v1071
      %v1073 = vsub.f32 %v1044, %v1072
      %v1074 = vsub.f32 %v1045, %v1072
      %v1075 = vsub.f32 %v1046, %v1072
      %v1076 = vsub.f32 %v1047, %v1072
      %v1077 = vsub.f32 %v1048, %v1072
      %v1078 = vsub.f32 %v1049, %v1072
      %v1079 = vsub.f32 %v1050, %v1072
      %v1080 = vsub.f32 %v1051, %v1072
      %v1081 = vmul.f32 %v1073, 1.442695
      %v1082 = vpow.pop %v1081
      %v1083 = vmul.f32 %v1074, 1.442695
      %v1084 = vpow.pop %v1083
      %v1085 = vmul.f32 %v1075, 1.442695
      %v1086 = vpow.pop %v1085
      %v1087 = vmul.f32 %v1076, 1.442695
      %v1088 = vpow.pop %v1087
      %v1089 = vmul.f32 %v1077, 1.442695
      %v1090 = vpow.pop %v1089
      %v1091 = vmul.f32 %v1078, 1.442695
      %v1092 = vpow.pop %v1091
      %v1093 = vmul.f32 %v1079, 1.442695
      %v1094 = vpow.pop %v1093
      %v1095 = vmul.f32 %v1080, 1.442695
      %v1096 = vpow.pop %v1095
      %v1097 = vsel %vm695, %v1082, 0.0
      %v1098 = vsel %vm695, %v1084, 0.0
      %v1099 = vadd.f32 %v1097, %v1098
      %v1100 = vsel %vm695, %v1086, 0.0
      %v1101 = vadd.f32 %v1099, %v1100
      %v1102 = vsel %vm695, %v1088, 0.0
      %v1103 = vadd.f32 %v1101, %v1102
      %v1104 = vsel %vm695, %v1090, 0.0
      %v1105 = vadd.f32 %v1103, %v1104
      %v1106 = vsel %vm695, %v1092, 0.0
      %v1107 = vadd.f32 %v1105, %v1106
      %v1108 = vsel %vm695, %v1094, 0.0
      %v1109 = vadd.f32 %v1107, %v1108
      %v1110 = vsel %vm695, %v1096, 0.0
      %v1111 = vadd.f32 %v1109, %v1110
      %v1112 = vrot.slane %v1111, 4
      %v1113 = vadd.f32 %v1111, %v1112
      %v1114 = vrot.slane %v1113, 2
      %v1115 = vadd.f32 %v1113, %v1114
      %v1116 = vrot.slane %v1115, 1
      %v1117 = vadd.f32 %v1115, %v1116
      %v1118 = vrcp.pop %v1117
      %v1119 = vmul.f32 %v1082, %v1118
      %v1120 = vmul.f32 %v1084, %v1118
      %v1121 = vmul.f32 %v1086, %v1118
      %v1122 = vmul.f32 %v1088, %v1118
      %v1123 = vmul.f32 %v1090, %v1118
      %v1124 = vmul.f32 %v1092, %v1118
      %v1125 = vmul.f32 %v1094, %v1118
      %v1126 = vmul.f32 %v1096, %v1118
      %1135 = vrot.lane.b32.xlu0 %v896, 64
      %v1136 = vpop.permute.xlu0 %1135
      %1137 = vrot.lane.b32.xlu0 %v899, 64
      %v1138 = vpop.permute.xlu0 %1137
      %1139 = vrot.lane.b32.xlu0 %v904, 64
      %v1140 = vpop.permute.xlu0 %1139
      %1141 = vrot.lane.b32.xlu0 %v907, 64
      %v1142 = vpop.permute.xlu0 %1141
      %1143 = vrot.lane.b32.xlu0 %v912, 64
      %v1144 = vpop.permute.xlu0 %1143
      %1145 = vrot.lane.b32.xlu0 %v915, 64
      %v1146 = vpop.permute.xlu0 %1145
      %1147 = vrot.lane.b32.xlu0 %v920, 64
      %v1148 = vpop.permute.xlu0 %1147
      %1149 = vrot.lane.b32.xlu0 %v923, 64
      %v1150 = vpop.permute.xlu0 %1149
      %v1159 = vmul.f32 %v1119, %v1136
      %v1160 = vmul.f32 %v1120, %v1138
      %v1161 = vmul.f32 %v1121, %v1140
      %v1162 = vmul.f32 %v1122, %v1142
      %v1163 = vmul.f32 %v1123, %v1144
      %v1164 = vmul.f32 %v1124, %v1146
      %v1165 = vmul.f32 %v1125, %v1148
      %v1166 = vmul.f32 %v1126, %v1150
      %v1167 = vpack.c.bf16 %v1160, %v1159
      %v1168 = vpack.c.bf16 %v1162, %v1161
      %v1169 = vpack.c.bf16 %v1164, %v1163
      %v1170 = vpack.c.bf16 %v1166, %v1165
      %v1171 = vld [vmem:[%s4] sm:$0xf]
      %v1172 = vld [vmem:[%s4 + $0x4] sm:$0xf]
      %v1173 = vld [vmem:[%s4 + $0x8] sm:$0xf]
      %v1174 = vld [vmem:[%s4 + $0xc] sm:$0xf]
      %v1175 = vld [vmem:[%s5] sm:$0x1]
      %v1177 = vlaneseq
      %v1178 = vshrl.u32 %v1177, 7
      %v1179 = vsub.s32 0, %v1178
      %v1180 = vrot.slane %v1175, %v1179
      %v1186 = vunpack.c.l.b16 %v1171
      %v1187 = vunpack.c.l.b16 %v1172
      %v1188 = vunpack.c.l.b16 %v1173
      %v1189 = vunpack.c.l.b16 %v1174
      %v1190 = vpack.c.b16 %v1187, %v1186
      %v1191 = vpack.c.b16 %v1189, %v1188
      %v1195 = vsel %vm695, %v1167, 0
      %v1198 = vsel %vm695, %v1168, 0
      %v1201 = vsel %vm695, %v1169, 0
      %v1204 = vsel %vm695, %v1170, 0
      %1206 = vmatprep.subr.bf16.mxu0 0
      %1207 = vmatpush1.bf16.msra.mxu0 %v1190
      %1208 = vmatprep.subr.bf16.mxu0 0
      %1209 = vmatpush1.bf16.msra.mxu0 %v1191
      %1210 = vmatprep.subr.bf16.mxu0 0
      %1211 = vmatpush1.bf16.msra.mxu0 0
      %1212 = vmatprep.subr.bf16.mxu0 0
      %1213 = vmatpush1.bf16.msra.mxu0 0
      %1214 = vmatprep.subr.bf16.mxu0 0
      %1215 = vmatpush1.bf16.msra.mxu0 0
      %1216 = vmatprep.subr.bf16.mxu0 0
      %1217 = vmatpush1.bf16.msra.mxu0 0
      %1218 = vmatprep.subr.bf16.mxu0 0
      %1219 = vmatpush1.bf16.msra.mxu0 0
      %1220 = vmatprep.subr.bf16.mxu0 0
      %1221 = vmatpush1.bf16.msra.mxu0 0
      %1222 = vmatprep.subr.bf16.mxu0 0
      %1223 = vmatpush1.bf16.msra.mxu0 0
      %1224 = vmatprep.subr.bf16.mxu0 0
      %1225 = vmatpush1.bf16.msra.mxu0 0
      %1226 = vmatprep.subr.bf16.mxu0 0
      %1227 = vmatpush1.bf16.msra.mxu0 0
      %1228 = vmatprep.subr.bf16.mxu0 0
      %1229 = vmatpush1.bf16.msra.mxu0 0
      %1230 = vmatprep.subr.bf16.mxu0 0
      %1231 = vmatpush1.bf16.msra.mxu0 0
      %1232 = vmatprep.subr.bf16.mxu0 0
      %1233 = vmatpush1.bf16.msra.mxu0 0
      %1234 = vmatprep.subr.bf16.mxu0 0
      %1235 = vmatpush1.bf16.msra.mxu0 0
      %1236 = vmatprep.subr.bf16.mxu0 0
      %1237 = vmatpush1.bf16.msra.mxu0 0
      %1238 = vmatprep.mubr.bf16.mxu0 0
      %1239 = vmatmul.mubr.bf16.gmra.mrb[0].mxu0 %v1195
      %v1240 = vpop.f32.mrb[0].mxu0
      %v1241 = vadd.f32 %v1180, %v1240
      %v1242 = vpop.f32.mrb[0].mxu0
      %v1243 = vpop.f32.mrb[0].mxu0
      %v1244 = vadd.f32 %v1180, %v1243
      %v1245 = vpop.f32.mrb[0].mxu0
      %1246 = vmatprep.mubr.bf16.mxu0 0
      %1247 = vmatmul.mubr.bf16.gmra.mrb[0].mxu0 %v1198
      %v1248 = vpop.f32.mrb[0].mxu0
      %v1249 = vadd.f32 %v1180, %v1248
      %v1250 = vpop.f32.mrb[0].mxu0
      %v1251 = vpop.f32.mrb[0].mxu0
      %v1252 = vadd.f32 %v1180, %v1251
      %v1253 = vpop.f32.mrb[0].mxu0
      %1254 = vmatprep.mubr.bf16.mxu0 0
      %1255 = vmatmul.mubr.bf16.gmra.mrb[0].mxu0 %v1201
      %v1256 = vpop.f32.mrb[0].mxu0
      %v1257 = vadd.f32 %v1180, %v1256
      %v1258 = vpop.f32.mrb[0].mxu0
      %v1259 = vpop.f32.mrb[0].mxu0
      %v1260 = vadd.f32 %v1180, %v1259
      %v1261 = vpop.f32.mrb[0].mxu0
      %1262 = vmatprep.mubr.bf16.mxu0 0
      %1263 = vmatmul.mubr.bf16.gmra.mrb[0].mxu0 %v1204
      %v1264 = vpop.f32.mrb[0].mxu0
      %v1265 = vadd.f32 %v1180, %v1264
      %v1266 = vpop.f32.mrb[0].mxu0
      %v1267 = vpop.f32.mrb[0].mxu0
      %v1268 = vadd.f32 %v1180, %v1267
      %v1269 = vpop.f32.mrb[0].mxu0
      %1270 = vdwg.mxu0
      %v1271 = vadd.f32 %v821, %v1241
      %v1272 = vadd.f32 %v822, %v1244
      %v1273 = vadd.f32 %v823, %v1249
      %v1274 = vadd.f32 %v824, %v1252
      %v1275 = vadd.f32 %v825, %v1257
      %v1276 = vadd.f32 %v826, %v1260
      %v1277 = vadd.f32 %v827, %v1265
      %v1278 = vadd.f32 %v828, %v1268
      %v1279 = vld [vmem:[%s8] sm:$0x1]
      %v1280 = vld [vmem:[%s9] sm:$0x1]
      %v1281 = vsel %vm695, %v1271, 0.0
      %1282 = vadd.xlane.f32.xlu0 %v1281
      %v1283 = vpop.xlane.xlu0 %1282
      %v1284 = vsel %vm695, %v1272, 0.0
      %1285 = vadd.xlane.f32.xlu0 %v1284
      %v1286 = vpop.xlane.xlu0 %1285
      %v1287 = vsel %vm695, %v1273, 0.0
      %1288 = vadd.xlane.f32.xlu0 %v1287
      %v1289 = vpop.xlane.xlu0 %1288
      %v1290 = vsel %vm695, %v1274, 0.0
      %1291 = vadd.xlane.f32.xlu0 %v1290
      %v1292 = vpop.xlane.xlu0 %1291
      %v1293 = vsel %vm695, %v1275, 0.0
      %1294 = vadd.xlane.f32.xlu0 %v1293
      %v1295 = vpop.xlane.xlu0 %1294
      %v1296 = vsel %vm695, %v1276, 0.0
      %1297 = vadd.xlane.f32.xlu0 %v1296
      %v1298 = vpop.xlane.xlu0 %1297
      %v1299 = vsel %vm695, %v1277, 0.0
      %1300 = vadd.xlane.f32.xlu0 %v1299
      %v1301 = vpop.xlane.xlu0 %1300
      %v1302 = vsel %vm695, %v1278, 0.0
      %1303 = vadd.xlane.f32.xlu0 %v1302
      %v1304 = vpop.xlane.xlu0 %1303
      %v1305 = vmul.f32 %v1283, %v720
      %v1306 = vmul.f32 %v1286, %v720
      %v1307 = vmul.f32 %v1289, %v720
      %v1308 = vmul.f32 %v1292, %v720
      %v1309 = vmul.f32 %v1295, %v720
      %v1310 = vmul.f32 %v1298, %v720
      %v1311 = vmul.f32 %v1301, %v720
      %v1312 = vmul.f32 %v1304, %v720
      %v1313 = vsub.f32 %v1271, %v1305
      %v1314 = vsub.f32 %v1272, %v1306
      %v1315 = vsub.f32 %v1273, %v1307
      %v1316 = vsub.f32 %v1274, %v1308
      %v1317 = vsub.f32 %v1275, %v1309
      %v1318 = vsub.f32 %v1276, %v1310
      %v1319 = vsub.f32 %v1277, %v1311
      %v1320 = vsub.f32 %v1278, %v1312
      %v1321 = vmul.f32 %v1313, %v1313
      %v1322 = vmul.f32 %v1314, %v1314
      %v1323 = vmul.f32 %v1315, %v1315
      %v1324 = vmul.f32 %v1316, %v1316
      %v1325 = vmul.f32 %v1317, %v1317
      %v1326 = vmul.f32 %v1318, %v1318
      %v1327 = vmul.f32 %v1319, %v1319
      %v1328 = vmul.f32 %v1320, %v1320
      %v1329 = vsel %vm695, %v1321, 0.0
      %1330 = vadd.xlane.f32.xlu0 %v1329
      %v1331 = vpop.xlane.xlu0 %1330
      %v1332 = vsel %vm695, %v1322, 0.0
      %1333 = vadd.xlane.f32.xlu0 %v1332
      %v1334 = vpop.xlane.xlu0 %1333
      %v1335 = vsel %vm695, %v1323, 0.0
      %1336 = vadd.xlane.f32.xlu0 %v1335
      %v1337 = vpop.xlane.xlu0 %1336
      %v1338 = vsel %vm695, %v1324, 0.0
      %1339 = vadd.xlane.f32.xlu0 %v1338
      %v1340 = vpop.xlane.xlu0 %1339
      %v1341 = vsel %vm695, %v1325, 0.0
      %1342 = vadd.xlane.f32.xlu0 %v1341
      %v1343 = vpop.xlane.xlu0 %1342
      %v1344 = vsel %vm695, %v1326, 0.0
      %1345 = vadd.xlane.f32.xlu0 %v1344
      %v1346 = vpop.xlane.xlu0 %1345
      %v1347 = vsel %vm695, %v1327, 0.0
      %1348 = vadd.xlane.f32.xlu0 %v1347
      %v1349 = vpop.xlane.xlu0 %1348
      %v1350 = vsel %vm695, %v1328, 0.0
      %1351 = vadd.xlane.f32.xlu0 %v1350
      %v1352 = vpop.xlane.xlu0 %1351
      %v1353 = vmul.f32 %v1331, %v720
      %v1354 = vmul.f32 %v1334, %v720
      %v1355 = vmul.f32 %v1337, %v720
      %v1356 = vmul.f32 %v1340, %v720
      %v1357 = vmul.f32 %v1343, %v720
      %v1358 = vmul.f32 %v1346, %v720
      %v1359 = vmul.f32 %v1349, %v720
      %v1360 = vmul.f32 %v1352, %v720
      %v1361 = vadd.f32 %v1353, 1e-05
      %v1362 = vadd.f32 %v1354, 1e-05
      %v1363 = vadd.f32 %v1355, 1e-05
      %v1364 = vadd.f32 %v1356, 1e-05
      %v1365 = vadd.f32 %v1357, 1e-05
      %v1366 = vadd.f32 %v1358, 1e-05
      %v1367 = vadd.f32 %v1359, 1e-05
      %v1368 = vadd.f32 %v1360, 1e-05
      %v1369 = vrsqrt.pop %v1361
      %v1370 = vrsqrt.pop %v1362
      %v1371 = vrsqrt.pop %v1363
      %v1372 = vrsqrt.pop %v1364
      %v1373 = vrsqrt.pop %v1365
      %v1374 = vrsqrt.pop %v1366
      %v1375 = vrsqrt.pop %v1367
      %v1376 = vrsqrt.pop %v1368
      %v1377 = vmul.f32 %v1313, %v1369
      %v1378 = vmul.f32 %v1314, %v1370
      %v1379 = vmul.f32 %v1315, %v1371
      %v1380 = vmul.f32 %v1316, %v1372
      %v1381 = vmul.f32 %v1317, %v1373
      %v1382 = vmul.f32 %v1318, %v1374
      %v1383 = vmul.f32 %v1319, %v1375
      %v1384 = vmul.f32 %v1320, %v1376
      %v1386 = vlaneseq
      %v1387 = vshrl.u32 %v1386, 7
      %v1388 = vsub.s32 0, %v1387
      %v1389 = vrot.slane %v1279, %v1388
      %v1391 = vmul.f32 %v1377, %v1389
      %v1392 = vmul.f32 %v1378, %v1389
      %v1393 = vmul.f32 %v1379, %v1389
      %v1394 = vmul.f32 %v1380, %v1389
      %v1395 = vmul.f32 %v1381, %v1389
      %v1396 = vmul.f32 %v1382, %v1389
      %v1397 = vmul.f32 %v1383, %v1389
      %v1398 = vmul.f32 %v1384, %v1389
      %v1400 = vlaneseq
      %v1401 = vshrl.u32 %v1400, 7
      %v1402 = vsub.s32 0, %v1401
      %v1403 = vrot.slane %v1280, %v1402
      %v1405 = vadd.f32 %v1391, %v1403
      %v1406 = vadd.f32 %v1392, %v1403
      %v1407 = vadd.f32 %v1393, %v1403
      %v1408 = vadd.f32 %v1394, %v1403
      %v1409 = vadd.f32 %v1395, %v1403
      %v1410 = vadd.f32 %v1396, %v1403
      %v1411 = vadd.f32 %v1397, %v1403
      %v1412 = vadd.f32 %v1398, %v1403
      %v1413 = vsel %vm695, %v1405, 0.0
      %v1414 = vsel %vm695, %v1406, 0.0
      %v1415 = vadd.f32 %v1413, %v1414
      %v1416 = vsel %vm695, %v1407, 0.0
      %v1417 = vadd.f32 %v1415, %v1416
      %v1418 = vsel %vm695, %v1408, 0.0
      %v1419 = vadd.f32 %v1417, %v1418
      %v1420 = vsel %vm695, %v1409, 0.0
      %v1421 = vadd.f32 %v1419, %v1420
      %v1422 = vsel %vm695, %v1410, 0.0
      %v1423 = vadd.f32 %v1421, %v1422
      %v1424 = vsel %vm695, %v1411, 0.0
      %v1425 = vadd.f32 %v1423, %v1424
      %v1426 = vsel %vm695, %v1412, 0.0
      %v1427 = vadd.f32 %v1425, %v1426
      %v1428 = vrot.slane %v1427, 4
      %v1429 = vadd.f32 %v1427, %v1428
      %v1430 = vrot.slane %v1429, 2
      %v1431 = vadd.f32 %v1429, %v1430
      %v1432 = vrot.slane %v1431, 1
      %v1433 = vadd.f32 %v1431, %v1432
      %v1434 = vrcp.pop 64.0
      %v1435 = vmul.f32 %v1433, %v1434
      %v1436 = vld [vmem:[%s10] sm:$0xff]
      %v1437 = vmul.f32 %v1435, %v1436
      %v1438 = vsel %vm695, %v1437, 0.0
      %1439 = vadd.xlane.f32.xlu0 %v1438
      %v1440 = vpop.xlane.xlu0 %1439
      %v1441 = vld [vmem:[%s11] sm:$0xff]
      %v1442 = vadd.f32 %v1440, %v1441
      %v1443 = vmul.f32 %v1442, 0.5
      %v1444 = vmul.f32 %v1442, 0.044715
      %v1445 = vmul.f32 %v1444, %v1442
      %v1446 = vmul.f32 %v1445, %v1442
      %v1447 = vadd.f32 %v1442, %v1446
      %v1448 = vmul.f32 %v1447, 0.7978846
      %v1449 = vtanh.pop %v1448
      %v1450 = vadd.f32 %v1449, 1.0
      %v1451 = vmul.f32 %v1443, %v1450
      %v1452 = vld [vmem:[%s12] sm:$0xff]
      %1454 = vset.pattern.permute.xlu0 0
      %1455 = vperm.xlu0 %1454, %v1451
      %v1456 = vpop.permute.xlu0 %1455
      %v1458 = vmul.f32 %v1456, %v1452
      %v1459 = vsel %vm695, %v1458, 0.0
      %v1460 = vrot.slane %v1459, 4
      %v1461 = vadd.f32 %v1459, %v1460
      %v1462 = vrot.slane %v1461, 2
      %v1463 = vadd.f32 %v1461, %v1462
      %v1464 = vrot.slane %v1463, 1
      %v1465 = vadd.f32 %v1463, %v1464
      %v1466 = vld [vmem:[%s13] sm:$0x1]
      %v1467 = vadd.f32 %v1465, %v1466
      %v1468 = vmul.f32 %v1467, 0.5
      %v1469 = vtanh.pop %v1468
      %v1470 = vadd.f32 %v1469, 1.0
      %v1471 = vmul.f32 %v1470, 0.5
      %v1472 = vadd.f32 %v1471, 1.0
      %v1473 = vlaneseq
      %v1474 = vshrl.u32 %v1473, 7
      %v1475 = vsub.s32 0, %v1474
      %v1476 = vrot.slane %v1472, %v1475
      %v1477 = vmul.f32 %v1405, %v1476
      %v1478 = vmul.f32 %v1406, %v1476
      %v1479 = vmul.f32 %v1407, %v1476
      %v1480 = vmul.f32 %v1408, %v1476
      %v1481 = vmul.f32 %v1409, %v1476
      %v1482 = vmul.f32 %v1410, %v1476
      %v1483 = vmul.f32 %v1411, %v1476
      %v1484 = vmul.f32 %v1412, %v1476
      %v1485 = vld [vmem:[%s14] sm:$0x1]
      %v1486 = vld [vmem:[%s15] sm:$0x1]
      %v1487 = vsel %vm695, %v1477, 0.0
      %1488 = vadd.xlane.f32.xlu0 %v1487
      %v1489 = vpop.xlane.xlu0 %1488
      %v1490 = vsel %vm695, %v1478, 0.0
      %1491 = vadd.xlane.f32.xlu0 %v1490
      %v1492 = vpop.xlane.xlu0 %1491
      %v1493 = vsel %vm695, %v1479, 0.0
      %1494 = vadd.xlane.f32.xlu0 %v1493
      %v1495 = vpop.xlane.xlu0 %1494
      %v1496 = vsel %vm695, %v1480, 0.0
      %1497 = vadd.xlane.f32.xlu0 %v1496
      %v1498 = vpop.xlane.xlu0 %1497
      %v1499 = vsel %vm695, %v1481, 0.0
      %1500 = vadd.xlane.f32.xlu0 %v1499
      %v1501 = vpop.xlane.xlu0 %1500
      %v1502 = vsel %vm695, %v1482, 0.0
      %1503 = vadd.xlane.f32.xlu0 %v1502
      %v1504 = vpop.xlane.xlu0 %1503
      %v1505 = vsel %vm695, %v1483, 0.0
      %1506 = vadd.xlane.f32.xlu0 %v1505
      %v1507 = vpop.xlane.xlu0 %1506
      %v1508 = vsel %vm695, %v1484, 0.0
      %1509 = vadd.xlane.f32.xlu0 %v1508
      %v1510 = vpop.xlane.xlu0 %1509
      %v1511 = vmul.f32 %v1489, %v720
      %v1512 = vmul.f32 %v1492, %v720
      %v1513 = vmul.f32 %v1495, %v720
      %v1514 = vmul.f32 %v1498, %v720
      %v1515 = vmul.f32 %v1501, %v720
      %v1516 = vmul.f32 %v1504, %v720
      %v1517 = vmul.f32 %v1507, %v720
      %v1518 = vmul.f32 %v1510, %v720
      %v1519 = vsub.f32 %v1477, %v1511
      %v1520 = vsub.f32 %v1478, %v1512
      %v1521 = vsub.f32 %v1479, %v1513
      %v1522 = vsub.f32 %v1480, %v1514
      %v1523 = vsub.f32 %v1481, %v1515
      %v1524 = vsub.f32 %v1482, %v1516
      %v1525 = vsub.f32 %v1483, %v1517
      %v1526 = vsub.f32 %v1484, %v1518
      %v1527 = vmul.f32 %v1519, %v1519
      %v1528 = vmul.f32 %v1520, %v1520
      %v1529 = vmul.f32 %v1521, %v1521
      %v1530 = vmul.f32 %v1522, %v1522
      %v1531 = vmul.f32 %v1523, %v1523
      %v1532 = vmul.f32 %v1524, %v1524
      %v1533 = vmul.f32 %v1525, %v1525
      %v1534 = vmul.f32 %v1526, %v1526
      %v1535 = vsel %vm695, %v1527, 0.0
      %1536 = vadd.xlane.f32.xlu0 %v1535
      %v1537 = vpop.xlane.xlu0 %1536
      %v1538 = vsel %vm695, %v1528, 0.0
      %1539 = vadd.xlane.f32.xlu0 %v1538
      %v1540 = vpop.xlane.xlu0 %1539
      %v1541 = vsel %vm695, %v1529, 0.0
      %1542 = vadd.xlane.f32.xlu0 %v1541
      %v1543 = vpop.xlane.xlu0 %1542
      %v1544 = vsel %vm695, %v1530, 0.0
      %1545 = vadd.xlane.f32.xlu0 %v1544
      %v1546 = vpop.xlane.xlu0 %1545
      %v1547 = vsel %vm695, %v1531, 0.0
      %1548 = vadd.xlane.f32.xlu0 %v1547
      %v1549 = vpop.xlane.xlu0 %1548
      %v1550 = vsel %vm695, %v1532, 0.0
      %1551 = vadd.xlane.f32.xlu0 %v1550
      %v1552 = vpop.xlane.xlu0 %1551
      %v1553 = vsel %vm695, %v1533, 0.0
      %1554 = vadd.xlane.f32.xlu0 %v1553
      %v1555 = vpop.xlane.xlu0 %1554
      %v1556 = vsel %vm695, %v1534, 0.0
      %1557 = vadd.xlane.f32.xlu0 %v1556
      %v1558 = vpop.xlane.xlu0 %1557
      %v1559 = vmul.f32 %v1537, %v720
      %v1560 = vmul.f32 %v1540, %v720
      %v1561 = vmul.f32 %v1543, %v720
      %v1562 = vmul.f32 %v1546, %v720
      %v1563 = vmul.f32 %v1549, %v720
      %v1564 = vmul.f32 %v1552, %v720
      %v1565 = vmul.f32 %v1555, %v720
      %v1566 = vmul.f32 %v1558, %v720
      %v1567 = vadd.f32 %v1559, 1e-05
      %v1568 = vadd.f32 %v1560, 1e-05
      %v1569 = vadd.f32 %v1561, 1e-05
      %v1570 = vadd.f32 %v1562, 1e-05
      %v1571 = vadd.f32 %v1563, 1e-05
      %v1572 = vadd.f32 %v1564, 1e-05
      %v1573 = vadd.f32 %v1565, 1e-05
      %v1574 = vadd.f32 %v1566, 1e-05
      %v1575 = vrsqrt.pop %v1567
      %v1576 = vrsqrt.pop %v1568
      %v1577 = vrsqrt.pop %v1569
      %v1578 = vrsqrt.pop %v1570
      %v1579 = vrsqrt.pop %v1571
      %v1580 = vrsqrt.pop %v1572
      %v1581 = vrsqrt.pop %v1573
      %v1582 = vrsqrt.pop %v1574
      %v1583 = vmul.f32 %v1519, %v1575
      %v1584 = vmul.f32 %v1520, %v1576
      %v1585 = vmul.f32 %v1521, %v1577
      %v1586 = vmul.f32 %v1522, %v1578
      %v1587 = vmul.f32 %v1523, %v1579
      %v1588 = vmul.f32 %v1524, %v1580
      %v1589 = vmul.f32 %v1525, %v1581
      %v1590 = vmul.f32 %v1526, %v1582
      %v1592 = vlaneseq
      %v1593 = vshrl.u32 %v1592, 7
      %v1594 = vsub.s32 0, %v1593
      %v1595 = vrot.slane %v1485, %v1594
      %v1597 = vmul.f32 %v1583, %v1595
      %v1598 = vmul.f32 %v1584, %v1595
      %v1599 = vmul.f32 %v1585, %v1595
      %v1600 = vmul.f32 %v1586, %v1595
      %v1601 = vmul.f32 %v1587, %v1595
      %v1602 = vmul.f32 %v1588, %v1595
      %v1603 = vmul.f32 %v1589, %v1595
      %v1604 = vmul.f32 %v1590, %v1595
      %v1606 = vlaneseq
      %v1607 = vshrl.u32 %v1606, 7
      %v1608 = vsub.s32 0, %v1607
      %v1609 = vrot.slane %v1486, %v1608
      %v1611 = vadd.f32 %v1597, %v1609
      %v1612 = vadd.f32 %v1598, %v1609
      %v1613 = vadd.f32 %v1599, %v1609
      %v1614 = vadd.f32 %v1600, %v1609
      %v1615 = vadd.f32 %v1601, %v1609
      %v1616 = vadd.f32 %v1602, %v1609
      %v1617 = vadd.f32 %v1603, %v1609
      %v1618 = vadd.f32 %v1604, %v1609
      %v1619 = vpack.c.bf16 %v1612, %v1611
      %v1620 = vpack.c.bf16 %v1614, %v1613
      %v1621 = vpack.c.bf16 %v1616, %v1615
      %v1622 = vpack.c.bf16 %v1618, %v1617
      %v1623 = vld [vmem:[%s16] sm:$0xf]
      %v1624 = vld [vmem:[%s16 + $0x4] sm:$0xf]
      %v1625 = vld [vmem:[%s16 + $0x8] sm:$0xf]
      %v1626 = vld [vmem:[%s16 + $0xc] sm:$0xf]
      %v1627 = vld [vmem:[%s17] sm:$0x1]
      %v1629 = vlaneseq
      %v1630 = vshrl.u32 %v1629, 7
      %v1631 = vsub.s32 0, %v1630
      %v1632 = vrot.slane %v1627, %v1631
      %v1638 = vunpack.c.l.b16 %v1623
      %v1639 = vunpack.c.l.b16 %v1624
      %v1640 = vunpack.c.l.b16 %v1625
      %v1641 = vunpack.c.l.b16 %v1626
      %v1642 = vpack.c.b16 %v1639, %v1638
      %v1643 = vpack.c.b16 %v1641, %v1640
      %v1647 = vsel %vm695, %v1619, 0
      %v1650 = vsel %vm695, %v1620, 0
      %v1653 = vsel %vm695, %v1621, 0
      %v1656 = vsel %vm695, %v1622, 0
      %1658 = vmatprep.subr.bf16.mxu0 0
      %1659 = vmatpush1.bf16.msra.mxu0 %v1642
      %1660 = vmatprep.subr.bf16.mxu0 0
      %1661 = vmatpush1.bf16.msra.mxu0 %v1643
      %1662 = vmatprep.subr.bf16.mxu0 0
      %1663 = vmatpush1.bf16.msra.mxu0 0
      %1664 = vmatprep.subr.bf16.mxu0 0
      %1665 = vmatpush1.bf16.msra.mxu0 0
      %1666 = vmatprep.subr.bf16.mxu0 0
      %1667 = vmatpush1.bf16.msra.mxu0 0
      %1668 = vmatprep.subr.bf16.mxu0 0
      %1669 = vmatpush1.bf16.msra.mxu0 0
      %1670 = vmatprep.subr.bf16.mxu0 0
      %1671 = vmatpush1.bf16.msra.mxu0 0
      %1672 = vmatprep.subr.bf16.mxu0 0
      %1673 = vmatpush1.bf16.msra.mxu0 0
      %1674 = vmatprep.subr.bf16.mxu0 0
      %1675 = vmatpush1.bf16.msra.mxu0 0
      %1676 = vmatprep.subr.bf16.mxu0 0
      %1677 = vmatpush1.bf16.msra.mxu0 0
      %1678 = vmatprep.subr.bf16.mxu0 0
      %1679 = vmatpush1.bf16.msra.mxu0 0
      %1680 = vmatprep.subr.bf16.mxu0 0
      %1681 = vmatpush1.bf16.msra.mxu0 0
      %1682 = vmatprep.subr.bf16.mxu0 0
      %1683 = vmatpush1.bf16.msra.mxu0 0
      %1684 = vmatprep.subr.bf16.mxu0 0
      %1685 = vmatpush1.bf16.msra.mxu0 0
      %1686 = vmatprep.subr.bf16.mxu0 0
      %1687 = vmatpush1.bf16.msra.mxu0 0
      %1688 = vmatprep.subr.bf16.mxu0 0
      %1689 = vmatpush1.bf16.msra.mxu0 0
      %1690 = vmatprep.mubr.bf16.mxu0 0
      %1691 = vmatmul.mubr.bf16.gmra.mrb[0].mxu0 %v1647
      %v1692 = vpop.f32.mrb[0].mxu0
      %v1693 = vadd.f32 %v1632, %v1692
      %v1694 = vpop.f32.mrb[0].mxu0
      %v1695 = vpop.f32.mrb[0].mxu0
      %v1696 = vadd.f32 %v1632, %v1695
      %v1697 = vpop.f32.mrb[0].mxu0
      %1698 = vmatprep.mubr.bf16.mxu0 0
      %1699 = vmatmul.mubr.bf16.gmra.mrb[0].mxu0 %v1650
      %v1700 = vpop.f32.mrb[0].mxu0
      %v1701 = vadd.f32 %v1632, %v1700
      %v1702 = vpop.f32.mrb[0].mxu0
      %v1703 = vpop.f32.mrb[0].mxu0
      %v1704 = vadd.f32 %v1632, %v1703
      %v1705 = vpop.f32.mrb[0].mxu0
      %1706 = vmatprep.mubr.bf16.mxu0 0
      %1707 = vmatmul.mubr.bf16.gmra.mrb[0].mxu0 %v1653
      %v1708 = vpop.f32.mrb[0].mxu0
      %v1709 = vadd.f32 %v1632, %v1708
      %v1710 = vpop.f32.mrb[0].mxu0
      %v1711 = vpop.f32.mrb[0].mxu0
      %v1712 = vadd.f32 %v1632, %v1711
      %v1713 = vpop.f32.mrb[0].mxu0
      %1714 = vmatprep.mubr.bf16.mxu0 0
      %1715 = vmatmul.mubr.bf16.gmra.mrb[0].mxu0 %v1656
      %v1716 = vpop.f32.mrb[0].mxu0
      %v1717 = vadd.f32 %v1632, %v1716
      %v1718 = vpop.f32.mrb[0].mxu0
      %v1719 = vpop.f32.mrb[0].mxu0
      %v1720 = vadd.f32 %v1632, %v1719
      %v1721 = vpop.f32.mrb[0].mxu0
      %1722 = vdwg.mxu0
      %v1723 = vld [vmem:[%s1] sm:$0xff]
      %v1724 = vld [vmem:[%s1 + $0x8] sm:$0xff]
      %v1725 = vld [vmem:[%s1 + $0x10] sm:$0xff]
      %v1726 = vld [vmem:[%s1 + $0x18] sm:$0xff]
      %v1727 = vld [vmem:[%s1 + $0x20] sm:$0xff]
      %v1728 = vld [vmem:[%s1 + $0x28] sm:$0xff]
      %v1729 = vld [vmem:[%s1 + $0x30] sm:$0xff]
      %v1730 = vld [vmem:[%s1 + $0x38] sm:$0xff]
      %v1731 = vld [vmem:[%s18] sm:$0xff]
      %v1732 = vld [vmem:[%s18 + $0x8] sm:$0x1]
      %v1733 = vld [vmem:[%s19] sm:$0x1]
      %v1734 = vld [vmem:[%s20] sm:$0xf]
      %v1735 = vld [vmem:[%s20 + $0x4] sm:$0xf]
      %v1736 = vld [vmem:[%s20 + $0x8] sm:$0xf]
      %v1737 = vld [vmem:[%s20 + $0xc] sm:$0xf]
      %v1738 = vld [vmem:[%s20 + $0x10] sm:$0xf]
      %v1739 = vld [vmem:[%s20 + $0x14] sm:$0xf]
      %v1740 = vld [vmem:[%s20 + $0x18] sm:$0xf]
      %v1741 = vld [vmem:[%s20 + $0x1c] sm:$0xf]
      %v1742 = vld [vmem:[%s20 + $0x20] sm:$0xf]
      %v1743 = vld [vmem:[%s20 + $0x24] sm:$0xf]
      %v1744 = vld [vmem:[%s20 + $0x28] sm:$0xf]
      %v1745 = vld [vmem:[%s20 + $0x2c] sm:$0xf]
      %v1746 = vld [vmem:[%s20 + $0x30] sm:$0xf]
      %v1747 = vld [vmem:[%s20 + $0x34] sm:$0xf]
      %v1748 = vld [vmem:[%s20 + $0x38] sm:$0xf]
      %v1749 = vld [vmem:[%s20 + $0x3c] sm:$0xf]
      %v1750 = vld [vmem:[%s21] sm:$0x1]
      %1752 = vset.pattern.permute.xlu0 0
      %1753 = vperm.xlu0 %1752, %v1723
      %v1754 = vpop.permute.xlu0 %1753
      %1757 = vset.pattern.permute.xlu0 0
      %1758 = vperm.xlu0 %1757, %v1724
      %v1759 = vpop.permute.xlu0 %1758
      %1762 = vset.pattern.permute.xlu0 0
      %1763 = vperm.xlu0 %1762, %v1725
      %v1764 = vpop.permute.xlu0 %1763
      %1767 = vset.pattern.permute.xlu0 0
      %1768 = vperm.xlu0 %1767, %v1726
      %v1769 = vpop.permute.xlu0 %1768
      %1772 = vset.pattern.permute.xlu0 0
      %1773 = vperm.xlu0 %1772, %v1727
      %v1774 = vpop.permute.xlu0 %1773
      %1777 = vset.pattern.permute.xlu0 0
      %1778 = vperm.xlu0 %1777, %v1728
      %v1779 = vpop.permute.xlu0 %1778
      %1782 = vset.pattern.permute.xlu0 0
      %1783 = vperm.xlu0 %1782, %v1729
      %v1784 = vpop.permute.xlu0 %1783
      %1787 = vset.pattern.permute.xlu0 0
      %1788 = vperm.xlu0 %1787, %v1730
      %v1789 = vpop.permute.xlu0 %1788
      %v1791 = vmul.f32 %v1693, %v1754
      %v1792 = vmul.f32 %v1696, %v1759
      %v1793 = vmul.f32 %v1701, %v1764
      %v1794 = vmul.f32 %v1704, %v1769
      %v1795 = vmul.f32 %v1709, %v1774
      %v1796 = vmul.f32 %v1712, %v1779
      %v1797 = vmul.f32 %v1717, %v1784
      %v1798 = vmul.f32 %v1720, %v1789
      %1799 = vset.pattern.permute.xlu0 1
      %1800 = vperm.xlu0 %1799, %v1723
      %v1801 = vpop.permute.xlu0 %1800
      %1803 = vset.pattern.permute.xlu0 1
      %1804 = vperm.xlu0 %1803, %v1724
      %v1805 = vpop.permute.xlu0 %1804
      %1807 = vset.pattern.permute.xlu0 1
      %1808 = vperm.xlu0 %1807, %v1725
      %v1809 = vpop.permute.xlu0 %1808
      %1811 = vset.pattern.permute.xlu0 1
      %1812 = vperm.xlu0 %1811, %v1726
      %v1813 = vpop.permute.xlu0 %1812
      %1815 = vset.pattern.permute.xlu0 1
      %1816 = vperm.xlu0 %1815, %v1727
      %v1817 = vpop.permute.xlu0 %1816
      %1819 = vset.pattern.permute.xlu0 1
      %1820 = vperm.xlu0 %1819, %v1728
      %v1821 = vpop.permute.xlu0 %1820
      %1823 = vset.pattern.permute.xlu0 1
      %1824 = vperm.xlu0 %1823, %v1729
      %v1825 = vpop.permute.xlu0 %1824
      %1827 = vset.pattern.permute.xlu0 1
      %1828 = vperm.xlu0 %1827, %v1730
      %v1829 = vpop.permute.xlu0 %1828
      %v1831 = vmul.f32 %v1693, %v1801
      %v1832 = vmul.f32 %v1696, %v1805
      %v1833 = vmul.f32 %v1701, %v1809
      %v1834 = vmul.f32 %v1704, %v1813
      %v1835 = vmul.f32 %v1709, %v1817
      %v1836 = vmul.f32 %v1712, %v1821
      %v1837 = vmul.f32 %v1717, %v1825
      %v1838 = vmul.f32 %v1720, %v1829
      %1839 = vst [vmem:[#allocation2] sm:$0xff] 0.0
      %1840 = vst [vmem:[#allocation2 + $0x8] sm:$0xff] 0.0
      %1841 = vst [vmem:[#allocation2 + $0x10] sm:$0xff] %v1693
      %1842 = vst [vmem:[#allocation2 + $0x18] sm:$0xff] %v1696
      %1843 = vst [vmem:[#allocation2 + $0x20] sm:$0xff] %v1701
      %1844 = vst [vmem:[#allocation2 + $0x28] sm:$0xff] %v1704
      %1845 = vst [vmem:[#allocation2 + $0x30] sm:$0xff] %v1709
      %1846 = vst [vmem:[#allocation2 + $0x38] sm:$0xff] %v1712
      %1847 = vst [vmem:[#allocation2 + $0x40] sm:$0xff] %v1717
      %1848 = vst [vmem:[#allocation2 + $0x48] sm:$0xff] %v1720
      %1849 = vst [vmem:[#allocation2 + $0x50] sm:$0xff] 0.0
      %1850 = vst [vmem:[#allocation2 + $0x58] sm:$0xff] 0.0
      %1851 = vst [vmem:[#allocation3] sm:$0xff] 0.0
      %1852 = vst [vmem:[#allocation3 + $0x8] sm:$0xff] 0.0
      %1853 = vst [vmem:[#allocation3 + $0x10] sm:$0xff] %v1791
      %1854 = vst [vmem:[#allocation3 + $0x18] sm:$0xff] %v1792
      %1855 = vst [vmem:[#allocation3 + $0x20] sm:$0xff] %v1793
      %1856 = vst [vmem:[#allocation3 + $0x28] sm:$0xff] %v1794
      %1857 = vst [vmem:[#allocation3 + $0x30] sm:$0xff] %v1795
      %1858 = vst [vmem:[#allocation3 + $0x38] sm:$0xff] %v1796
      %1859 = vst [vmem:[#allocation3 + $0x40] sm:$0xff] %v1797
      %1860 = vst [vmem:[#allocation3 + $0x48] sm:$0xff] %v1798
      %1861 = vst [vmem:[#allocation3 + $0x50] sm:$0xff] 0.0
      %1862 = vst [vmem:[#allocation3 + $0x58] sm:$0xff] 0.0
      %1863 = vst [vmem:[#allocation4] sm:$0xff] 0.0
      %1864 = vst [vmem:[#allocation4 + $0x8] sm:$0xff] 0.0
      %1865 = vst [vmem:[#allocation4 + $0x10] sm:$0xff] %v1831
      %1866 = vst [vmem:[#allocation4 + $0x18] sm:$0xff] %v1832
      %1867 = vst [vmem:[#allocation4 + $0x20] sm:$0xff] %v1833
      %1868 = vst [vmem:[#allocation4 + $0x28] sm:$0xff] %v1834
      %1869 = vst [vmem:[#allocation4 + $0x30] sm:$0xff] %v1835
      %1870 = vst [vmem:[#allocation4 + $0x38] sm:$0xff] %v1836
      %1871 = vst [vmem:[#allocation4 + $0x40] sm:$0xff] %v1837
      %1872 = vst [vmem:[#allocation4 + $0x48] sm:$0xff] %v1838
      %1873 = vst [vmem:[#allocation4 + $0x50] sm:$0xff] 0.0
      %1874 = vst [vmem:[#allocation4 + $0x58] sm:$0xff] 0.0
      %v1875 = vld [vmem:[#allocation3 + $0x7] sm:$0xff]
      %v1876 = vld [vmem:[#allocation3 + $0xf] sm:$0xff]
      %v1877 = vld [vmem:[#allocation3 + $0x17] sm:$0xff]
      %v1878 = vld [vmem:[#allocation3 + $0x1f] sm:$0xff]
      %v1879 = vld [vmem:[#allocation3 + $0x27] sm:$0xff]
      %v1880 = vld [vmem:[#allocation3 + $0x2f] sm:$0xff]
      %v1881 = vld [vmem:[#allocation3 + $0x37] sm:$0xff]
      %v1882 = vld [vmem:[#allocation3 + $0x3f] sm:$0xff]
      %v1883 = vld [vmem:[#allocation2 + $0x8] sm:$0xff]
      %v1884 = vld [vmem:[#allocation2 + $0x10] sm:$0xff]
      %v1885 = vld [vmem:[#allocation2 + $0x18] sm:$0xff]
      %v1886 = vld [vmem:[#allocation2 + $0x20] sm:$0xff]
      %v1887 = vld [vmem:[#allocation2 + $0x28] sm:$0xff]
      %v1888 = vld [vmem:[#allocation2 + $0x30] sm:$0xff]
      %v1889 = vld [vmem:[#allocation2 + $0x38] sm:$0xff]
      %v1890 = vld [vmem:[#allocation2 + $0x40] sm:$0xff]
      %v1891 = vld [vmem:[#allocation4 + $0x9] sm:$0xff]
      %v1892 = vld [vmem:[#allocation4 + $0x11] sm:$0xff]
      %v1893 = vld [vmem:[#allocation4 + $0x19] sm:$0xff]
      %v1894 = vld [vmem:[#allocation4 + $0x21] sm:$0xff]
      %v1895 = vld [vmem:[#allocation4 + $0x29] sm:$0xff]
      %v1896 = vld [vmem:[#allocation4 + $0x31] sm:$0xff]
      %v1897 = vld [vmem:[#allocation4 + $0x39] sm:$0xff]
      %v1898 = vld [vmem:[#allocation4 + $0x41] sm:$0xff]
      %v1899 = vld [vmem:[#allocation3 + $0x47] sm:$0xff]
      %v1900 = vld [vmem:[#allocation2 + $0x48] sm:$0xff]
      %v1901 = vld [vmem:[#allocation4 + $0x49] sm:$0xff]
      %v1902 = vld [vmem:[#allocation3 + $0x4f] sm:$0xff]
      %v1903 = vld [vmem:[#allocation2 + $0x50] sm:$0xff]
      %v1904 = vld [vmem:[#allocation4 + $0x51] sm:$0xff]
      %v1906 = vlaneseq
      %v1907 = vshrl.u32 %v1906, 7
      %v1908 = vsub.s32 0, %v1907
      %v1909 = vrot.slane %v1733, %v1908
      %v1911 = vadd.f32 %v1909, 0.0
      %v1912 = vlaneseq
      %v1913 = vshrl.u32 %v1912, 7
      %v1914 = vsub.s32 0, %v1913
      %v1915 = vrot.slane %v1731, %v1914
      %v1916 = vmul.f32 %v1875, %v1915
      %v1917 = vmul.f32 %v1876, %v1915
      %v1918 = vmul.f32 %v1877, %v1915
      %v1919 = vmul.f32 %v1878, %v1915
      %v1920 = vmul.f32 %v1879, %v1915
      %v1921 = vmul.f32 %v1880, %v1915
      %v1922 = vmul.f32 %v1881, %v1915
      %v1923 = vmul.f32 %v1882, %v1915
      %v1924 = vadd.f32 %v1911, %v1916
      %v1925 = vadd.f32 %v1911, %v1917
      %v1926 = vadd.f32 %v1911, %v1918
      %v1927 = vadd.f32 %v1911, %v1919
      %v1928 = vadd.f32 %v1911, %v1920
      %v1929 = vadd.f32 %v1911, %v1921
      %v1930 = vadd.f32 %v1911, %v1922
      %v1931 = vadd.f32 %v1911, %v1923
      %v1932 = vlaneseq
      %v1933 = vshrl.u32 %v1932, 7
      %v1934 = vsub.s32 1, %v1933
      %v1935 = vrot.slane %v1731, %v1934
      %v1936 = vmul.f32 %v1883, %v1935
      %v1937 = vmul.f32 %v1884, %v1935
      %v1938 = vmul.f32 %v1885, %v1935
      %v1939 = vmul.f32 %v1886, %v1935
      %v1940 = vmul.f32 %v1887, %v1935
      %v1941 = vmul.f32 %v1888, %v1935
      %v1942 = vmul.f32 %v1889, %v1935
      %v1943 = vmul.f32 %v1890, %v1935
      %v1944 = vadd.f32 %v1924, %v1936
      %v1945 = vadd.f32 %v1925, %v1937
      %v1946 = vadd.f32 %v1926, %v1938
      %v1947 = vadd.f32 %v1927, %v1939
      %v1948 = vadd.f32 %v1928, %v1940
      %v1949 = vadd.f32 %v1929, %v1941
      %v1950 = vadd.f32 %v1930, %v1942
      %v1951 = vadd.f32 %v1931, %v1943
      %v1952 = vlaneseq
      %v1953 = vshrl.u32 %v1952, 7
      %v1954 = vsub.s32 2, %v1953
      %v1955 = vrot.slane %v1731, %v1954
      %v1956 = vmul.f32 %v1891, %v1955
      %v1957 = vmul.f32 %v1892, %v1955
      %v1958 = vmul.f32 %v1893, %v1955
      %v1959 = vmul.f32 %v1894, %v1955
      %v1960 = vmul.f32 %v1895, %v1955
      %v1961 = vmul.f32 %v1896, %v1955
      %v1962 = vmul.f32 %v1897, %v1955
      %v1963 = vmul.f32 %v1898, %v1955
      %v1964 = vadd.f32 %v1944, %v1956
      %v1965 = vadd.f32 %v1945, %v1957
      %v1966 = vadd.f32 %v1946, %v1958
      %v1967 = vadd.f32 %v1947, %v1959
      %v1968 = vadd.f32 %v1948, %v1960
      %v1969 = vadd.f32 %v1949, %v1961
      %v1970 = vadd.f32 %v1950, %v1962
      %v1971 = vadd.f32 %v1951, %v1963
      %v1972 = vlaneseq
      %v1973 = vshrl.u32 %v1972, 7
      %v1974 = vsub.s32 3, %v1973
      %v1975 = vrot.slane %v1731, %v1974
      %v1976 = vmul.f32 %v1876, %v1975
      %v1977 = vmul.f32 %v1877, %v1975
      %v1978 = vmul.f32 %v1878, %v1975
      %v1979 = vmul.f32 %v1879, %v1975
      %v1980 = vmul.f32 %v1880, %v1975
      %v1981 = vmul.f32 %v1881, %v1975
      %v1982 = vmul.f32 %v1882, %v1975
      %v1983 = vmul.f32 %v1899, %v1975
      %v1984 = vadd.f32 %v1964, %v1976
      %v1985 = vadd.f32 %v1965, %v1977
      %v1986 = vadd.f32 %v1966, %v1978
      %v1987 = vadd.f32 %v1967, %v1979
      %v1988 = vadd.f32 %v1968, %v1980
      %v1989 = vadd.f32 %v1969, %v1981
      %v1990 = vadd.f32 %v1970, %v1982
      %v1991 = vadd.f32 %v1971, %v1983
      %v1992 = vlaneseq
      %v1993 = vshrl.u32 %v1992, 7
      %v1994 = vsub.s32 4, %v1993
      %v1995 = vrot.slane %v1731, %v1994
      %v1996 = vmul.f32 %v1884, %v1995
      %v1997 = vmul.f32 %v1885, %v1995
      %v1998 = vmul.f32 %v1886, %v1995
      %v1999 = vmul.f32 %v1887, %v1995
      %v2000 = vmul.f32 %v1888, %v1995
      %v2001 = vmul.f32 %v1889, %v1995
      %v2002 = vmul.f32 %v1890, %v1995
      %v2003 = vmul.f32 %v1900, %v1995
      %v2004 = vadd.f32 %v1984, %v1996
      %v2005 = vadd.f32 %v1985, %v1997
      %v2006 = vadd.f32 %v1986, %v1998
      %v2007 = vadd.f32 %v1987, %v1999
      %v2008 = vadd.f32 %v1988, %v2000
      %v2009 = vadd.f32 %v1989, %v2001
      %v2010 = vadd.f32 %v1990, %v2002
      %v2011 = vadd.f32 %v1991, %v2003
      %v2012 = vlaneseq
      %v2013 = vshrl.u32 %v2012, 7
      %v2014 = vsub.s32 5, %v2013
      %v2015 = vrot.slane %v1731, %v2014
      %v2016 = vmul.f32 %v1892, %v2015
      %v2017 = vmul.f32 %v1893, %v2015
      %v2018 = vmul.f32 %v1894, %v2015
      %v2019 = vmul.f32 %v1895, %v2015
      %v2020 = vmul.f32 %v1896, %v2015
      %v2021 = vmul.f32 %v1897, %v2015
      %v2022 = vmul.f32 %v1898, %v2015
      %v2023 = vmul.f32 %v1901, %v2015
      %v2024 = vadd.f32 %v2004, %v2016
      %v2025 = vadd.f32 %v2005, %v2017
      %v2026 = vadd.f32 %v2006, %v2018
      %v2027 = vadd.f32 %v2007, %v2019
      %v2028 = vadd.f32 %v2008, %v2020
      %v2029 = vadd.f32 %v2009, %v2021
      %v2030 = vadd.f32 %v2010, %v2022
      %v2031 = vadd.f32 %v2011, %v2023
      %v2032 = vlaneseq
      %v2033 = vshrl.u32 %v2032, 7
      %v2034 = vsub.s32 6, %v2033
      %v2035 = vrot.slane %v1731, %v2034
      %v2036 = vmul.f32 %v1877, %v2035
      %v2037 = vmul.f32 %v1878, %v2035
      %v2038 = vmul.f32 %v1879, %v2035
      %v2039 = vmul.f32 %v1880, %v2035
      %v2040 = vmul.f32 %v1881, %v2035
      %v2041 = vmul.f32 %v1882, %v2035
      %v2042 = vmul.f32 %v1899, %v2035
      %v2043 = vmul.f32 %v1902, %v2035
      %v2044 = vadd.f32 %v2024, %v2036
      %v2045 = vadd.f32 %v2025, %v2037
      %v2046 = vadd.f32 %v2026, %v2038
      %v2047 = vadd.f32 %v2027, %v2039
      %v2048 = vadd.f32 %v2028, %v2040
      %v2049 = vadd.f32 %v2029, %v2041
      %v2050 = vadd.f32 %v2030, %v2042
      %v2051 = vadd.f32 %v2031, %v2043
      %v2052 = vlaneseq
      %v2053 = vshrl.u32 %v2052, 7
      %v2054 = vsub.s32 7, %v2053
      %v2055 = vrot.slane %v1731, %v2054
      %v2056 = vmul.f32 %v1885, %v2055
      %v2057 = vmul.f32 %v1886, %v2055
      %v2058 = vmul.f32 %v1887, %v2055
      %v2059 = vmul.f32 %v1888, %v2055
      %v2060 = vmul.f32 %v1889, %v2055
      %v2061 = vmul.f32 %v1890, %v2055
      %v2062 = vmul.f32 %v1900, %v2055
      %v2063 = vmul.f32 %v1903, %v2055
      %v2064 = vadd.f32 %v2044, %v2056
      %v2065 = vadd.f32 %v2045, %v2057
      %v2066 = vadd.f32 %v2046, %v2058
      %v2067 = vadd.f32 %v2047, %v2059
      %v2068 = vadd.f32 %v2048, %v2060
      %v2069 = vadd.f32 %v2049, %v2061
      %v2070 = vadd.f32 %v2050, %v2062
      %v2071 = vadd.f32 %v2051, %v2063
      %v2072 = vlaneseq
      %v2073 = vshrl.u32 %v2072, 7
      %v2074 = vsub.s32 0, %v2073
      %v2075 = vrot.slane %v1732, %v2074
      %v2076 = vmul.f32 %v1893, %v2075
      %v2077 = vmul.f32 %v1894, %v2075
      %v2078 = vmul.f32 %v1895, %v2075
      %v2079 = vmul.f32 %v1896, %v2075
      %v2080 = vmul.f32 %v1897, %v2075
      %v2081 = vmul.f32 %v1898, %v2075
      %v2082 = vmul.f32 %v1901, %v2075
      %v2083 = vmul.f32 %v1904, %v2075
      %v2084 = vadd.f32 %v2064, %v2076
      %v2085 = vadd.f32 %v2065, %v2077
      %v2086 = vadd.f32 %v2066, %v2078
      %v2087 = vadd.f32 %v2067, %v2079
      %v2088 = vadd.f32 %v2068, %v2080
      %v2089 = vadd.f32 %v2069, %v2081
      %v2090 = vadd.f32 %v2070, %v2082
      %v2091 = vadd.f32 %v2071, %v2083
      %v2092 = vmul.f32 %v2084, 0.5
      %v2093 = vmul.f32 %v2085, 0.5
      %v2094 = vmul.f32 %v2086, 0.5
      %v2095 = vmul.f32 %v2087, 0.5
      %v2096 = vmul.f32 %v2088, 0.5
      %v2097 = vmul.f32 %v2089, 0.5
      %v2098 = vmul.f32 %v2090, 0.5
      %v2099 = vmul.f32 %v2091, 0.5
      %v2100 = vmul.f32 %v2084, 0.044715
      %v2101 = vmul.f32 %v2085, 0.044715
      %v2102 = vmul.f32 %v2086, 0.044715
      %v2103 = vmul.f32 %v2087, 0.044715
      %v2104 = vmul.f32 %v2088, 0.044715
      %v2105 = vmul.f32 %v2089, 0.044715
      %v2106 = vmul.f32 %v2090, 0.044715
      %v2107 = vmul.f32 %v2091, 0.044715
      %v2108 = vmul.f32 %v2100, %v2084
      %v2109 = vmul.f32 %v2101, %v2085
      %v2110 = vmul.f32 %v2102, %v2086
      %v2111 = vmul.f32 %v2103, %v2087
      %v2112 = vmul.f32 %v2104, %v2088
      %v2113 = vmul.f32 %v2105, %v2089
      %v2114 = vmul.f32 %v2106, %v2090
      %v2115 = vmul.f32 %v2107, %v2091
      %v2116 = vmul.f32 %v2108, %v2084
      %v2117 = vmul.f32 %v2109, %v2085
      %v2118 = vmul.f32 %v2110, %v2086
      %v2119 = vmul.f32 %v2111, %v2087
      %v2120 = vmul.f32 %v2112, %v2088
      %v2121 = vmul.f32 %v2113, %v2089
      %v2122 = vmul.f32 %v2114, %v2090
      %v2123 = vmul.f32 %v2115, %v2091
      %v2124 = vadd.f32 %v2084, %v2116
      %v2125 = vadd.f32 %v2085, %v2117
      %v2126 = vadd.f32 %v2086, %v2118
      %v2127 = vadd.f32 %v2087, %v2119
      %v2128 = vadd.f32 %v2088, %v2120
      %v2129 = vadd.f32 %v2089, %v2121
      %v2130 = vadd.f32 %v2090, %v2122
      %v2131 = vadd.f32 %v2091, %v2123
      %v2132 = vmul.f32 %v2124, 0.7978846
      %v2133 = vmul.f32 %v2125, 0.7978846
      %v2134 = vmul.f32 %v2126, 0.7978846
      %v2135 = vmul.f32 %v2127, 0.7978846
      %v2136 = vmul.f32 %v2128, 0.7978846
      %v2137 = vmul.f32 %v2129, 0.7978846
      %v2138 = vmul.f32 %v2130, 0.7978846
      %v2139 = vmul.f32 %v2131, 0.7978846
      %v2140 = vtanh.pop %v2132
      %v2141 = vtanh.pop %v2133
      %v2142 = vtanh.pop %v2134
      %v2143 = vtanh.pop %v2135
      %v2144 = vtanh.pop %v2136
      %v2145 = vtanh.pop %v2137
      %v2146 = vtanh.pop %v2138
      %v2147 = vtanh.pop %v2139
      %v2148 = vadd.f32 %v2140, 1.0
      %v2149 = vadd.f32 %v2141, 1.0
      %v2150 = vadd.f32 %v2142, 1.0
      %v2151 = vadd.f32 %v2143, 1.0
      %v2152 = vadd.f32 %v2144, 1.0
      %v2153 = vadd.f32 %v2145, 1.0
      %v2154 = vadd.f32 %v2146, 1.0
      %v2155 = vadd.f32 %v2147, 1.0
      %v2156 = vmul.f32 %v2092, %v2148
      %v2157 = vmul.f32 %v2093, %v2149
      %v2158 = vmul.f32 %v2094, %v2150
      %v2159 = vmul.f32 %v2095, %v2151
      %v2160 = vmul.f32 %v2096, %v2152
      %v2161 = vmul.f32 %v2097, %v2153
      %v2162 = vmul.f32 %v2098, %v2154
      %v2163 = vmul.f32 %v2099, %v2155
      %v2164 = vpack.c.bf16 %v2157, %v2156
      %v2165 = vpack.c.bf16 %v2159, %v2158
      %v2166 = vpack.c.bf16 %v2161, %v2160
      %v2167 = vpack.c.bf16 %v2163, %v2162
      %v2184 = vunpack.c.l.b16 %v1734
      %v2185 = vunpack.c.l.b16 %v1735
      %v2186 = vunpack.c.l.b16 %v1736
      %v2187 = vunpack.c.l.b16 %v1737
      %v2188 = vunpack.c.l.b16 %v1738
      %v2189 = vunpack.c.l.b16 %v1739
      %v2190 = vunpack.c.l.b16 %v1740
      %v2191 = vunpack.c.l.b16 %v1741
      %v2192 = vunpack.c.l.b16 %v1742
      %v2193 = vunpack.c.l.b16 %v1743
      %v2194 = vunpack.c.l.b16 %v1744
      %v2195 = vunpack.c.l.b16 %v1745
      %v2196 = vunpack.c.l.b16 %v1746
      %v2197 = vunpack.c.l.b16 %v1747
      %v2198 = vunpack.c.l.b16 %v1748
      %v2199 = vunpack.c.l.b16 %v1749
      %v2200 = vpack.c.b16 %v2185, %v2184
      %v2201 = vpack.c.b16 %v2187, %v2186
      %v2202 = vpack.c.b16 %v2189, %v2188
      %v2203 = vpack.c.b16 %v2191, %v2190
      %v2204 = vpack.c.b16 %v2193, %v2192
      %v2205 = vpack.c.b16 %v2195, %v2194
      %v2206 = vpack.c.b16 %v2197, %v2196
      %v2207 = vpack.c.b16 %v2199, %v2198
      %2216 = vmatprep.subr.bf16.mxu0 0
      %2217 = vmatpush1.bf16.msra.mxu0 %v2200
      %2218 = vmatprep.subr.bf16.mxu0 0
      %2219 = vmatpush1.bf16.msra.mxu0 %v2201
      %2220 = vmatprep.subr.bf16.mxu0 0
      %2221 = vmatpush1.bf16.msra.mxu0 %v2202
      %2222 = vmatprep.subr.bf16.mxu0 0
      %2223 = vmatpush1.bf16.msra.mxu0 %v2203
      %2224 = vmatprep.subr.bf16.mxu0 0
      %2225 = vmatpush1.bf16.msra.mxu0 %v2204
      %2226 = vmatprep.subr.bf16.mxu0 0
      %2227 = vmatpush1.bf16.msra.mxu0 %v2205
      %2228 = vmatprep.subr.bf16.mxu0 0
      %2229 = vmatpush1.bf16.msra.mxu0 %v2206
      %2230 = vmatprep.subr.bf16.mxu0 0
      %2231 = vmatpush1.bf16.msra.mxu0 %v2207
      %2232 = vmatprep.subr.bf16.mxu0 0
      %2233 = vmatpush1.bf16.msra.mxu0 0
      %2234 = vmatprep.subr.bf16.mxu0 0
      %2235 = vmatpush1.bf16.msra.mxu0 0
      %2236 = vmatprep.subr.bf16.mxu0 0
      %2237 = vmatpush1.bf16.msra.mxu0 0
      %2238 = vmatprep.subr.bf16.mxu0 0
      %2239 = vmatpush1.bf16.msra.mxu0 0
      %2240 = vmatprep.subr.bf16.mxu0 0
      %2241 = vmatpush1.bf16.msra.mxu0 0
      %2242 = vmatprep.subr.bf16.mxu0 0
      %2243 = vmatpush1.bf16.msra.mxu0 0
      %2244 = vmatprep.subr.bf16.mxu0 0
      %2245 = vmatpush1.bf16.msra.mxu0 0
      %2246 = vmatprep.subr.bf16.mxu0 0
      %2247 = vmatpush1.bf16.msra.mxu0 0
      %2248 = vmatprep.mubr.bf16.mxu0 0
      %2249 = vmatmul.mubr.bf16.gmra.mrb[0].mxu0 %v2164
      %v2250 = vpop.f32.mrb[0].mxu0
      %v2251 = vadd.f32 0.0, %v2250
      %v2252 = vpop.f32.mrb[0].mxu0
      %v2253 = vpop.f32.mrb[0].mxu0
      %v2254 = vadd.f32 0.0, %v2253
      %v2255 = vpop.f32.mrb[0].mxu0
      %2256 = vmatprep.mubr.bf16.mxu0 0
      %2257 = vmatmul.mubr.bf16.gmra.mrb[0].mxu0 %v2165
      %v2258 = vpop.f32.mrb[0].mxu0
      %v2259 = vadd.f32 0.0, %v2258
      %v2260 = vpop.f32.mrb[0].mxu0
      %v2261 = vpop.f32.mrb[0].mxu0
      %v2262 = vadd.f32 0.0, %v2261
      %v2263 = vpop.f32.mrb[0].mxu0
      %2264 = vmatprep.mubr.bf16.mxu0 0
      %2265 = vmatmul.mubr.bf16.gmra.mrb[0].mxu0 %v2166
      %v2266 = vpop.f32.mrb[0].mxu0
      %v2267 = vadd.f32 0.0, %v2266
      %v2268 = vpop.f32.mrb[0].mxu0
      %v2269 = vpop.f32.mrb[0].mxu0
      %v2270 = vadd.f32 0.0, %v2269
      %v2271 = vpop.f32.mrb[0].mxu0
      %2272 = vmatprep.mubr.bf16.mxu0 0
      %2273 = vmatmul.mubr.bf16.gmra.mrb[0].mxu0 %v2167
      %v2274 = vpop.f32.mrb[0].mxu0
      %v2275 = vadd.f32 0.0, %v2274
      %v2276 = vpop.f32.mrb[0].mxu0
      %v2277 = vpop.f32.mrb[0].mxu0
      %v2278 = vadd.f32 0.0, %v2277
      %v2279 = vpop.f32.mrb[0].mxu0
      %2280 = vdwg.mxu0
      %v2281 = vadd.f32 %v1611, %v2251
      %v2282 = vadd.f32 %v1612, %v2254
      %v2283 = vadd.f32 %v1613, %v2259
      %v2284 = vadd.f32 %v1614, %v2262
      %v2285 = vadd.f32 %v1615, %v2267
      %v2286 = vadd.f32 %v1616, %v2270
      %v2287 = vadd.f32 %v1617, %v2275
      %v2288 = vadd.f32 %v1618, %v2278
      %v2290 = vlaneseq
      %v2291 = vshrl.u32 %v2290, 7
      %v2292 = vsub.s32 0, %v2291
      %v2293 = vrot.slane %v1750, %v2292
      %v2295 = vadd.f32 %v2281, %v2293
      %v2296 = vadd.f32 %v2282, %v2293
      %v2297 = vadd.f32 %v2283, %v2293
      %v2298 = vadd.f32 %v2284, %v2293
      %v2299 = vadd.f32 %v2285, %v2293
      %v2300 = vadd.f32 %v2286, %v2293
      %v2301 = vadd.f32 %v2287, %v2293
      %v2302 = vadd.f32 %v2288, %v2293
      %v2303 = vpack.c.bf16 %v2296, %v2295
      %v2304 = vpack.c.bf16 %v2298, %v2297
      %v2305 = vpack.c.bf16 %v2300, %v2299
      %v2306 = vpack.c.bf16 %v2302, %v2301
      %v2311 = vunpack.c.l.b16 %v2303
      %v2312 = vunpack.c.h.b16 %v2303
      %v2313 = vunpack.c.l.b16 %v2304
      %v2314 = vunpack.c.h.b16 %v2304
      %v2315 = vunpack.c.l.b16 %v2305
      %v2316 = vunpack.c.h.b16 %v2305
      %v2317 = vunpack.c.l.b16 %v2306
      %v2318 = vunpack.c.h.b16 %v2306
      %v2319 = vpack.c.b16 %v2311, %v2311
      %v2320 = vpack.c.b16 %v2312, %v2312
      %v2321 = vpack.c.b16 %v2313, %v2313
      %v2322 = vpack.c.b16 %v2314, %v2314
      %v2323 = vpack.c.b16 %v2315, %v2315
      %v2324 = vpack.c.b16 %v2316, %v2316
      %v2325 = vpack.c.b16 %v2317, %v2317
      %v2326 = vpack.c.b16 %v2318, %v2318
      %vm2335 = vcmask 257024
      %2336 = vst.msk [vmem:[%s683] sm:$0xf] %vm2335, %v2319
      %2337 = vst.msk [vmem:[%s683 + $0x4] sm:$0xf] %vm2335, %v2320
      %2338 = vst.msk [vmem:[%s683 + $0x8] sm:$0xf] %vm2335, %v2321
      %2339 = vst.msk [vmem:[%s683 + $0xc] sm:$0xf] %vm2335, %v2322
      %2340 = vst.msk [vmem:[%s683 + $0x10] sm:$0xf] %vm2335, %v2323
      %2341 = vst.msk [vmem:[%s683 + $0x14] sm:$0xf] %vm2335, %v2324
      %2342 = vst.msk [vmem:[%s683 + $0x18] sm:$0xf] %vm2335, %v2325
      %2343 = vst.msk [vmem:[%s683 + $0x1c] sm:$0xf] %vm2335, %v2326
      %p2344 = scmp.lt.s32.totalorder %s33, 1
      %s2345 = scalar_select %p2344, %s33, 1
      %s2346 = smul.addr %s2345, 8
      %s2347 = smul.addr %s2346, 4
      %s2348 = scalar_lea.vmem %s22, %s2347
      // Predicated region
      $region109: #{dpvt_forward.3} parent=107 // pred_check
        %p2349 = pneg %p518
      $region110: #{dpvt_forward.3} parent=107 // pred_check_branch
        %2351 = sbr.rel (%p2349) target = $region112
      $region111: #{dpvt_forward.3} parent=107 // pred_region
        _
      $region112: #{dpvt_forward.3} parent=107 // pred_fallthru
        _
    $region108: #{dpvt_forward.3} parent=5 // pred_fallthru
      _
    %p2352 = scmp.le.s32.totalorder 2, %s28
    // Predicated region
    $region113: #{dpvt_forward.3} parent=5 // pred_check
      %p2353 = pneg %p2352
    $region114: #{dpvt_forward.3} parent=5 // pred_check_branch
      %2355 = sbr.rel (%p2353) target = $region116
    $region115: #{dpvt_forward.3} parent=5 // pred_region
      %s2356 = ssub.s32 %s28, 2
      // Predicated region
      $region117: #{dpvt_forward.3} parent=115 // pred_check
        %p2357 = pneg %p524
      $region118: #{dpvt_forward.3} parent=115 // pred_check_branch
        %2359 = sbr.rel (%p2357) target = $region120
      $region119: #{dpvt_forward.3} parent=115 // pred_region
        %p2360 = scmp.lt.s32.totalorder %s34, 1
        %s2361 = scalar_select %p2360, %s34, 1
        %s2362 = smul.addr %s2361, 8
        %s2363 = smul.addr %s2362, 4
        %s2364 = scalar_lea.vmem %s22, %s2363
      $region120: #{dpvt_forward.3} parent=115 // pred_fallthru
        _
    $region116: #{dpvt_forward.3} parent=5 // pred_fallthru
      _
  $region6: #{dpvt_forward.3} parent=0 // loop_footer
    %s32 = sadd.s32 1, %s28
  $region7: #{dpvt_forward.3} parent=0 // loop_footer_branch
    %27 = sbr.rel target = $region3
  $region8: #{dpvt_forward.3} parent=0 // loop_exit
    _

// kernel: dpvt_forward.4
$region0: #{dpvt_forward.4}
  #allocation0 [shape = 'u32[]', space=smem, size = 0x4, offset = 0x4, fixed_abs, tag = 'smem constant byte address 0x4 - core index']
  #allocation1 [shape = 'u32[144,128]{1,0:T(1,128)}', space=vmem, size = 0x12000, scoped, tag = 'internal scratch']
  #allocation2 [shape = 'f32[96,32]{1,0:T(8,128)}', space=vmem, size = 0xc000, scoped, tag = 'scratch operand']
  #allocation3 [shape = 'f32[96,32]{1,0:T(8,128)}', space=vmem, size = 0xc000, scoped, tag = 'scratch operand']
  #allocation4 [shape = 'f32[96,32]{1,0:T(8,128)}', space=vmem, size = 0xc000, scoped, tag = 'scratch operand']
  #allocation5 [shape = 'f32[96,128]{1,0:T(8,128)}', space=vmem, size = 0xc000, scoped, tag = 'scratch operand']
  #allocation6 [shape = 'f32[96,128]{1,0:T(8,128)}', space=vmem, size = 0xc000, scoped, tag = 'scratch operand']
  #allocation7 [shape = 'f32[96,128]{1,0:T(8,128)}', space=vmem, size = 0xc000, scoped, tag = 'scratch operand']
  %s0 = inlined_call_operand.vmem [shape: f32[2,64,32], index: 0, kind: input, shape index: {}]
  %s1 = inlined_call_operand.vmem [shape: f32[64,2], index: 1, kind: input, shape index: {}]
  %s2 = inlined_call_operand.vmem [shape: f32[1,32], index: 2, kind: input, shape index: {}]
  %s3 = inlined_call_operand.vmem [shape: f32[1,32], index: 3, kind: input, shape index: {}]
  %s4 = inlined_call_operand.vmem [shape: bf16[288,32], index: 4, kind: input, shape index: {}]
  %s5 = inlined_call_operand.vmem [shape: f32[1,32], index: 5, kind: input, shape index: {}]
  %s6 = inlined_call_operand.vmem [shape: bf16[32,96], index: 6, kind: input, shape index: {}]
  %s7 = inlined_call_operand.vmem [shape: f32[1,96], index: 7, kind: input, shape index: {}]
  %s8 = inlined_call_operand.vmem [shape: f32[1,32], index: 8, kind: input, shape index: {}]
  %s9 = inlined_call_operand.vmem [shape: bf16[32,32], index: 9, kind: input, shape index: {}]
  %s10 = inlined_call_operand.vmem [shape: f32[1,32], index: 10, kind: input, shape index: {}]
  %s11 = inlined_call_operand.vmem [shape: f32[1,32], index: 11, kind: input, shape index: {}]
  %s12 = inlined_call_operand.vmem [shape: f32[1,32], index: 12, kind: input, shape index: {}]
  %s13 = inlined_call_operand.vmem [shape: bf16[32,128], index: 13, kind: input, shape index: {}]
  %s14 = inlined_call_operand.vmem [shape: f32[1,128], index: 14, kind: input, shape index: {}]
  %s15 = inlined_call_operand.vmem [shape: f32[9,128], index: 15, kind: input, shape index: {}]
  %s16 = inlined_call_operand.vmem [shape: f32[1,128], index: 16, kind: input, shape index: {}]
  %s17 = inlined_call_operand.vmem [shape: bf16[128,32], index: 17, kind: input, shape index: {}]
  %s18 = inlined_call_operand.vmem [shape: f32[1,32], index: 18, kind: input, shape index: {}]
  %s19 = inlined_call_operand.vmem [shape: bf16[2,64,32], index: 19, kind: output, shape index: {}]
  %s20 = sld [smem:[#allocation0]]
  $region109: #{dpvt_forward.4} parent=0
    _
  %s22 = ssub.s32 1, %s20
  %s23 = scalar_select 0, %s22, %s20
  loop: start=0, step=1, limit=4
  $region2: #{dpvt_forward.4} parent=0 // loop_pre_header
    _
  $region3: #{dpvt_forward.4} parent=0 // loop_header
    %s25 = sphi 0, %s29
    %p26 = scmp.ge.s32.totalorder %s25, 4
    %s35 = sphi 0, %s37
    %s38 = sphi 0, %s35
    %s39 = sphi 0, %s38
    %s55 = sphi 0, %s39
    %s59 = sphi 0, %s59
    %s61 = sphi 0, %s59
    %s62 = sphi 0, %s61
    %s76 = sphi 0, %s62
    %s80 = sphi 0, %s80
    %s82 = sphi 0, %s80
    %s83 = sphi 0, %s82
    %s97 = sphi 0, %s83
    %s101 = sphi 0, %s101
    %s103 = sphi 0, %s101
    %s104 = sphi 0, %s103
    %s118 = sphi 0, %s104
    %s122 = sphi 0, %s122
    %s124 = sphi 0, %s122
    %s125 = sphi 0, %s124
    %s139 = sphi 0, %s125
    %s143 = sphi 0, %s143
    %s145 = sphi 0, %s143
    %s146 = sphi 0, %s145
    %s160 = sphi 0, %s146
    %s164 = sphi 0, %s164
    %s166 = sphi 0, %s164
    %s167 = sphi 0, %s166
    %s181 = sphi 0, %s167
    %s185 = sphi 0, %s185
    %s187 = sphi 0, %s185
    %s188 = sphi 0, %s187
    %s202 = sphi 0, %s188
    %s206 = sphi 0, %s206
    %s208 = sphi 0, %s206
    %s209 = sphi 0, %s208
    %s223 = sphi 0, %s209
    %s227 = sphi 0, %s227
    %s229 = sphi 0, %s227
    %s230 = sphi 0, %s229
    %s244 = sphi 0, %s230
    %s248 = sphi 0, %s248
    %s250 = sphi 0, %s248
    %s251 = sphi 0, %s250
    %s265 = sphi 0, %s251
    %s269 = sphi 0, %s269
    %s271 = sphi 0, %s269
    %s272 = sphi 0, %s271
    %s286 = sphi 0, %s272
    %s290 = sphi 0, %s290
    %s292 = sphi 0, %s290
    %s293 = sphi 0, %s292
    %s307 = sphi 0, %s293
    %s311 = sphi 0, %s311
    %s313 = sphi 0, %s311
    %s314 = sphi 0, %s313
    %s328 = sphi 0, %s314
    %s332 = sphi 0, %s332
    %s334 = sphi 0, %s332
    %s335 = sphi 0, %s334
    %s349 = sphi 0, %s335
    %s353 = sphi 0, %s353
    %s355 = sphi 0, %s353
    %s356 = sphi 0, %s355
    %s370 = sphi 0, %s356
    %s374 = sphi 0, %s374
    %s376 = sphi 0, %s374
    %s377 = sphi 0, %s376
    %s391 = sphi 0, %s377
    %s395 = sphi 0, %s395
    %s397 = sphi 0, %s395
    %s398 = sphi 0, %s397
    %s412 = sphi 0, %s398
    %s416 = sphi 0, %s416
    %s418 = sphi 0, %s416
    %s419 = sphi 0, %s418
    %s433 = sphi 0, %s419
    %s439 = sphi 0, %s441
    %s442 = sphi 0, %s439
    %s443 = sphi 0, %s442
    %s459 = sphi 0, %s443
  $region4: #{dpvt_forward.4} parent=0 // loop_header_branch
    %28 = sbr.rel (%p26) target = $region8
  $region5: #{dpvt_forward.4} parent=0 // loop_body
    %s30 = ssub.s32 %s25, 1
    %s31 = ssub.s32 %s25, 2
    %s32 = sadd.s32 %s25, 1
    %s33 = ssub.s32 %s25, %s32
    %p34 = scmp.eq.s32.totalorder %s33, 0
    %s36 = sadd.s32 %s35, 1
    %s37 = scalar_select %p34, %s35, %s36
    %p40 = pneg %p34
    %p41 = scmp.eq.s32.totalorder %s25, 1
    %p42 = por %p40, %p41
    %p43 = scmp.ne.s32.totalorder %s35, %s38
    %p44 = scmp.eq.s32.totalorder %s25, 0
    %p45 = por %p43, %p44
    %p46 = scmp.ne.s32.totalorder %s35, %s38
    %p47 = scmp.eq.s32.totalorder %s30, 1
    %p48 = por %p46, %p47
    %p49 = scmp.ne.s32.totalorder %s38, %s39
    %p50 = scmp.eq.s32.totalorder %s30, 0
    %p51 = por %p49, %p50
    %p52 = scmp.ne.s32.totalorder %s38, %s39
    %p53 = scmp.eq.s32.totalorder %s31, 1
    %p54 = por %p52, %p53
    %p56 = scmp.ne.s32.totalorder %s39, %s55
    %p57 = scmp.eq.s32.totalorder %s31, 0
    %p58 = por %p56, %p57
    %s60 = sadd.s32 %s59, 1
    %p63 = scmp.eq.s32.totalorder %s25, 1
    %p64 = scmp.ne.s32.totalorder %s59, %s61
    %p65 = scmp.eq.s32.totalorder %s25, 0
    %p66 = por %p64, %p65
    %p67 = scmp.ne.s32.totalorder %s59, %s61
    %p68 = scmp.eq.s32.totalorder %s30, 1
    %p69 = por %p67, %p68
    %p70 = scmp.ne.s32.totalorder %s61, %s62
    %p71 = scmp.eq.s32.totalorder %s30, 0
    %p72 = por %p70, %p71
    %p73 = scmp.ne.s32.totalorder %s61, %s62
    %p74 = scmp.eq.s32.totalorder %s31, 1
    %p75 = por %p73, %p74
    %p77 = scmp.ne.s32.totalorder %s62, %s76
    %p78 = scmp.eq.s32.totalorder %s31, 0
    %p79 = por %p77, %p78
    %s81 = sadd.s32 %s80, 1
    %p84 = scmp.eq.s32.totalorder %s25, 1
    %p85 = scmp.ne.s32.totalorder %s80, %s82
    %p86 = scmp.eq.s32.totalorder %s25, 0
    %p87 = por %p85, %p86
    %p88 = scmp.ne.s32.totalorder %s80, %s82
    %p89 = scmp.eq.s32.totalorder %s30, 1
    %p90 = por %p88, %p89
    %p91 = scmp.ne.s32.totalorder %s82, %s83
    %p92 = scmp.eq.s32.totalorder %s30, 0
    %p93 = por %p91, %p92
    %p94 = scmp.ne.s32.totalorder %s82, %s83
    %p95 = scmp.eq.s32.totalorder %s31, 1
    %p96 = por %p94, %p95
    %p98 = scmp.ne.s32.totalorder %s83, %s97
    %p99 = scmp.eq.s32.totalorder %s31, 0
    %p100 = por %p98, %p99
    %s102 = sadd.s32 %s101, 1
    %p105 = scmp.eq.s32.totalorder %s25, 1
    %p106 = scmp.ne.s32.totalorder %s101, %s103
    %p107 = scmp.eq.s32.totalorder %s25, 0
    %p108 = por %p106, %p107
    %p109 = scmp.ne.s32.totalorder %s101, %s103
    %p110 = scmp.eq.s32.totalorder %s30, 1
    %p111 = por %p109, %p110
    %p112 = scmp.ne.s32.totalorder %s103, %s104
    %p113 = scmp.eq.s32.totalorder %s30, 0
    %p114 = por %p112, %p113
    %p115 = scmp.ne.s32.totalorder %s103, %s104
    %p116 = scmp.eq.s32.totalorder %s31, 1
    %p117 = por %p115, %p116
    %p119 = scmp.ne.s32.totalorder %s104, %s118
    %p120 = scmp.eq.s32.totalorder %s31, 0
    %p121 = por %p119, %p120
    %s123 = sadd.s32 %s122, 1
    %p126 = scmp.eq.s32.totalorder %s25, 1
    %p127 = scmp.ne.s32.totalorder %s122, %s124
    %p128 = scmp.eq.s32.totalorder %s25, 0
    %p129 = por %p127, %p128
    %p130 = scmp.ne.s32.totalorder %s122, %s124
    %p131 = scmp.eq.s32.totalorder %s30, 1
    %p132 = por %p130, %p131
    %p133 = scmp.ne.s32.totalorder %s124, %s125
    %p134 = scmp.eq.s32.totalorder %s30, 0
    %p135 = por %p133, %p134
    %p136 = scmp.ne.s32.totalorder %s124, %s125
    %p137 = scmp.eq.s32.totalorder %s31, 1
    %p138 = por %p136, %p137
    %p140 = scmp.ne.s32.totalorder %s125, %s139
    %p141 = scmp.eq.s32.totalorder %s31, 0
    %p142 = por %p140, %p141
    %s144 = sadd.s32 %s143, 1
    %p147 = scmp.eq.s32.totalorder %s25, 1
    %p148 = scmp.ne.s32.totalorder %s143, %s145
    %p149 = scmp.eq.s32.totalorder %s25, 0
    %p150 = por %p148, %p149
    %p151 = scmp.ne.s32.totalorder %s143, %s145
    %p152 = scmp.eq.s32.totalorder %s30, 1
    %p153 = por %p151, %p152
    %p154 = scmp.ne.s32.totalorder %s145, %s146
    %p155 = scmp.eq.s32.totalorder %s30, 0
    %p156 = por %p154, %p155
    %p157 = scmp.ne.s32.totalorder %s145, %s146
    %p158 = scmp.eq.s32.totalorder %s31, 1
    %p159 = por %p157, %p158
    %p161 = scmp.ne.s32.totalorder %s146, %s160
    %p162 = scmp.eq.s32.totalorder %s31, 0
    %p163 = por %p161, %p162
    %s165 = sadd.s32 %s164, 1
    %p168 = scmp.eq.s32.totalorder %s25, 1
    %p169 = scmp.ne.s32.totalorder %s164, %s166
    %p170 = scmp.eq.s32.totalorder %s25, 0
    %p171 = por %p169, %p170
    %p172 = scmp.ne.s32.totalorder %s164, %s166
    %p173 = scmp.eq.s32.totalorder %s30, 1
    %p174 = por %p172, %p173
    %p175 = scmp.ne.s32.totalorder %s166, %s167
    %p176 = scmp.eq.s32.totalorder %s30, 0
    %p177 = por %p175, %p176
    %p178 = scmp.ne.s32.totalorder %s166, %s167
    %p179 = scmp.eq.s32.totalorder %s31, 1
    %p180 = por %p178, %p179
    %p182 = scmp.ne.s32.totalorder %s167, %s181
    %p183 = scmp.eq.s32.totalorder %s31, 0
    %p184 = por %p182, %p183
    %s186 = sadd.s32 %s185, 1
    %p189 = scmp.eq.s32.totalorder %s25, 1
    %p190 = scmp.ne.s32.totalorder %s185, %s187
    %p191 = scmp.eq.s32.totalorder %s25, 0
    %p192 = por %p190, %p191
    %p193 = scmp.ne.s32.totalorder %s185, %s187
    %p194 = scmp.eq.s32.totalorder %s30, 1
    %p195 = por %p193, %p194
    %p196 = scmp.ne.s32.totalorder %s187, %s188
    %p197 = scmp.eq.s32.totalorder %s30, 0
    %p198 = por %p196, %p197
    %p199 = scmp.ne.s32.totalorder %s187, %s188
    %p200 = scmp.eq.s32.totalorder %s31, 1
    %p201 = por %p199, %p200
    %p203 = scmp.ne.s32.totalorder %s188, %s202
    %p204 = scmp.eq.s32.totalorder %s31, 0
    %p205 = por %p203, %p204
    %s207 = sadd.s32 %s206, 1
    %p210 = scmp.eq.s32.totalorder %s25, 1
    %p211 = scmp.ne.s32.totalorder %s206, %s208
    %p212 = scmp.eq.s32.totalorder %s25, 0
    %p213 = por %p211, %p212
    %p214 = scmp.ne.s32.totalorder %s206, %s208
    %p215 = scmp.eq.s32.totalorder %s30, 1
    %p216 = por %p214, %p215
    %p217 = scmp.ne.s32.totalorder %s208, %s209
    %p218 = scmp.eq.s32.totalorder %s30, 0
    %p219 = por %p217, %p218
    %p220 = scmp.ne.s32.totalorder %s208, %s209
    %p221 = scmp.eq.s32.totalorder %s31, 1
    %p222 = por %p220, %p221
    %p224 = scmp.ne.s32.totalorder %s209, %s223
    %p225 = scmp.eq.s32.totalorder %s31, 0
    %p226 = por %p224, %p225
    %s228 = sadd.s32 %s227, 1
    %p231 = scmp.eq.s32.totalorder %s25, 1
    %p232 = scmp.ne.s32.totalorder %s227, %s229
    %p233 = scmp.eq.s32.totalorder %s25, 0
    %p234 = por %p232, %p233
    %p235 = scmp.ne.s32.totalorder %s227, %s229
    %p236 = scmp.eq.s32.totalorder %s30, 1
    %p237 = por %p235, %p236
    %p238 = scmp.ne.s32.totalorder %s229, %s230
    %p239 = scmp.eq.s32.totalorder %s30, 0
    %p240 = por %p238, %p239
    %p241 = scmp.ne.s32.totalorder %s229, %s230
    %p242 = scmp.eq.s32.totalorder %s31, 1
    %p243 = por %p241, %p242
    %p245 = scmp.ne.s32.totalorder %s230, %s244
    %p246 = scmp.eq.s32.totalorder %s31, 0
    %p247 = por %p245, %p246
    %s249 = sadd.s32 %s248, 1
    %p252 = scmp.eq.s32.totalorder %s25, 1
    %p253 = scmp.ne.s32.totalorder %s248, %s250
    %p254 = scmp.eq.s32.totalorder %s25, 0
    %p255 = por %p253, %p254
    %p256 = scmp.ne.s32.totalorder %s248, %s250
    %p257 = scmp.eq.s32.totalorder %s30, 1
    %p258 = por %p256, %p257
    %p259 = scmp.ne.s32.totalorder %s250, %s251
    %p260 = scmp.eq.s32.totalorder %s30, 0
    %p261 = por %p259, %p260
    %p262 = scmp.ne.s32.totalorder %s250, %s251
    %p263 = scmp.eq.s32.totalorder %s31, 1
    %p264 = por %p262, %p263
    %p266 = scmp.ne.s32.totalorder %s251, %s265
    %p267 = scmp.eq.s32.totalorder %s31, 0
    %p268 = por %p266, %p267
    %s270 = sadd.s32 %s269, 1
    %p273 = scmp.eq.s32.totalorder %s25, 1
    %p274 = scmp.ne.s32.totalorder %s269, %s271
    %p275 = scmp.eq.s32.totalorder %s25, 0
    %p276 = por %p274, %p275
    %p277 = scmp.ne.s32.totalorder %s269, %s271
    %p278 = scmp.eq.s32.totalorder %s30, 1
    %p279 = por %p277, %p278
    %p280 = scmp.ne.s32.totalorder %s271, %s272
    %p281 = scmp.eq.s32.totalorder %s30, 0
    %p282 = por %p280, %p281
    %p283 = scmp.ne.s32.totalorder %s271, %s272
    %p284 = scmp.eq.s32.totalorder %s31, 1
    %p285 = por %p283, %p284
    %p287 = scmp.ne.s32.totalorder %s272, %s286
    %p288 = scmp.eq.s32.totalorder %s31, 0
    %p289 = por %p287, %p288
    %s291 = sadd.s32 %s290, 1
    %p294 = scmp.eq.s32.totalorder %s25, 1
    %p295 = scmp.ne.s32.totalorder %s290, %s292
    %p296 = scmp.eq.s32.totalorder %s25, 0
    %p297 = por %p295, %p296
    %p298 = scmp.ne.s32.totalorder %s290, %s292
    %p299 = scmp.eq.s32.totalorder %s30, 1
    %p300 = por %p298, %p299
    %p301 = scmp.ne.s32.totalorder %s292, %s293
    %p302 = scmp.eq.s32.totalorder %s30, 0
    %p303 = por %p301, %p302
    %p304 = scmp.ne.s32.totalorder %s292, %s293
    %p305 = scmp.eq.s32.totalorder %s31, 1
    %p306 = por %p304, %p305
    %p308 = scmp.ne.s32.totalorder %s293, %s307
    %p309 = scmp.eq.s32.totalorder %s31, 0
    %p310 = por %p308, %p309
    %s312 = sadd.s32 %s311, 1
    %p315 = scmp.eq.s32.totalorder %s25, 1
    %p316 = scmp.ne.s32.totalorder %s311, %s313
    %p317 = scmp.eq.s32.totalorder %s25, 0
    %p318 = por %p316, %p317
    %p319 = scmp.ne.s32.totalorder %s311, %s313
    %p320 = scmp.eq.s32.totalorder %s30, 1
    %p321 = por %p319, %p320
    %p322 = scmp.ne.s32.totalorder %s313, %s314
    %p323 = scmp.eq.s32.totalorder %s30, 0
    %p324 = por %p322, %p323
    %p325 = scmp.ne.s32.totalorder %s313, %s314
    %p326 = scmp.eq.s32.totalorder %s31, 1
    %p327 = por %p325, %p326
    %p329 = scmp.ne.s32.totalorder %s314, %s328
    %p330 = scmp.eq.s32.totalorder %s31, 0
    %p331 = por %p329, %p330
    %s333 = sadd.s32 %s332, 1
    %p336 = scmp.eq.s32.totalorder %s25, 1
    %p337 = scmp.ne.s32.totalorder %s332, %s334
    %p338 = scmp.eq.s32.totalorder %s25, 0
    %p339 = por %p337, %p338
    %p340 = scmp.ne.s32.totalorder %s332, %s334
    %p341 = scmp.eq.s32.totalorder %s30, 1
    %p342 = por %p340, %p341
    %p343 = scmp.ne.s32.totalorder %s334, %s335
    %p344 = scmp.eq.s32.totalorder %s30, 0
    %p345 = por %p343, %p344
    %p346 = scmp.ne.s32.totalorder %s334, %s335
    %p347 = scmp.eq.s32.totalorder %s31, 1
    %p348 = por %p346, %p347
    %p350 = scmp.ne.s32.totalorder %s335, %s349
    %p351 = scmp.eq.s32.totalorder %s31, 0
    %p352 = por %p350, %p351
    %s354 = sadd.s32 %s353, 1
    %p357 = scmp.eq.s32.totalorder %s25, 1
    %p358 = scmp.ne.s32.totalorder %s353, %s355
    %p359 = scmp.eq.s32.totalorder %s25, 0
    %p360 = por %p358, %p359
    %p361 = scmp.ne.s32.totalorder %s353, %s355
    %p362 = scmp.eq.s32.totalorder %s30, 1
    %p363 = por %p361, %p362
    %p364 = scmp.ne.s32.totalorder %s355, %s356
    %p365 = scmp.eq.s32.totalorder %s30, 0
    %p366 = por %p364, %p365
    %p367 = scmp.ne.s32.totalorder %s355, %s356
    %p368 = scmp.eq.s32.totalorder %s31, 1
    %p369 = por %p367, %p368
    %p371 = scmp.ne.s32.totalorder %s356, %s370
    %p372 = scmp.eq.s32.totalorder %s31, 0
    %p373 = por %p371, %p372
    %s375 = sadd.s32 %s374, 1
    %p378 = scmp.eq.s32.totalorder %s25, 1
    %p379 = scmp.ne.s32.totalorder %s374, %s376
    %p380 = scmp.eq.s32.totalorder %s25, 0
    %p381 = por %p379, %p380
    %p382 = scmp.ne.s32.totalorder %s374, %s376
    %p383 = scmp.eq.s32.totalorder %s30, 1
    %p384 = por %p382, %p383
    %p385 = scmp.ne.s32.totalorder %s376, %s377
    %p386 = scmp.eq.s32.totalorder %s30, 0
    %p387 = por %p385, %p386
    %p388 = scmp.ne.s32.totalorder %s376, %s377
    %p389 = scmp.eq.s32.totalorder %s31, 1
    %p390 = por %p388, %p389
    %p392 = scmp.ne.s32.totalorder %s377, %s391
    %p393 = scmp.eq.s32.totalorder %s31, 0
    %p394 = por %p392, %p393
    %s396 = sadd.s32 %s395, 1
    %p399 = scmp.eq.s32.totalorder %s25, 1
    %p400 = scmp.ne.s32.totalorder %s395, %s397
    %p401 = scmp.eq.s32.totalorder %s25, 0
    %p402 = por %p400, %p401
    %p403 = scmp.ne.s32.totalorder %s395, %s397
    %p404 = scmp.eq.s32.totalorder %s30, 1
    %p405 = por %p403, %p404
    %p406 = scmp.ne.s32.totalorder %s397, %s398
    %p407 = scmp.eq.s32.totalorder %s30, 0
    %p408 = por %p406, %p407
    %p409 = scmp.ne.s32.totalorder %s397, %s398
    %p410 = scmp.eq.s32.totalorder %s31, 1
    %p411 = por %p409, %p410
    %p413 = scmp.ne.s32.totalorder %s398, %s412
    %p414 = scmp.eq.s32.totalorder %s31, 0
    %p415 = por %p413, %p414
    %s417 = sadd.s32 %s416, 1
    %p420 = scmp.eq.s32.totalorder %s25, 1
    %p421 = scmp.ne.s32.totalorder %s416, %s418
    %p422 = scmp.eq.s32.totalorder %s25, 0
    %p423 = por %p421, %p422
    %p424 = scmp.ne.s32.totalorder %s416, %s418
    %p425 = scmp.eq.s32.totalorder %s30, 1
    %p426 = por %p424, %p425
    %p427 = scmp.ne.s32.totalorder %s418, %s419
    %p428 = scmp.eq.s32.totalorder %s30, 0
    %p429 = por %p427, %p428
    %p430 = scmp.ne.s32.totalorder %s418, %s419
    %p431 = scmp.eq.s32.totalorder %s31, 1
    %p432 = por %p430, %p431
    %p434 = scmp.ne.s32.totalorder %s419, %s433
    %p435 = scmp.eq.s32.totalorder %s31, 0
    %p436 = por %p434, %p435
    %s437 = ssub.s32 %s25, %s32
    %p438 = scmp.eq.s32.totalorder %s437, 0
    %s440 = sadd.s32 %s439, 1
    %s441 = scalar_select %p438, %s439, %s440
    %p444 = pneg %p438
    %p445 = scmp.eq.s32.totalorder %s25, 1
    %p446 = por %p444, %p445
    %p447 = scmp.ne.s32.totalorder %s439, %s442
    %p448 = scmp.eq.s32.totalorder %s25, 0
    %p449 = por %p447, %p448
    %p450 = scmp.ne.s32.totalorder %s439, %s442
    %p451 = scmp.eq.s32.totalorder %s30, 1
    %p452 = por %p450, %p451
    %p453 = scmp.ne.s32.totalorder %s442, %s443
    %p454 = scmp.eq.s32.totalorder %s30, 0
    %p455 = por %p453, %p454
    %p456 = scmp.ne.s32.totalorder %s442, %s443
    %p457 = scmp.eq.s32.totalorder %s31, 1
    %p458 = por %p456, %p457
    %p460 = scmp.ne.s32.totalorder %s443, %s459
    %p461 = scmp.eq.s32.totalorder %s31, 0
    %p462 = por %p460, %p461
    %p463 = scmp.le.s32.totalorder 1, %s25
    %p464 = scmp.lt.s32.totalorder %s25, 3
    %p465 = pnand %p463, %p464
    %p466 = pneg %p465
    // Predicated region
    $region9: #{dpvt_forward.4} parent=5 // pred_check
      _
    $region10: #{dpvt_forward.4} parent=5 // pred_check_branch
      %468 = sbr.rel (%p465) target = $region12
    $region11: #{dpvt_forward.4} parent=5 // pred_region
      %s469 = ssub.s32 %s25, 1
      // Predicated region
      $region13: #{dpvt_forward.4} parent=11 // pred_check
        %p470 = pneg %p72
      $region14: #{dpvt_forward.4} parent=11 // pred_check_branch
        %472 = sbr.rel (%p470) target = $region16
      $region15: #{dpvt_forward.4} parent=11 // pred_region
        _
      $region16: #{dpvt_forward.4} parent=11 // pred_fallthru
        _
      // Predicated region
      $region17: #{dpvt_forward.4} parent=11 // pred_check
        %p473 = pneg %p93
      $region18: #{dpvt_forward.4} parent=11 // pred_check_branch
        %475 = sbr.rel (%p473) target = $region20
      $region19: #{dpvt_forward.4} parent=11 // pred_region
        _
      $region20: #{dpvt_forward.4} parent=11 // pred_fallthru
        _
      // Predicated region
      $region21: #{dpvt_forward.4} parent=11 // pred_check
        %p476 = pneg %p114
      $region22: #{dpvt_forward.4} parent=11 // pred_check_branch
        %478 = sbr.rel (%p476) target = $region24
      $region23: #{dpvt_forward.4} parent=11 // pred_region
        _
      $region24: #{dpvt_forward.4} parent=11 // pred_fallthru
        _
      // Predicated region
      $region25: #{dpvt_forward.4} parent=11 // pred_check
        %p479 = pneg %p135
      $region26: #{dpvt_forward.4} parent=11 // pred_check_branch
        %481 = sbr.rel (%p479) target = $region28
      $region27: #{dpvt_forward.4} parent=11 // pred_region
        _
      $region28: #{dpvt_forward.4} parent=11 // pred_fallthru
        _
      // Predicated region
      $region29: #{dpvt_forward.4} parent=11 // pred_check
        %p482 = pneg %p156
      $region30: #{dpvt_forward.4} parent=11 // pred_check_branch
        %484 = sbr.rel (%p482) target = $region32
      $region31: #{dpvt_forward.4} parent=11 // pred_region
        _
      $region32: #{dpvt_forward.4} parent=11 // pred_fallthru
        _
      // Predicated region
      $region33: #{dpvt_forward.4} parent=11 // pred_check
        %p485 = pneg %p177
      $region34: #{dpvt_forward.4} parent=11 // pred_check_branch
        %487 = sbr.rel (%p485) target = $region36
      $region35: #{dpvt_forward.4} parent=11 // pred_region
        _
      $region36: #{dpvt_forward.4} parent=11 // pred_fallthru
        _
      // Predicated region
      $region37: #{dpvt_forward.4} parent=11 // pred_check
        %p488 = pneg %p198
      $region38: #{dpvt_forward.4} parent=11 // pred_check_branch
        %490 = sbr.rel (%p488) target = $region40
      $region39: #{dpvt_forward.4} parent=11 // pred_region
        _
      $region40: #{dpvt_forward.4} parent=11 // pred_fallthru
        _
      // Predicated region
      $region41: #{dpvt_forward.4} parent=11 // pred_check
        %p491 = pneg %p219
      $region42: #{dpvt_forward.4} parent=11 // pred_check_branch
        %493 = sbr.rel (%p491) target = $region44
      $region43: #{dpvt_forward.4} parent=11 // pred_region
        _
      $region44: #{dpvt_forward.4} parent=11 // pred_fallthru
        _
      // Predicated region
      $region45: #{dpvt_forward.4} parent=11 // pred_check
        %p494 = pneg %p240
      $region46: #{dpvt_forward.4} parent=11 // pred_check_branch
        %496 = sbr.rel (%p494) target = $region48
      $region47: #{dpvt_forward.4} parent=11 // pred_region
        _
      $region48: #{dpvt_forward.4} parent=11 // pred_fallthru
        _
      // Predicated region
      $region49: #{dpvt_forward.4} parent=11 // pred_check
        %p497 = pneg %p261
      $region50: #{dpvt_forward.4} parent=11 // pred_check_branch
        %499 = sbr.rel (%p497) target = $region52
      $region51: #{dpvt_forward.4} parent=11 // pred_region
        _
      $region52: #{dpvt_forward.4} parent=11 // pred_fallthru
        _
      // Predicated region
      $region53: #{dpvt_forward.4} parent=11 // pred_check
        %p500 = pneg %p282
      $region54: #{dpvt_forward.4} parent=11 // pred_check_branch
        %502 = sbr.rel (%p500) target = $region56
      $region55: #{dpvt_forward.4} parent=11 // pred_region
        _
      $region56: #{dpvt_forward.4} parent=11 // pred_fallthru
        _
      // Predicated region
      $region57: #{dpvt_forward.4} parent=11 // pred_check
        %p503 = pneg %p303
      $region58: #{dpvt_forward.4} parent=11 // pred_check_branch
        %505 = sbr.rel (%p503) target = $region60
      $region59: #{dpvt_forward.4} parent=11 // pred_region
        _
      $region60: #{dpvt_forward.4} parent=11 // pred_fallthru
        _
      // Predicated region
      $region61: #{dpvt_forward.4} parent=11 // pred_check
        %p506 = pneg %p324
      $region62: #{dpvt_forward.4} parent=11 // pred_check_branch
        %508 = sbr.rel (%p506) target = $region64
      $region63: #{dpvt_forward.4} parent=11 // pred_region
        _
      $region64: #{dpvt_forward.4} parent=11 // pred_fallthru
        _
      // Predicated region
      $region65: #{dpvt_forward.4} parent=11 // pred_check
        %p509 = pneg %p345
      $region66: #{dpvt_forward.4} parent=11 // pred_check_branch
        %511 = sbr.rel (%p509) target = $region68
      $region67: #{dpvt_forward.4} parent=11 // pred_region
        _
      $region68: #{dpvt_forward.4} parent=11 // pred_fallthru
        _
      // Predicated region
      $region69: #{dpvt_forward.4} parent=11 // pred_check
        %p512 = pneg %p366
      $region70: #{dpvt_forward.4} parent=11 // pred_check_branch
        %514 = sbr.rel (%p512) target = $region72
      $region71: #{dpvt_forward.4} parent=11 // pred_region
        _
      $region72: #{dpvt_forward.4} parent=11 // pred_fallthru
        _
      // Predicated region
      $region73: #{dpvt_forward.4} parent=11 // pred_check
        %p515 = pneg %p387
      $region74: #{dpvt_forward.4} parent=11 // pred_check_branch
        %517 = sbr.rel (%p515) target = $region76
      $region75: #{dpvt_forward.4} parent=11 // pred_region
        _
      $region76: #{dpvt_forward.4} parent=11 // pred_fallthru
        _
      // Predicated region
      $region77: #{dpvt_forward.4} parent=11 // pred_check
        %p518 = pneg %p408
      $region78: #{dpvt_forward.4} parent=11 // pred_check_branch
        %520 = sbr.rel (%p518) target = $region80
      $region79: #{dpvt_forward.4} parent=11 // pred_region
        _
      $region80: #{dpvt_forward.4} parent=11 // pred_fallthru
        _
      // Predicated region
      $region81: #{dpvt_forward.4} parent=11 // pred_check
        %p521 = pneg %p429
      $region82: #{dpvt_forward.4} parent=11 // pred_check_branch
        %523 = sbr.rel (%p521) target = $region84
      $region83: #{dpvt_forward.4} parent=11 // pred_region
        _
      $region84: #{dpvt_forward.4} parent=11 // pred_fallthru
        _
    $region12: #{dpvt_forward.4} parent=5 // pred_fallthru
      _
    %p524 = scmp.lt.s32.totalorder %s25, 2
    // Predicated region
    $region85: #{dpvt_forward.4} parent=5 // pred_check
      %p525 = pneg %p524
    $region86: #{dpvt_forward.4} parent=5 // pred_check_branch
      %527 = sbr.rel (%p525) target = $region88
    $region87: #{dpvt_forward.4} parent=5 // pred_region
      // Predicated region
      $region89: #{dpvt_forward.4} parent=87 // pred_check
        %p528 = pneg %p45
      $region90: #{dpvt_forward.4} parent=87 // pred_check_branch
        %530 = sbr.rel (%p528) target = $region92
      $region91: #{dpvt_forward.4} parent=87 // pred_region
        %p531 = scmp.lt.s32.totalorder %s25, 1
        %s532 = scalar_select %p531, %s25, 1
        %s533 = smul.addr %s532, 8
        %s534 = smul.addr %s533, 8
        %s535 = scalar_lea.vmem %s0, %s534
      $region92: #{dpvt_forward.4} parent=87 // pred_fallthru
        _
    $region88: #{dpvt_forward.4} parent=5 // pred_fallthru
      _
    %p536 = scmp.le.s32.totalorder 1, %s25
    %p537 = scmp.lt.s32.totalorder %s25, 3
    %p538 = pnand %p536, %p537
    %p539 = pneg %p538
    // Predicated region
    $region93: #{dpvt_forward.4} parent=5 // pred_check
      _
    $region94: #{dpvt_forward.4} parent=5 // pred_check_branch
      %541 = sbr.rel (%p538) target = $region96
    $region95: #{dpvt_forward.4} parent=5 // pred_region
      %s542 = ssub.s32 %s25, 1
      %p543 = scmp.lt.s32.totalorder %s30, 1
      %s544 = scalar_select %p543, %s30, 1
      %s545 = smul.addr %s544, 8
      %s546 = smul.addr %s545, 8
      %s547 = scalar_lea.vmem %s0, %s546
      %p548 = pneg %p51
      %p549 = pneg %p48
      %p550 = pneg %p72
      %p551 = pneg %p69
      %p552 = pneg %p93
      %p553 = pneg %p90
      %p554 = pneg %p114
      %p555 = pneg %p111
      %p556 = pneg %p135
      %p557 = pneg %p132
      %p558 = pneg %p156
      %p559 = pneg %p153
      %p560 = pneg %p177
      %p561 = pneg %p174
      %p562 = pneg %p198
      %p563 = pneg %p195
      %p564 = pneg %p219
      %p565 = pneg %p216
      %p566 = pneg %p240
      %p567 = pneg %p237
      %p568 = pneg %p261
      %p569 = pneg %p258
      %p570 = pneg %p282
      %p571 = pneg %p279
      %p572 = pneg %p303
      %p573 = pneg %p300
      %p574 = pneg %p324
      %p575 = pneg %p321
      %p576 = pneg %p345
      %p577 = pneg %p342
      %p578 = pneg %p366
      %p579 = pneg %p363
      %p580 = pneg %p387
      %p581 = pneg %p384
      %p582 = pneg %p408
      %p583 = pneg %p405
      %p584 = pneg %p429
      %p585 = pneg %p426
      %p586 = pneg %p455
      %p587 = pneg %p452
      %p588 = scmp.lt.s32.totalorder %s30, 1
      %s589 = scalar_select %p588, %s30, 1
      %s590 = smul.addr %s589, 8
      %s591 = smul.addr %s590, 4
      %s592 = scalar_lea.vmem %s19, %s591
      %p593 = scmp.lt.s32.totalorder %s30, 1
      %s594 = scalar_select %p593, %s30, 1
      %s595 = smul.addr %s594, 8
      %s596 = smul.addr %s595, 8
      %s597 = scalar_lea.vmem %s0, %s596
      %p598 = scmp.lt.s32.totalorder %s30, 1
      %s599 = scalar_select %p598, %s30, 1
      %s600 = smul.addr %s599, 8
      %s601 = smul.addr %s600, 4
      %s602 = scalar_lea.vmem %s19, %s601
      %v604 = vld [vmem:[%s597] sm:$0xff]
      %v605 = vld [vmem:[%s597 + $0x8] sm:$0xff]
      %v606 = vld [vmem:[%s597 + $0x10] sm:$0xff]
      %v607 = vld [vmem:[%s597 + $0x18] sm:$0xff]
      %v608 = vld [vmem:[%s597 + $0x20] sm:$0xff]
      %v609 = vld [vmem:[%s597 + $0x28] sm:$0xff]
      %v610 = vld [vmem:[%s597 + $0x30] sm:$0xff]
      %v611 = vld [vmem:[%s597 + $0x38] sm:$0xff]
      %v612 = vld [vmem:[%s1] sm:$0xff]
      %v613 = vld [vmem:[%s1 + $0x8] sm:$0xff]
      %v614 = vld [vmem:[%s1 + $0x10] sm:$0xff]
      %v615 = vld [vmem:[%s1 + $0x18] sm:$0xff]
      %v616 = vld [vmem:[%s1 + $0x20] sm:$0xff]
      %v617 = vld [vmem:[%s1 + $0x28] sm:$0xff]
      %v618 = vld [vmem:[%s1 + $0x30] sm:$0xff]
      %v619 = vld [vmem:[%s1 + $0x38] sm:$0xff]
      %v620 = vld [vmem:[%s2] sm:$0x1]
      %v621 = vld [vmem:[%s3] sm:$0x1]
      %vm622 = vcmask 261120
      %v623 = vsel %vm622, %v604, 0.0
      %624 = vadd.xlane.f32.xlu0 %v623
      %v625 = vpop.xlane.xlu0 %624
      %v626 = vsel %vm622, %v605, 0.0
      %627 = vadd.xlane.f32.xlu0 %v626
      %v628 = vpop.xlane.xlu0 %627
      %v629 = vsel %vm622, %v606, 0.0
      %630 = vadd.xlane.f32.xlu0 %v629
      %v631 = vpop.xlane.xlu0 %630
      %v632 = vsel %vm622, %v607, 0.0
      %633 = vadd.xlane.f32.xlu0 %v632
      %v634 = vpop.xlane.xlu0 %633
      %v635 = vsel %vm622, %v608, 0.0
      %636 = vadd.xlane.f32.xlu0 %v635
      %v637 = vpop.xlane.xlu0 %636
      %v638 = vsel %vm622, %v609, 0.0
      %639 = vadd.xlane.f32.xlu0 %v638
      %v640 = vpop.xlane.xlu0 %639
      %v641 = vsel %vm622, %v610, 0.0
      %642 = vadd.xlane.f32.xlu0 %v641
      %v643 = vpop.xlane.xlu0 %642
      %v644 = vsel %vm622, %v611, 0.0
      %645 = vadd.xlane.f32.xlu0 %v644
      %v646 = vpop.xlane.xlu0 %645
      %v647 = vrcp.pop 32.0
      %v648 = vmul.f32 %v625, %v647
      %v649 = vmul.f32 %v628, %v647
      %v650 = vmul.f32 %v631, %v647
      %v651 = vmul.f32 %v634, %v647
      %v652 = vmul.f32 %v637, %v647
      %v653 = vmul.f32 %v640, %v647
      %v654 = vmul.f32 %v643, %v647
      %v655 = vmul.f32 %v646, %v647
      %v656 = vsub.f32 %v604, %v648
      %v657 = vsub.f32 %v605, %v649
      %v658 = vsub.f32 %v606, %v650
      %v659 = vsub.f32 %v607, %v651
      %v660 = vsub.f32 %v608, %v652
      %v661 = vsub.f32 %v609, %v653
      %v662 = vsub.f32 %v610, %v654
      %v663 = vsub.f32 %v611, %v655
      %v664 = vmul.f32 %v656, %v656
      %v665 = vmul.f32 %v657, %v657
      %v666 = vmul.f32 %v658, %v658
      %v667 = vmul.f32 %v659, %v659
      %v668 = vmul.f32 %v660, %v660
      %v669 = vmul.f32 %v661, %v661
      %v670 = vmul.f32 %v662, %v662
      %v671 = vmul.f32 %v663, %v663
      %v672 = vsel %vm622, %v664, 0.0
      %673 = vadd.xlane.f32.xlu0 %v672
      %v674 = vpop.xlane.xlu0 %673
      %v675 = vsel %vm622, %v665, 0.0
      %676 = vadd.xlane.f32.xlu0 %v675
      %v677 = vpop.xlane.xlu0 %676
      %v678 = vsel %vm622, %v666, 0.0
      %679 = vadd.xlane.f32.xlu0 %v678
      %v680 = vpop.xlane.xlu0 %679
      %v681 = vsel %vm622, %v667, 0.0
      %682 = vadd.xlane.f32.xlu0 %v681
      %v683 = vpop.xlane.xlu0 %682
      %v684 = vsel %vm622, %v668, 0.0
      %685 = vadd.xlane.f32.xlu0 %v684
      %v686 = vpop.xlane.xlu0 %685
      %v687 = vsel %vm622, %v669, 0.0
      %688 = vadd.xlane.f32.xlu0 %v687
      %v689 = vpop.xlane.xlu0 %688
      %v690 = vsel %vm622, %v670, 0.0
      %691 = vadd.xlane.f32.xlu0 %v690
      %v692 = vpop.xlane.xlu0 %691
      %v693 = vsel %vm622, %v671, 0.0
      %694 = vadd.xlane.f32.xlu0 %v693
      %v695 = vpop.xlane.xlu0 %694
      %v696 = vmul.f32 %v674, %v647
      %v697 = vmul.f32 %v677, %v647
      %v698 = vmul.f32 %v680, %v647
      %v699 = vmul.f32 %v683, %v647
      %v700 = vmul.f32 %v686, %v647
      %v701 = vmul.f32 %v689, %v647
      %v702 = vmul.f32 %v692, %v647
      %v703 = vmul.f32 %v695, %v647
      %v704 = vadd.f32 %v696, 1e-05
      %v705 = vadd.f32 %v697, 1e-05
      %v706 = vadd.f32 %v698, 1e-05
      %v707 = vadd.f32 %v699, 1e-05
      %v708 = vadd.f32 %v700, 1e-05
      %v709 = vadd.f32 %v701, 1e-05
      %v710 = vadd.f32 %v702, 1e-05
      %v711 = vadd.f32 %v703, 1e-05
      %v712 = vrsqrt.pop %v704
      %v713 = vrsqrt.pop %v705
      %v714 = vrsqrt.pop %v706
      %v715 = vrsqrt.pop %v707
      %v716 = vrsqrt.pop %v708
      %v717 = vrsqrt.pop %v709
      %v718 = vrsqrt.pop %v710
      %v719 = vrsqrt.pop %v711
      %v720 = vmul.f32 %v656, %v712
      %v721 = vmul.f32 %v657, %v713
      %v722 = vmul.f32 %v658, %v714
      %v723 = vmul.f32 %v659, %v715
      %v724 = vmul.f32 %v660, %v716
      %v725 = vmul.f32 %v661, %v717
      %v726 = vmul.f32 %v662, %v718
      %v727 = vmul.f32 %v663, %v719
      %v729 = vlaneseq
      %v730 = vshrl.u32 %v729, 7
      %v731 = vsub.s32 0, %v730
      %v732 = vrot.slane %v620, %v731
      %v734 = vmul.f32 %v720, %v732
      %v735 = vmul.f32 %v721, %v732
      %v736 = vmul.f32 %v722, %v732
      %v737 = vmul.f32 %v723, %v732
      %v738 = vmul.f32 %v724, %v732
      %v739 = vmul.f32 %v725, %v732
      %v740 = vmul.f32 %v726, %v732
      %v741 = vmul.f32 %v727, %v732
      %v743 = vlaneseq
      %v744 = vshrl.u32 %v743, 7
      %v745 = vsub.s32 0, %v744
      %v746 = vrot.slane %v621, %v745
      %v748 = vadd.f32 %v734, %v746
      %v749 = vadd.f32 %v735, %v746
      %v750 = vadd.f32 %v736, %v746
      %v751 = vadd.f32 %v737, %v746
      %v752 = vadd.f32 %v738, %v746
      %v753 = vadd.f32 %v739, %v746
      %v754 = vadd.f32 %v740, %v746
      %v755 = vadd.f32 %v741, %v746
      %757 = vset.pattern.permute.xlu0 0
      %758 = vperm.xlu0 %757, %v612
      %v759 = vpop.permute.xlu0 %758
      %762 = vset.pattern.permute.xlu0 0
      %763 = vperm.xlu0 %762, %v613
      %v764 = vpop.permute.xlu0 %763
      %767 = vset.pattern.permute.xlu0 0
      %768 = vperm.xlu0 %767, %v614
      %v769 = vpop.permute.xlu0 %768
      %772 = vset.pattern.permute.xlu0 0
      %773 = vperm.xlu0 %772, %v615
      %v774 = vpop.permute.xlu0 %773
      %777 = vset.pattern.permute.xlu0 0
      %778 = vperm.xlu0 %777, %v616
      %v779 = vpop.permute.xlu0 %778
      %782 = vset.pattern.permute.xlu0 0
      %783 = vperm.xlu0 %782, %v617
      %v784 = vpop.permute.xlu0 %783
      %787 = vset.pattern.permute.xlu0 0
      %788 = vperm.xlu0 %787, %v618
      %v789 = vpop.permute.xlu0 %788
      %792 = vset.pattern.permute.xlu0 0
      %793 = vperm.xlu0 %792, %v619
      %v794 = vpop.permute.xlu0 %793
      %v796 = vmul.f32 %v748, %v759
      %v797 = vmul.f32 %v749, %v764
      %v798 = vmul.f32 %v750, %v769
      %v799 = vmul.f32 %v751, %v774
      %v800 = vmul.f32 %v752, %v779
      %v801 = vmul.f32 %v753, %v784
      %v802 = vmul.f32 %v754, %v789
      %v803 = vmul.f32 %v755, %v794
      %804 = vset.pattern.permute.xlu0 1
      %805 = vperm.xlu0 %804, %v612
      %v806 = vpop.permute.xlu0 %805
      %808 = vset.pattern.permute.xlu0 1
      %809 = vperm.xlu0 %808, %v613
      %v810 = vpop.permute.xlu0 %809
      %812 = vset.pattern.permute.xlu0 1
      %813 = vperm.xlu0 %812, %v614
      %v814 = vpop.permute.xlu0 %813
      %816 = vset.pattern.permute.xlu0 1
      %817 = vperm.xlu0 %816, %v615
      %v818 = vpop.permute.xlu0 %817
      %820 = vset.pattern.permute.xlu0 1
      %821 = vperm.xlu0 %820, %v616
      %v822 = vpop.permute.xlu0 %821
      %824 = vset.pattern.permute.xlu0 1
      %825 = vperm.xlu0 %824, %v617
      %v826 = vpop.permute.xlu0 %825
      %828 = vset.pattern.permute.xlu0 1
      %829 = vperm.xlu0 %828, %v618
      %v830 = vpop.permute.xlu0 %829
      %832 = vset.pattern.permute.xlu0 1
      %833 = vperm.xlu0 %832, %v619
      %v834 = vpop.permute.xlu0 %833
      %v836 = vmul.f32 %v748, %v806
      %v837 = vmul.f32 %v749, %v810
      %v838 = vmul.f32 %v750, %v814
      %v839 = vmul.f32 %v751, %v818
      %v840 = vmul.f32 %v752, %v822
      %v841 = vmul.f32 %v753, %v826
      %v842 = vmul.f32 %v754, %v830
      %v843 = vmul.f32 %v755, %v834
      %844 = vst.msk [vmem:[#allocation2] sm:$0xff] %vm622, 0.0
      %845 = vst.msk [vmem:[#allocation2 + $0x8] sm:$0xff] %vm622, 0.0
      %846 = vst.msk [vmem:[#allocation2 + $0x10] sm:$0xff] %vm622, %v748
      %847 = vst.msk [vmem:[#allocation2 + $0x18] sm:$0xff] %vm622, %v749
      %848 = vst.msk [vmem:[#allocation2 + $0x20] sm:$0xff] %vm622, %v750
      %849 = vst.msk [vmem:[#allocation2 + $0x28] sm:$0xff] %vm622, %v751
      %850 = vst.msk [vmem:[#allocation2 + $0x30] sm:$0xff] %vm622, %v752
      %851 = vst.msk [vmem:[#allocation2 + $0x38] sm:$0xff] %vm622, %v753
      %852 = vst.msk [vmem:[#allocation2 + $0x40] sm:$0xff] %vm622, %v754
      %853 = vst.msk [vmem:[#allocation2 + $0x48] sm:$0xff] %vm622, %v755
      %854 = vst.msk [vmem:[#allocation2 + $0x50] sm:$0xff] %vm622, 0.0
      %855 = vst.msk [vmem:[#allocation2 + $0x58] sm:$0xff] %vm622, 0.0
      %856 = vst.msk [vmem:[#allocation3] sm:$0xff] %vm622, 0.0
      %857 = vst.msk [vmem:[#allocation3 + $0x8] sm:$0xff] %vm622, 0.0
      %858 = vst.msk [vmem:[#allocation3 + $0x10] sm:$0xff] %vm622, %v796
      %859 = vst.msk [vmem:[#allocation3 + $0x18] sm:$0xff] %vm622, %v797
      %860 = vst.msk [vmem:[#allocation3 + $0x20] sm:$0xff] %vm622, %v798
      %861 = vst.msk [vmem:[#allocation3 + $0x28] sm:$0xff] %vm622, %v799
      %862 = vst.msk [vmem:[#allocation3 + $0x30] sm:$0xff] %vm622, %v800
      %863 = vst.msk [vmem:[#allocation3 + $0x38] sm:$0xff] %vm622, %v801
      %864 = vst.msk [vmem:[#allocation3 + $0x40] sm:$0xff] %vm622, %v802
      %865 = vst.msk [vmem:[#allocation3 + $0x48] sm:$0xff] %vm622, %v803
      %866 = vst.msk [vmem:[#allocation3 + $0x50] sm:$0xff] %vm622, 0.0
      %867 = vst.msk [vmem:[#allocation3 + $0x58] sm:$0xff] %vm622, 0.0
      %868 = vst.msk [vmem:[#allocation4] sm:$0xff] %vm622, 0.0
      %869 = vst.msk [vmem:[#allocation4 + $0x8] sm:$0xff] %vm622, 0.0
      %870 = vst.msk [vmem:[#allocation4 + $0x10] sm:$0xff] %vm622, %v836
      %871 = vst.msk [vmem:[#allocation4 + $0x18] sm:$0xff] %vm622, %v837
      %872 = vst.msk [vmem:[#allocation4 + $0x20] sm:$0xff] %vm622, %v838
      %873 = vst.msk [vmem:[#allocation4 + $0x28] sm:$0xff] %vm622, %v839
      %874 = vst.msk [vmem:[#allocation4 + $0x30] sm:$0xff] %vm622, %v840
      %875 = vst.msk [vmem:[#allocation4 + $0x38] sm:$0xff] %vm622, %v841
      %876 = vst.msk [vmem:[#allocation4 + $0x40] sm:$0xff] %vm622, %v842
      %877 = vst.msk [vmem:[#allocation4 + $0x48] sm:$0xff] %vm622, %v843
      %878 = vst.msk [vmem:[#allocation4 + $0x50] sm:$0xff] %vm622, 0.0
      %879 = vst.msk [vmem:[#allocation4 + $0x58] sm:$0xff] %vm622, 0.0
      %v880 = vld [vmem:[%s4] sm:$0xf]
      %v881 = vld [vmem:[%s4 + $0x4] sm:$0xf]
      %v882 = vld [vmem:[%s4 + $0x8] sm:$0xf]
      %v883 = vld [vmem:[%s4 + $0xc] sm:$0xf]
      %v884 = vld [vmem:[%s4 + $0x10] sm:$0xf]
      %v885 = vld [vmem:[%s4 + $0x14] sm:$0xf]
      %v886 = vld [vmem:[%s4 + $0x18] sm:$0xf]
      %v887 = vld [vmem:[%s4 + $0x1c] sm:$0xf]
      %v888 = vld [vmem:[%s4 + $0x20] sm:$0xf]
      %v889 = vld [vmem:[%s4 + $0x24] sm:$0xf]
      %v890 = vld [vmem:[%s4 + $0x28] sm:$0xf]
      %v891 = vld [vmem:[%s4 + $0x2c] sm:$0xf]
      %v892 = vld [vmem:[%s4 + $0x30] sm:$0xf]
      %v893 = vld [vmem:[%s4 + $0x34] sm:$0xf]
      %v894 = vld [vmem:[%s4 + $0x38] sm:$0xf]
      %v895 = vld [vmem:[%s4 + $0x3c] sm:$0xf]
      %v896 = vld [vmem:[%s4 + $0x40] sm:$0xf]
      %v897 = vld [vmem:[%s4 + $0x44] sm:$0xf]
      %v898 = vld [vmem:[%s4 + $0x48] sm:$0xf]
      %v899 = vld [vmem:[%s4 + $0x4c] sm:$0xf]
      %v900 = vld [vmem:[%s4 + $0x50] sm:$0xf]
      %v901 = vld [vmem:[%s4 + $0x54] sm:$0xf]
      %v902 = vld [vmem:[%s4 + $0x58] sm:$0xf]
      %v903 = vld [vmem:[%s4 + $0x5c] sm:$0xf]
      %v904 = vld [vmem:[%s4 + $0x60] sm:$0xf]
      %v905 = vld [vmem:[%s4 + $0x64] sm:$0xf]
      %v906 = vld [vmem:[%s4 + $0x68] sm:$0xf]
      %v907 = vld [vmem:[%s4 + $0x6c] sm:$0xf]
      %v908 = vld [vmem:[%s4 + $0x70] sm:$0xf]
      %v909 = vld [vmem:[%s4 + $0x74] sm:$0xf]
      %v910 = vld [vmem:[%s4 + $0x78] sm:$0xf]
      %v911 = vld [vmem:[%s4 + $0x7c] sm:$0xf]
      %v912 = vld [vmem:[%s4 + $0x80] sm:$0xf]
      %v913 = vld [vmem:[%s4 + $0x84] sm:$0xf]
      %v914 = vld [vmem:[%s4 + $0x88] sm:$0xf]
      %v915 = vld [vmem:[%s4 + $0x8c] sm:$0xf]
      %v916 = vld [vmem:[%s5] sm:$0x1]
      %v917 = vld [vmem:[#allocation3 + $0x7] sm:$0xff]
      %v918 = vld [vmem:[#allocation3 + $0xf] sm:$0xff]
      %v919 = vld [vmem:[#allocation3 + $0x17] sm:$0xff]
      %v920 = vld [vmem:[#allocation3 + $0x1f] sm:$0xff]
      %v921 = vld [vmem:[#allocation3 + $0x27] sm:$0xff]
      %v922 = vld [vmem:[#allocation3 + $0x2f] sm:$0xff]
      %v923 = vld [vmem:[#allocation3 + $0x37] sm:$0xff]
      %v924 = vld [vmem:[#allocation3 + $0x3f] sm:$0xff]
      %v925 = vld [vmem:[#allocation2 + $0x8] sm:$0xff]
      %v926 = vld [vmem:[#allocation2 + $0x10] sm:$0xff]
      %v927 = vld [vmem:[#allocation2 + $0x18] sm:$0xff]
      %v928 = vld [vmem:[#allocation2 + $0x20] sm:$0xff]
      %v929 = vld [vmem:[#allocation2 + $0x28] sm:$0xff]
      %v930 = vld [vmem:[#allocation2 + $0x30] sm:$0xff]
      %v931 = vld [vmem:[#allocation2 + $0x38] sm:$0xff]
      %v932 = vld [vmem:[#allocation2 + $0x40] sm:$0xff]
      %v933 = vld [vmem:[#allocation4 + $0x9] sm:$0xff]
      %v934 = vld [vmem:[#allocation4 + $0x11] sm:$0xff]
      %v935 = vld [vmem:[#allocation4 + $0x19] sm:$0xff]
      %v936 = vld [vmem:[#allocation4 + $0x21] sm:$0xff]
      %v937 = vld [vmem:[#allocation4 + $0x29] sm:$0xff]
      %v938 = vld [vmem:[#allocation4 + $0x31] sm:$0xff]
      %v939 = vld [vmem:[#allocation4 + $0x39] sm:$0xff]
      %v940 = vld [vmem:[#allocation4 + $0x41] sm:$0xff]
      %v941 = vld [vmem:[#allocation3 + $0x47] sm:$0xff]
      %v942 = vld [vmem:[#allocation2 + $0x48] sm:$0xff]
      %v943 = vld [vmem:[#allocation4 + $0x49] sm:$0xff]
      %v944 = vld [vmem:[#allocation3 + $0x4f] sm:$0xff]
      %v945 = vld [vmem:[#allocation2 + $0x50] sm:$0xff]
      %v946 = vld [vmem:[#allocation4 + $0x51] sm:$0xff]
      %955 = vrot.lane.b32.xlu0 %v925, 32
      %v956 = vpop.permute.xlu0 %955
      %957 = vrot.lane.b32.xlu0 %v926, 32
      %v958 = vpop.permute.xlu0 %957
      %959 = vrot.lane.b32.xlu0 %v927, 32
      %v960 = vpop.permute.xlu0 %959
      %961 = vrot.lane.b32.xlu0 %v928, 32
      %v962 = vpop.permute.xlu0 %961
      %963 = vrot.lane.b32.xlu0 %v929, 32
      %v964 = vpop.permute.xlu0 %963
      %965 = vrot.lane.b32.xlu0 %v930, 32
      %v966 = vpop.permute.xlu0 %965
      %967 = vrot.lane.b32.xlu0 %v931, 32
      %v968 = vpop.permute.xlu0 %967
      %969 = vrot.lane.b32.xlu0 %v932, 32
      %v970 = vpop.permute.xlu0 %969
      %987 = vrot.lane.b32.xlu0 %v933, 64
      %v988 = vpop.permute.xlu0 %987
      %989 = vrot.lane.b32.xlu0 %v934, 64
      %v990 = vpop.permute.xlu0 %989
      %991 = vrot.lane.b32.xlu0 %v935, 64
      %v992 = vpop.permute.xlu0 %991
      %993 = vrot.lane.b32.xlu0 %v936, 64
      %v994 = vpop.permute.xlu0 %993
      %995 = vrot.lane.b32.xlu0 %v937, 64
      %v996 = vpop.permute.xlu0 %995
      %997 = vrot.lane.b32.xlu0 %v938, 64
      %v998 = vpop.permute.xlu0 %997
      %999 = vrot.lane.b32.xlu0 %v939, 64
      %v1000 = vpop.permute.xlu0 %999
      %1001 = vrot.lane.b32.xlu0 %v940, 64
      %v1002 = vpop.permute.xlu0 %1001
      %1019 = vrot.lane.b32.xlu0 %v918, 96
      %v1020 = vpop.permute.xlu0 %1019
      %1021 = vrot.lane.b32.xlu0 %v919, 96
      %v1022 = vpop.permute.xlu0 %1021
      %1023 = vrot.lane.b32.xlu0 %v920, 96
      %v1024 = vpop.permute.xlu0 %1023
      %1025 = vrot.lane.b32.xlu0 %v921, 96
      %v1026 = vpop.permute.xlu0 %1025
      %1027 = vrot.lane.b32.xlu0 %v922, 96
      %v1028 = vpop.permute.xlu0 %1027
      %1029 = vrot.lane.b32.xlu0 %v923, 96
      %v1030 = vpop.permute.xlu0 %1029
      %1031 = vrot.lane.b32.xlu0 %v924, 96
      %v1032 = vpop.permute.xlu0 %1031
      %1033 = vrot.lane.b32.xlu0 %v941, 96
      %v1034 = vpop.permute.xlu0 %1033
      %1044 = vrot.lane.b32.xlu0 %v934, 32
      %v1045 = vpop.permute.xlu0 %1044
      %1046 = vrot.lane.b32.xlu0 %v935, 32
      %v1047 = vpop.permute.xlu0 %1046
      %1048 = vrot.lane.b32.xlu0 %v936, 32
      %v1049 = vpop.permute.xlu0 %1048
      %1050 = vrot.lane.b32.xlu0 %v937, 32
      %v1051 = vpop.permute.xlu0 %1050
      %1052 = vrot.lane.b32.xlu0 %v938, 32
      %v1053 = vpop.permute.xlu0 %1052
      %1054 = vrot.lane.b32.xlu0 %v939, 32
      %v1055 = vpop.permute.xlu0 %1054
      %1056 = vrot.lane.b32.xlu0 %v940, 32
      %v1057 = vpop.permute.xlu0 %1056
      %1058 = vrot.lane.b32.xlu0 %v943, 32
      %v1059 = vpop.permute.xlu0 %1058
      %1069 = vrot.lane.b32.xlu0 %v919, 64
      %v1070 = vpop.permute.xlu0 %1069
      %1071 = vrot.lane.b32.xlu0 %v920, 64
      %v1072 = vpop.permute.xlu0 %1071
      %1073 = vrot.lane.b32.xlu0 %v921, 64
      %v1074 = vpop.permute.xlu0 %1073
      %1075 = vrot.lane.b32.xlu0 %v922, 64
      %v1076 = vpop.permute.xlu0 %1075
      %1077 = vrot.lane.b32.xlu0 %v923, 64
      %v1078 = vpop.permute.xlu0 %1077
      %1079 = vrot.lane.b32.xlu0 %v924, 64
      %v1080 = vpop.permute.xlu0 %1079
      %1081 = vrot.lane.b32.xlu0 %v941, 64
      %v1082 = vpop.permute.xlu0 %1081
      %1083 = vrot.lane.b32.xlu0 %v944, 64
      %v1084 = vpop.permute.xlu0 %1083
      %1095 = vrot.lane.b32.xlu0 %v927, 96
      %v1096 = vpop.permute.xlu0 %1095
      %1097 = vrot.lane.b32.xlu0 %v928, 96
      %v1098 = vpop.permute.xlu0 %1097
      %1099 = vrot.lane.b32.xlu0 %v929, 96
      %v1100 = vpop.permute.xlu0 %1099
      %1101 = vrot.lane.b32.xlu0 %v930, 96
      %v1102 = vpop.permute.xlu0 %1101
      %1103 = vrot.lane.b32.xlu0 %v931, 96
      %v1104 = vpop.permute.xlu0 %1103
      %1105 = vrot.lane.b32.xlu0 %v932, 96
      %v1106 = vpop.permute.xlu0 %1105
      %1107 = vrot.lane.b32.xlu0 %v942, 96
      %v1108 = vpop.permute.xlu0 %1107
      %1109 = vrot.lane.b32.xlu0 %v945, 96
      %v1110 = vpop.permute.xlu0 %1109
      %v1119 = vsel %vm622, %v917, %v956
      %v1120 = vsel %vm622, %v918, %v958
      %v1121 = vsel %vm622, %v919, %v960
      %v1122 = vsel %vm622, %v920, %v962
      %v1123 = vsel %vm622, %v921, %v964
      %v1124 = vsel %vm622, %v922, %v966
      %v1125 = vsel %vm622, %v923, %v968
      %v1126 = vsel %vm622, %v924, %v970
      %vm1127 = vcmask 523264
      %v1128 = vsel %vm1127, %v1119, %v988
      %v1129 = vsel %vm1127, %v1120, %v990
      %v1130 = vsel %vm1127, %v1121, %v992
      %v1131 = vsel %vm1127, %v1122, %v994
      %v1132 = vsel %vm1127, %v1123, %v996
      %v1133 = vsel %vm1127, %v1124, %v998
      %v1134 = vsel %vm1127, %v1125, %v1000
      %v1135 = vsel %vm1127, %v1126, %v1002
      %vm1136 = vcmask 785408
      %v1137 = vsel %vm1136, %v1128, %v1020
      %v1138 = vsel %vm1136, %v1129, %v1022
      %v1139 = vsel %vm1136, %v1130, %v1024
      %v1140 = vsel %vm1136, %v1131, %v1026
      %v1141 = vsel %vm1136, %v1132, %v1028
      %v1142 = vsel %vm1136, %v1133, %v1030
      %v1143 = vsel %vm1136, %v1134, %v1032
      %v1144 = vsel %vm1136, %v1135, %v1034
      %v1145 = vsel %vm622, %v926, %v1045
      %v1146 = vsel %vm622, %v927, %v1047
      %v1147 = vsel %vm622, %v928, %v1049
      %v1148 = vsel %vm622, %v929, %v1051
      %v1149 = vsel %vm622, %v930, %v1053
      %v1150 = vsel %vm622, %v931, %v1055
      %v1151 = vsel %vm622, %v932, %v1057
      %v1152 = vsel %vm622, %v942, %v1059
      %v1153 = vsel %vm1127, %v1145, %v1070
      %v1154 = vsel %vm1127, %v1146, %v1072
      %v1155 = vsel %vm1127, %v1147, %v1074
      %v1156 = vsel %vm1127, %v1148, %v1076
      %v1157 = vsel %vm1127, %v1149, %v1078
      %v1158 = vsel %vm1127, %v1150, %v1080
      %v1159 = vsel %vm1127, %v1151, %v1082
      %v1160 = vsel %vm1127, %v1152, %v1084
      %v1161 = vsel %vm1136, %v1153, %v1096
      %v1162 = vsel %vm1136, %v1154, %v1098
      %v1163 = vsel %vm1136, %v1155, %v1100
      %v1164 = vsel %vm1136, %v1156, %v1102
      %v1165 = vsel %vm1136, %v1157, %v1104
      %v1166 = vsel %vm1136, %v1158, %v1106
      %v1167 = vsel %vm1136, %v1159, %v1108
      %v1168 = vsel %vm1136, %v1160, %v1110
      %v1169 = vpack.c.bf16 %v1138, %v1137
      %v1170 = vpack.c.bf16 %v1162, %v1161
      %v1171 = vpack.c.bf16 %v936, %v935
      %v1172 = vpack.c.bf16 %v1140, %v1139
      %v1173 = vpack.c.bf16 %v1164, %v1163
      %v1174 = vpack.c.bf16 %v938, %v937
      %v1175 = vpack.c.bf16 %v1142, %v1141
      %v1176 = vpack.c.bf16 %v1166, %v1165
      %v1177 = vpack.c.bf16 %v940, %v939
      %v1178 = vpack.c.bf16 %v1144, %v1143
      %v1179 = vpack.c.bf16 %v1168, %v1167
      %v1180 = vpack.c.bf16 %v946, %v943
      %v1182 = vlaneseq
      %v1183 = vshrl.u32 %v1182, 7
      %v1184 = vsub.s32 0, %v1183
      %v1185 = vrot.slane %v916, %v1184
      %v1223 = vunpack.c.l.b16 %v880
      %v1224 = vunpack.c.l.b16 %v881
      %v1225 = vunpack.c.l.b16 %v882
      %v1226 = vunpack.c.l.b16 %v883
      %v1227 = vunpack.c.l.b16 %v884
      %v1228 = vunpack.c.l.b16 %v885
      %v1229 = vunpack.c.l.b16 %v886
      %v1230 = vunpack.c.l.b16 %v887
      %v1231 = vunpack.c.l.b16 %v888
      %v1232 = vunpack.c.l.b16 %v889
      %v1233 = vunpack.c.l.b16 %v890
      %v1234 = vunpack.c.l.b16 %v891
      %v1235 = vunpack.c.l.b16 %v892
      %v1236 = vunpack.c.l.b16 %v893
      %v1237 = vunpack.c.l.b16 %v894
      %v1238 = vunpack.c.l.b16 %v895
      %v1239 = vunpack.c.l.b16 %v896
      %v1240 = vunpack.c.l.b16 %v897
      %v1241 = vunpack.c.l.b16 %v898
      %v1242 = vunpack.c.l.b16 %v899
      %v1243 = vunpack.c.l.b16 %v900
      %v1244 = vunpack.c.l.b16 %v901
      %v1245 = vunpack.c.l.b16 %v902
      %v1246 = vunpack.c.l.b16 %v903
      %v1247 = vunpack.c.l.b16 %v904
      %v1248 = vunpack.c.l.b16 %v905
      %v1249 = vunpack.c.l.b16 %v906
      %v1250 = vunpack.c.l.b16 %v907
      %v1251 = vunpack.c.l.b16 %v908
      %v1252 = vunpack.c.l.b16 %v909
      %v1253 = vunpack.c.l.b16 %v910
      %v1254 = vunpack.c.l.b16 %v911
      %v1255 = vunpack.c.l.b16 %v912
      %v1256 = vunpack.c.l.b16 %v913
      %v1257 = vunpack.c.l.b16 %v914
      %v1258 = vunpack.c.l.b16 %v915
      %v1259 = vpack.c.b16 %v1224, %v1223
      %v1260 = vpack.c.b16 %v1226, %v1225
      %v1261 = vpack.c.b16 %v1228, %v1227
      %v1262 = vpack.c.b16 %v1230, %v1229
      %v1263 = vpack.c.b16 %v1232, %v1231
      %v1264 = vpack.c.b16 %v1234, %v1233
      %v1265 = vpack.c.b16 %v1236, %v1235
      %v1266 = vpack.c.b16 %v1238, %v1237
      %v1267 = vpack.c.b16 %v1240, %v1239
      %v1268 = vpack.c.b16 %v1242, %v1241
      %v1269 = vpack.c.b16 %v1244, %v1243
      %v1270 = vpack.c.b16 %v1246, %v1245
      %v1271 = vpack.c.b16 %v1248, %v1247
      %v1272 = vpack.c.b16 %v1250, %v1249
      %v1273 = vpack.c.b16 %v1252, %v1251
      %v1274 = vpack.c.b16 %v1254, %v1253
      %v1275 = vpack.c.b16 %v1256, %v1255
      %v1276 = vpack.c.b16 %v1258, %v1257
      %v1296 = vsel %vm622, %v1171, 0
      %v1299 = vsel %vm622, %v1174, 0
      %v1302 = vsel %vm622, %v1177, 0
      %v1305 = vsel %vm622, %v1180, 0
      %1307 = vmatprep.subr.bf16.mxu0 0
      %1308 = vmatpush1.bf16.msra.mxu0 %v1259
      %1309 = vmatprep.subr.bf16.mxu0 0
      %1310 = vmatpush1.bf16.msra.mxu0 %v1260
      %1311 = vmatprep.subr.bf16.mxu0 0
      %1312 = vmatpush1.bf16.msra.mxu0 %v1261
      %1313 = vmatprep.subr.bf16.mxu0 0
      %1314 = vmatpush1.bf16.msra.mxu0 %v1262
      %1315 = vmatprep.subr.bf16.mxu0 0
      %1316 = vmatpush1.bf16.msra.mxu0 %v1263
      %1317 = vmatprep.subr.bf16.mxu0 0
      %1318 = vmatpush1.bf16.msra.mxu0 %v1264
      %1319 = vmatprep.subr.bf16.mxu0 0
      %1320 = vmatpush1.bf16.msra.mxu0 %v1265
      %1321 = vmatprep.subr.bf16.mxu0 0
      %1322 = vmatpush1.bf16.msra.mxu0 %v1266
      %1323 = vmatprep.subr.bf16.mxu0 0
      %1324 = vmatpush1.bf16.msra.mxu0 %v1267
      %1325 = vmatprep.subr.bf16.mxu0 0
      %1326 = vmatpush1.bf16.msra.mxu0 %v1268
      %1327 = vmatprep.subr.bf16.mxu0 0
      %1328 = vmatpush1.bf16.msra.mxu0 %v1269
      %1329 = vmatprep.subr.bf16.mxu0 0
      %1330 = vmatpush1.bf16.msra.mxu0 %v1270
      %1331 = vmatprep.subr.bf16.mxu0 0
      %1332 = vmatpush1.bf16.msra.mxu0 %v1271
      %1333 = vmatprep.subr.bf16.mxu0 0
      %1334 = vmatpush1.bf16.msra.mxu0 %v1272
      %1335 = vmatprep.subr.bf16.mxu0 0
      %1336 = vmatpush1.bf16.msra.mxu0 %v1273
      %1337 = vmatprep.subr.bf16.mxu0 0
      %1338 = vmatpush1.bf16.msra.mxu0 %v1274
      %1339 = vmatprep.mubr.bf16.mxu0 %v1170
      %1340 = vmatmul.mubr.bf16.gmra.mrb[0].mxu0 %v1169
      %v1341 = vpop.f32.mrb[0].mxu0
      %v1342 = vadd.f32 %v1185, %v1341
      %v1343 = vpop.f32.mrb[0].mxu0
      %v1344 = vpop.f32.mrb[0].mxu0
      %v1345 = vadd.f32 %v1185, %v1344
      %v1346 = vpop.f32.mrb[0].mxu0
      %1347 = vmatprep.mubr.bf16.mxu0 %v1173
      %1348 = vmatmul.mubr.bf16.gmra.mrb[0].mxu0 %v1172
      %v1349 = vpop.f32.mrb[0].mxu0
      %v1350 = vadd.f32 %v1185, %v1349
      %v1351 = vpop.f32.mrb[0].mxu0
      %v1352 = vpop.f32.mrb[0].mxu0
      %v1353 = vadd.f32 %v1185, %v1352
      %v1354 = vpop.f32.mrb[0].mxu0
      %1355 = vmatprep.mubr.bf16.mxu0 %v1176
      %1356 = vmatmul.mubr.bf16.gmra.mrb[0].mxu0 %v1175
      %v1357 = vpop.f32.mrb[0].mxu0
      %v1358 = vadd.f32 %v1185, %v1357
      %v1359 = vpop.f32.mrb[0].mxu0
      %v1360 = vpop.f32.mrb[0].mxu0
      %v1361 = vadd.f32 %v1185, %v1360
      %v1362 = vpop.f32.mrb[0].mxu0
      %1363 = vmatprep.mubr.bf16.mxu0 %v1179
      %1364 = vmatmul.mubr.bf16.gmra.mrb[0].mxu0 %v1178
      %v1365 = vpop.f32.mrb[0].mxu0
      %v1366 = vadd.f32 %v1185, %v1365
      %v1367 = vpop.f32.mrb[0].mxu0
      %v1368 = vpop.f32.mrb[0].mxu0
      %v1369 = vadd.f32 %v1185, %v1368
      %v1370 = vpop.f32.mrb[0].mxu0
      %1371 = vdwg.mxu0
      %1372 = vmatprep.subr.bf16.mxu0 0
      %1373 = vmatpush1.bf16.msra.mxu0 %v1275
      %1374 = vmatprep.subr.bf16.mxu0 0
      %1375 = vmatpush1.bf16.msra.mxu0 %v1276
      %1376 = vmatprep.subr.bf16.mxu0 0
      %1377 = vmatpush1.bf16.msra.mxu0 0
      %1378 = vmatprep.subr.bf16.mxu0 0
      %1379 = vmatpush1.bf16.msra.mxu0 0
      %1380 = vmatprep.subr.bf16.mxu0 0
      %1381 = vmatpush1.bf16.msra.mxu0 0
      %1382 = vmatprep.subr.bf16.mxu0 0
      %1383 = vmatpush1.bf16.msra.mxu0 0
      %1384 = vmatprep.subr.bf16.mxu0 0
      %1385 = vmatpush1.bf16.msra.mxu0 0
      %1386 = vmatprep.subr.bf16.mxu0 0
      %1387 = vmatpush1.bf16.msra.mxu0 0
      %1388 = vmatprep.subr.bf16.mxu0 0
      %1389 = vmatpush1.bf16.msra.mxu0 0
      %1390 = vmatprep.subr.bf16.mxu0 0
      %1391 = vmatpush1.bf16.msra.mxu0 0
      %1392 = vmatprep.subr.bf16.mxu0 0
      %1393 = vmatpush1.bf16.msra.mxu0 0
      %1394 = vmatprep.subr.bf16.mxu0 0
      %1395 = vmatpush1.bf16.msra.mxu0 0
      %1396 = vmatprep.subr.bf16.mxu0 0
      %1397 = vmatpush1.bf16.msra.mxu0 0
      %1398 = vmatprep.subr.bf16.mxu0 0
      %1399 = vmatpush1.bf16.msra.mxu0 0
      %1400 = vmatprep.subr.bf16.mxu0 0
      %1401 = vmatpush1.bf16.msra.mxu0 0
      %1402 = vmatprep.subr.bf16.mxu0 0
      %1403 = vmatpush1.bf16.msra.mxu0 0
      %1404 = vmatprep.mubr.bf16.mxu0 0
      %1405 = vmatmul.mubr.bf16.gmra.mrb[0].mxu0 %v1296
      %v1406 = vpop.f32.mrb[0].mxu0
      %v1407 = vadd.f32 %v1342, %v1406
      %v1408 = vpop.f32.mrb[0].mxu0
      %v1409 = vpop.f32.mrb[0].mxu0
      %v1410 = vadd.f32 %v1345, %v1409
      %v1411 = vpop.f32.mrb[0].mxu0
      %1412 = vmatprep.mubr.bf16.mxu0 0
      %1413 = vmatmul.mubr.bf16.gmra.mrb[0].mxu0 %v1299
      %v1414 = vpop.f32.mrb[0].mxu0
      %v1415 = vadd.f32 %v1350, %v1414
      %v1416 = vpop.f32.mrb[0].mxu0
      %v1417 = vpop.f32.mrb[0].mxu0
      %v1418 = vadd.f32 %v1353, %v1417
      %v1419 = vpop.f32.mrb[0].mxu0
      %1420 = vmatprep.mubr.bf16.mxu0 0
      %1421 = vmatmul.mubr.bf16.gmra.mrb[0].mxu0 %v1302
      %v1422 = vpop.f32.mrb[0].mxu0
      %v1423 = vadd.f32 %v1358, %v1422
      %v1424 = vpop.f32.mrb[0].mxu0
      %v1425 = vpop.f32.mrb[0].mxu0
      %v1426 = vadd.f32 %v1361, %v1425
      %v1427 = vpop.f32.mrb[0].mxu0
      %1428 = vmatprep.mubr.bf16.mxu0 0
      %1429 = vmatmul.mubr.bf16.gmra.mrb[0].mxu0 %v1305
      %v1430 = vpop.f32.mrb[0].mxu0
      %v1431 = vadd.f32 %v1366, %v1430
      %v1432 = vpop.f32.mrb[0].mxu0
      %v1433 = vpop.f32.mrb[0].mxu0
      %v1434 = vadd.f32 %v1369, %v1433
      %v1435 = vpop.f32.mrb[0].mxu0
      %1436 = vdwg.mxu0
      %v1437 = vmax.f32 %v1407, 0.0
      %v1438 = vmax.f32 %v1410, 0.0
      %v1439 = vmax.f32 %v1415, 0.0
      %v1440 = vmax.f32 %v1418, 0.0
      %v1441 = vmax.f32 %v1423, 0.0
      %v1442 = vmax.f32 %v1426, 0.0
      %v1443 = vmax.f32 %v1431, 0.0
      %v1444 = vmax.f32 %v1434, 0.0
      %v1445 = vpack.c.bf16 %v1438, %v1437
      %v1446 = vpack.c.bf16 %v1440, %v1439
      %v1447 = vpack.c.bf16 %v1442, %v1441
      %v1448 = vpack.c.bf16 %v1444, %v1443
      %v1449 = vld [vmem:[%s6] sm:$0xf]
      %v1450 = vld [vmem:[%s6 + $0x4] sm:$0xf]
      %v1451 = vld [vmem:[%s6 + $0x8] sm:$0xf]
      %v1452 = vld [vmem:[%s6 + $0xc] sm:$0xf]
      %v1453 = vld [vmem:[%s7] sm:$0x1]
      %v1455 = vlaneseq
      %v1456 = vshrl.u32 %v1455, 7
      %v1457 = vsub.s32 0, %v1456
      %v1458 = vrot.slane %v1453, %v1457
      %v1464 = vunpack.c.l.b16 %v1449
      %v1465 = vunpack.c.l.b16 %v1450
      %v1466 = vunpack.c.l.b16 %v1451
      %v1467 = vunpack.c.l.b16 %v1452
      %v1468 = vpack.c.b16 %v1465, %v1464
      %v1469 = vpack.c.b16 %v1467, %v1466
      %v1473 = vsel %vm622, %v1445, 0
      %v1476 = vsel %vm622, %v1446, 0
      %v1479 = vsel %vm622, %v1447, 0
      %v1482 = vsel %vm622, %v1448, 0
      %1484 = vmatprep.subr.bf16.mxu0 0
      %1485 = vmatpush1.bf16.msra.mxu0 %v1468
      %1486 = vmatprep.subr.bf16.mxu0 0
      %1487 = vmatpush1.bf16.msra.mxu0 %v1469
      %1488 = vmatprep.subr.bf16.mxu0 0
      %1489 = vmatpush1.bf16.msra.mxu0 0
      %1490 = vmatprep.subr.bf16.mxu0 0
      %1491 = vmatpush1.bf16.msra.mxu0 0
      %1492 = vmatprep.subr.bf16.mxu0 0
      %1493 = vmatpush1.bf16.msra.mxu0 0
      %1494 = vmatprep.subr.bf16.mxu0 0
      %1495 = vmatpush1.bf16.msra.mxu0 0
      %1496 = vmatprep.subr.bf16.mxu0 0
      %1497 = vmatpush1.bf16.msra.mxu0 0
      %1498 = vmatprep.subr.bf16.mxu0 0
      %1499 = vmatpush1.bf16.msra.mxu0 0
      %1500 = vmatprep.subr.bf16.mxu0 0
      %1501 = vmatpush1.bf16.msra.mxu0 0
      %1502 = vmatprep.subr.bf16.mxu0 0
      %1503 = vmatpush1.bf16.msra.mxu0 0
      %1504 = vmatprep.subr.bf16.mxu0 0
      %1505 = vmatpush1.bf16.msra.mxu0 0
      %1506 = vmatprep.subr.bf16.mxu0 0
      %1507 = vmatpush1.bf16.msra.mxu0 0
      %1508 = vmatprep.subr.bf16.mxu0 0
      %1509 = vmatpush1.bf16.msra.mxu0 0
      %1510 = vmatprep.subr.bf16.mxu0 0
      %1511 = vmatpush1.bf16.msra.mxu0 0
      %1512 = vmatprep.subr.bf16.mxu0 0
      %1513 = vmatpush1.bf16.msra.mxu0 0
      %1514 = vmatprep.subr.bf16.mxu0 0
      %1515 = vmatpush1.bf16.msra.mxu0 0
      %1516 = vmatprep.mubr.bf16.mxu0 0
      %1517 = vmatmul.mubr.bf16.gmra.mrb[0].mxu0 %v1473
      %v1518 = vpop.f32.mrb[0].mxu0
      %v1519 = vadd.f32 %v1458, %v1518
      %v1520 = vpop.f32.mrb[0].mxu0
      %v1521 = vpop.f32.mrb[0].mxu0
      %v1522 = vadd.f32 %v1458, %v1521
      %v1523 = vpop.f32.mrb[0].mxu0
      %1524 = vmatprep.mubr.bf16.mxu0 0
      %1525 = vmatmul.mubr.bf16.gmra.mrb[0].mxu0 %v1476
      %v1526 = vpop.f32.mrb[0].mxu0
      %v1527 = vadd.f32 %v1458, %v1526
      %v1528 = vpop.f32.mrb[0].mxu0
      %v1529 = vpop.f32.mrb[0].mxu0
      %v1530 = vadd.f32 %v1458, %v1529
      %v1531 = vpop.f32.mrb[0].mxu0
      %1532 = vmatprep.mubr.bf16.mxu0 0
      %1533 = vmatmul.mubr.bf16.gmra.mrb[0].mxu0 %v1479
      %v1534 = vpop.f32.mrb[0].mxu0
      %v1535 = vadd.f32 %v1458, %v1534
      %v1536 = vpop.f32.mrb[0].mxu0
      %v1537 = vpop.f32.mrb[0].mxu0
      %v1538 = vadd.f32 %v1458, %v1537
      %v1539 = vpop.f32.mrb[0].mxu0
      %1540 = vmatprep.mubr.bf16.mxu0 0
      %1541 = vmatmul.mubr.bf16.gmra.mrb[0].mxu0 %v1482
      %v1542 = vpop.f32.mrb[0].mxu0
      %v1543 = vadd.f32 %v1458, %v1542
      %v1544 = vpop.f32.mrb[0].mxu0
      %v1545 = vpop.f32.mrb[0].mxu0
      %v1546 = vadd.f32 %v1458, %v1545
      %v1547 = vpop.f32.mrb[0].mxu0
      %1548 = vdwg.mxu0
      %v1549 = vsel %vm622, %v1519, -inf
      %v1550 = vsel %vm622, %v1522, -inf
      %v1551 = vsel %vm622, %v1527, -inf
      %v1552 = vsel %vm622, %v1530, -inf
      %v1553 = vsel %vm622, %v1535, -inf
      %v1554 = vmax.f32 %v1549, %v1553
      %v1555 = vsel %vm622, %v1538, -inf
      %v1556 = vmax.f32 %v1550, %v1555
      %v1557 = vsel %vm622, %v1543, -inf
      %v1558 = vmax.f32 %v1551, %v1557
      %v1559 = vsel %vm622, %v1546, -inf
      %v1560 = vmax.f32 %v1552, %v1559
      %v1561 = vmax.f32 %v1554, %v1556
      %v1562 = vmax.f32 %v1558, %v1560
      %v1563 = vmax.f32 %v1561, %v1562
      %v1564 = vsub.f32 %v1519, %v1563
      %v1565 = vsub.f32 %v1522, %v1563
      %v1566 = vsub.f32 %v1527, %v1563
      %v1567 = vsub.f32 %v1530, %v1563
      %v1568 = vsub.f32 %v1535, %v1563
      %v1569 = vsub.f32 %v1538, %v1563
      %v1570 = vsub.f32 %v1543, %v1563
      %v1571 = vsub.f32 %v1546, %v1563
      %v1572 = vmul.f32 %v1564, 1.442695
      %v1573 = vpow.pop %v1572
      %v1574 = vmul.f32 %v1565, 1.442695
      %v1575 = vpow.pop %v1574
      %v1576 = vmul.f32 %v1566, 1.442695
      %v1577 = vpow.pop %v1576
      %v1578 = vmul.f32 %v1567, 1.442695
      %v1579 = vpow.pop %v1578
      %v1580 = vmul.f32 %v1568, 1.442695
      %v1581 = vpow.pop %v1580
      %v1582 = vmul.f32 %v1569, 1.442695
      %v1583 = vpow.pop %v1582
      %v1584 = vmul.f32 %v1570, 1.442695
      %v1585 = vpow.pop %v1584
      %v1586 = vmul.f32 %v1571, 1.442695
      %v1587 = vpow.pop %v1586
      %v1588 = vsel %vm622, %v1573, 0.0
      %v1589 = vsel %vm622, %v1575, 0.0
      %v1590 = vadd.f32 %v1588, %v1589
      %v1591 = vsel %vm622, %v1577, 0.0
      %v1592 = vadd.f32 %v1590, %v1591
      %v1593 = vsel %vm622, %v1579, 0.0
      %v1594 = vadd.f32 %v1592, %v1593
      %v1595 = vsel %vm622, %v1581, 0.0
      %v1596 = vadd.f32 %v1594, %v1595
      %v1597 = vsel %vm622, %v1583, 0.0
      %v1598 = vadd.f32 %v1596, %v1597
      %v1599 = vsel %vm622, %v1585, 0.0
      %v1600 = vadd.f32 %v1598, %v1599
      %v1601 = vsel %vm622, %v1587, 0.0
      %v1602 = vadd.f32 %v1600, %v1601
      %v1603 = vrcp.pop %v1602
      %v1604 = vmul.f32 %v1573, %v1603
      %v1605 = vmul.f32 %v1575, %v1603
      %v1606 = vmul.f32 %v1577, %v1603
      %v1607 = vmul.f32 %v1579, %v1603
      %v1608 = vmul.f32 %v1581, %v1603
      %v1609 = vmul.f32 %v1583, %v1603
      %v1610 = vmul.f32 %v1585, %v1603
      %v1611 = vmul.f32 %v1587, %v1603
      %vm1612 = vcmask 523520
      %v1613 = vsel %vm1612, %v1519, -inf
      %1614 = vmax.xlane.f32.xlu0 %v1613
      %v1615 = vpop.xlane.xlu0 %1614
      %v1616 = vsel %vm1612, %v1522, -inf
      %1617 = vmax.xlane.f32.xlu0 %v1616
      %v1618 = vpop.xlane.xlu0 %1617
      %v1619 = vsel %vm1612, %v1527, -inf
      %1620 = vmax.xlane.f32.xlu0 %v1619
      %v1621 = vpop.xlane.xlu0 %1620
      %v1622 = vsel %vm1612, %v1530, -inf
      %1623 = vmax.xlane.f32.xlu0 %v1622
      %v1624 = vpop.xlane.xlu0 %1623
      %v1625 = vsel %vm1612, %v1535, -inf
      %1626 = vmax.xlane.f32.xlu0 %v1625
      %v1627 = vpop.xlane.xlu0 %1626
      %v1628 = vsel %vm1612, %v1538, -inf
      %1629 = vmax.xlane.f32.xlu0 %v1628
      %v1630 = vpop.xlane.xlu0 %1629
      %v1631 = vsel %vm1612, %v1543, -inf
      %1632 = vmax.xlane.f32.xlu0 %v1631
      %v1633 = vpop.xlane.xlu0 %1632
      %v1634 = vsel %vm1612, %v1546, -inf
      %1635 = vmax.xlane.f32.xlu0 %v1634
      %v1636 = vpop.xlane.xlu0 %1635
      %v1637 = vsub.f32 %v1519, %v1615
      %v1638 = vsub.f32 %v1522, %v1618
      %v1639 = vsub.f32 %v1527, %v1621
      %v1640 = vsub.f32 %v1530, %v1624
      %v1641 = vsub.f32 %v1535, %v1627
      %v1642 = vsub.f32 %v1538, %v1630
      %v1643 = vsub.f32 %v1543, %v1633
      %v1644 = vsub.f32 %v1546, %v1636
      %v1645 = vmul.f32 %v1637, 1.442695
      %v1646 = vpow.pop %v1645
      %v1647 = vmul.f32 %v1638, 1.442695
      %v1648 = vpow.pop %v1647
      %v1649 = vmul.f32 %v1639, 1.442695
      %v1650 = vpow.pop %v1649
      %v1651 = vmul.f32 %v1640, 1.442695
      %v1652 = vpow.pop %v1651
      %v1653 = vmul.f32 %v1641, 1.442695
      %v1654 = vpow.pop %v1653
      %v1655 = vmul.f32 %v1642, 1.442695
      %v1656 = vpow.pop %v1655
      %v1657 = vmul.f32 %v1643, 1.442695
      %v1658 = vpow.pop %v1657
      %v1659 = vmul.f32 %v1644, 1.442695
      %v1660 = vpow.pop %v1659
      %1669 = vrot.lane.b32.xlu0 %v1646, 96
      %v1670 = vpop.permute.xlu0 %1669
      %1671 = vrot.lane.b32.xlu0 %v1648, 96
      %v1672 = vpop.permute.xlu0 %1671
      %1673 = vrot.lane.b32.xlu0 %v1650, 96
      %v1674 = vpop.permute.xlu0 %1673
      %1675 = vrot.lane.b32.xlu0 %v1652, 96
      %v1676 = vpop.permute.xlu0 %1675
      %1677 = vrot.lane.b32.xlu0 %v1654, 96
      %v1678 = vpop.permute.xlu0 %1677
      %1679 = vrot.lane.b32.xlu0 %v1656, 96
      %v1680 = vpop.permute.xlu0 %1679
      %1681 = vrot.lane.b32.xlu0 %v1658, 96
      %v1682 = vpop.permute.xlu0 %1681
      %1683 = vrot.lane.b32.xlu0 %v1660, 96
      %v1684 = vpop.permute.xlu0 %1683
      %v1693 = vsel %vm622, %v1670, 0.0
      %1694 = vadd.xlane.f32.xlu0 %v1693
      %v1695 = vpop.xlane.xlu0 %1694
      %v1696 = vsel %vm622, %v1672, 0.0
      %1697 = vadd.xlane.f32.xlu0 %v1696
      %v1698 = vpop.xlane.xlu0 %1697
      %v1699 = vsel %vm622, %v1674, 0.0
      %1700 = vadd.xlane.f32.xlu0 %v1699
      %v1701 = vpop.xlane.xlu0 %1700
      %v1702 = vsel %vm622, %v1676, 0.0
      %1703 = vadd.xlane.f32.xlu0 %v1702
      %v1704 = vpop.xlane.xlu0 %1703
      %v1705 = vsel %vm622, %v1678, 0.0
      %1706 = vadd.xlane.f32.xlu0 %v1705
      %v1707 = vpop.xlane.xlu0 %1706
      %v1708 = vsel %vm622, %v1680, 0.0
      %1709 = vadd.xlane.f32.xlu0 %v1708
      %v1710 = vpop.xlane.xlu0 %1709
      %v1711 = vsel %vm622, %v1682, 0.0
      %1712 = vadd.xlane.f32.xlu0 %v1711
      %v1713 = vpop.xlane.xlu0 %1712
      %v1714 = vsel %vm622, %v1684, 0.0
      %1715 = vadd.xlane.f32.xlu0 %v1714
      %v1716 = vpop.xlane.xlu0 %1715
      %v1717 = vrcp.pop %v1695
      %v1718 = vrcp.pop %v1698
      %v1719 = vrcp.pop %v1701
      %v1720 = vrcp.pop %v1704
      %v1721 = vrcp.pop %v1707
      %v1722 = vrcp.pop %v1710
      %v1723 = vrcp.pop %v1713
      %v1724 = vrcp.pop %v1716
      %v1725 = vmul.f32 %v1646, %v1717
      %v1726 = vmul.f32 %v1648, %v1718
      %v1727 = vmul.f32 %v1650, %v1719
      %v1728 = vmul.f32 %v1652, %v1720
      %v1729 = vmul.f32 %v1654, %v1721
      %v1730 = vmul.f32 %v1656, %v1722
      %v1731 = vmul.f32 %v1658, %v1723
      %v1732 = vmul.f32 %v1660, %v1724
      %1741 = vrot.lane.b32.xlu0 %v1519, 64
      %v1742 = vpop.permute.xlu0 %1741
      %1743 = vrot.lane.b32.xlu0 %v1522, 64
      %v1744 = vpop.permute.xlu0 %1743
      %1745 = vrot.lane.b32.xlu0 %v1527, 64
      %v1746 = vpop.permute.xlu0 %1745
      %1747 = vrot.lane.b32.xlu0 %v1530, 64
      %v1748 = vpop.permute.xlu0 %1747
      %1749 = vrot.lane.b32.xlu0 %v1535, 64
      %v1750 = vpop.permute.xlu0 %1749
      %1751 = vrot.lane.b32.xlu0 %v1538, 64
      %v1752 = vpop.permute.xlu0 %1751
      %1753 = vrot.lane.b32.xlu0 %v1543, 64
      %v1754 = vpop.permute.xlu0 %1753
      %1755 = vrot.lane.b32.xlu0 %v1546, 64
      %v1756 = vpop.permute.xlu0 %1755
      %v1765 = vmul.f32 %v1604, %v1742
      %v1766 = vmul.f32 %v1605, %v1744
      %v1767 = vmul.f32 %v1606, %v1746
      %v1768 = vmul.f32 %v1607, %v1748
      %v1769 = vmul.f32 %v1608, %v1750
      %v1770 = vmul.f32 %v1609, %v1752
      %v1771 = vmul.f32 %v1610, %v1754
      %v1772 = vmul.f32 %v1611, %v1756
      %1781 = vrot.lane.b32.xlu0 %v1725, 96
      %v1782 = vpop.permute.xlu0 %1781
      %1783 = vrot.lane.b32.xlu0 %v1726, 96
      %v1784 = vpop.permute.xlu0 %1783
      %1785 = vrot.lane.b32.xlu0 %v1727, 96
      %v1786 = vpop.permute.xlu0 %1785
      %1787 = vrot.lane.b32.xlu0 %v1728, 96
      %v1788 = vpop.permute.xlu0 %1787
      %1789 = vrot.lane.b32.xlu0 %v1729, 96
      %v1790 = vpop.permute.xlu0 %1789
      %1791 = vrot.lane.b32.xlu0 %v1730, 96
      %v1792 = vpop.permute.xlu0 %1791
      %1793 = vrot.lane.b32.xlu0 %v1731, 96
      %v1794 = vpop.permute.xlu0 %1793
      %1795 = vrot.lane.b32.xlu0 %v1732, 96
      %v1796 = vpop.permute.xlu0 %1795
      %v1805 = vmul.f32 %v1765, %v1782
      %v1806 = vmul.f32 %v1766, %v1784
      %v1807 = vmul.f32 %v1767, %v1786
      %v1808 = vmul.f32 %v1768, %v1788
      %v1809 = vmul.f32 %v1769, %v1790
      %v1810 = vmul.f32 %v1770, %v1792
      %v1811 = vmul.f32 %v1771, %v1794
      %v1812 = vmul.f32 %v1772, %v1796
      %v1813 = vld [vmem:[%s8] sm:$0x1]
      %v1815 = vlaneseq
      %v1816 = vshrl.u32 %v1815, 7
      %v1817 = vsub.s32 0, %v1816
      %v1818 = vrot.slane %v1813, %v1817
      %v1820 = vmul.f32 %v1805, %v1818
      %v1821 = vmul.f32 %v1806, %v1818
      %v1822 = vmul.f32 %v1807, %v1818
      %v1823 = vmul.f32 %v1808, %v1818
      %v1824 = vmul.f32 %v1809, %v1818
      %v1825 = vmul.f32 %v1810, %v1818
      %v1826 = vmul.f32 %v1811, %v1818
      %v1827 = vmul.f32 %v1812, %v1818
      %v1828 = vpack.c.bf16 %v1821, %v1820
      %v1829 = vpack.c.bf16 %v1823, %v1822
      %v1830 = vpack.c.bf16 %v1825, %v1824
      %v1831 = vpack.c.bf16 %v1827, %v1826
      %v1832 = vld [vmem:[%s9] sm:$0xf]
      %v1833 = vld [vmem:[%s9 + $0x4] sm:$0xf]
      %v1834 = vld [vmem:[%s9 + $0x8] sm:$0xf]
      %v1835 = vld [vmem:[%s9 + $0xc] sm:$0xf]
      %v1836 = vld [vmem:[%s10] sm:$0x1]
      %v1838 = vlaneseq
      %v1839 = vshrl.u32 %v1838, 7
      %v1840 = vsub.s32 0, %v1839
      %v1841 = vrot.slane %v1836, %v1840
      %v1847 = vunpack.c.l.b16 %v1832
      %v1848 = vunpack.c.l.b16 %v1833
      %v1849 = vunpack.c.l.b16 %v1834
      %v1850 = vunpack.c.l.b16 %v1835
      %v1851 = vpack.c.b16 %v1848, %v1847
      %v1852 = vpack.c.b16 %v1850, %v1849
      %v1856 = vsel %vm622, %v1828, 0
      %v1859 = vsel %vm622, %v1829, 0
      %v1862 = vsel %vm622, %v1830, 0
      %v1865 = vsel %vm622, %v1831, 0
      %1867 = vmatprep.subr.bf16.mxu0 0
      %1868 = vmatpush1.bf16.msra.mxu0 %v1851
      %1869 = vmatprep.subr.bf16.mxu0 0
      %1870 = vmatpush1.bf16.msra.mxu0 %v1852
      %1871 = vmatprep.subr.bf16.mxu0 0
      %1872 = vmatpush1.bf16.msra.mxu0 0
      %1873 = vmatprep.subr.bf16.mxu0 0
      %1874 = vmatpush1.bf16.msra.mxu0 0
      %1875 = vmatprep.subr.bf16.mxu0 0
      %1876 = vmatpush1.bf16.msra.mxu0 0
      %1877 = vmatprep.subr.bf16.mxu0 0
      %1878 = vmatpush1.bf16.msra.mxu0 0
      %1879 = vmatprep.subr.bf16.mxu0 0
      %1880 = vmatpush1.bf16.msra.mxu0 0
      %1881 = vmatprep.subr.bf16.mxu0 0
      %1882 = vmatpush1.bf16.msra.mxu0 0
      %1883 = vmatprep.subr.bf16.mxu0 0
      %1884 = vmatpush1.bf16.msra.mxu0 0
      %1885 = vmatprep.subr.bf16.mxu0 0
      %1886 = vmatpush1.bf16.msra.mxu0 0
      %1887 = vmatprep.subr.bf16.mxu0 0
      %1888 = vmatpush1.bf16.msra.mxu0 0
      %1889 = vmatprep.subr.bf16.mxu0 0
      %1890 = vmatpush1.bf16.msra.mxu0 0
      %1891 = vmatprep.subr.bf16.mxu0 0
      %1892 = vmatpush1.bf16.msra.mxu0 0
      %1893 = vmatprep.subr.bf16.mxu0 0
      %1894 = vmatpush1.bf16.msra.mxu0 0
      %1895 = vmatprep.subr.bf16.mxu0 0
      %1896 = vmatpush1.bf16.msra.mxu0 0
      %1897 = vmatprep.subr.bf16.mxu0 0
      %1898 = vmatpush1.bf16.msra.mxu0 0
      %1899 = vmatprep.mubr.bf16.mxu0 0
      %1900 = vmatmul.mubr.bf16.gmra.mrb[0].mxu0 %v1856
      %v1901 = vpop.f32.mrb[0].mxu0
      %v1902 = vadd.f32 %v1841, %v1901
      %v1903 = vpop.f32.mrb[0].mxu0
      %v1904 = vpop.f32.mrb[0].mxu0
      %v1905 = vadd.f32 %v1841, %v1904
      %v1906 = vpop.f32.mrb[0].mxu0
      %1907 = vmatprep.mubr.bf16.mxu0 0
      %1908 = vmatmul.mubr.bf16.gmra.mrb[0].mxu0 %v1859
      %v1909 = vpop.f32.mrb[0].mxu0
      %v1910 = vadd.f32 %v1841, %v1909
      %v1911 = vpop.f32.mrb[0].mxu0
      %v1912 = vpop.f32.mrb[0].mxu0
      %v1913 = vadd.f32 %v1841, %v1912
      %v1914 = vpop.f32.mrb[0].mxu0
      %1915 = vmatprep.mubr.bf16.mxu0 0
      %1916 = vmatmul.mubr.bf16.gmra.mrb[0].mxu0 %v1862
      %v1917 = vpop.f32.mrb[0].mxu0
      %v1918 = vadd.f32 %v1841, %v1917
      %v1919 = vpop.f32.mrb[0].mxu0
      %v1920 = vpop.f32.mrb[0].mxu0
      %v1921 = vadd.f32 %v1841, %v1920
      %v1922 = vpop.f32.mrb[0].mxu0
      %1923 = vmatprep.mubr.bf16.mxu0 0
      %1924 = vmatmul.mubr.bf16.gmra.mrb[0].mxu0 %v1865
      %v1925 = vpop.f32.mrb[0].mxu0
      %v1926 = vadd.f32 %v1841, %v1925
      %v1927 = vpop.f32.mrb[0].mxu0
      %v1928 = vpop.f32.mrb[0].mxu0
      %v1929 = vadd.f32 %v1841, %v1928
      %v1930 = vpop.f32.mrb[0].mxu0
      %1931 = vdwg.mxu0
      %v1932 = vadd.f32 %v604, %v1902
      %v1933 = vadd.f32 %v605, %v1905
      %v1934 = vadd.f32 %v606, %v1910
      %v1935 = vadd.f32 %v607, %v1913
      %v1936 = vadd.f32 %v608, %v1918
      %v1937 = vadd.f32 %v609, %v1921
      %v1938 = vadd.f32 %v610, %v1926
      %v1939 = vadd.f32 %v611, %v1929
      %v1940 = vld [vmem:[%s11] sm:$0x1]
      %v1941 = vld [vmem:[%s12] sm:$0x1]
      %v1942 = vsel %vm622, %v1932, 0.0
      %1943 = vadd.xlane.f32.xlu0 %v1942
      %v1944 = vpop.xlane.xlu0 %1943
      %v1945 = vsel %vm622, %v1933, 0.0
      %1946 = vadd.xlane.f32.xlu0 %v1945
      %v1947 = vpop.xlane.xlu0 %1946
      %v1948 = vsel %vm622, %v1934, 0.0
      %1949 = vadd.xlane.f32.xlu0 %v1948
      %v1950 = vpop.xlane.xlu0 %1949
      %v1951 = vsel %vm622, %v1935, 0.0
      %1952 = vadd.xlane.f32.xlu0 %v1951
      %v1953 = vpop.xlane.xlu0 %1952
      %v1954 = vsel %vm622, %v1936, 0.0
      %1955 = vadd.xlane.f32.xlu0 %v1954
      %v1956 = vpop.xlane.xlu0 %1955
      %v1957 = vsel %vm622, %v1937, 0.0
      %1958 = vadd.xlane.f32.xlu0 %v1957
      %v1959 = vpop.xlane.xlu0 %1958
      %v1960 = vsel %vm622, %v1938, 0.0
      %1961 = vadd.xlane.f32.xlu0 %v1960
      %v1962 = vpop.xlane.xlu0 %1961
      %v1963 = vsel %vm622, %v1939, 0.0
      %1964 = vadd.xlane.f32.xlu0 %v1963
      %v1965 = vpop.xlane.xlu0 %1964
      %v1966 = vmul.f32 %v1944, %v647
      %v1967 = vmul.f32 %v1947, %v647
      %v1968 = vmul.f32 %v1950, %v647
      %v1969 = vmul.f32 %v1953, %v647
      %v1970 = vmul.f32 %v1956, %v647
      %v1971 = vmul.f32 %v1959, %v647
      %v1972 = vmul.f32 %v1962, %v647
      %v1973 = vmul.f32 %v1965, %v647
      %v1974 = vsub.f32 %v1932, %v1966
      %v1975 = vsub.f32 %v1933, %v1967
      %v1976 = vsub.f32 %v1934, %v1968
      %v1977 = vsub.f32 %v1935, %v1969
      %v1978 = vsub.f32 %v1936, %v1970
      %v1979 = vsub.f32 %v1937, %v1971
      %v1980 = vsub.f32 %v1938, %v1972
      %v1981 = vsub.f32 %v1939, %v1973
      %v1982 = vmul.f32 %v1974, %v1974
      %v1983 = vmul.f32 %v1975, %v1975
      %v1984 = vmul.f32 %v1976, %v1976
      %v1985 = vmul.f32 %v1977, %v1977
      %v1986 = vmul.f32 %v1978, %v1978
      %v1987 = vmul.f32 %v1979, %v1979
      %v1988 = vmul.f32 %v1980, %v1980
      %v1989 = vmul.f32 %v1981, %v1981
      %v1990 = vsel %vm622, %v1982, 0.0
      %1991 = vadd.xlane.f32.xlu0 %v1990
      %v1992 = vpop.xlane.xlu0 %1991
      %v1993 = vsel %vm622, %v1983, 0.0
      %1994 = vadd.xlane.f32.xlu0 %v1993
      %v1995 = vpop.xlane.xlu0 %1994
      %v1996 = vsel %vm622, %v1984, 0.0
      %1997 = vadd.xlane.f32.xlu0 %v1996
      %v1998 = vpop.xlane.xlu0 %1997
      %v1999 = vsel %vm622, %v1985, 0.0
      %2000 = vadd.xlane.f32.xlu0 %v1999
      %v2001 = vpop.xlane.xlu0 %2000
      %v2002 = vsel %vm622, %v1986, 0.0
      %2003 = vadd.xlane.f32.xlu0 %v2002
      %v2004 = vpop.xlane.xlu0 %2003
      %v2005 = vsel %vm622, %v1987, 0.0
      %2006 = vadd.xlane.f32.xlu0 %v2005
      %v2007 = vpop.xlane.xlu0 %2006
      %v2008 = vsel %vm622, %v1988, 0.0
      %2009 = vadd.xlane.f32.xlu0 %v2008
      %v2010 = vpop.xlane.xlu0 %2009
      %v2011 = vsel %vm622, %v1989, 0.0
      %2012 = vadd.xlane.f32.xlu0 %v2011
      %v2013 = vpop.xlane.xlu0 %2012
      %v2014 = vmul.f32 %v1992, %v647
      %v2015 = vmul.f32 %v1995, %v647
      %v2016 = vmul.f32 %v1998, %v647
      %v2017 = vmul.f32 %v2001, %v647
      %v2018 = vmul.f32 %v2004, %v647
      %v2019 = vmul.f32 %v2007, %v647
      %v2020 = vmul.f32 %v2010, %v647
      %v2021 = vmul.f32 %v2013, %v647
      %v2022 = vadd.f32 %v2014, 1e-05
      %v2023 = vadd.f32 %v2015, 1e-05
      %v2024 = vadd.f32 %v2016, 1e-05
      %v2025 = vadd.f32 %v2017, 1e-05
      %v2026 = vadd.f32 %v2018, 1e-05
      %v2027 = vadd.f32 %v2019, 1e-05
      %v2028 = vadd.f32 %v2020, 1e-05
      %v2029 = vadd.f32 %v2021, 1e-05
      %v2030 = vrsqrt.pop %v2022
      %v2031 = vrsqrt.pop %v2023
      %v2032 = vrsqrt.pop %v2024
      %v2033 = vrsqrt.pop %v2025
      %v2034 = vrsqrt.pop %v2026
      %v2035 = vrsqrt.pop %v2027
      %v2036 = vrsqrt.pop %v2028
      %v2037 = vrsqrt.pop %v2029
      %v2038 = vmul.f32 %v1974, %v2030
      %v2039 = vmul.f32 %v1975, %v2031
      %v2040 = vmul.f32 %v1976, %v2032
      %v2041 = vmul.f32 %v1977, %v2033
      %v2042 = vmul.f32 %v1978, %v2034
      %v2043 = vmul.f32 %v1979, %v2035
      %v2044 = vmul.f32 %v1980, %v2036
      %v2045 = vmul.f32 %v1981, %v2037
      %v2047 = vlaneseq
      %v2048 = vshrl.u32 %v2047, 7
      %v2049 = vsub.s32 0, %v2048
      %v2050 = vrot.slane %v1940, %v2049
      %v2052 = vmul.f32 %v2038, %v2050
      %v2053 = vmul.f32 %v2039, %v2050
      %v2054 = vmul.f32 %v2040, %v2050
      %v2055 = vmul.f32 %v2041, %v2050
      %v2056 = vmul.f32 %v2042, %v2050
      %v2057 = vmul.f32 %v2043, %v2050
      %v2058 = vmul.f32 %v2044, %v2050
      %v2059 = vmul.f32 %v2045, %v2050
      %v2061 = vlaneseq
      %v2062 = vshrl.u32 %v2061, 7
      %v2063 = vsub.s32 0, %v2062
      %v2064 = vrot.slane %v1941, %v2063
      %v2066 = vadd.f32 %v2052, %v2064
      %v2067 = vadd.f32 %v2053, %v2064
      %v2068 = vadd.f32 %v2054, %v2064
      %v2069 = vadd.f32 %v2055, %v2064
      %v2070 = vadd.f32 %v2056, %v2064
      %v2071 = vadd.f32 %v2057, %v2064
      %v2072 = vadd.f32 %v2058, %v2064
      %v2073 = vadd.f32 %v2059, %v2064
      %v2074 = vpack.c.bf16 %v2067, %v2066
      %v2075 = vpack.c.bf16 %v2069, %v2068
      %v2076 = vpack.c.bf16 %v2071, %v2070
      %v2077 = vpack.c.bf16 %v2073, %v2072
      %v2078 = vld [vmem:[%s13] sm:$0xf]
      %v2079 = vld [vmem:[%s13 + $0x4] sm:$0xf]
      %v2080 = vld [vmem:[%s13 + $0x8] sm:$0xf]
      %v2081 = vld [vmem:[%s13 + $0xc] sm:$0xf]
      %v2082 = vld [vmem:[%s14] sm:$0x1]
      %v2084 = vlaneseq
      %v2085 = vshrl.u32 %v2084, 7
      %v2086 = vsub.s32 0, %v2085
      %v2087 = vrot.slane %v2082, %v2086
      %v2093 = vunpack.c.l.b16 %v2078
      %v2094 = vunpack.c.l.b16 %v2079
      %v2095 = vunpack.c.l.b16 %v2080
      %v2096 = vunpack.c.l.b16 %v2081
      %v2097 = vpack.c.b16 %v2094, %v2093
      %v2098 = vpack.c.b16 %v2096, %v2095
      %v2102 = vsel %vm622, %v2074, 0
      %v2105 = vsel %vm622, %v2075, 0
      %v2108 = vsel %vm622, %v2076, 0
      %v2111 = vsel %vm622, %v2077, 0
      %2113 = vmatprep.subr.bf16.mxu0 0
      %2114 = vmatpush1.bf16.msra.mxu0 %v2097
      %2115 = vmatprep.subr.bf16.mxu0 0
      %2116 = vmatpush1.bf16.msra.mxu0 %v2098
      %2117 = vmatprep.subr.bf16.mxu0 0
      %2118 = vmatpush1.bf16.msra.mxu0 0
      %2119 = vmatprep.subr.bf16.mxu0 0
      %2120 = vmatpush1.bf16.msra.mxu0 0
      %2121 = vmatprep.subr.bf16.mxu0 0
      %2122 = vmatpush1.bf16.msra.mxu0 0
      %2123 = vmatprep.subr.bf16.mxu0 0
      %2124 = vmatpush1.bf16.msra.mxu0 0
      %2125 = vmatprep.subr.bf16.mxu0 0
      %2126 = vmatpush1.bf16.msra.mxu0 0
      %2127 = vmatprep.subr.bf16.mxu0 0
      %2128 = vmatpush1.bf16.msra.mxu0 0
      %2129 = vmatprep.subr.bf16.mxu0 0
      %2130 = vmatpush1.bf16.msra.mxu0 0
      %2131 = vmatprep.subr.bf16.mxu0 0
      %2132 = vmatpush1.bf16.msra.mxu0 0
      %2133 = vmatprep.subr.bf16.mxu0 0
      %2134 = vmatpush1.bf16.msra.mxu0 0
      %2135 = vmatprep.subr.bf16.mxu0 0
      %2136 = vmatpush1.bf16.msra.mxu0 0
      %2137 = vmatprep.subr.bf16.mxu0 0
      %2138 = vmatpush1.bf16.msra.mxu0 0
      %2139 = vmatprep.subr.bf16.mxu0 0
      %2140 = vmatpush1.bf16.msra.mxu0 0
      %2141 = vmatprep.subr.bf16.mxu0 0
      %2142 = vmatpush1.bf16.msra.mxu0 0
      %2143 = vmatprep.subr.bf16.mxu0 0
      %2144 = vmatpush1.bf16.msra.mxu0 0
      %2145 = vmatprep.mubr.bf16.mxu0 0
      %2146 = vmatmul.mubr.bf16.gmra.mrb[0].mxu0 %v2102
      %v2147 = vpop.f32.mrb[0].mxu0
      %v2148 = vadd.f32 %v2087, %v2147
      %v2149 = vpop.f32.mrb[0].mxu0
      %v2150 = vpop.f32.mrb[0].mxu0
      %v2151 = vadd.f32 %v2087, %v2150
      %v2152 = vpop.f32.mrb[0].mxu0
      %2153 = vmatprep.mubr.bf16.mxu0 0
      %2154 = vmatmul.mubr.bf16.gmra.mrb[0].mxu0 %v2105
      %v2155 = vpop.f32.mrb[0].mxu0
      %v2156 = vadd.f32 %v2087, %v2155
      %v2157 = vpop.f32.mrb[0].mxu0
      %v2158 = vpop.f32.mrb[0].mxu0
      %v2159 = vadd.f32 %v2087, %v2158
      %v2160 = vpop.f32.mrb[0].mxu0
      %2161 = vmatprep.mubr.bf16.mxu0 0
      %2162 = vmatmul.mubr.bf16.gmra.mrb[0].mxu0 %v2108
      %v2163 = vpop.f32.mrb[0].mxu0
      %v2164 = vadd.f32 %v2087, %v2163
      %v2165 = vpop.f32.mrb[0].mxu0
      %v2166 = vpop.f32.mrb[0].mxu0
      %v2167 = vadd.f32 %v2087, %v2166
      %v2168 = vpop.f32.mrb[0].mxu0
      %2169 = vmatprep.mubr.bf16.mxu0 0
      %2170 = vmatmul.mubr.bf16.gmra.mrb[0].mxu0 %v2111
      %v2171 = vpop.f32.mrb[0].mxu0
      %v2172 = vadd.f32 %v2087, %v2171
      %v2173 = vpop.f32.mrb[0].mxu0
      %v2174 = vpop.f32.mrb[0].mxu0
      %v2175 = vadd.f32 %v2087, %v2174
      %v2176 = vpop.f32.mrb[0].mxu0
      %2177 = vdwg.mxu0
      %v2178 = vld [vmem:[%s15] sm:$0xff]
      %v2179 = vld [vmem:[%s15 + $0x8] sm:$0x1]
      %v2180 = vld [vmem:[%s16] sm:$0x1]
      %v2181 = vld [vmem:[%s17] sm:$0xf]
      %v2182 = vld [vmem:[%s17 + $0x4] sm:$0xf]
      %v2183 = vld [vmem:[%s17 + $0x8] sm:$0xf]
      %v2184 = vld [vmem:[%s17 + $0xc] sm:$0xf]
      %v2185 = vld [vmem:[%s17 + $0x10] sm:$0xf]
      %v2186 = vld [vmem:[%s17 + $0x14] sm:$0xf]
      %v2187 = vld [vmem:[%s17 + $0x18] sm:$0xf]
      %v2188 = vld [vmem:[%s17 + $0x1c] sm:$0xf]
      %v2189 = vld [vmem:[%s17 + $0x20] sm:$0xf]
      %v2190 = vld [vmem:[%s17 + $0x24] sm:$0xf]
      %v2191 = vld [vmem:[%s17 + $0x28] sm:$0xf]
      %v2192 = vld [vmem:[%s17 + $0x2c] sm:$0xf]
      %v2193 = vld [vmem:[%s17 + $0x30] sm:$0xf]
      %v2194 = vld [vmem:[%s17 + $0x34] sm:$0xf]
      %v2195 = vld [vmem:[%s17 + $0x38] sm:$0xf]
      %v2196 = vld [vmem:[%s17 + $0x3c] sm:$0xf]
      %v2197 = vld [vmem:[%s18] sm:$0x1]
      %v2198 = vmul.f32 %v2148, %v759
      %v2199 = vmul.f32 %v2151, %v764
      %v2200 = vmul.f32 %v2156, %v769
      %v2201 = vmul.f32 %v2159, %v774
      %v2202 = vmul.f32 %v2164, %v779
      %v2203 = vmul.f32 %v2167, %v784
      %v2204 = vmul.f32 %v2172, %v789
      %v2205 = vmul.f32 %v2175, %v794
      %v2206 = vmul.f32 %v2148, %v806
      %v2207 = vmul.f32 %v2151, %v810
      %v2208 = vmul.f32 %v2156, %v814
      %v2209 = vmul.f32 %v2159, %v818
      %v2210 = vmul.f32 %v2164, %v822
      %v2211 = vmul.f32 %v2167, %v826
      %v2212 = vmul.f32 %v2172, %v830
      %v2213 = vmul.f32 %v2175, %v834
      %2214 = vst [vmem:[#allocation5] sm:$0xff] 0.0
      %2215 = vst [vmem:[#allocation5 + $0x8] sm:$0xff] 0.0
      %2216 = vst [vmem:[#allocation5 + $0x10] sm:$0xff] %v2148
      %2217 = vst [vmem:[#allocation5 + $0x18] sm:$0xff] %v2151
      %2218 = vst [vmem:[#allocation5 + $0x20] sm:$0xff] %v2156
      %2219 = vst [vmem:[#allocation5 + $0x28] sm:$0xff] %v2159
      %2220 = vst [vmem:[#allocation5 + $0x30] sm:$0xff] %v2164
      %2221 = vst [vmem:[#allocation5 + $0x38] sm:$0xff] %v2167
      %2222 = vst [vmem:[#allocation5 + $0x40] sm:$0xff] %v2172
      %2223 = vst [vmem:[#allocation5 + $0x48] sm:$0xff] %v2175
      %2224 = vst [vmem:[#allocation5 + $0x50] sm:$0xff] 0.0
      %2225 = vst [vmem:[#allocation5 + $0x58] sm:$0xff] 0.0
      %2226 = vst [vmem:[#allocation6] sm:$0xff] 0.0
      %2227 = vst [vmem:[#allocation6 + $0x8] sm:$0xff] 0.0
      %2228 = vst [vmem:[#allocation6 + $0x10] sm:$0xff] %v2198
      %2229 = vst [vmem:[#allocation6 + $0x18] sm:$0xff] %v2199
      %2230 = vst [vmem:[#allocation6 + $0x20] sm:$0xff] %v2200
      %2231 = vst [vmem:[#allocation6 + $0x28] sm:$0xff] %v2201
      %2232 = vst [vmem:[#allocation6 + $0x30] sm:$0xff] %v2202
      %2233 = vst [vmem:[#allocation6 + $0x38] sm:$0xff] %v2203
      %2234 = vst [vmem:[#allocation6 + $0x40] sm:$0xff] %v2204
      %2235 = vst [vmem:[#allocation6 + $0x48] sm:$0xff] %v2205
      %2236 = vst [vmem:[#allocation6 + $0x50] sm:$0xff] 0.0
      %2237 = vst [vmem:[#allocation6 + $0x58] sm:$0xff] 0.0
      %2238 = vst [vmem:[#allocation7] sm:$0xff] 0.0
      %2239 = vst [vmem:[#allocation7 + $0x8] sm:$0xff] 0.0
      %2240 = vst [vmem:[#allocation7 + $0x10] sm:$0xff] %v2206
      %2241 = vst [vmem:[#allocation7 + $0x18] sm:$0xff] %v2207
      %2242 = vst [vmem:[#allocation7 + $0x20] sm:$0xff] %v2208
      %2243 = vst [vmem:[#allocation7 + $0x28] sm:$0xff] %v2209
      %2244 = vst [vmem:[#allocation7 + $0x30] sm:$0xff] %v2210
      %2245 = vst [vmem:[#allocation7 + $0x38] sm:$0xff] %v2211
      %2246 = vst [vmem:[#allocation7 + $0x40] sm:$0xff] %v2212
      %2247 = vst [vmem:[#allocation7 + $0x48] sm:$0xff] %v2213
      %2248 = vst [vmem:[#allocation7 + $0x50] sm:$0xff] 0.0
      %2249 = vst [vmem:[#allocation7 + $0x58] sm:$0xff] 0.0
      %v2250 = vld [vmem:[#allocation6 + $0x7] sm:$0xff]
      %v2251 = vld [vmem:[#allocation6 + $0xf] sm:$0xff]
      %v2252 = vld [vmem:[#allocation6 + $0x17] sm:$0xff]
      %v2253 = vld [vmem:[#allocation6 + $0x1f] sm:$0xff]
      %v2254 = vld [vmem:[#allocation6 + $0x27] sm:$0xff]
      %v2255 = vld [vmem:[#allocation6 + $0x2f] sm:$0xff]
      %v2256 = vld [vmem:[#allocation6 + $0x37] sm:$0xff]
      %v2257 = vld [vmem:[#allocation6 + $0x3f] sm:$0xff]
      %v2258 = vld [vmem:[#allocation5 + $0x8] sm:$0xff]
      %v2259 = vld [vmem:[#allocation5 + $0x10] sm:$0xff]
      %v2260 = vld [vmem:[#allocation5 + $0x18] sm:$0xff]
      %v2261 = vld [vmem:[#allocation5 + $0x20] sm:$0xff]
      %v2262 = vld [vmem:[#allocation5 + $0x28] sm:$0xff]
      %v2263 = vld [vmem:[#allocation5 + $0x30] sm:$0xff]
      %v2264 = vld [vmem:[#allocation5 + $0x38] sm:$0xff]
      %v2265 = vld [vmem:[#allocation5 + $0x40] sm:$0xff]
      %v2266 = vld [vmem:[#allocation7 + $0x9] sm:$0xff]
      %v2267 = vld [vmem:[#allocation7 + $0x11] sm:$0xff]
      %v2268 = vld [vmem:[#allocation7 + $0x19] sm:$0xff]
      %v2269 = vld [vmem:[#allocation7 + $0x21] sm:$0xff]
      %v2270 = vld [vmem:[#allocation7 + $0x29] sm:$0xff]
      %v2271 = vld [vmem:[#allocation7 + $0x31] sm:$0xff]
      %v2272 = vld [vmem:[#allocation7 + $0x39] sm:$0xff]
      %v2273 = vld [vmem:[#allocation7 + $0x41] sm:$0xff]
      %v2274 = vld [vmem:[#allocation6 + $0x47] sm:$0xff]
      %v2275 = vld [vmem:[#allocation5 + $0x48] sm:$0xff]
      %v2276 = vld [vmem:[#allocation7 + $0x49] sm:$0xff]
      %v2277 = vld [vmem:[#allocation6 + $0x4f] sm:$0xff]
      %v2278 = vld [vmem:[#allocation5 + $0x50] sm:$0xff]
      %v2279 = vld [vmem:[#allocation7 + $0x51] sm:$0xff]
      %v2281 = vlaneseq
      %v2282 = vshrl.u32 %v2281, 7
      %v2283 = vsub.s32 0, %v2282
      %v2284 = vrot.slane %v2180, %v2283
      %v2286 = vadd.f32 %v2284, 0.0
      %v2287 = vlaneseq
      %v2288 = vshrl.u32 %v2287, 7
      %v2289 = vsub.s32 0, %v2288
      %v2290 = vrot.slane %v2178, %v2289
      %v2291 = vmul.f32 %v2250, %v2290
      %v2292 = vmul.f32 %v2251, %v2290
      %v2293 = vmul.f32 %v2252, %v2290
      %v2294 = vmul.f32 %v2253, %v2290
      %v2295 = vmul.f32 %v2254, %v2290
      %v2296 = vmul.f32 %v2255, %v2290
      %v2297 = vmul.f32 %v2256, %v2290
      %v2298 = vmul.f32 %v2257, %v2290
      %v2299 = vadd.f32 %v2286, %v2291
      %v2300 = vadd.f32 %v2286, %v2292
      %v2301 = vadd.f32 %v2286, %v2293
      %v2302 = vadd.f32 %v2286, %v2294
      %v2303 = vadd.f32 %v2286, %v2295
      %v2304 = vadd.f32 %v2286, %v2296
      %v2305 = vadd.f32 %v2286, %v2297
      %v2306 = vadd.f32 %v2286, %v2298
      %v2307 = vlaneseq
      %v2308 = vshrl.u32 %v2307, 7
      %v2309 = vsub.s32 1, %v2308
      %v2310 = vrot.slane %v2178, %v2309
      %v2311 = vmul.f32 %v2258, %v2310
      %v2312 = vmul.f32 %v2259, %v2310
      %v2313 = vmul.f32 %v2260, %v2310
      %v2314 = vmul.f32 %v2261, %v2310
      %v2315 = vmul.f32 %v2262, %v2310
      %v2316 = vmul.f32 %v2263, %v2310
      %v2317 = vmul.f32 %v2264, %v2310
      %v2318 = vmul.f32 %v2265, %v2310
      %v2319 = vadd.f32 %v2299, %v2311
      %v2320 = vadd.f32 %v2300, %v2312
      %v2321 = vadd.f32 %v2301, %v2313
      %v2322 = vadd.f32 %v2302, %v2314
      %v2323 = vadd.f32 %v2303, %v2315
      %v2324 = vadd.f32 %v2304, %v2316
      %v2325 = vadd.f32 %v2305, %v2317
      %v2326 = vadd.f32 %v2306, %v2318
      %v2327 = vlaneseq
      %v2328 = vshrl.u32 %v2327, 7
      %v2329 = vsub.s32 2, %v2328
      %v2330 = vrot.slane %v2178, %v2329
      %v2331 = vmul.f32 %v2266, %v2330
      %v2332 = vmul.f32 %v2267, %v2330
      %v2333 = vmul.f32 %v2268, %v2330
      %v2334 = vmul.f32 %v2269, %v2330
      %v2335 = vmul.f32 %v2270, %v2330
      %v2336 = vmul.f32 %v2271, %v2330
      %v2337 = vmul.f32 %v2272, %v2330
      %v2338 = vmul.f32 %v2273, %v2330
      %v2339 = vadd.f32 %v2319, %v2331
      %v2340 = vadd.f32 %v2320, %v2332
      %v2341 = vadd.f32 %v2321, %v2333
      %v2342 = vadd.f32 %v2322, %v2334
      %v2343 = vadd.f32 %v2323, %v2335
      %v2344 = vadd.f32 %v2324, %v2336
      %v2345 = vadd.f32 %v2325, %v2337
      %v2346 = vadd.f32 %v2326, %v2338
      %v2347 = vlaneseq
      %v2348 = vshrl.u32 %v2347, 7
      %v2349 = vsub.s32 3, %v2348
      %v2350 = vrot.slane %v2178, %v2349
      %v2351 = vmul.f32 %v2251, %v2350
      %v2352 = vmul.f32 %v2252, %v2350
      %v2353 = vmul.f32 %v2253, %v2350
      %v2354 = vmul.f32 %v2254, %v2350
      %v2355 = vmul.f32 %v2255, %v2350
      %v2356 = vmul.f32 %v2256, %v2350
      %v2357 = vmul.f32 %v2257, %v2350
      %v2358 = vmul.f32 %v2274, %v2350
      %v2359 = vadd.f32 %v2339, %v2351
      %v2360 = vadd.f32 %v2340, %v2352
      %v2361 = vadd.f32 %v2341, %v2353
      %v2362 = vadd.f32 %v2342, %v2354
      %v2363 = vadd.f32 %v2343, %v2355
      %v2364 = vadd.f32 %v2344, %v2356
      %v2365 = vadd.f32 %v2345, %v2357
      %v2366 = vadd.f32 %v2346, %v2358
      %v2367 = vlaneseq
      %v2368 = vshrl.u32 %v2367, 7
      %v2369 = vsub.s32 4, %v2368
      %v2370 = vrot.slane %v2178, %v2369
      %v2371 = vmul.f32 %v2259, %v2370
      %v2372 = vmul.f32 %v2260, %v2370
      %v2373 = vmul.f32 %v2261, %v2370
      %v2374 = vmul.f32 %v2262, %v2370
      %v2375 = vmul.f32 %v2263, %v2370
      %v2376 = vmul.f32 %v2264, %v2370
      %v2377 = vmul.f32 %v2265, %v2370
      %v2378 = vmul.f32 %v2275, %v2370
      %v2379 = vadd.f32 %v2359, %v2371
      %v2380 = vadd.f32 %v2360, %v2372
      %v2381 = vadd.f32 %v2361, %v2373
      %v2382 = vadd.f32 %v2362, %v2374
      %v2383 = vadd.f32 %v2363, %v2375
      %v2384 = vadd.f32 %v2364, %v2376
      %v2385 = vadd.f32 %v2365, %v2377
      %v2386 = vadd.f32 %v2366, %v2378
      %v2387 = vlaneseq
      %v2388 = vshrl.u32 %v2387, 7
      %v2389 = vsub.s32 5, %v2388
      %v2390 = vrot.slane %v2178, %v2389
      %v2391 = vmul.f32 %v2267, %v2390
      %v2392 = vmul.f32 %v2268, %v2390
      %v2393 = vmul.f32 %v2269, %v2390
      %v2394 = vmul.f32 %v2270, %v2390
      %v2395 = vmul.f32 %v2271, %v2390
      %v2396 = vmul.f32 %v2272, %v2390
      %v2397 = vmul.f32 %v2273, %v2390
      %v2398 = vmul.f32 %v2276, %v2390
      %v2399 = vadd.f32 %v2379, %v2391
      %v2400 = vadd.f32 %v2380, %v2392
      %v2401 = vadd.f32 %v2381, %v2393
      %v2402 = vadd.f32 %v2382, %v2394
      %v2403 = vadd.f32 %v2383, %v2395
      %v2404 = vadd.f32 %v2384, %v2396
      %v2405 = vadd.f32 %v2385, %v2397
      %v2406 = vadd.f32 %v2386, %v2398
      %v2407 = vlaneseq
      %v2408 = vshrl.u32 %v2407, 7
      %v2409 = vsub.s32 6, %v2408
      %v2410 = vrot.slane %v2178, %v2409
      %v2411 = vmul.f32 %v2252, %v2410
      %v2412 = vmul.f32 %v2253, %v2410
      %v2413 = vmul.f32 %v2254, %v2410
      %v2414 = vmul.f32 %v2255, %v2410
      %v2415 = vmul.f32 %v2256, %v2410
      %v2416 = vmul.f32 %v2257, %v2410
      %v2417 = vmul.f32 %v2274, %v2410
      %v2418 = vmul.f32 %v2277, %v2410
      %v2419 = vadd.f32 %v2399, %v2411
      %v2420 = vadd.f32 %v2400, %v2412
      %v2421 = vadd.f32 %v2401, %v2413
      %v2422 = vadd.f32 %v2402, %v2414
      %v2423 = vadd.f32 %v2403, %v2415
      %v2424 = vadd.f32 %v2404, %v2416
      %v2425 = vadd.f32 %v2405, %v2417
      %v2426 = vadd.f32 %v2406, %v2418
      %v2427 = vlaneseq
      %v2428 = vshrl.u32 %v2427, 7
      %v2429 = vsub.s32 7, %v2428
      %v2430 = vrot.slane %v2178, %v2429
      %v2431 = vmul.f32 %v2260, %v2430
      %v2432 = vmul.f32 %v2261, %v2430
      %v2433 = vmul.f32 %v2262, %v2430
      %v2434 = vmul.f32 %v2263, %v2430
      %v2435 = vmul.f32 %v2264, %v2430
      %v2436 = vmul.f32 %v2265, %v2430
      %v2437 = vmul.f32 %v2275, %v2430
      %v2438 = vmul.f32 %v2278, %v2430
      %v2439 = vadd.f32 %v2419, %v2431
      %v2440 = vadd.f32 %v2420, %v2432
      %v2441 = vadd.f32 %v2421, %v2433
      %v2442 = vadd.f32 %v2422, %v2434
      %v2443 = vadd.f32 %v2423, %v2435
      %v2444 = vadd.f32 %v2424, %v2436
      %v2445 = vadd.f32 %v2425, %v2437
      %v2446 = vadd.f32 %v2426, %v2438
      %v2447 = vlaneseq
      %v2448 = vshrl.u32 %v2447, 7
      %v2449 = vsub.s32 0, %v2448
      %v2450 = vrot.slane %v2179, %v2449
      %v2451 = vmul.f32 %v2268, %v2450
      %v2452 = vmul.f32 %v2269, %v2450
      %v2453 = vmul.f32 %v2270, %v2450
      %v2454 = vmul.f32 %v2271, %v2450
      %v2455 = vmul.f32 %v2272, %v2450
      %v2456 = vmul.f32 %v2273, %v2450
      %v2457 = vmul.f32 %v2276, %v2450
      %v2458 = vmul.f32 %v2279, %v2450
      %v2459 = vadd.f32 %v2439, %v2451
      %v2460 = vadd.f32 %v2440, %v2452
      %v2461 = vadd.f32 %v2441, %v2453
      %v2462 = vadd.f32 %v2442, %v2454
      %v2463 = vadd.f32 %v2443, %v2455
      %v2464 = vadd.f32 %v2444, %v2456
      %v2465 = vadd.f32 %v2445, %v2457
      %v2466 = vadd.f32 %v2446, %v2458
      %v2467 = vmul.f32 %v2459, 0.5
      %v2468 = vmul.f32 %v2460, 0.5
      %v2469 = vmul.f32 %v2461, 0.5
      %v2470 = vmul.f32 %v2462, 0.5
      %v2471 = vmul.f32 %v2463, 0.5
      %v2472 = vmul.f32 %v2464, 0.5
      %v2473 = vmul.f32 %v2465, 0.5
      %v2474 = vmul.f32 %v2466, 0.5
      %v2475 = vmul.f32 %v2459, 0.044715
      %v2476 = vmul.f32 %v2460, 0.044715
      %v2477 = vmul.f32 %v2461, 0.044715
      %v2478 = vmul.f32 %v2462, 0.044715
      %v2479 = vmul.f32 %v2463, 0.044715
      %v2480 = vmul.f32 %v2464, 0.044715
      %v2481 = vmul.f32 %v2465, 0.044715
      %v2482 = vmul.f32 %v2466, 0.044715
      %v2483 = vmul.f32 %v2475, %v2459
      %v2484 = vmul.f32 %v2476, %v2460
      %v2485 = vmul.f32 %v2477, %v2461
      %v2486 = vmul.f32 %v2478, %v2462
      %v2487 = vmul.f32 %v2479, %v2463
      %v2488 = vmul.f32 %v2480, %v2464
      %v2489 = vmul.f32 %v2481, %v2465
      %v2490 = vmul.f32 %v2482, %v2466
      %v2491 = vmul.f32 %v2483, %v2459
      %v2492 = vmul.f32 %v2484, %v2460
      %v2493 = vmul.f32 %v2485, %v2461
      %v2494 = vmul.f32 %v2486, %v2462
      %v2495 = vmul.f32 %v2487, %v2463
      %v2496 = vmul.f32 %v2488, %v2464
      %v2497 = vmul.f32 %v2489, %v2465
      %v2498 = vmul.f32 %v2490, %v2466
      %v2499 = vadd.f32 %v2459, %v2491
      %v2500 = vadd.f32 %v2460, %v2492
      %v2501 = vadd.f32 %v2461, %v2493
      %v2502 = vadd.f32 %v2462, %v2494
      %v2503 = vadd.f32 %v2463, %v2495
      %v2504 = vadd.f32 %v2464, %v2496
      %v2505 = vadd.f32 %v2465, %v2497
      %v2506 = vadd.f32 %v2466, %v2498
      %v2507 = vmul.f32 %v2499, 0.7978846
      %v2508 = vmul.f32 %v2500, 0.7978846
      %v2509 = vmul.f32 %v2501, 0.7978846
      %v2510 = vmul.f32 %v2502, 0.7978846
      %v2511 = vmul.f32 %v2503, 0.7978846
      %v2512 = vmul.f32 %v2504, 0.7978846
      %v2513 = vmul.f32 %v2505, 0.7978846
      %v2514 = vmul.f32 %v2506, 0.7978846
      %v2515 = vtanh.pop %v2507
      %v2516 = vtanh.pop %v2508
      %v2517 = vtanh.pop %v2509
      %v2518 = vtanh.pop %v2510
      %v2519 = vtanh.pop %v2511
      %v2520 = vtanh.pop %v2512
      %v2521 = vtanh.pop %v2513
      %v2522 = vtanh.pop %v2514
      %v2523 = vadd.f32 %v2515, 1.0
      %v2524 = vadd.f32 %v2516, 1.0
      %v2525 = vadd.f32 %v2517, 1.0
      %v2526 = vadd.f32 %v2518, 1.0
      %v2527 = vadd.f32 %v2519, 1.0
      %v2528 = vadd.f32 %v2520, 1.0
      %v2529 = vadd.f32 %v2521, 1.0
      %v2530 = vadd.f32 %v2522, 1.0
      %v2531 = vmul.f32 %v2467, %v2523
      %v2532 = vmul.f32 %v2468, %v2524
      %v2533 = vmul.f32 %v2469, %v2525
      %v2534 = vmul.f32 %v2470, %v2526
      %v2535 = vmul.f32 %v2471, %v2527
      %v2536 = vmul.f32 %v2472, %v2528
      %v2537 = vmul.f32 %v2473, %v2529
      %v2538 = vmul.f32 %v2474, %v2530
      %v2539 = vpack.c.bf16 %v2532, %v2531
      %v2540 = vpack.c.bf16 %v2534, %v2533
      %v2541 = vpack.c.bf16 %v2536, %v2535
      %v2542 = vpack.c.bf16 %v2538, %v2537
      %v2559 = vunpack.c.l.b16 %v2181
      %v2560 = vunpack.c.l.b16 %v2182
      %v2561 = vunpack.c.l.b16 %v2183
      %v2562 = vunpack.c.l.b16 %v2184
      %v2563 = vunpack.c.l.b16 %v2185
      %v2564 = vunpack.c.l.b16 %v2186
      %v2565 = vunpack.c.l.b16 %v2187
      %v2566 = vunpack.c.l.b16 %v2188
      %v2567 = vunpack.c.l.b16 %v2189
      %v2568 = vunpack.c.l.b16 %v2190
      %v2569 = vunpack.c.l.b16 %v2191
      %v2570 = vunpack.c.l.b16 %v2192
      %v2571 = vunpack.c.l.b16 %v2193
      %v2572 = vunpack.c.l.b16 %v2194
      %v2573 = vunpack.c.l.b16 %v2195
      %v2574 = vunpack.c.l.b16 %v2196
      %v2575 = vpack.c.b16 %v2560, %v2559
      %v2576 = vpack.c.b16 %v2562, %v2561
      %v2577 = vpack.c.b16 %v2564, %v2563
      %v2578 = vpack.c.b16 %v2566, %v2565
      %v2579 = vpack.c.b16 %v2568, %v2567
      %v2580 = vpack.c.b16 %v2570, %v2569
      %v2581 = vpack.c.b16 %v2572, %v2571
      %v2582 = vpack.c.b16 %v2574, %v2573
      %2591 = vmatprep.subr.bf16.mxu0 0
      %2592 = vmatpush1.bf16.msra.mxu0 %v2575
      %2593 = vmatprep.subr.bf16.mxu0 0
      %2594 = vmatpush1.bf16.msra.mxu0 %v2576
      %2595 = vmatprep.subr.bf16.mxu0 0
      %2596 = vmatpush1.bf16.msra.mxu0 %v2577
      %2597 = vmatprep.subr.bf16.mxu0 0
      %2598 = vmatpush1.bf16.msra.mxu0 %v2578
      %2599 = vmatprep.subr.bf16.mxu0 0
      %2600 = vmatpush1.bf16.msra.mxu0 %v2579
      %2601 = vmatprep.subr.bf16.mxu0 0
      %2602 = vmatpush1.bf16.msra.mxu0 %v2580
      %2603 = vmatprep.subr.bf16.mxu0 0
      %2604 = vmatpush1.bf16.msra.mxu0 %v2581
      %2605 = vmatprep.subr.bf16.mxu0 0
      %2606 = vmatpush1.bf16.msra.mxu0 %v2582
      %2607 = vmatprep.subr.bf16.mxu0 0
      %2608 = vmatpush1.bf16.msra.mxu0 0
      %2609 = vmatprep.subr.bf16.mxu0 0
      %2610 = vmatpush1.bf16.msra.mxu0 0
      %2611 = vmatprep.subr.bf16.mxu0 0
      %2612 = vmatpush1.bf16.msra.mxu0 0
      %2613 = vmatprep.subr.bf16.mxu0 0
      %2614 = vmatpush1.bf16.msra.mxu0 0
      %2615 = vmatprep.subr.bf16.mxu0 0
      %2616 = vmatpush1.bf16.msra.mxu0 0
      %2617 = vmatprep.subr.bf16.mxu0 0
      %2618 = vmatpush1.bf16.msra.mxu0 0
      %2619 = vmatprep.subr.bf16.mxu0 0
      %2620 = vmatpush1.bf16.msra.mxu0 0
      %2621 = vmatprep.subr.bf16.mxu0 0
      %2622 = vmatpush1.bf16.msra.mxu0 0
      %2623 = vmatprep.mubr.bf16.mxu0 0
      %2624 = vmatmul.mubr.bf16.gmra.mrb[0].mxu0 %v2539
      %v2625 = vpop.f32.mrb[0].mxu0
      %v2626 = vadd.f32 0.0, %v2625
      %v2627 = vpop.f32.mrb[0].mxu0
      %v2628 = vpop.f32.mrb[0].mxu0
      %v2629 = vadd.f32 0.0, %v2628
      %v2630 = vpop.f32.mrb[0].mxu0
      %2631 = vmatprep.mubr.bf16.mxu0 0
      %2632 = vmatmul.mubr.bf16.gmra.mrb[0].mxu0 %v2540
      %v2633 = vpop.f32.mrb[0].mxu0
      %v2634 = vadd.f32 0.0, %v2633
      %v2635 = vpop.f32.mrb[0].mxu0
      %v2636 = vpop.f32.mrb[0].mxu0
      %v2637 = vadd.f32 0.0, %v2636
      %v2638 = vpop.f32.mrb[0].mxu0
      %2639 = vmatprep.mubr.bf16.mxu0 0
      %2640 = vmatmul.mubr.bf16.gmra.mrb[0].mxu0 %v2541
      %v2641 = vpop.f32.mrb[0].mxu0
      %v2642 = vadd.f32 0.0, %v2641
      %v2643 = vpop.f32.mrb[0].mxu0
      %v2644 = vpop.f32.mrb[0].mxu0
      %v2645 = vadd.f32 0.0, %v2644
      %v2646 = vpop.f32.mrb[0].mxu0
      %2647 = vmatprep.mubr.bf16.mxu0 0
      %2648 = vmatmul.mubr.bf16.gmra.mrb[0].mxu0 %v2542
      %v2649 = vpop.f32.mrb[0].mxu0
      %v2650 = vadd.f32 0.0, %v2649
      %v2651 = vpop.f32.mrb[0].mxu0
      %v2652 = vpop.f32.mrb[0].mxu0
      %v2653 = vadd.f32 0.0, %v2652
      %v2654 = vpop.f32.mrb[0].mxu0
      %2655 = vdwg.mxu0
      %v2656 = vadd.f32 %v1932, %v2626
      %v2657 = vadd.f32 %v1933, %v2629
      %v2658 = vadd.f32 %v1934, %v2634
      %v2659 = vadd.f32 %v1935, %v2637
      %v2660 = vadd.f32 %v1936, %v2642
      %v2661 = vadd.f32 %v1937, %v2645
      %v2662 = vadd.f32 %v1938, %v2650
      %v2663 = vadd.f32 %v1939, %v2653
      %v2665 = vlaneseq
      %v2666 = vshrl.u32 %v2665, 7
      %v2667 = vsub.s32 0, %v2666
      %v2668 = vrot.slane %v2197, %v2667
      %v2670 = vadd.f32 %v2656, %v2668
      %v2671 = vadd.f32 %v2657, %v2668
      %v2672 = vadd.f32 %v2658, %v2668
      %v2673 = vadd.f32 %v2659, %v2668
      %v2674 = vadd.f32 %v2660, %v2668
      %v2675 = vadd.f32 %v2661, %v2668
      %v2676 = vadd.f32 %v2662, %v2668
      %v2677 = vadd.f32 %v2663, %v2668
      %v2678 = vpack.c.bf16 %v2671, %v2670
      %v2679 = vpack.c.bf16 %v2673, %v2672
      %v2680 = vpack.c.bf16 %v2675, %v2674
      %v2681 = vpack.c.bf16 %v2677, %v2676
      %v2686 = vunpack.c.l.b16 %v2678
      %v2687 = vunpack.c.h.b16 %v2678
      %v2688 = vunpack.c.l.b16 %v2679
      %v2689 = vunpack.c.h.b16 %v2679
      %v2690 = vunpack.c.l.b16 %v2680
      %v2691 = vunpack.c.h.b16 %v2680
      %v2692 = vunpack.c.l.b16 %v2681
      %v2693 = vunpack.c.h.b16 %v2681
      %v2694 = vpack.c.b16 %v2686, %v2686
      %v2695 = vpack.c.b16 %v2687, %v2687
      %v2696 = vpack.c.b16 %v2688, %v2688
      %v2697 = vpack.c.b16 %v2689, %v2689
      %v2698 = vpack.c.b16 %v2690, %v2690
      %v2699 = vpack.c.b16 %v2691, %v2691
      %v2700 = vpack.c.b16 %v2692, %v2692
      %v2701 = vpack.c.b16 %v2693, %v2693
      %vm2710 = vcmask 257024
      %2711 = vst.msk [vmem:[%s602] sm:$0xf] %vm2710, %v2694
      %2712 = vst.msk [vmem:[%s602 + $0x4] sm:$0xf] %vm2710, %v2695
      %2713 = vst.msk [vmem:[%s602 + $0x8] sm:$0xf] %vm2710, %v2696
      %2714 = vst.msk [vmem:[%s602 + $0xc] sm:$0xf] %vm2710, %v2697
      %2715 = vst.msk [vmem:[%s602 + $0x10] sm:$0xf] %vm2710, %v2698
      %2716 = vst.msk [vmem:[%s602 + $0x14] sm:$0xf] %vm2710, %v2699
      %2717 = vst.msk [vmem:[%s602 + $0x18] sm:$0xf] %vm2710, %v2700
      %2718 = vst.msk [vmem:[%s602 + $0x1c] sm:$0xf] %vm2710, %v2701
      %p2719 = scmp.lt.s32.totalorder %s30, 1
      %s2720 = scalar_select %p2719, %s30, 1
      %s2721 = smul.addr %s2720, 8
      %s2722 = smul.addr %s2721, 4
      %s2723 = scalar_lea.vmem %s19, %s2722
      // Predicated region
      $region97: #{dpvt_forward.4} parent=95 // pred_check
        %p2724 = pneg %p452
      $region98: #{dpvt_forward.4} parent=95 // pred_check_branch
        %2726 = sbr.rel (%p2724) target = $region100
      $region99: #{dpvt_forward.4} parent=95 // pred_region
        _
      $region100: #{dpvt_forward.4} parent=95 // pred_fallthru
        _
    $region96: #{dpvt_forward.4} parent=5 // pred_fallthru
      _
    %p2727 = scmp.le.s32.totalorder 2, %s25
    // Predicated region
    $region101: #{dpvt_forward.4} parent=5 // pred_check
      %p2728 = pneg %p2727
    $region102: #{dpvt_forward.4} parent=5 // pred_check_branch
      %2730 = sbr.rel (%p2728) target = $region104
    $region103: #{dpvt_forward.4} parent=5 // pred_region
      %s2731 = ssub.s32 %s25, 2
      // Predicated region
      $region105: #{dpvt_forward.4} parent=103 // pred_check
        %p2732 = pneg %p458
      $region106: #{dpvt_forward.4} parent=103 // pred_check_branch
        %2734 = sbr.rel (%p2732) target = $region108
      $region107: #{dpvt_forward.4} parent=103 // pred_region
        %p2735 = scmp.lt.s32.totalorder %s31, 1
        %s2736 = scalar_select %p2735, %s31, 1
        %s2737 = smul.addr %s2736, 8
        %s2738 = smul.addr %s2737, 4
        %s2739 = scalar_lea.vmem %s19, %s2738
      $region108: #{dpvt_forward.4} parent=103 // pred_fallthru
        _
    $region104: #{dpvt_forward.4} parent=5 // pred_fallthru
      _
  $region6: #{dpvt_forward.4} parent=0 // loop_footer
    %s29 = sadd.s32 1, %s25
  $region7: #{dpvt_forward.4} parent=0 // loop_footer_branch
    %24 = sbr.rel target = $region3
  $region8: #{dpvt_forward.4} parent=0 // loop_exit
    _

</llo_original>
